<compile_context>
chip_gen: v5e
topology: v5e:2x2
jax: 0.10.0
libtpu: 0.0.40
codegen_flags: <defaults>
</compile_context>

<pallas_src>
import functools

import jax
import jax.numpy as jnp
from jax.experimental import pallas as pl
from jax.experimental.pallas import tpu as pltpu

# ----------------------------- small config -----------------------------
T = 8                 # number of frames (the "batch" dim of the PyTorch input)
C_IN = 4              # input channels
HW = 16               # spatial size
KH = KW = 3           # conv kernel
N_FEATURES = 128      # per-frame feature size produced by the stand-in CNN
RNN_HIDDEN = 128      # LSTM hidden size (PyTorch module default rnn_hidden_size=128)
NUM_CLASSES = 2
K_PAD = 128           # im2col contraction dim (KH*KW*C_IN = 36) padded lane-dense


# ----------------------------- fused kernel -----------------------------
def _rcnn_kernel(patches_ref, wconv_ref, bconv_ref,
                 wih1_ref, b1_ref,
                 wcomb_ref, b2_ref, wfc_ref, bfc_ref,
                 out_ref, *, seq_len, frame_pixels, hidden):
    H = hidden
    H4 = 4 * H
    f32 = jnp.float32
    bf16 = jnp.bfloat16

    bconv = bconv_ref[...]                                   # (1, F)   tiny
    b1 = b1_ref[...]                                         # (1, 4H)  tiny

    # ---- per-frame CNN stand-in + layer-1 input projection --------------
    # Independent across frames and of the recurrence below except through
    # x1[t]; everything lives in one basic block so the scheduler overlaps
    # frame t+1's MXU work with step t's gate VPU/EUP work.
    x1 = []
    for t in range(seq_len):
        p_t = patches_ref[t * frame_pixels:(t + 1) * frame_pixels, :]     # (FP, K) bf16
        conv_t = jnp.dot(p_t, wconv_ref[...],
                         preferred_element_type=f32)                      # (FP, F) f32
        conv_t = jnp.maximum(conv_t + bconv, 0.0)                         # bias + ReLU
        feat_t = jnp.mean(conv_t, axis=0, keepdims=True)                  # (1, F) GAP
        x1.append(jnp.dot(feat_t.astype(bf16), wih1_ref[...],
                          preferred_element_type=f32) + b1)               # (1, 4H)

    def lstm_gates(g, c):
        # PyTorch LSTM gate order: i, f, g, o (all slices on 128-lane boundaries)
        i = jax.nn.sigmoid(g[:, 0 * H:1 * H])
        f = jax.nn.sigmoid(g[:, 1 * H:2 * H])
        gg = jnp.tanh(g[:, 2 * H:3 * H])
        o = jax.nn.sigmoid(g[:, 3 * H:4 * H])
        c_new = f * c + i * gg
        return o * jnp.tanh(c_new), c_new

    # ---- bootstrap: layer-1 step 0 (h1(-1)=0 -> recurrent term is zero) ----
    h1_0, c1_0 = lstm_gates(x1[0], jnp.zeros((1, H), f32))
    h_flat = jnp.concatenate([h1_0, jnp.zeros((1, H), f32)], axis=1)      # [h1(0), h2(-1)]
    c_stack = jnp.concatenate([c1_0, jnp.zeros((1, H), f32)], axis=0)     # [c1(0); c2(-1)]

    # ---- skew-fused recurrence: ONE matmul per step on the serial chain ----
    # wcomb = [[whh1, wih2], [0, whh2]]  (2H, 8H):
    #   combined[:, :4H] = h1(t) @ whh1                   -> g1(t+1) recurrent part
    #   combined[:, 4H:] = h1(t) @ wih2 + h2(t-1) @ whh2  -> g2(t) pre-bias
    h2_final = None
    for t in range(seq_len):
        combined = jnp.dot(h_flat.astype(bf16), wcomb_ref[...],
                           preferred_element_type=f32)                    # (1, 8H)
        b2 = b2_ref[...]
        if t + 1 < seq_len:
            # layer-2(t) and layer-1(t+1) gates stacked on sublanes -> one pass
            g_stack = jnp.concatenate([combined[:, :H4] + x1[t + 1],      # g1(t+1)
                                       combined[:, H4:] + b2], axis=0)    # g2(t)
            h_stack, c_stack = lstm_gates(g_stack, c_stack)               # (2, H)
            h_flat = jnp.concatenate([h_stack[0:1, :],                    # h1(t+1)
                                      h_stack[1:2, :]], axis=1)           # h2(t)
        else:
            g2 = combined[:, H4:] + b2
            h2_final, _ = lstm_gates(g2, c_stack[1:2, :])                 # h2(T-1)

    # ---- FC + softmax on the final top-layer hidden state (f32) ----------
    logits = jnp.dot(h2_final, wfc_ref[...],
                     preferred_element_type=f32) + bfc_ref[...]           # (1, C)
    m = jnp.max(logits, axis=1, keepdims=True)
    e = jnp.exp(logits - m)
    out_ref[...] = e * pl.reciprocal(jnp.sum(e, axis=1, keepdims=True),
                                     approx=True)


# ------------------------------ wrappers ------------------------------
def _im2col_nchw(x_nchw):
    """NCHW frames -> lane-padded im2col patches (T*H*W, K_PAD), f32."""
    x = jnp.transpose(x_nchw, (0, 2, 3, 1))                      # NCHW -> NHWC
    Tn, Hh, Ww, C = x.shape
    xp = jnp.pad(x, ((0, 0), (1, 1), (1, 1), (0, 0)))            # 'same' padding
    cols = [xp[:, kh:kh + Hh, kw:kw + Ww, :]
            for kh in range(KH) for kw in range(KW)]
    patches = jnp.concatenate(cols, axis=-1).reshape(Tn * Hh * Ww, KH * KW * C)
    # Explicit zero pad of the contraction lanes: the matching conv-weight rows
    # are zero, and zero*zero keeps the padded region inert (never garbage).
    return jnp.pad(patches, ((0, 0), (0, K_PAD - KH * KW * C)))


def _prep_conv_w(conv_w):
    """(KH, KW, C_IN, F) -> zero-row-padded (K_PAD, F) matmul weight."""
    wmat = conv_w.reshape(KH * KW * C_IN, conv_w.shape[-1])
    return jnp.pad(wmat, ((0, K_PAD - wmat.shape[0]), (0, 0)))


def prepare_params(params):
    """One-time, out of the per-call jit path: fuse/pad/cast kernel weights."""
    H = RNN_HIDDEN
    H4 = 4 * H
    wconv = _prep_conv_w(params["conv_w"]).astype(jnp.bfloat16)           # (K_PAD, F)
    top = jnp.concatenate([params["whh1"], params["wih2"]], axis=1)       # (H, 8H)
    bot = jnp.concatenate([jnp.zeros((H, H4), jnp.float32),
                           params["whh2"]], axis=1)                       # (H, 8H)
    wcomb = jnp.concatenate([top, bot], axis=0).astype(jnp.bfloat16)      # (2H, 8H)
    return {
        "wconv": wconv,
        "bconv": params["conv_b"],
        "wih1": params["wih1"].astype(jnp.bfloat16),
        "b1": params["b1"],
        "wcomb": wcomb,
        "b2": params["b2"],
        "wfc": params["wfc"],     # final classifier kept f32 (tiny, accuracy)
        "bfc": params["bfc"],
    }


@jax.jit
def rcnn_forward(x, kparams):
    Tn, _, Hh, Ww = x.shape
    patches = _im2col_nchw(x).astype(jnp.bfloat16)                        # (T*H*W, K_PAD)

    kernel = functools.partial(_rcnn_kernel, seq_len=Tn,
                               frame_pixels=Hh * Ww, hidden=RNN_HIDDEN)
    vmem = pl.BlockSpec(memory_space=pltpu.MemorySpace.VMEM)
    return pl.pallas_call(
        kernel,
        out_shape=jax.ShapeDtypeStruct((1, NUM_CLASSES), jnp.float32),
        in_specs=[vmem] * 9,
        out_specs=vmem,
    )(patches, kparams["wconv"], kparams["bconv"],
      kparams["wih1"], kparams["b1"],
      kparams["wcomb"], kparams["b2"],
      kparams["wfc"], kparams["bfc"])


# --------------------------- pure-JAX reference ---------------------------
_hdot = functools.partial(jnp.dot, precision=jax.lax.Precision.HIGHEST)


def rcnn_reference(x, params):
    patches = _im2col_nchw(x)
    wconv = _prep_conv_w(params["conv_w"])
    conv = jnp.maximum(_hdot(patches, wconv) + params["conv_b"], 0.0)
    feats = conv.reshape(T, HW * HW, N_FEATURES).mean(axis=1)

    H = RNN_HIDDEN

    def cell(x_t, h, c, wih, whh, b):
        g = _hdot(x_t, wih) + _hdot(h, whh) + b
        i = jax.nn.sigmoid(g[:, 0 * H:1 * H])
        f = jax.nn.sigmoid(g[:, 1 * H:2 * H])
        gg = jnp.tanh(g[:, 2 * H:3 * H])
        o = jax.nn.sigmoid(g[:, 3 * H:4 * H])
        c = f * c + i * gg
        return o * jnp.tanh(c), c

    z = jnp.zeros((1, H), jnp.float32)
    h1, c1, h2, c2 = z, z, z, z
    for t in range(T):
        h1, c1 = cell(feats[t:t + 1], h1, c1,
                      params["wih1"], params["whh1"], params["b1"])
        h2, c2 = cell(h1, h2, c2,
                      params["wih2"], params["whh2"], params["b2"])
    logits = _hdot(h2, params["wfc"]) + params["bfc"]
    return jax.nn.softmax(logits, axis=1)


# ------------------------------ params ------------------------------
def init_params(key):
    ks = jax.random.split(key, 9)
    H4 = 4 * RNN_HIDDEN
    s = 0.1
    return {
        "conv_w": s * jax.random.normal(ks[0], (KH, KW, C_IN, N_FEATURES), jnp.float32),
        "conv_b": s * jax.random.normal(ks[1], (1, N_FEATURES), jnp.float32),
        # layer-1 LSTM weights (stored transposed: x @ W_ih^T, h @ W_hh^T)
        "wih1": s * jax.random.normal(ks[2], (N_FEATURES, H4), jnp.float32),
        "whh1": s * jax.random.normal(ks[3], (RNN_HIDDEN, H4), jnp.float32),
        "b1":   s * jax.random.normal(ks[4], (1, H4), jnp.float32),   # b_ih + b_hh
        # layer-2 LSTM weights
        "wih2": s * jax.random.normal(ks[5], (RNN_HIDDEN, H4), jnp.float32),
        "whh2": s * jax.random.normal(ks[6], (RNN_HIDDEN, H4), jnp.float32),
        "b2":   s * jax.random.normal(ks[7], (1, H4), jnp.float32),
        # final classifier (stored transposed) + bias
        "wfc":  s * jax.random.normal(ks[8], (RNN_HIDDEN, NUM_CLASSES), jnp.float32),
        "bfc":  jnp.zeros((1, NUM_CLASSES), jnp.float32),
    }


if __name__ == "__main__":
    key = jax.random.PRNGKey(0)
    k_x, k_p = jax.random.split(key)
    x = jax.random.normal(k_x, (T, C_IN, HW, HW), jnp.float32)   # sequence of NCHW frames
    params = init_params(k_p)
    kparams = prepare_params(params)                              # one-time weight prep

    out = jax.block_until_ready(rcnn_forward(x, kparams))
    ref = jax.block_until_ready(rcnn_reference(x, params))

    assert out.shape == (1, NUM_CLASSES)
    assert jnp.isfinite(out).all()
    assert abs(float(out.sum()) - 1.0) < 1e-2            # softmax row sums to ~1
    # bf16 MXU operands in the kernel vs f32 HIGHEST reference -> loosened tol.
    assert float(jnp.max(jnp.abs(out - ref))) < 2e-2
    print("KERNEL_OK")
</pallas_src>

<mosaic_0001>
module attributes {stable_mosaic.version = 11 : i64} {
  func.func @_rcnn_kernel(%arg0: memref<2048x128xbf16, #tpu.memory_space<vmem>>, %arg1: memref<128x128xbf16, #tpu.memory_space<vmem>>, %arg2: memref<1x128xf32, #tpu.memory_space<vmem>>, %arg3: memref<128x512xbf16, #tpu.memory_space<vmem>>, %arg4: memref<1x512xf32, #tpu.memory_space<vmem>>, %arg5: memref<256x1024xbf16, #tpu.memory_space<vmem>>, %arg6: memref<1x512xf32, #tpu.memory_space<vmem>>, %arg7: memref<128x2xf32, #tpu.memory_space<vmem>>, %arg8: memref<1x2xf32, #tpu.memory_space<vmem>>, %arg9: memref<1x2xf32, #tpu.memory_space<vmem>>) attributes {dimension_semantics = [], scalar_prefetch = 0 : i64, scratch_operands = 0 : i64, tpu.core_type = #tpu.core_type<tc>} {
    %c0 = arith.constant 0 : index
    %c0_0 = arith.constant 0 : index
    %0 = vector.load %arg2[%c0, %c0_0] : memref<1x128xf32, #tpu.memory_space<vmem>>, vector<1x128xf32>
    %c0_1 = arith.constant 0 : index
    %c0_2 = arith.constant 0 : index
    %1 = vector.load %arg4[%c0_1, %c0_2] : memref<1x512xf32, #tpu.memory_space<vmem>>, vector<1x512xf32>
    %c0_3 = arith.constant 0 : index
    %c0_4 = arith.constant 0 : index
    %2 = vector.load %arg0[%c0_3, %c0_4] : memref<2048x128xbf16, #tpu.memory_space<vmem>>, vector<256x128xbf16>
    %c0_5 = arith.constant 0 : index
    %c0_6 = arith.constant 0 : index
    %3 = vector.load %arg1[%c0_5, %c0_6] : memref<128x128xbf16, #tpu.memory_space<vmem>>, vector<128x128xbf16>
    %cst = arith.constant dense<0.000000e+00> : vector<256x128xf32>
    %4 = tpu.matmul %2, %3, %cst {dimension_numbers = #tpu.dot_dimension_numbers<[1], [0], [0], [1], [0, 0, 1, 1], [], []>} : vector<256x128xbf16>, vector<128x128xbf16>, vector<256x128xf32> -> vector<256x128xf32>
    %5 = vector.broadcast %0 : vector<1x128xf32> to vector<256x128xf32>
    %6 = arith.addf %4, %5 : vector<256x128xf32>
    %cst_7 = arith.constant 0.000000e+00 : f32
    %7 = vector.broadcast %cst_7 : f32 to vector<256x128xf32>
    %8 = arith.maximumf %6, %7 : vector<256x128xf32>
    %cst_8 = arith.constant dense<0.000000e+00> : vector<128xf32>
    %9 = vector.multi_reduction <add>, %8, %cst_8 [0] : vector<256x128xf32> to vector<128xf32>
    %10 = vector.shape_cast %9 : vector<128xf32> to vector<1x128xf32>
    %cst_9 = arith.constant 2.560000e+02 : f32
    %11 = vector.broadcast %cst_9 : f32 to vector<1x128xf32>
    %12 = arith.divf %10, %11 : vector<1x128xf32>
    %13 = arith.truncf %12 : vector<1x128xf32> to vector<1x128xbf16>
    %c0_10 = arith.constant 0 : index
    %c0_11 = arith.constant 0 : index
    %14 = vector.load %arg3[%c0_10, %c0_11] : memref<128x512xbf16, #tpu.memory_space<vmem>>, vector<128x512xbf16>
    %cst_12 = arith.constant dense<0.000000e+00> : vector<1x512xf32>
    %15 = tpu.matmul %13, %14, %cst_12 {dimension_numbers = #tpu.dot_dimension_numbers<[1], [0], [0], [1], [0, 0, 1, 1], [], []>} : vector<1x128xbf16>, vector<128x512xbf16>, vector<1x512xf32> -> vector<1x512xf32>
    %16 = arith.addf %15, %1 : vector<1x512xf32>
    %c256 = arith.constant 256 : index
    %c0_13 = arith.constant 0 : index
    %17 = vector.load %arg0[%c256, %c0_13] : memref<2048x128xbf16, #tpu.memory_space<vmem>>, vector<256x128xbf16>
    %c0_14 = arith.constant 0 : index
    %c0_15 = arith.constant 0 : index
    %18 = vector.load %arg1[%c0_14, %c0_15] : memref<128x128xbf16, #tpu.memory_space<vmem>>, vector<128x128xbf16>
    %cst_16 = arith.constant dense<0.000000e+00> : vector<256x128xf32>
    %19 = tpu.matmul %17, %18, %cst_16 {dimension_numbers = #tpu.dot_dimension_numbers<[1], [0], [0], [1], [0, 0, 1, 1], [], []>} : vector<256x128xbf16>, vector<128x128xbf16>, vector<256x128xf32> -> vector<256x128xf32>
    %20 = vector.broadcast %0 : vector<1x128xf32> to vector<256x128xf32>
    %21 = arith.addf %19, %20 : vector<256x128xf32>
    %cst_17 = arith.constant 0.000000e+00 : f32
    %22 = vector.broadcast %cst_17 : f32 to vector<256x128xf32>
    %23 = arith.maximumf %21, %22 : vector<256x128xf32>
    %cst_18 = arith.constant dense<0.000000e+00> : vector<128xf32>
    %24 = vector.multi_reduction <add>, %23, %cst_18 [0] : vector<256x128xf32> to vector<128xf32>
    %25 = vector.shape_cast %24 : vector<128xf32> to vector<1x128xf32>
    %cst_19 = arith.constant 2.560000e+02 : f32
    %26 = vector.broadcast %cst_19 : f32 to vector<1x128xf32>
    %27 = arith.divf %25, %26 : vector<1x128xf32>
    %28 = arith.truncf %27 : vector<1x128xf32> to vector<1x128xbf16>
    %c0_20 = arith.constant 0 : index
    %c0_21 = arith.constant 0 : index
    %29 = vector.load %arg3[%c0_20, %c0_21] : memref<128x512xbf16, #tpu.memory_space<vmem>>, vector<128x512xbf16>
    %cst_22 = arith.constant dense<0.000000e+00> : vector<1x512xf32>
    %30 = tpu.matmul %28, %29, %cst_22 {dimension_numbers = #tpu.dot_dimension_numbers<[1], [0], [0], [1], [0, 0, 1, 1], [], []>} : vector<1x128xbf16>, vector<128x512xbf16>, vector<1x512xf32> -> vector<1x512xf32>
    %31 = arith.addf %30, %1 : vector<1x512xf32>
    %c512 = arith.constant 512 : index
    %c0_23 = arith.constant 0 : index
    %32 = vector.load %arg0[%c512, %c0_23] : memref<2048x128xbf16, #tpu.memory_space<vmem>>, vector<256x128xbf16>
    %c0_24 = arith.constant 0 : index
    %c0_25 = arith.constant 0 : index
    %33 = vector.load %arg1[%c0_24, %c0_25] : memref<128x128xbf16, #tpu.memory_space<vmem>>, vector<128x128xbf16>
    %cst_26 = arith.constant dense<0.000000e+00> : vector<256x128xf32>
    %34 = tpu.matmul %32, %33, %cst_26 {dimension_numbers = #tpu.dot_dimension_numbers<[1], [0], [0], [1], [0, 0, 1, 1], [], []>} : vector<256x128xbf16>, vector<128x128xbf16>, vector<256x128xf32> -> vector<256x128xf32>
    %35 = vector.broadcast %0 : vector<1x128xf32> to vector<256x128xf32>
    %36 = arith.addf %34, %35 : vector<256x128xf32>
    %cst_27 = arith.constant 0.000000e+00 : f32
    %37 = vector.broadcast %cst_27 : f32 to vector<256x128xf32>
    %38 = arith.maximumf %36, %37 : vector<256x128xf32>
    %cst_28 = arith.constant dense<0.000000e+00> : vector<128xf32>
    %39 = vector.multi_reduction <add>, %38, %cst_28 [0] : vector<256x128xf32> to vector<128xf32>
    %40 = vector.shape_cast %39 : vector<128xf32> to vector<1x128xf32>
    %cst_29 = arith.constant 2.560000e+02 : f32
    %41 = vector.broadcast %cst_29 : f32 to vector<1x128xf32>
    %42 = arith.divf %40, %41 : vector<1x128xf32>
    %43 = arith.truncf %42 : vector<1x128xf32> to vector<1x128xbf16>
    %c0_30 = arith.constant 0 : index
    %c0_31 = arith.constant 0 : index
    %44 = vector.load %arg3[%c0_30, %c0_31] : memref<128x512xbf16, #tpu.memory_space<vmem>>, vector<128x512xbf16>
    %cst_32 = arith.constant dense<0.000000e+00> : vector<1x512xf32>
    %45 = tpu.matmul %43, %44, %cst_32 {dimension_numbers = #tpu.dot_dimension_numbers<[1], [0], [0], [1], [0, 0, 1, 1], [], []>} : vector<1x128xbf16>, vector<128x512xbf16>, vector<1x512xf32> -> vector<1x512xf32>
    %46 = arith.addf %45, %1 : vector<1x512xf32>
    %c768 = arith.constant 768 : index
    %c0_33 = arith.constant 0 : index
    %47 = vector.load %arg0[%c768, %c0_33] : memref<2048x128xbf16, #tpu.memory_space<vmem>>, vector<256x128xbf16>
    %c0_34 = arith.constant 0 : index
    %c0_35 = arith.constant 0 : index
    %48 = vector.load %arg1[%c0_34, %c0_35] : memref<128x128xbf16, #tpu.memory_space<vmem>>, vector<128x128xbf16>
    %cst_36 = arith.constant dense<0.000000e+00> : vector<256x128xf32>
    %49 = tpu.matmul %47, %48, %cst_36 {dimension_numbers = #tpu.dot_dimension_numbers<[1], [0], [0], [1], [0, 0, 1, 1], [], []>} : vector<256x128xbf16>, vector<128x128xbf16>, vector<256x128xf32> -> vector<256x128xf32>
    %50 = vector.broadcast %0 : vector<1x128xf32> to vector<256x128xf32>
    %51 = arith.addf %49, %50 : vector<256x128xf32>
    %cst_37 = arith.constant 0.000000e+00 : f32
    %52 = vector.broadcast %cst_37 : f32 to vector<256x128xf32>
    %53 = arith.maximumf %51, %52 : vector<256x128xf32>
    %cst_38 = arith.constant dense<0.000000e+00> : vector<128xf32>
    %54 = vector.multi_reduction <add>, %53, %cst_38 [0] : vector<256x128xf32> to vector<128xf32>
    %55 = vector.shape_cast %54 : vector<128xf32> to vector<1x128xf32>
    %cst_39 = arith.constant 2.560000e+02 : f32
    %56 = vector.broadcast %cst_39 : f32 to vector<1x128xf32>
    %57 = arith.divf %55, %56 : vector<1x128xf32>
    %58 = arith.truncf %57 : vector<1x128xf32> to vector<1x128xbf16>
    %c0_40 = arith.constant 0 : index
    %c0_41 = arith.constant 0 : index
    %59 = vector.load %arg3[%c0_40, %c0_41] : memref<128x512xbf16, #tpu.memory_space<vmem>>, vector<128x512xbf16>
    %cst_42 = arith.constant dense<0.000000e+00> : vector<1x512xf32>
    %60 = tpu.matmul %58, %59, %cst_42 {dimension_numbers = #tpu.dot_dimension_numbers<[1], [0], [0], [1], [0, 0, 1, 1], [], []>} : vector<1x128xbf16>, vector<128x512xbf16>, vector<1x512xf32> -> vector<1x512xf32>
    %61 = arith.addf %60, %1 : vector<1x512xf32>
    %c1024 = arith.constant 1024 : index
    %c0_43 = arith.constant 0 : index
    %62 = vector.load %arg0[%c1024, %c0_43] : memref<2048x128xbf16, #tpu.memory_space<vmem>>, vector<256x128xbf16>
    %c0_44 = arith.constant 0 : index
    %c0_45 = arith.constant 0 : index
    %63 = vector.load %arg1[%c0_44, %c0_45] : memref<128x128xbf16, #tpu.memory_space<vmem>>, vector<128x128xbf16>
    %cst_46 = arith.constant dense<0.000000e+00> : vector<256x128xf32>
    %64 = tpu.matmul %62, %63, %cst_46 {dimension_numbers = #tpu.dot_dimension_numbers<[1], [0], [0], [1], [0, 0, 1, 1], [], []>} : vector<256x128xbf16>, vector<128x128xbf16>, vector<256x128xf32> -> vector<256x128xf32>
    %65 = vector.broadcast %0 : vector<1x128xf32> to vector<256x128xf32>
    %66 = arith.addf %64, %65 : vector<256x128xf32>
    %cst_47 = arith.constant 0.000000e+00 : f32
    %67 = vector.broadcast %cst_47 : f32 to vector<256x128xf32>
    %68 = arith.maximumf %66, %67 : vector<256x128xf32>
    %cst_48 = arith.constant dense<0.000000e+00> : vector<128xf32>
    %69 = vector.multi_reduction <add>, %68, %cst_48 [0] : vector<256x128xf32> to vector<128xf32>
    %70 = vector.shape_cast %69 : vector<128xf32> to vector<1x128xf32>
    %cst_49 = arith.constant 2.560000e+02 : f32
    %71 = vector.broadcast %cst_49 : f32 to vector<1x128xf32>
    %72 = arith.divf %70, %71 : vector<1x128xf32>
    %73 = arith.truncf %72 : vector<1x128xf32> to vector<1x128xbf16>
    %c0_50 = arith.constant 0 : index
    %c0_51 = arith.constant 0 : index
    %74 = vector.load %arg3[%c0_50, %c0_51] : memref<128x512xbf16, #tpu.memory_space<vmem>>, vector<128x512xbf16>
    %cst_52 = arith.constant dense<0.000000e+00> : vector<1x512xf32>
    %75 = tpu.matmul %73, %74, %cst_52 {dimension_numbers = #tpu.dot_dimension_numbers<[1], [0], [0], [1], [0, 0, 1, 1], [], []>} : vector<1x128xbf16>, vector<128x512xbf16>, vector<1x512xf32> -> vector<1x512xf32>
    %76 = arith.addf %75, %1 : vector<1x512xf32>
    %c1280 = arith.constant 1280 : index
    %c0_53 = arith.constant 0 : index
    %77 = vector.load %arg0[%c1280, %c0_53] : memref<2048x128xbf16, #tpu.memory_space<vmem>>, vector<256x128xbf16>
    %c0_54 = arith.constant 0 : index
    %c0_55 = arith.constant 0 : index
    %78 = vector.load %arg1[%c0_54, %c0_55] : memref<128x128xbf16, #tpu.memory_space<vmem>>, vector<128x128xbf16>
    %cst_56 = arith.constant dense<0.000000e+00> : vector<256x128xf32>
    %79 = tpu.matmul %77, %78, %cst_56 {dimension_numbers = #tpu.dot_dimension_numbers<[1], [0], [0], [1], [0, 0, 1, 1], [], []>} : vector<256x128xbf16>, vector<128x128xbf16>, vector<256x128xf32> -> vector<256x128xf32>
    %80 = vector.broadcast %0 : vector<1x128xf32> to vector<256x128xf32>
    %81 = arith.addf %79, %80 : vector<256x128xf32>
    %cst_57 = arith.constant 0.000000e+00 : f32
    %82 = vector.broadcast %cst_57 : f32 to vector<256x128xf32>
    %83 = arith.maximumf %81, %82 : vector<256x128xf32>
    %cst_58 = arith.constant dense<0.000000e+00> : vector<128xf32>
    %84 = vector.multi_reduction <add>, %83, %cst_58 [0] : vector<256x128xf32> to vector<128xf32>
    %85 = vector.shape_cast %84 : vector<128xf32> to vector<1x128xf32>
    %cst_59 = arith.constant 2.560000e+02 : f32
    %86 = vector.broadcast %cst_59 : f32 to vector<1x128xf32>
    %87 = arith.divf %85, %86 : vector<1x128xf32>
    %88 = arith.truncf %87 : vector<1x128xf32> to vector<1x128xbf16>
    %c0_60 = arith.constant 0 : index
    %c0_61 = arith.constant 0 : index
    %89 = vector.load %arg3[%c0_60, %c0_61] : memref<128x512xbf16, #tpu.memory_space<vmem>>, vector<128x512xbf16>
    %cst_62 = arith.constant dense<0.000000e+00> : vector<1x512xf32>
    %90 = tpu.matmul %88, %89, %cst_62 {dimension_numbers = #tpu.dot_dimension_numbers<[1], [0], [0], [1], [0, 0, 1, 1], [], []>} : vector<1x128xbf16>, vector<128x512xbf16>, vector<1x512xf32> -> vector<1x512xf32>
    %91 = arith.addf %90, %1 : vector<1x512xf32>
    %c1536 = arith.constant 1536 : index
    %c0_63 = arith.constant 0 : index
    %92 = vector.load %arg0[%c1536, %c0_63] : memref<2048x128xbf16, #tpu.memory_space<vmem>>, vector<256x128xbf16>
    %c0_64 = arith.constant 0 : index
    %c0_65 = arith.constant 0 : index
    %93 = vector.load %arg1[%c0_64, %c0_65] : memref<128x128xbf16, #tpu.memory_space<vmem>>, vector<128x128xbf16>
    %cst_66 = arith.constant dense<0.000000e+00> : vector<256x128xf32>
    %94 = tpu.matmul %92, %93, %cst_66 {dimension_numbers = #tpu.dot_dimension_numbers<[1], [0], [0], [1], [0, 0, 1, 1], [], []>} : vector<256x128xbf16>, vector<128x128xbf16>, vector<256x128xf32> -> vector<256x128xf32>
    %95 = vector.broadcast %0 : vector<1x128xf32> to vector<256x128xf32>
    %96 = arith.addf %94, %95 : vector<256x128xf32>
    %cst_67 = arith.constant 0.000000e+00 : f32
    %97 = vector.broadcast %cst_67 : f32 to vector<256x128xf32>
    %98 = arith.maximumf %96, %97 : vector<256x128xf32>
    %cst_68 = arith.constant dense<0.000000e+00> : vector<128xf32>
    %99 = vector.multi_reduction <add>, %98, %cst_68 [0] : vector<256x128xf32> to vector<128xf32>
    %100 = vector.shape_cast %99 : vector<128xf32> to vector<1x128xf32>
    %cst_69 = arith.constant 2.560000e+02 : f32
    %101 = vector.broadcast %cst_69 : f32 to vector<1x128xf32>
    %102 = arith.divf %100, %101 : vector<1x128xf32>
    %103 = arith.truncf %102 : vector<1x128xf32> to vector<1x128xbf16>
    %c0_70 = arith.constant 0 : index
    %c0_71 = arith.constant 0 : index
    %104 = vector.load %arg3[%c0_70, %c0_71] : memref<128x512xbf16, #tpu.memory_space<vmem>>, vector<128x512xbf16>
    %cst_72 = arith.constant dense<0.000000e+00> : vector<1x512xf32>
    %105 = tpu.matmul %103, %104, %cst_72 {dimension_numbers = #tpu.dot_dimension_numbers<[1], [0], [0], [1], [0, 0, 1, 1], [], []>} : vector<1x128xbf16>, vector<128x512xbf16>, vector<1x512xf32> -> vector<1x512xf32>
    %106 = arith.addf %105, %1 : vector<1x512xf32>
    %c1792 = arith.constant 1792 : index
    %c0_73 = arith.constant 0 : index
    %107 = vector.load %arg0[%c1792, %c0_73] : memref<2048x128xbf16, #tpu.memory_space<vmem>>, vector<256x128xbf16>
    %c0_74 = arith.constant 0 : index
    %c0_75 = arith.constant 0 : index
    %108 = vector.load %arg1[%c0_74, %c0_75] : memref<128x128xbf16, #tpu.memory_space<vmem>>, vector<128x128xbf16>
    %cst_76 = arith.constant dense<0.000000e+00> : vector<256x128xf32>
    %109 = tpu.matmul %107, %108, %cst_76 {dimension_numbers = #tpu.dot_dimension_numbers<[1], [0], [0], [1], [0, 0, 1, 1], [], []>} : vector<256x128xbf16>, vector<128x128xbf16>, vector<256x128xf32> -> vector<256x128xf32>
    %110 = vector.broadcast %0 : vector<1x128xf32> to vector<256x128xf32>
    %111 = arith.addf %109, %110 : vector<256x128xf32>
    %cst_77 = arith.constant 0.000000e+00 : f32
    %112 = vector.broadcast %cst_77 : f32 to vector<256x128xf32>
    %113 = arith.maximumf %111, %112 : vector<256x128xf32>
    %cst_78 = arith.constant dense<0.000000e+00> : vector<128xf32>
    %114 = vector.multi_reduction <add>, %113, %cst_78 [0] : vector<256x128xf32> to vector<128xf32>
    %115 = vector.shape_cast %114 : vector<128xf32> to vector<1x128xf32>
    %cst_79 = arith.constant 2.560000e+02 : f32
    %116 = vector.broadcast %cst_79 : f32 to vector<1x128xf32>
    %117 = arith.divf %115, %116 : vector<1x128xf32>
    %118 = arith.truncf %117 : vector<1x128xf32> to vector<1x128xbf16>
    %c0_80 = arith.constant 0 : index
    %c0_81 = arith.constant 0 : index
    %119 = vector.load %arg3[%c0_80, %c0_81] : memref<128x512xbf16, #tpu.memory_space<vmem>>, vector<128x512xbf16>
    %cst_82 = arith.constant dense<0.000000e+00> : vector<1x512xf32>
    %120 = tpu.matmul %118, %119, %cst_82 {dimension_numbers = #tpu.dot_dimension_numbers<[1], [0], [0], [1], [0, 0, 1, 1], [], []>} : vector<1x128xbf16>, vector<128x512xbf16>, vector<1x512xf32> -> vector<1x512xf32>
    %121 = arith.addf %120, %1 : vector<1x512xf32>
    %cst_83 = arith.constant 0.000000e+00 : f32
    %122 = vector.broadcast %cst_83 : f32 to vector<1x128xf32>
    %123 = vector.extract_strided_slice %16 {offsets = [0, 0], sizes = [1, 128], strides = [1, 1]} : vector<1x512xf32> to vector<1x128xf32>
    %124 = arith.negf %123 : vector<1x128xf32>
    %125 = math.exp %124 : vector<1x128xf32>
    %cst_84 = arith.constant 1.000000e+00 : f32
    %126 = vector.broadcast %cst_84 : f32 to vector<1x128xf32>
    %127 = arith.addf %126, %125 : vector<1x128xf32>
    %128 = arith.divf %126, %127 : vector<1x128xf32>
    %129 = vector.extract_strided_slice %16 {offsets = [0, 128], sizes = [1, 128], strides = [1, 1]} : vector<1x512xf32> to vector<1x128xf32>
    %130 = arith.negf %129 : vector<1x128xf32>
    %131 = math.exp %130 : vector<1x128xf32>
    %cst_85 = arith.constant 1.000000e+00 : f32
    %132 = vector.broadcast %cst_85 : f32 to vector<1x128xf32>
    %133 = arith.addf %132, %131 : vector<1x128xf32>
    %134 = arith.divf %132, %133 : vector<1x128xf32>
    %135 = vector.extract_strided_slice %16 {offsets = [0, 256], sizes = [1, 128], strides = [1, 1]} : vector<1x512xf32> to vector<1x128xf32>
    %136 = math.tanh %135 : vector<1x128xf32>
    %137 = vector.extract_strided_slice %16 {offsets = [0, 384], sizes = [1, 128], strides = [1, 1]} : vector<1x512xf32> to vector<1x128xf32>
    %138 = arith.negf %137 : vector<1x128xf32>
    %139 = math.exp %138 : vector<1x128xf32>
    %cst_86 = arith.constant 1.000000e+00 : f32
    %140 = vector.broadcast %cst_86 : f32 to vector<1x128xf32>
    %141 = arith.addf %140, %139 : vector<1x128xf32>
    %142 = arith.divf %140, %141 : vector<1x128xf32>
    %143 = arith.mulf %134, %122 : vector<1x128xf32>
    %144 = arith.mulf %128, %136 : vector<1x128xf32>
    %145 = arith.addf %143, %144 : vector<1x128xf32>
    %146 = math.tanh %145 : vector<1x128xf32>
    %147 = arith.mulf %142, %146 : vector<1x128xf32>
    %cst_87 = arith.constant 0.000000e+00 : f32
    %148 = vector.broadcast %cst_87 : f32 to vector<1x128xf32>
    %149 = tpu.concatenate %147, %148 in 1 : vector<1x128xf32>, vector<1x128xf32> -> vector<1x256xf32>
    %cst_88 = arith.constant 0.000000e+00 : f32
    %150 = vector.broadcast %cst_88 : f32 to vector<1x128xf32>
    %151 = tpu.concatenate %145, %150 in 0 : vector<1x128xf32>, vector<1x128xf32> -> vector<2x128xf32>
    %152 = arith.truncf %149 : vector<1x256xf32> to vector<1x256xbf16>
    %c0_89 = arith.constant 0 : index
    %c0_90 = arith.constant 0 : index
    %153 = vector.load %arg5[%c0_89, %c0_90] : memref<256x1024xbf16, #tpu.memory_space<vmem>>, vector<256x1024xbf16>
    %cst_91 = arith.constant dense<0.000000e+00> : vector<1x1024xf32>
    %154 = tpu.matmul %152, %153, %cst_91 {dimension_numbers = #tpu.dot_dimension_numbers<[1], [0], [0], [1], [0, 0, 1, 1], [], []>} : vector<1x256xbf16>, vector<256x1024xbf16>, vector<1x1024xf32> -> vector<1x1024xf32>
    %c0_92 = arith.constant 0 : index
    %c0_93 = arith.constant 0 : index
    %155 = vector.load %arg6[%c0_92, %c0_93] : memref<1x512xf32, #tpu.memory_space<vmem>>, vector<1x512xf32>
    %156 = vector.extract_strided_slice %154 {offsets = [0, 0], sizes = [1, 512], strides = [1, 1]} : vector<1x1024xf32> to vector<1x512xf32>
    %157 = arith.addf %156, %31 : vector<1x512xf32>
    %158 = vector.extract_strided_slice %154 {offsets = [0, 512], sizes = [1, 512], strides = [1, 1]} : vector<1x1024xf32> to vector<1x512xf32>
    %159 = arith.addf %158, %155 : vector<1x512xf32>
    %160 = tpu.concatenate %157, %159 in 0 : vector<1x512xf32>, vector<1x512xf32> -> vector<2x512xf32>
    %161 = vector.extract_strided_slice %160 {offsets = [0, 0], sizes = [2, 128], strides = [1, 1]} : vector<2x512xf32> to vector<2x128xf32>
    %162 = arith.negf %161 : vector<2x128xf32>
    %163 = math.exp %162 : vector<2x128xf32>
    %cst_94 = arith.constant 1.000000e+00 : f32
    %164 = vector.broadcast %cst_94 : f32 to vector<2x128xf32>
    %165 = arith.addf %164, %163 : vector<2x128xf32>
    %166 = arith.divf %164, %165 : vector<2x128xf32>
    %167 = vector.extract_strided_slice %160 {offsets = [0, 128], sizes = [2, 128], strides = [1, 1]} : vector<2x512xf32> to vector<2x128xf32>
    %168 = arith.negf %167 : vector<2x128xf32>
    %169 = math.exp %168 : vector<2x128xf32>
    %cst_95 = arith.constant 1.000000e+00 : f32
    %170 = vector.broadcast %cst_95 : f32 to vector<2x128xf32>
    %171 = arith.addf %170, %169 : vector<2x128xf32>
    %172 = arith.divf %170, %171 : vector<2x128xf32>
    %173 = vector.extract_strided_slice %160 {offsets = [0, 256], sizes = [2, 128], strides = [1, 1]} : vector<2x512xf32> to vector<2x128xf32>
    %174 = math.tanh %173 : vector<2x128xf32>
    %175 = vector.extract_strided_slice %160 {offsets = [0, 384], sizes = [2, 128], strides = [1, 1]} : vector<2x512xf32> to vector<2x128xf32>
    %176 = arith.negf %175 : vector<2x128xf32>
    %177 = math.exp %176 : vector<2x128xf32>
    %cst_96 = arith.constant 1.000000e+00 : f32
    %178 = vector.broadcast %cst_96 : f32 to vector<2x128xf32>
    %179 = arith.addf %178, %177 : vector<2x128xf32>
    %180 = arith.divf %178, %179 : vector<2x128xf32>
    %181 = arith.mulf %172, %151 : vector<2x128xf32>
    %182 = arith.mulf %166, %174 : vector<2x128xf32>
    %183 = arith.addf %181, %182 : vector<2x128xf32>
    %184 = math.tanh %183 : vector<2x128xf32>
    %185 = arith.mulf %180, %184 : vector<2x128xf32>
    %186 = vector.extract_strided_slice %185 {offsets = [0, 0], sizes = [1, 128], strides = [1, 1]} : vector<2x128xf32> to vector<1x128xf32>
    %187 = vector.extract_strided_slice %185 {offsets = [1, 0], sizes = [1, 128], strides = [1, 1]} : vector<2x128xf32> to vector<1x128xf32>
    %188 = tpu.concatenate %186, %187 in 1 : vector<1x128xf32>, vector<1x128xf32> -> vector<1x256xf32>
    %189 = arith.truncf %188 : vector<1x256xf32> to vector<1x256xbf16>
    %c0_97 = arith.constant 0 : index
    %c0_98 = arith.constant 0 : index
    %190 = vector.load %arg5[%c0_97, %c0_98] : memref<256x1024xbf16, #tpu.memory_space<vmem>>, vector<256x1024xbf16>
    %cst_99 = arith.constant dense<0.000000e+00> : vector<1x1024xf32>
    %191 = tpu.matmul %189, %190, %cst_99 {dimension_numbers = #tpu.dot_dimension_numbers<[1], [0], [0], [1], [0, 0, 1, 1], [], []>} : vector<1x256xbf16>, vector<256x1024xbf16>, vector<1x1024xf32> -> vector<1x1024xf32>
    %c0_100 = arith.constant 0 : index
    %c0_101 = arith.constant 0 : index
    %192 = vector.load %arg6[%c0_100, %c0_101] : memref<1x512xf32, #tpu.memory_space<vmem>>, vector<1x512xf32>
    %193 = vector.extract_strided_slice %191 {offsets = [0, 0], sizes = [1, 512], strides = [1, 1]} : vector<1x1024xf32> to vector<1x512xf32>
    %194 = arith.addf %193, %46 : vector<1x512xf32>
    %195 = vector.extract_strided_slice %191 {offsets = [0, 512], sizes = [1, 512], strides = [1, 1]} : vector<1x1024xf32> to vector<1x512xf32>
    %196 = arith.addf %195, %192 : vector<1x512xf32>
    %197 = tpu.concatenate %194, %196 in 0 : vector<1x512xf32>, vector<1x512xf32> -> vector<2x512xf32>
    %198 = vector.extract_strided_slice %197 {offsets = [0, 0], sizes = [2, 128], strides = [1, 1]} : vector<2x512xf32> to vector<2x128xf32>
    %199 = arith.negf %198 : vector<2x128xf32>
    %200 = math.exp %199 : vector<2x128xf32>
    %cst_102 = arith.constant 1.000000e+00 : f32
    %201 = vector.broadcast %cst_102 : f32 to vector<2x128xf32>
    %202 = arith.addf %201, %200 : vector<2x128xf32>
    %203 = arith.divf %201, %202 : vector<2x128xf32>
    %204 = vector.extract_strided_slice %197 {offsets = [0, 128], sizes = [2, 128], strides = [1, 1]} : vector<2x512xf32> to vector<2x128xf32>
    %205 = arith.negf %204 : vector<2x128xf32>
    %206 = math.exp %205 : vector<2x128xf32>
    %cst_103 = arith.constant 1.000000e+00 : f32
    %207 = vector.broadcast %cst_103 : f32 to vector<2x128xf32>
    %208 = arith.addf %207, %206 : vector<2x128xf32>
    %209 = arith.divf %207, %208 : vector<2x128xf32>
    %210 = vector.extract_strided_slice %197 {offsets = [0, 256], sizes = [2, 128], strides = [1, 1]} : vector<2x512xf32> to vector<2x128xf32>
    %211 = math.tanh %210 : vector<2x128xf32>
    %212 = vector.extract_strided_slice %197 {offsets = [0, 384], sizes = [2, 128], strides = [1, 1]} : vector<2x512xf32> to vector<2x128xf32>
    %213 = arith.negf %212 : vector<2x128xf32>
    %214 = math.exp %213 : vector<2x128xf32>
    %cst_104 = arith.constant 1.000000e+00 : f32
    %215 = vector.broadcast %cst_104 : f32 to vector<2x128xf32>
    %216 = arith.addf %215, %214 : vector<2x128xf32>
    %217 = arith.divf %215, %216 : vector<2x128xf32>
    %218 = arith.mulf %209, %183 : vector<2x128xf32>
    %219 = arith.mulf %203, %211 : vector<2x128xf32>
    %220 = arith.addf %218, %219 : vector<2x128xf32>
    %221 = math.tanh %220 : vector<2x128xf32>
    %222 = arith.mulf %217, %221 : vector<2x128xf32>
    %223 = vector.extract_strided_slice %222 {offsets = [0, 0], sizes = [1, 128], strides = [1, 1]} : vector<2x128xf32> to vector<1x128xf32>
    %224 = vector.extract_strided_slice %222 {offsets = [1, 0], sizes = [1, 128], strides = [1, 1]} : vector<2x128xf32> to vector<1x128xf32>
    %225 = tpu.concatenate %223, %224 in 1 : vector<1x128xf32>, vector<1x128xf32> -> vector<1x256xf32>
    %226 = arith.truncf %225 : vector<1x256xf32> to vector<1x256xbf16>
    %c0_105 = arith.constant 0 : index
    %c0_106 = arith.constant 0 : index
    %227 = vector.load %arg5[%c0_105, %c0_106] : memref<256x1024xbf16, #tpu.memory_space<vmem>>, vector<256x1024xbf16>
    %cst_107 = arith.constant dense<0.000000e+00> : vector<1x1024xf32>
    %228 = tpu.matmul %226, %227, %cst_107 {dimension_numbers = #tpu.dot_dimension_numbers<[1], [0], [0], [1], [0, 0, 1, 1], [], []>} : vector<1x256xbf16>, vector<256x1024xbf16>, vector<1x1024xf32> -> vector<1x1024xf32>
    %c0_108 = arith.constant 0 : index
    %c0_109 = arith.constant 0 : index
    %229 = vector.load %arg6[%c0_108, %c0_109] : memref<1x512xf32, #tpu.memory_space<vmem>>, vector<1x512xf32>
    %230 = vector.extract_strided_slice %228 {offsets = [0, 0], sizes = [1, 512], strides = [1, 1]} : vector<1x1024xf32> to vector<1x512xf32>
    %231 = arith.addf %230, %61 : vector<1x512xf32>
    %232 = vector.extract_strided_slice %228 {offsets = [0, 512], sizes = [1, 512], strides = [1, 1]} : vector<1x1024xf32> to vector<1x512xf32>
    %233 = arith.addf %232, %229 : vector<1x512xf32>
    %234 = tpu.concatenate %231, %233 in 0 : vector<1x512xf32>, vector<1x512xf32> -> vector<2x512xf32>
    %235 = vector.extract_strided_slice %234 {offsets = [0, 0], sizes = [2, 128], strides = [1, 1]} : vector<2x512xf32> to vector<2x128xf32>
    %236 = arith.negf %235 : vector<2x128xf32>
    %237 = math.exp %236 : vector<2x128xf32>
    %cst_110 = arith.constant 1.000000e+00 : f32
    %238 = vector.broadcast %cst_110 : f32 to vector<2x128xf32>
    %239 = arith.addf %238, %237 : vector<2x128xf32>
    %240 = arith.divf %238, %239 : vector<2x128xf32>
    %241 = vector.extract_strided_slice %234 {offsets = [0, 128], sizes = [2, 128], strides = [1, 1]} : vector<2x512xf32> to vector<2x128xf32>
    %242 = arith.negf %241 : vector<2x128xf32>
    %243 = math.exp %242 : vector<2x128xf32>
    %cst_111 = arith.constant 1.000000e+00 : f32
    %244 = vector.broadcast %cst_111 : f32 to vector<2x128xf32>
    %245 = arith.addf %244, %243 : vector<2x128xf32>
    %246 = arith.divf %244, %245 : vector<2x128xf32>
    %247 = vector.extract_strided_slice %234 {offsets = [0, 256], sizes = [2, 128], strides = [1, 1]} : vector<2x512xf32> to vector<2x128xf32>
    %248 = math.tanh %247 : vector<2x128xf32>
    %249 = vector.extract_strided_slice %234 {offsets = [0, 384], sizes = [2, 128], strides = [1, 1]} : vector<2x512xf32> to vector<2x128xf32>
    %250 = arith.negf %249 : vector<2x128xf32>
    %251 = math.exp %250 : vector<2x128xf32>
    %cst_112 = arith.constant 1.000000e+00 : f32
    %252 = vector.broadcast %cst_112 : f32 to vector<2x128xf32>
    %253 = arith.addf %252, %251 : vector<2x128xf32>
    %254 = arith.divf %252, %253 : vector<2x128xf32>
    %255 = arith.mulf %246, %220 : vector<2x128xf32>
    %256 = arith.mulf %240, %248 : vector<2x128xf32>
    %257 = arith.addf %255, %256 : vector<2x128xf32>
    %258 = math.tanh %257 : vector<2x128xf32>
    %259 = arith.mulf %254, %258 : vector<2x128xf32>
    %260 = vector.extract_strided_slice %259 {offsets = [0, 0], sizes = [1, 128], strides = [1, 1]} : vector<2x128xf32> to vector<1x128xf32>
    %261 = vector.extract_strided_slice %259 {offsets = [1, 0], sizes = [1, 128], strides = [1, 1]} : vector<2x128xf32> to vector<1x128xf32>
    %262 = tpu.concatenate %260, %261 in 1 : vector<1x128xf32>, vector<1x128xf32> -> vector<1x256xf32>
    %263 = arith.truncf %262 : vector<1x256xf32> to vector<1x256xbf16>
    %c0_113 = arith.constant 0 : index
    %c0_114 = arith.constant 0 : index
    %264 = vector.load %arg5[%c0_113, %c0_114] : memref<256x1024xbf16, #tpu.memory_space<vmem>>, vector<256x1024xbf16>
    %cst_115 = arith.constant dense<0.000000e+00> : vector<1x1024xf32>
    %265 = tpu.matmul %263, %264, %cst_115 {dimension_numbers = #tpu.dot_dimension_numbers<[1], [0], [0], [1], [0, 0, 1, 1], [], []>} : vector<1x256xbf16>, vector<256x1024xbf16>, vector<1x1024xf32> -> vector<1x1024xf32>
    %c0_116 = arith.constant 0 : index
    %c0_117 = arith.constant 0 : index
    %266 = vector.load %arg6[%c0_116, %c0_117] : memref<1x512xf32, #tpu.memory_space<vmem>>, vector<1x512xf32>
    %267 = vector.extract_strided_slice %265 {offsets = [0, 0], sizes = [1, 512], strides = [1, 1]} : vector<1x1024xf32> to vector<1x512xf32>
    %268 = arith.addf %267, %76 : vector<1x512xf32>
    %269 = vector.extract_strided_slice %265 {offsets = [0, 512], sizes = [1, 512], strides = [1, 1]} : vector<1x1024xf32> to vector<1x512xf32>
    %270 = arith.addf %269, %266 : vector<1x512xf32>
    %271 = tpu.concatenate %268, %270 in 0 : vector<1x512xf32>, vector<1x512xf32> -> vector<2x512xf32>
    %272 = vector.extract_strided_slice %271 {offsets = [0, 0], sizes = [2, 128], strides = [1, 1]} : vector<2x512xf32> to vector<2x128xf32>
    %273 = arith.negf %272 : vector<2x128xf32>
    %274 = math.exp %273 : vector<2x128xf32>
    %cst_118 = arith.constant 1.000000e+00 : f32
    %275 = vector.broadcast %cst_118 : f32 to vector<2x128xf32>
    %276 = arith.addf %275, %274 : vector<2x128xf32>
    %277 = arith.divf %275, %276 : vector<2x128xf32>
    %278 = vector.extract_strided_slice %271 {offsets = [0, 128], sizes = [2, 128], strides = [1, 1]} : vector<2x512xf32> to vector<2x128xf32>
    %279 = arith.negf %278 : vector<2x128xf32>
    %280 = math.exp %279 : vector<2x128xf32>
    %cst_119 = arith.constant 1.000000e+00 : f32
    %281 = vector.broadcast %cst_119 : f32 to vector<2x128xf32>
    %282 = arith.addf %281, %280 : vector<2x128xf32>
    %283 = arith.divf %281, %282 : vector<2x128xf32>
    %284 = vector.extract_strided_slice %271 {offsets = [0, 256], sizes = [2, 128], strides = [1, 1]} : vector<2x512xf32> to vector<2x128xf32>
    %285 = math.tanh %284 : vector<2x128xf32>
    %286 = vector.extract_strided_slice %271 {offsets = [0, 384], sizes = [2, 128], strides = [1, 1]} : vector<2x512xf32> to vector<2x128xf32>
    %287 = arith.negf %286 : vector<2x128xf32>
    %288 = math.exp %287 : vector<2x128xf32>
    %cst_120 = arith.constant 1.000000e+00 : f32
    %289 = vector.broadcast %cst_120 : f32 to vector<2x128xf32>
    %290 = arith.addf %289, %288 : vector<2x128xf32>
    %291 = arith.divf %289, %290 : vector<2x128xf32>
    %292 = arith.mulf %283, %257 : vector<2x128xf32>
    %293 = arith.mulf %277, %285 : vector<2x128xf32>
    %294 = arith.addf %292, %293 : vector<2x128xf32>
    %295 = math.tanh %294 : vector<2x128xf32>
    %296 = arith.mulf %291, %295 : vector<2x128xf32>
    %297 = vector.extract_strided_slice %296 {offsets = [0, 0], sizes = [1, 128], strides = [1, 1]} : vector<2x128xf32> to vector<1x128xf32>
    %298 = vector.extract_strided_slice %296 {offsets = [1, 0], sizes = [1, 128], strides = [1, 1]} : vector<2x128xf32> to vector<1x128xf32>
    %299 = tpu.concatenate %297, %298 in 1 : vector<1x128xf32>, vector<1x128xf32> -> vector<1x256xf32>
    %300 = arith.truncf %299 : vector<1x256xf32> to vector<1x256xbf16>
    %c0_121 = arith.constant 0 : index
    %c0_122 = arith.constant 0 : index
    %301 = vector.load %arg5[%c0_121, %c0_122] : memref<256x1024xbf16, #tpu.memory_space<vmem>>, vector<256x1024xbf16>
    %cst_123 = arith.constant dense<0.000000e+00> : vector<1x1024xf32>
    %302 = tpu.matmul %300, %301, %cst_123 {dimension_numbers = #tpu.dot_dimension_numbers<[1], [0], [0], [1], [0, 0, 1, 1], [], []>} : vector<1x256xbf16>, vector<256x1024xbf16>, vector<1x1024xf32> -> vector<1x1024xf32>
    %c0_124 = arith.constant 0 : index
    %c0_125 = arith.constant 0 : index
    %303 = vector.load %arg6[%c0_124, %c0_125] : memref<1x512xf32, #tpu.memory_space<vmem>>, vector<1x512xf32>
    %304 = vector.extract_strided_slice %302 {offsets = [0, 0], sizes = [1, 512], strides = [1, 1]} : vector<1x1024xf32> to vector<1x512xf32>
    %305 = arith.addf %304, %91 : vector<1x512xf32>
    %306 = vector.extract_strided_slice %302 {offsets = [0, 512], sizes = [1, 512], strides = [1, 1]} : vector<1x1024xf32> to vector<1x512xf32>
    %307 = arith.addf %306, %303 : vector<1x512xf32>
    %308 = tpu.concatenate %305, %307 in 0 : vector<1x512xf32>, vector<1x512xf32> -> vector<2x512xf32>
    %309 = vector.extract_strided_slice %308 {offsets = [0, 0], sizes = [2, 128], strides = [1, 1]} : vector<2x512xf32> to vector<2x128xf32>
    %310 = arith.negf %309 : vector<2x128xf32>
    %311 = math.exp %310 : vector<2x128xf32>
    %cst_126 = arith.constant 1.000000e+00 : f32
    %312 = vector.broadcast %cst_126 : f32 to vector<2x128xf32>
    %313 = arith.addf %312, %311 : vector<2x128xf32>
    %314 = arith.divf %312, %313 : vector<2x128xf32>
    %315 = vector.extract_strided_slice %308 {offsets = [0, 128], sizes = [2, 128], strides = [1, 1]} : vector<2x512xf32> to vector<2x128xf32>
    %316 = arith.negf %315 : vector<2x128xf32>
    %317 = math.exp %316 : vector<2x128xf32>
    %cst_127 = arith.constant 1.000000e+00 : f32
    %318 = vector.broadcast %cst_127 : f32 to vector<2x128xf32>
    %319 = arith.addf %318, %317 : vector<2x128xf32>
    %320 = arith.divf %318, %319 : vector<2x128xf32>
    %321 = vector.extract_strided_slice %308 {offsets = [0, 256], sizes = [2, 128], strides = [1, 1]} : vector<2x512xf32> to vector<2x128xf32>
    %322 = math.tanh %321 : vector<2x128xf32>
    %323 = vector.extract_strided_slice %308 {offsets = [0, 384], sizes = [2, 128], strides = [1, 1]} : vector<2x512xf32> to vector<2x128xf32>
    %324 = arith.negf %323 : vector<2x128xf32>
    %325 = math.exp %324 : vector<2x128xf32>
    %cst_128 = arith.constant 1.000000e+00 : f32
    %326 = vector.broadcast %cst_128 : f32 to vector<2x128xf32>
    %327 = arith.addf %326, %325 : vector<2x128xf32>
    %328 = arith.divf %326, %327 : vector<2x128xf32>
    %329 = arith.mulf %320, %294 : vector<2x128xf32>
    %330 = arith.mulf %314, %322 : vector<2x128xf32>
    %331 = arith.addf %329, %330 : vector<2x128xf32>
    %332 = math.tanh %331 : vector<2x128xf32>
    %333 = arith.mulf %328, %332 : vector<2x128xf32>
    %334 = vector.extract_strided_slice %333 {offsets = [0, 0], sizes = [1, 128], strides = [1, 1]} : vector<2x128xf32> to vector<1x128xf32>
    %335 = vector.extract_strided_slice %333 {offsets = [1, 0], sizes = [1, 128], strides = [1, 1]} : vector<2x128xf32> to vector<1x128xf32>
    %336 = tpu.concatenate %334, %335 in 1 : vector<1x128xf32>, vector<1x128xf32> -> vector<1x256xf32>
    %337 = arith.truncf %336 : vector<1x256xf32> to vector<1x256xbf16>
    %c0_129 = arith.constant 0 : index
    %c0_130 = arith.constant 0 : index
    %338 = vector.load %arg5[%c0_129, %c0_130] : memref<256x1024xbf16, #tpu.memory_space<vmem>>, vector<256x1024xbf16>
    %cst_131 = arith.constant dense<0.000000e+00> : vector<1x1024xf32>
    %339 = tpu.matmul %337, %338, %cst_131 {dimension_numbers = #tpu.dot_dimension_numbers<[1], [0], [0], [1], [0, 0, 1, 1], [], []>} : vector<1x256xbf16>, vector<256x1024xbf16>, vector<1x1024xf32> -> vector<1x1024xf32>
    %c0_132 = arith.constant 0 : index
    %c0_133 = arith.constant 0 : index
    %340 = vector.load %arg6[%c0_132, %c0_133] : memref<1x512xf32, #tpu.memory_space<vmem>>, vector<1x512xf32>
    %341 = vector.extract_strided_slice %339 {offsets = [0, 0], sizes = [1, 512], strides = [1, 1]} : vector<1x1024xf32> to vector<1x512xf32>
    %342 = arith.addf %341, %106 : vector<1x512xf32>
    %343 = vector.extract_strided_slice %339 {offsets = [0, 512], sizes = [1, 512], strides = [1, 1]} : vector<1x1024xf32> to vector<1x512xf32>
    %344 = arith.addf %343, %340 : vector<1x512xf32>
    %345 = tpu.concatenate %342, %344 in 0 : vector<1x512xf32>, vector<1x512xf32> -> vector<2x512xf32>
    %346 = vector.extract_strided_slice %345 {offsets = [0, 0], sizes = [2, 128], strides = [1, 1]} : vector<2x512xf32> to vector<2x128xf32>
    %347 = arith.negf %346 : vector<2x128xf32>
    %348 = math.exp %347 : vector<2x128xf32>
    %cst_134 = arith.constant 1.000000e+00 : f32
    %349 = vector.broadcast %cst_134 : f32 to vector<2x128xf32>
    %350 = arith.addf %349, %348 : vector<2x128xf32>
    %351 = arith.divf %349, %350 : vector<2x128xf32>
    %352 = vector.extract_strided_slice %345 {offsets = [0, 128], sizes = [2, 128], strides = [1, 1]} : vector<2x512xf32> to vector<2x128xf32>
    %353 = arith.negf %352 : vector<2x128xf32>
    %354 = math.exp %353 : vector<2x128xf32>
    %cst_135 = arith.constant 1.000000e+00 : f32
    %355 = vector.broadcast %cst_135 : f32 to vector<2x128xf32>
    %356 = arith.addf %355, %354 : vector<2x128xf32>
    %357 = arith.divf %355, %356 : vector<2x128xf32>
    %358 = vector.extract_strided_slice %345 {offsets = [0, 256], sizes = [2, 128], strides = [1, 1]} : vector<2x512xf32> to vector<2x128xf32>
    %359 = math.tanh %358 : vector<2x128xf32>
    %360 = vector.extract_strided_slice %345 {offsets = [0, 384], sizes = [2, 128], strides = [1, 1]} : vector<2x512xf32> to vector<2x128xf32>
    %361 = arith.negf %360 : vector<2x128xf32>
    %362 = math.exp %361 : vector<2x128xf32>
    %cst_136 = arith.constant 1.000000e+00 : f32
    %363 = vector.broadcast %cst_136 : f32 to vector<2x128xf32>
    %364 = arith.addf %363, %362 : vector<2x128xf32>
    %365 = arith.divf %363, %364 : vector<2x128xf32>
    %366 = arith.mulf %357, %331 : vector<2x128xf32>
    %367 = arith.mulf %351, %359 : vector<2x128xf32>
    %368 = arith.addf %366, %367 : vector<2x128xf32>
    %369 = math.tanh %368 : vector<2x128xf32>
    %370 = arith.mulf %365, %369 : vector<2x128xf32>
    %371 = vector.extract_strided_slice %370 {offsets = [0, 0], sizes = [1, 128], strides = [1, 1]} : vector<2x128xf32> to vector<1x128xf32>
    %372 = vector.extract_strided_slice %370 {offsets = [1, 0], sizes = [1, 128], strides = [1, 1]} : vector<2x128xf32> to vector<1x128xf32>
    %373 = tpu.concatenate %371, %372 in 1 : vector<1x128xf32>, vector<1x128xf32> -> vector<1x256xf32>
    %374 = arith.truncf %373 : vector<1x256xf32> to vector<1x256xbf16>
    %c0_137 = arith.constant 0 : index
    %c0_138 = arith.constant 0 : index
    %375 = vector.load %arg5[%c0_137, %c0_138] : memref<256x1024xbf16, #tpu.memory_space<vmem>>, vector<256x1024xbf16>
    %cst_139 = arith.constant dense<0.000000e+00> : vector<1x1024xf32>
    %376 = tpu.matmul %374, %375, %cst_139 {dimension_numbers = #tpu.dot_dimension_numbers<[1], [0], [0], [1], [0, 0, 1, 1], [], []>} : vector<1x256xbf16>, vector<256x1024xbf16>, vector<1x1024xf32> -> vector<1x1024xf32>
    %c0_140 = arith.constant 0 : index
    %c0_141 = arith.constant 0 : index
    %377 = vector.load %arg6[%c0_140, %c0_141] : memref<1x512xf32, #tpu.memory_space<vmem>>, vector<1x512xf32>
    %378 = vector.extract_strided_slice %376 {offsets = [0, 0], sizes = [1, 512], strides = [1, 1]} : vector<1x1024xf32> to vector<1x512xf32>
    %379 = arith.addf %378, %121 : vector<1x512xf32>
    %380 = vector.extract_strided_slice %376 {offsets = [0, 512], sizes = [1, 512], strides = [1, 1]} : vector<1x1024xf32> to vector<1x512xf32>
    %381 = arith.addf %380, %377 : vector<1x512xf32>
    %382 = tpu.concatenate %379, %381 in 0 : vector<1x512xf32>, vector<1x512xf32> -> vector<2x512xf32>
    %383 = vector.extract_strided_slice %382 {offsets = [0, 0], sizes = [2, 128], strides = [1, 1]} : vector<2x512xf32> to vector<2x128xf32>
    %384 = arith.negf %383 : vector<2x128xf32>
    %385 = math.exp %384 : vector<2x128xf32>
    %cst_142 = arith.constant 1.000000e+00 : f32
    %386 = vector.broadcast %cst_142 : f32 to vector<2x128xf32>
    %387 = arith.addf %386, %385 : vector<2x128xf32>
    %388 = arith.divf %386, %387 : vector<2x128xf32>
    %389 = vector.extract_strided_slice %382 {offsets = [0, 128], sizes = [2, 128], strides = [1, 1]} : vector<2x512xf32> to vector<2x128xf32>
    %390 = arith.negf %389 : vector<2x128xf32>
    %391 = math.exp %390 : vector<2x128xf32>
    %cst_143 = arith.constant 1.000000e+00 : f32
    %392 = vector.broadcast %cst_143 : f32 to vector<2x128xf32>
    %393 = arith.addf %392, %391 : vector<2x128xf32>
    %394 = arith.divf %392, %393 : vector<2x128xf32>
    %395 = vector.extract_strided_slice %382 {offsets = [0, 256], sizes = [2, 128], strides = [1, 1]} : vector<2x512xf32> to vector<2x128xf32>
    %396 = math.tanh %395 : vector<2x128xf32>
    %397 = vector.extract_strided_slice %382 {offsets = [0, 384], sizes = [2, 128], strides = [1, 1]} : vector<2x512xf32> to vector<2x128xf32>
    %398 = arith.negf %397 : vector<2x128xf32>
    %399 = math.exp %398 : vector<2x128xf32>
    %cst_144 = arith.constant 1.000000e+00 : f32
    %400 = vector.broadcast %cst_144 : f32 to vector<2x128xf32>
    %401 = arith.addf %400, %399 : vector<2x128xf32>
    %402 = arith.divf %400, %401 : vector<2x128xf32>
    %403 = arith.mulf %394, %368 : vector<2x128xf32>
    %404 = arith.mulf %388, %396 : vector<2x128xf32>
    %405 = arith.addf %403, %404 : vector<2x128xf32>
    %406 = math.tanh %405 : vector<2x128xf32>
    %407 = arith.mulf %402, %406 : vector<2x128xf32>
    %408 = vector.extract_strided_slice %407 {offsets = [0, 0], sizes = [1, 128], strides = [1, 1]} : vector<2x128xf32> to vector<1x128xf32>
    %409 = vector.extract_strided_slice %407 {offsets = [1, 0], sizes = [1, 128], strides = [1, 1]} : vector<2x128xf32> to vector<1x128xf32>
    %410 = tpu.concatenate %408, %409 in 1 : vector<1x128xf32>, vector<1x128xf32> -> vector<1x256xf32>
    %411 = arith.truncf %410 : vector<1x256xf32> to vector<1x256xbf16>
    %c0_145 = arith.constant 0 : index
    %c0_146 = arith.constant 0 : index
    %412 = vector.load %arg5[%c0_145, %c0_146] : memref<256x1024xbf16, #tpu.memory_space<vmem>>, vector<256x1024xbf16>
    %cst_147 = arith.constant dense<0.000000e+00> : vector<1x1024xf32>
    %413 = tpu.matmul %411, %412, %cst_147 {dimension_numbers = #tpu.dot_dimension_numbers<[1], [0], [0], [1], [0, 0, 1, 1], [], []>} : vector<1x256xbf16>, vector<256x1024xbf16>, vector<1x1024xf32> -> vector<1x1024xf32>
    %c0_148 = arith.constant 0 : index
    %c0_149 = arith.constant 0 : index
    %414 = vector.load %arg6[%c0_148, %c0_149] : memref<1x512xf32, #tpu.memory_space<vmem>>, vector<1x512xf32>
    %415 = vector.extract_strided_slice %413 {offsets = [0, 512], sizes = [1, 512], strides = [1, 1]} : vector<1x1024xf32> to vector<1x512xf32>
    %416 = arith.addf %415, %414 : vector<1x512xf32>
    %417 = vector.extract_strided_slice %405 {offsets = [1, 0], sizes = [1, 128], strides = [1, 1]} : vector<2x128xf32> to vector<1x128xf32>
    %418 = vector.extract_strided_slice %416 {offsets = [0, 0], sizes = [1, 128], strides = [1, 1]} : vector<1x512xf32> to vector<1x128xf32>
    %419 = arith.negf %418 : vector<1x128xf32>
    %420 = math.exp %419 : vector<1x128xf32>
    %cst_150 = arith.constant 1.000000e+00 : f32
    %421 = vector.broadcast %cst_150 : f32 to vector<1x128xf32>
    %422 = arith.addf %421, %420 : vector<1x128xf32>
    %423 = arith.divf %421, %422 : vector<1x128xf32>
    %424 = vector.extract_strided_slice %416 {offsets = [0, 128], sizes = [1, 128], strides = [1, 1]} : vector<1x512xf32> to vector<1x128xf32>
    %425 = arith.negf %424 : vector<1x128xf32>
    %426 = math.exp %425 : vector<1x128xf32>
    %cst_151 = arith.constant 1.000000e+00 : f32
    %427 = vector.broadcast %cst_151 : f32 to vector<1x128xf32>
    %428 = arith.addf %427, %426 : vector<1x128xf32>
    %429 = arith.divf %427, %428 : vector<1x128xf32>
    %430 = vector.extract_strided_slice %416 {offsets = [0, 256], sizes = [1, 128], strides = [1, 1]} : vector<1x512xf32> to vector<1x128xf32>
    %431 = math.tanh %430 : vector<1x128xf32>
    %432 = vector.extract_strided_slice %416 {offsets = [0, 384], sizes = [1, 128], strides = [1, 1]} : vector<1x512xf32> to vector<1x128xf32>
    %433 = arith.negf %432 : vector<1x128xf32>
    %434 = math.exp %433 : vector<1x128xf32>
    %cst_152 = arith.constant 1.000000e+00 : f32
    %435 = vector.broadcast %cst_152 : f32 to vector<1x128xf32>
    %436 = arith.addf %435, %434 : vector<1x128xf32>
    %437 = arith.divf %435, %436 : vector<1x128xf32>
    %438 = arith.mulf %429, %417 : vector<1x128xf32>
    %439 = arith.mulf %423, %431 : vector<1x128xf32>
    %440 = arith.addf %438, %439 : vector<1x128xf32>
    %441 = math.tanh %440 : vector<1x128xf32>
    %442 = arith.mulf %437, %441 : vector<1x128xf32>
    %c0_153 = arith.constant 0 : index
    %c0_154 = arith.constant 0 : index
    %443 = vector.load %arg7[%c0_153, %c0_154] : memref<128x2xf32, #tpu.memory_space<vmem>>, vector<128x2xf32>
    %cst_155 = arith.constant dense<0.000000e+00> : vector<1x2xf32>
    %444 = tpu.matmul %442, %443, %cst_155 {dimension_numbers = #tpu.dot_dimension_numbers<[1], [0], [0], [1], [0, 0, 1, 1], [], []>} : vector<1x128xf32>, vector<128x2xf32>, vector<1x2xf32> -> vector<1x2xf32>
    %c0_156 = arith.constant 0 : index
    %c0_157 = arith.constant 0 : index
    %445 = vector.load %arg8[%c0_156, %c0_157] : memref<1x2xf32, #tpu.memory_space<vmem>>, vector<1x2xf32>
    %446 = arith.addf %444, %445 : vector<1x2xf32>
    %cst_158 = arith.constant dense<0xFF800000> : vector<1xf32>
    %447 = vector.multi_reduction <maximumf>, %446, %cst_158 [1] : vector<1x2xf32> to vector<1xf32>
    %448 = vector.shape_cast %447 : vector<1xf32> to vector<1x1xf32>
    %449 = vector.broadcast %448 : vector<1x1xf32> to vector<1x2xf32>
    %450 = arith.subf %446, %449 : vector<1x2xf32>
    %451 = math.exp %450 : vector<1x2xf32>
    %cst_159 = arith.constant dense<0.000000e+00> : vector<1xf32>
    %452 = vector.multi_reduction <add>, %451, %cst_159 [1] : vector<1x2xf32> to vector<1xf32>
    %453 = vector.shape_cast %452 : vector<1xf32> to vector<1x1xf32>
    %454 = tpu.reciprocal %453 {approx = true} : vector<1x1xf32> -> vector<1x1xf32>
    %455 = vector.broadcast %454 : vector<1x1xf32> to vector<1x2xf32>
    %456 = arith.mulf %451, %455 : vector<1x2xf32>
    %c0_160 = arith.constant 0 : index
    %c0_161 = arith.constant 0 : index
    %457 = vector.load %arg9[%c0_160, %c0_161] : memref<1x2xf32, #tpu.memory_space<vmem>>, vector<1x2xf32>
    tpu.vector_store %arg9[%c0_160, %c0_161], %456 {strides = array<i32>} : memref<1x2xf32, #tpu.memory_space<vmem>>, vector<1x2xf32>,
    return
  }
}

</mosaic_0001>

<llo_original>
// kernel: rcnn_forward.1
$region0: #{rcnn_forward.1}
  #allocation0 [shape = 'u32[]', space=smem, size = 0x4, offset = 0x4, fixed_abs, tag = 'smem constant byte address 0x4 - core index']
  #allocation1 [shape = 'u32[72,128]{1,0:T(1,128)}', space=vmem, size = 0x9000, scoped, tag = 'internal scratch']
  %s0 = inlined_call_operand.vmem [shape: bf16[2048,128], index: 0, kind: input, shape index: {}]
  %s1 = inlined_call_operand.vmem [shape: bf16[128,128], index: 1, kind: input, shape index: {}]
  %s2 = inlined_call_operand.vmem [shape: f32[1,128], index: 2, kind: input, shape index: {}]
  %s3 = inlined_call_operand.vmem [shape: bf16[128,512], index: 3, kind: input, shape index: {}]
  %s4 = inlined_call_operand.vmem [shape: f32[1,512], index: 4, kind: input, shape index: {}]
  %s5 = inlined_call_operand.vmem [shape: bf16[256,1024], index: 5, kind: input, shape index: {}]
  %s6 = inlined_call_operand.vmem [shape: f32[1,512], index: 6, kind: input, shape index: {}]
  %s7 = inlined_call_operand.vmem [shape: f32[128,2], index: 7, kind: input, shape index: {}]
  %s8 = inlined_call_operand.vmem [shape: f32[1,2], index: 8, kind: input, shape index: {}]
  %s9 = inlined_call_operand.hbm [shape: f32[1,2], index: 9, kind: output, shape index: {}]
  %s10 = sld [smem:[#allocation0]]
  $region46: #{rcnn_forward.1} parent=0
    _
  %s12 = ssub.s32 1, %s10
  %s13 = scalar_select 0, %s12, %s10
  $region1: #{rcnn_forward.1} parent=0
    #allocation2 [shape = 'u8[512]{0}', space=vmem, size = 0x400, scoped, tag = 'output window, operand 0, single buffered']
    #allocation3 [shape = 's32[1]{0}', space=sflag, size = 0x4, scoped, tag = 'scoped memory for rcnn_forward.1']
    %14 = vsyncpa [#allocation3], 0
    // Predicated region
    $region2: #{rcnn_forward.1} parent=1 // pred_check
      _
    $region3: #{rcnn_forward.1} parent=1 // pred_check_branch
      %16 = sbr.rel (0) target = $region5
    $region4: #{rcnn_forward.1} parent=1 // pred_region
      _
    $region5: #{rcnn_forward.1} parent=1 // pred_fallthru
      _
    // Predicated region
    $region6: #{rcnn_forward.1} parent=1 // pred_check
      _
    $region7: #{rcnn_forward.1} parent=1 // pred_check_branch
      %18 = sbr.rel (0) target = $region9
    $region8: #{rcnn_forward.1} parent=1 // pred_region
      _
    $region9: #{rcnn_forward.1} parent=1 // pred_fallthru
      _
    // Predicated region
    $region10: #{rcnn_forward.1} parent=1 // pred_check
      _
    $region11: #{rcnn_forward.1} parent=1 // pred_check_branch
      %20 = sbr.rel (0) target = $region13
    $region12: #{rcnn_forward.1} parent=1 // pred_region
      _
    $region13: #{rcnn_forward.1} parent=1 // pred_fallthru
      _
    // Predicated region
    $region14: #{rcnn_forward.1} parent=1 // pred_check
      _
    $region15: #{rcnn_forward.1} parent=1 // pred_check_branch
      %22 = sbr.rel (0) target = $region17
    $region16: #{rcnn_forward.1} parent=1 // pred_region
      _
    $region17: #{rcnn_forward.1} parent=1 // pred_fallthru
      _
    // Predicated region
    $region18: #{rcnn_forward.1} parent=1 // pred_check
      _
    $region19: #{rcnn_forward.1} parent=1 // pred_check_branch
      %24 = sbr.rel (0) target = $region21
    $region20: #{rcnn_forward.1} parent=1 // pred_region
      _
    $region21: #{rcnn_forward.1} parent=1 // pred_fallthru
      _
    // Predicated region
    $region22: #{rcnn_forward.1} parent=1 // pred_check
      _
    $region23: #{rcnn_forward.1} parent=1 // pred_check_branch
      %26 = sbr.rel (0) target = $region25
    $region24: #{rcnn_forward.1} parent=1 // pred_region
      _
    $region25: #{rcnn_forward.1} parent=1 // pred_fallthru
      _
    // Predicated region
    $region26: #{rcnn_forward.1} parent=1 // pred_check
      _
    $region27: #{rcnn_forward.1} parent=1 // pred_check_branch
      %28 = sbr.rel (0) target = $region29
    $region28: #{rcnn_forward.1} parent=1 // pred_region
      _
    $region29: #{rcnn_forward.1} parent=1 // pred_fallthru
      _
    // Predicated region
    $region30: #{rcnn_forward.1} parent=1 // pred_check
      _
    $region31: #{rcnn_forward.1} parent=1 // pred_check_branch
      %30 = sbr.rel (0) target = $region33
    $region32: #{rcnn_forward.1} parent=1 // pred_region
      _
    $region33: #{rcnn_forward.1} parent=1 // pred_fallthru
      _
    // Predicated region
    $region34: #{rcnn_forward.1} parent=1 // pred_check
      _
    $region35: #{rcnn_forward.1} parent=1 // pred_check_branch
      %32 = sbr.rel (0) target = $region37
    $region36: #{rcnn_forward.1} parent=1 // pred_region
      _
    $region37: #{rcnn_forward.1} parent=1 // pred_fallthru
      _
    %v33 = vld [vmem:[%s2] sm:$0x1]
    %v34 = vld [vmem:[%s4] sm:$0xf]
    %v35 = vld [vmem:[%s0] sm:$0xf]
    %v36 = vld [vmem:[%s0 + $0x4] sm:$0xf]
    %v37 = vld [vmem:[%s0 + $0x8] sm:$0xf]
    %v38 = vld [vmem:[%s0 + $0xc] sm:$0xf]
    %v39 = vld [vmem:[%s0 + $0x10] sm:$0xf]
    %v40 = vld [vmem:[%s0 + $0x14] sm:$0xf]
    %v41 = vld [vmem:[%s0 + $0x18] sm:$0xf]
    %v42 = vld [vmem:[%s0 + $0x1c] sm:$0xf]
    %v43 = vld [vmem:[%s0 + $0x20] sm:$0xf]
    %v44 = vld [vmem:[%s0 + $0x24] sm:$0xf]
    %v45 = vld [vmem:[%s0 + $0x28] sm:$0xf]
    %v46 = vld [vmem:[%s0 + $0x2c] sm:$0xf]
    %v47 = vld [vmem:[%s0 + $0x30] sm:$0xf]
    %v48 = vld [vmem:[%s0 + $0x34] sm:$0xf]
    %v49 = vld [vmem:[%s0 + $0x38] sm:$0xf]
    %v50 = vld [vmem:[%s0 + $0x3c] sm:$0xf]
    %v51 = vld [vmem:[%s0 + $0x40] sm:$0xf]
    %v52 = vld [vmem:[%s0 + $0x44] sm:$0xf]
    %v53 = vld [vmem:[%s0 + $0x48] sm:$0xf]
    %v54 = vld [vmem:[%s0 + $0x4c] sm:$0xf]
    %v55 = vld [vmem:[%s0 + $0x50] sm:$0xf]
    %v56 = vld [vmem:[%s0 + $0x54] sm:$0xf]
    %v57 = vld [vmem:[%s0 + $0x58] sm:$0xf]
    %v58 = vld [vmem:[%s0 + $0x5c] sm:$0xf]
    %v59 = vld [vmem:[%s0 + $0x60] sm:$0xf]
    %v60 = vld [vmem:[%s0 + $0x64] sm:$0xf]
    %v61 = vld [vmem:[%s0 + $0x68] sm:$0xf]
    %v62 = vld [vmem:[%s0 + $0x6c] sm:$0xf]
    %v63 = vld [vmem:[%s0 + $0x70] sm:$0xf]
    %v64 = vld [vmem:[%s0 + $0x74] sm:$0xf]
    %v65 = vld [vmem:[%s0 + $0x78] sm:$0xf]
    %v66 = vld [vmem:[%s0 + $0x7c] sm:$0xf]
    %v67 = vld [vmem:[%s1] sm:$0xf]
    %v68 = vld [vmem:[%s1 + $0x4] sm:$0xf]
    %v69 = vld [vmem:[%s1 + $0x8] sm:$0xf]
    %v70 = vld [vmem:[%s1 + $0xc] sm:$0xf]
    %v71 = vld [vmem:[%s1 + $0x10] sm:$0xf]
    %v72 = vld [vmem:[%s1 + $0x14] sm:$0xf]
    %v73 = vld [vmem:[%s1 + $0x18] sm:$0xf]
    %v74 = vld [vmem:[%s1 + $0x1c] sm:$0xf]
    %v75 = vld [vmem:[%s1 + $0x20] sm:$0xf]
    %v76 = vld [vmem:[%s1 + $0x24] sm:$0xf]
    %v77 = vld [vmem:[%s1 + $0x28] sm:$0xf]
    %v78 = vld [vmem:[%s1 + $0x2c] sm:$0xf]
    %v79 = vld [vmem:[%s1 + $0x30] sm:$0xf]
    %v80 = vld [vmem:[%s1 + $0x34] sm:$0xf]
    %v81 = vld [vmem:[%s1 + $0x38] sm:$0xf]
    %v82 = vld [vmem:[%s1 + $0x3c] sm:$0xf]
    %v84 = vperm.slane %v33, 0
    %v118 = vunpack.c.l.b16 %v35
    %v119 = vunpack.c.l.b16 %v36
    %v120 = vunpack.c.l.b16 %v37
    %v121 = vunpack.c.l.b16 %v38
    %v122 = vunpack.c.l.b16 %v39
    %v123 = vunpack.c.l.b16 %v40
    %v124 = vunpack.c.l.b16 %v41
    %v125 = vunpack.c.l.b16 %v42
    %v126 = vunpack.c.l.b16 %v43
    %v127 = vunpack.c.l.b16 %v44
    %v128 = vunpack.c.l.b16 %v45
    %v129 = vunpack.c.l.b16 %v46
    %v130 = vunpack.c.l.b16 %v47
    %v131 = vunpack.c.l.b16 %v48
    %v132 = vunpack.c.l.b16 %v49
    %v133 = vunpack.c.l.b16 %v50
    %v134 = vunpack.c.l.b16 %v51
    %v135 = vunpack.c.l.b16 %v52
    %v136 = vunpack.c.l.b16 %v53
    %v137 = vunpack.c.l.b16 %v54
    %v138 = vunpack.c.l.b16 %v55
    %v139 = vunpack.c.l.b16 %v56
    %v140 = vunpack.c.l.b16 %v57
    %v141 = vunpack.c.l.b16 %v58
    %v142 = vunpack.c.l.b16 %v59
    %v143 = vunpack.c.l.b16 %v60
    %v144 = vunpack.c.l.b16 %v61
    %v145 = vunpack.c.l.b16 %v62
    %v146 = vunpack.c.l.b16 %v63
    %v147 = vunpack.c.l.b16 %v64
    %v148 = vunpack.c.l.b16 %v65
    %v149 = vunpack.c.l.b16 %v66
    %v150 = vpack.c.b16 %v119, %v118
    %v151 = vpack.c.b16 %v121, %v120
    %v152 = vpack.c.b16 %v123, %v122
    %v153 = vpack.c.b16 %v125, %v124
    %v154 = vpack.c.b16 %v127, %v126
    %v155 = vpack.c.b16 %v129, %v128
    %v156 = vpack.c.b16 %v131, %v130
    %v157 = vpack.c.b16 %v133, %v132
    %v158 = vpack.c.b16 %v135, %v134
    %v159 = vpack.c.b16 %v137, %v136
    %v160 = vpack.c.b16 %v139, %v138
    %v161 = vpack.c.b16 %v141, %v140
    %v162 = vpack.c.b16 %v143, %v142
    %v163 = vpack.c.b16 %v145, %v144
    %v164 = vpack.c.b16 %v147, %v146
    %v165 = vpack.c.b16 %v149, %v148
    %v198 = vunpack.c.l.b16 %v67
    %v199 = vunpack.c.l.b16 %v68
    %v200 = vunpack.c.l.b16 %v69
    %v201 = vunpack.c.l.b16 %v70
    %v202 = vunpack.c.l.b16 %v71
    %v203 = vunpack.c.l.b16 %v72
    %v204 = vunpack.c.l.b16 %v73
    %v205 = vunpack.c.l.b16 %v74
    %v206 = vunpack.c.l.b16 %v75
    %v207 = vunpack.c.l.b16 %v76
    %v208 = vunpack.c.l.b16 %v77
    %v209 = vunpack.c.l.b16 %v78
    %v210 = vunpack.c.l.b16 %v79
    %v211 = vunpack.c.l.b16 %v80
    %v212 = vunpack.c.l.b16 %v81
    %v213 = vunpack.c.l.b16 %v82
    %v214 = vpack.c.b16 %v199, %v198
    %v215 = vpack.c.b16 %v201, %v200
    %v216 = vpack.c.b16 %v203, %v202
    %v217 = vpack.c.b16 %v205, %v204
    %v218 = vpack.c.b16 %v207, %v206
    %v219 = vpack.c.b16 %v209, %v208
    %v220 = vpack.c.b16 %v211, %v210
    %v221 = vpack.c.b16 %v213, %v212
    %230 = vmatpush.bf16.msra.mxu0 %v221
    %231 = vmatpush.bf16.msra.mxu0 %v220
    %232 = vmatpush.bf16.msra.mxu0 %v219
    %233 = vmatpush.bf16.msra.mxu0 %v218
    %234 = vmatpush.bf16.msra.mxu0 %v217
    %235 = vmatpush.bf16.msra.mxu0 %v216
    %236 = vmatpush.bf16.msra.mxu0 %v215
    %237 = vmatpush.bf16.msra.mxu0 %v214
    %238 = vmatmul.bf16.gmra.mxu0 %v150
    %v239 = vpop.f32.mrf.mxu0
    %v240 = vadd.f32 %v84, %v239
    %v241 = vpop.f32.mrf.mxu0
    %v242 = vadd.f32 %v84, %v241
    %243 = vmatmul.bf16.gmra.mxu0 %v151
    %v244 = vpop.f32.mrf.mxu0
    %v245 = vadd.f32 %v84, %v244
    %v246 = vpop.f32.mrf.mxu0
    %v247 = vadd.f32 %v84, %v246
    %248 = vmatmul.bf16.gmra.mxu0 %v152
    %v249 = vpop.f32.mrf.mxu0
    %v250 = vadd.f32 %v84, %v249
    %v251 = vpop.f32.mrf.mxu0
    %v252 = vadd.f32 %v84, %v251
    %253 = vmatmul.bf16.gmra.mxu0 %v153
    %v254 = vpop.f32.mrf.mxu0
    %v255 = vadd.f32 %v84, %v254
    %v256 = vpop.f32.mrf.mxu0
    %v257 = vadd.f32 %v84, %v256
    %258 = vmatmul.bf16.gmra.mxu0 %v154
    %v259 = vpop.f32.mrf.mxu0
    %v260 = vadd.f32 %v84, %v259
    %v261 = vpop.f32.mrf.mxu0
    %v262 = vadd.f32 %v84, %v261
    %263 = vmatmul.bf16.gmra.mxu0 %v155
    %v264 = vpop.f32.mrf.mxu0
    %v265 = vadd.f32 %v84, %v264
    %v266 = vpop.f32.mrf.mxu0
    %v267 = vadd.f32 %v84, %v266
    %268 = vmatmul.bf16.gmra.mxu0 %v156
    %v269 = vpop.f32.mrf.mxu0
    %v270 = vadd.f32 %v84, %v269
    %v271 = vpop.f32.mrf.mxu0
    %v272 = vadd.f32 %v84, %v271
    %273 = vmatmul.bf16.gmra.mxu0 %v157
    %v274 = vpop.f32.mrf.mxu0
    %v275 = vadd.f32 %v84, %v274
    %v276 = vpop.f32.mrf.mxu0
    %v277 = vadd.f32 %v84, %v276
    %278 = vmatmul.bf16.gmra.mxu0 %v158
    %v279 = vpop.f32.mrf.mxu0
    %v280 = vadd.f32 %v84, %v279
    %v281 = vpop.f32.mrf.mxu0
    %v282 = vadd.f32 %v84, %v281
    %283 = vmatmul.bf16.gmra.mxu0 %v159
    %v284 = vpop.f32.mrf.mxu0
    %v285 = vadd.f32 %v84, %v284
    %v286 = vpop.f32.mrf.mxu0
    %v287 = vadd.f32 %v84, %v286
    %288 = vmatmul.bf16.gmra.mxu0 %v160
    %v289 = vpop.f32.mrf.mxu0
    %v290 = vadd.f32 %v84, %v289
    %v291 = vpop.f32.mrf.mxu0
    %v292 = vadd.f32 %v84, %v291
    %293 = vmatmul.bf16.gmra.mxu0 %v161
    %v294 = vpop.f32.mrf.mxu0
    %v295 = vadd.f32 %v84, %v294
    %v296 = vpop.f32.mrf.mxu0
    %v297 = vadd.f32 %v84, %v296
    %298 = vmatmul.bf16.gmra.mxu0 %v162
    %v299 = vpop.f32.mrf.mxu0
    %v300 = vadd.f32 %v84, %v299
    %v301 = vpop.f32.mrf.mxu0
    %v302 = vadd.f32 %v84, %v301
    %303 = vmatmul.bf16.gmra.mxu0 %v163
    %v304 = vpop.f32.mrf.mxu0
    %v305 = vadd.f32 %v84, %v304
    %v306 = vpop.f32.mrf.mxu0
    %v307 = vadd.f32 %v84, %v306
    %308 = vmatmul.bf16.gmra.mxu0 %v164
    %v309 = vpop.f32.mrf.mxu0
    %v310 = vadd.f32 %v84, %v309
    %v311 = vpop.f32.mrf.mxu0
    %v312 = vadd.f32 %v84, %v311
    %313 = vmatmul.bf16.gmra.mxu0 %v165
    %v314 = vpop.f32.mrf.mxu0
    %v315 = vadd.f32 %v84, %v314
    %v316 = vpop.f32.mrf.mxu0
    %v317 = vadd.f32 %v84, %v316
    %318 = vdwg.mxu0
    %v319 = vmax.f32 %v240, 0.0
    %v320 = vmax.f32 %v242, 0.0
    %v321 = vmax.f32 %v245, 0.0
    %v322 = vmax.f32 %v247, 0.0
    %v323 = vmax.f32 %v250, 0.0
    %v324 = vmax.f32 %v252, 0.0
    %v325 = vmax.f32 %v255, 0.0
    %v326 = vmax.f32 %v257, 0.0
    %v327 = vmax.f32 %v260, 0.0
    %v328 = vmax.f32 %v262, 0.0
    %v329 = vmax.f32 %v265, 0.0
    %v330 = vmax.f32 %v267, 0.0
    %v331 = vmax.f32 %v270, 0.0
    %v332 = vmax.f32 %v272, 0.0
    %v333 = vmax.f32 %v275, 0.0
    %v334 = vmax.f32 %v277, 0.0
    %v335 = vmax.f32 %v280, 0.0
    %v336 = vmax.f32 %v282, 0.0
    %v337 = vmax.f32 %v285, 0.0
    %v338 = vmax.f32 %v287, 0.0
    %v339 = vmax.f32 %v290, 0.0
    %v340 = vmax.f32 %v292, 0.0
    %v341 = vmax.f32 %v295, 0.0
    %v342 = vmax.f32 %v297, 0.0
    %v343 = vmax.f32 %v300, 0.0
    %v344 = vmax.f32 %v302, 0.0
    %v345 = vmax.f32 %v305, 0.0
    %v346 = vmax.f32 %v307, 0.0
    %v347 = vmax.f32 %v310, 0.0
    %v348 = vmax.f32 %v312, 0.0
    %v349 = vmax.f32 %v315, 0.0
    %v350 = vmax.f32 %v317, 0.0
    %v351 = vadd.f32 %v319, %v320
    %v352 = vadd.f32 %v351, %v321
    %v353 = vadd.f32 %v352, %v322
    %v354 = vadd.f32 %v353, %v323
    %v355 = vadd.f32 %v354, %v324
    %v356 = vadd.f32 %v355, %v325
    %v357 = vadd.f32 %v356, %v326
    %v358 = vadd.f32 %v357, %v327
    %v359 = vadd.f32 %v358, %v328
    %v360 = vadd.f32 %v359, %v329
    %v361 = vadd.f32 %v360, %v330
    %v362 = vadd.f32 %v361, %v331
    %v363 = vadd.f32 %v362, %v332
    %v364 = vadd.f32 %v363, %v333
    %v365 = vadd.f32 %v364, %v334
    %v366 = vadd.f32 %v365, %v335
    %v367 = vadd.f32 %v366, %v336
    %v368 = vadd.f32 %v367, %v337
    %v369 = vadd.f32 %v368, %v338
    %v370 = vadd.f32 %v369, %v339
    %v371 = vadd.f32 %v370, %v340
    %v372 = vadd.f32 %v371, %v341
    %v373 = vadd.f32 %v372, %v342
    %v374 = vadd.f32 %v373, %v343
    %v375 = vadd.f32 %v374, %v344
    %v376 = vadd.f32 %v375, %v345
    %v377 = vadd.f32 %v376, %v346
    %v378 = vadd.f32 %v377, %v347
    %v379 = vadd.f32 %v378, %v348
    %v380 = vadd.f32 %v379, %v349
    %v381 = vadd.f32 %v380, %v350
    %v382 = vrot.slane %v381, 4
    %v383 = vadd.f32 %v381, %v382
    %v384 = vrot.slane %v383, 2
    %v385 = vadd.f32 %v383, %v384
    %v386 = vrot.slane %v385, 1
    %v387 = vadd.f32 %v385, %v386
    %v388 = vrcp.pop 256.0
    %v389 = vmul.f32 256.0, %v388
    %v390 = vsub.f32 1.0, %v389
    %v391 = vmul.f32 %v388, %v390
    %v392 = vadd.f32 %v388, %v391
    %vm393 = vweird.f32 %v388
    %v394 = vsel %vm393, %v388, %v392
    %v395 = vmul.f32 %v387, %v394
    %v396 = vpack.c.bf16 %v395, %v395
    %v397 = vld [vmem:[%s3] sm:$0xff]
    %v398 = vld [vmem:[%s3 + $0x8] sm:$0xff]
    %v399 = vld [vmem:[%s3 + $0x10] sm:$0xff]
    %v400 = vld [vmem:[%s3 + $0x18] sm:$0xff]
    %v401 = vld [vmem:[%s3 + $0x20] sm:$0xff]
    %v402 = vld [vmem:[%s3 + $0x28] sm:$0xff]
    %v403 = vld [vmem:[%s3 + $0x30] sm:$0xff]
    %v404 = vld [vmem:[%s3 + $0x38] sm:$0xff]
    %v405 = vld [vmem:[%s3 + $0x40] sm:$0xff]
    %v406 = vld [vmem:[%s3 + $0x48] sm:$0xff]
    %v407 = vld [vmem:[%s3 + $0x50] sm:$0xff]
    %v408 = vld [vmem:[%s3 + $0x58] sm:$0xff]
    %v409 = vld [vmem:[%s3 + $0x60] sm:$0xff]
    %v410 = vld [vmem:[%s3 + $0x68] sm:$0xff]
    %v411 = vld [vmem:[%s3 + $0x70] sm:$0xff]
    %v412 = vld [vmem:[%s3 + $0x78] sm:$0xff]
    %v413 = vld [vmem:[%s3 + $0x80] sm:$0xff]
    %v414 = vld [vmem:[%s3 + $0x88] sm:$0xff]
    %v415 = vld [vmem:[%s3 + $0x90] sm:$0xff]
    %v416 = vld [vmem:[%s3 + $0x98] sm:$0xff]
    %v417 = vld [vmem:[%s3 + $0xa0] sm:$0xff]
    %v418 = vld [vmem:[%s3 + $0xa8] sm:$0xff]
    %v419 = vld [vmem:[%s3 + $0xb0] sm:$0xff]
    %v420 = vld [vmem:[%s3 + $0xb8] sm:$0xff]
    %v421 = vld [vmem:[%s3 + $0xc0] sm:$0xff]
    %v422 = vld [vmem:[%s3 + $0xc8] sm:$0xff]
    %v423 = vld [vmem:[%s3 + $0xd0] sm:$0xff]
    %v424 = vld [vmem:[%s3 + $0xd8] sm:$0xff]
    %v425 = vld [vmem:[%s3 + $0xe0] sm:$0xff]
    %v426 = vld [vmem:[%s3 + $0xe8] sm:$0xff]
    %v427 = vld [vmem:[%s3 + $0xf0] sm:$0xff]
    %v428 = vld [vmem:[%s3 + $0xf8] sm:$0xff]
    %v461 = vunpack.c.l.b16 %v397
    %v462 = vunpack.c.h.b16 %v397
    %v463 = vunpack.c.l.b16 %v398
    %v464 = vunpack.c.h.b16 %v398
    %v465 = vunpack.c.l.b16 %v399
    %v466 = vunpack.c.h.b16 %v399
    %v467 = vunpack.c.l.b16 %v400
    %v468 = vunpack.c.h.b16 %v400
    %v469 = vunpack.c.l.b16 %v401
    %v470 = vunpack.c.h.b16 %v401
    %v471 = vunpack.c.l.b16 %v402
    %v472 = vunpack.c.h.b16 %v402
    %v473 = vunpack.c.l.b16 %v403
    %v474 = vunpack.c.h.b16 %v403
    %v475 = vunpack.c.l.b16 %v404
    %v476 = vunpack.c.h.b16 %v404
    %v477 = vunpack.c.l.b16 %v405
    %v478 = vunpack.c.h.b16 %v405
    %v479 = vunpack.c.l.b16 %v406
    %v480 = vunpack.c.h.b16 %v406
    %v481 = vunpack.c.l.b16 %v407
    %v482 = vunpack.c.h.b16 %v407
    %v483 = vunpack.c.l.b16 %v408
    %v484 = vunpack.c.h.b16 %v408
    %v485 = vunpack.c.l.b16 %v409
    %v486 = vunpack.c.h.b16 %v409
    %v487 = vunpack.c.l.b16 %v410
    %v488 = vunpack.c.h.b16 %v410
    %v489 = vunpack.c.l.b16 %v411
    %v490 = vunpack.c.h.b16 %v411
    %v491 = vunpack.c.l.b16 %v412
    %v492 = vunpack.c.h.b16 %v412
    %v493 = vunpack.c.l.b16 %v413
    %v494 = vunpack.c.h.b16 %v413
    %v495 = vunpack.c.l.b16 %v414
    %v496 = vunpack.c.h.b16 %v414
    %v497 = vunpack.c.l.b16 %v415
    %v498 = vunpack.c.h.b16 %v415
    %v499 = vunpack.c.l.b16 %v416
    %v500 = vunpack.c.h.b16 %v416
    %v501 = vunpack.c.l.b16 %v417
    %v502 = vunpack.c.h.b16 %v417
    %v503 = vunpack.c.l.b16 %v418
    %v504 = vunpack.c.h.b16 %v418
    %v505 = vunpack.c.l.b16 %v419
    %v506 = vunpack.c.h.b16 %v419
    %v507 = vunpack.c.l.b16 %v420
    %v508 = vunpack.c.h.b16 %v420
    %v509 = vunpack.c.l.b16 %v421
    %v510 = vunpack.c.h.b16 %v421
    %v511 = vunpack.c.l.b16 %v422
    %v512 = vunpack.c.h.b16 %v422
    %v513 = vunpack.c.l.b16 %v423
    %v514 = vunpack.c.h.b16 %v423
    %v515 = vunpack.c.l.b16 %v424
    %v516 = vunpack.c.h.b16 %v424
    %v517 = vunpack.c.l.b16 %v425
    %v518 = vunpack.c.h.b16 %v425
    %v519 = vunpack.c.l.b16 %v426
    %v520 = vunpack.c.h.b16 %v426
    %v521 = vunpack.c.l.b16 %v427
    %v522 = vunpack.c.h.b16 %v427
    %v523 = vunpack.c.l.b16 %v428
    %v524 = vunpack.c.h.b16 %v428
    %v525 = vpack.c.b16 %v465, %v461
    %v526 = vpack.c.b16 %v466, %v462
    %v527 = vpack.c.b16 %v467, %v463
    %v528 = vpack.c.b16 %v468, %v464
    %v529 = vpack.c.b16 %v473, %v469
    %v530 = vpack.c.b16 %v474, %v470
    %v531 = vpack.c.b16 %v475, %v471
    %v532 = vpack.c.b16 %v476, %v472
    %v533 = vpack.c.b16 %v481, %v477
    %v534 = vpack.c.b16 %v482, %v478
    %v535 = vpack.c.b16 %v483, %v479
    %v536 = vpack.c.b16 %v484, %v480
    %v537 = vpack.c.b16 %v489, %v485
    %v538 = vpack.c.b16 %v490, %v486
    %v539 = vpack.c.b16 %v491, %v487
    %v540 = vpack.c.b16 %v492, %v488
    %v541 = vpack.c.b16 %v497, %v493
    %v542 = vpack.c.b16 %v498, %v494
    %v543 = vpack.c.b16 %v499, %v495
    %v544 = vpack.c.b16 %v500, %v496
    %v545 = vpack.c.b16 %v505, %v501
    %v546 = vpack.c.b16 %v506, %v502
    %v547 = vpack.c.b16 %v507, %v503
    %v548 = vpack.c.b16 %v508, %v504
    %v549 = vpack.c.b16 %v513, %v509
    %v550 = vpack.c.b16 %v514, %v510
    %v551 = vpack.c.b16 %v515, %v511
    %v552 = vpack.c.b16 %v516, %v512
    %v553 = vpack.c.b16 %v521, %v517
    %v554 = vpack.c.b16 %v522, %v518
    %v555 = vpack.c.b16 %v523, %v519
    %v556 = vpack.c.b16 %v524, %v520
    %v590 = vperm.slane %v34, 0
    %v591 = vperm.slane %v34, 1
    %v592 = vperm.slane %v34, 2
    %v593 = vperm.slane %v34, 3
    %598 = vmatpush.bf16.msra.mxu0 %v553
    %599 = vmatpush.bf16.msra.mxu0 %v549
    %600 = vmatpush.bf16.msra.mxu0 %v545
    %601 = vmatpush.bf16.msra.mxu0 %v541
    %602 = vmatpush.bf16.msra.mxu0 %v537
    %603 = vmatpush.bf16.msra.mxu0 %v533
    %604 = vmatpush.bf16.msra.mxu0 %v529
    %605 = vmatpush.bf16.msra.mxu0 %v525
    %606 = vmatmul.bf16.gmra.mxu0 %v396
    %v607 = vpop.f32.mrf.mxu0
    %v608 = vadd.f32 %v590, %v607
    %v609 = vpop.f32.mrf.mxu0
    %610 = vdwg.mxu0
    %611 = vmatpush.bf16.msra.mxu0 %v554
    %612 = vmatpush.bf16.msra.mxu0 %v550
    %613 = vmatpush.bf16.msra.mxu0 %v546
    %614 = vmatpush.bf16.msra.mxu0 %v542
    %615 = vmatpush.bf16.msra.mxu0 %v538
    %616 = vmatpush.bf16.msra.mxu0 %v534
    %617 = vmatpush.bf16.msra.mxu0 %v530
    %618 = vmatpush.bf16.msra.mxu0 %v526
    %619 = vmatmul.bf16.gmra.mxu0 %v396
    %v620 = vpop.f32.mrf.mxu0
    %v621 = vadd.f32 %v591, %v620
    %v622 = vpop.f32.mrf.mxu0
    %623 = vdwg.mxu0
    %624 = vmatpush.bf16.msra.mxu0 %v555
    %625 = vmatpush.bf16.msra.mxu0 %v551
    %626 = vmatpush.bf16.msra.mxu0 %v547
    %627 = vmatpush.bf16.msra.mxu0 %v543
    %628 = vmatpush.bf16.msra.mxu0 %v539
    %629 = vmatpush.bf16.msra.mxu0 %v535
    %630 = vmatpush.bf16.msra.mxu0 %v531
    %631 = vmatpush.bf16.msra.mxu0 %v527
    %632 = vmatmul.bf16.gmra.mxu0 %v396
    %v633 = vpop.f32.mrf.mxu0
    %v634 = vadd.f32 %v592, %v633
    %v635 = vpop.f32.mrf.mxu0
    %636 = vdwg.mxu0
    %637 = vmatpush.bf16.msra.mxu0 %v556
    %638 = vmatpush.bf16.msra.mxu0 %v552
    %639 = vmatpush.bf16.msra.mxu0 %v548
    %640 = vmatpush.bf16.msra.mxu0 %v544
    %641 = vmatpush.bf16.msra.mxu0 %v540
    %642 = vmatpush.bf16.msra.mxu0 %v536
    %643 = vmatpush.bf16.msra.mxu0 %v532
    %644 = vmatpush.bf16.msra.mxu0 %v528
    %645 = vmatmul.bf16.gmra.mxu0 %v396
    %v646 = vpop.f32.mrf.mxu0
    %v647 = vadd.f32 %v593, %v646
    %v648 = vpop.f32.mrf.mxu0
    %649 = vdwg.mxu0
    %v650 = vld [vmem:[%s0 + $0x80] sm:$0xf]
    %v651 = vld [vmem:[%s0 + $0x84] sm:$0xf]
    %v652 = vld [vmem:[%s0 + $0x88] sm:$0xf]
    %v653 = vld [vmem:[%s0 + $0x8c] sm:$0xf]
    %v654 = vld [vmem:[%s0 + $0x90] sm:$0xf]
    %v655 = vld [vmem:[%s0 + $0x94] sm:$0xf]
    %v656 = vld [vmem:[%s0 + $0x98] sm:$0xf]
    %v657 = vld [vmem:[%s0 + $0x9c] sm:$0xf]
    %v658 = vld [vmem:[%s0 + $0xa0] sm:$0xf]
    %v659 = vld [vmem:[%s0 + $0xa4] sm:$0xf]
    %v660 = vld [vmem:[%s0 + $0xa8] sm:$0xf]
    %v661 = vld [vmem:[%s0 + $0xac] sm:$0xf]
    %v662 = vld [vmem:[%s0 + $0xb0] sm:$0xf]
    %v663 = vld [vmem:[%s0 + $0xb4] sm:$0xf]
    %v664 = vld [vmem:[%s0 + $0xb8] sm:$0xf]
    %v665 = vld [vmem:[%s0 + $0xbc] sm:$0xf]
    %v666 = vld [vmem:[%s0 + $0xc0] sm:$0xf]
    %v667 = vld [vmem:[%s0 + $0xc4] sm:$0xf]
    %v668 = vld [vmem:[%s0 + $0xc8] sm:$0xf]
    %v669 = vld [vmem:[%s0 + $0xcc] sm:$0xf]
    %v670 = vld [vmem:[%s0 + $0xd0] sm:$0xf]
    %v671 = vld [vmem:[%s0 + $0xd4] sm:$0xf]
    %v672 = vld [vmem:[%s0 + $0xd8] sm:$0xf]
    %v673 = vld [vmem:[%s0 + $0xdc] sm:$0xf]
    %v674 = vld [vmem:[%s0 + $0xe0] sm:$0xf]
    %v675 = vld [vmem:[%s0 + $0xe4] sm:$0xf]
    %v676 = vld [vmem:[%s0 + $0xe8] sm:$0xf]
    %v677 = vld [vmem:[%s0 + $0xec] sm:$0xf]
    %v678 = vld [vmem:[%s0 + $0xf0] sm:$0xf]
    %v679 = vld [vmem:[%s0 + $0xf4] sm:$0xf]
    %v680 = vld [vmem:[%s0 + $0xf8] sm:$0xf]
    %v681 = vld [vmem:[%s0 + $0xfc] sm:$0xf]
    %v714 = vunpack.c.l.b16 %v650
    %v715 = vunpack.c.l.b16 %v651
    %v716 = vunpack.c.l.b16 %v652
    %v717 = vunpack.c.l.b16 %v653
    %v718 = vunpack.c.l.b16 %v654
    %v719 = vunpack.c.l.b16 %v655
    %v720 = vunpack.c.l.b16 %v656
    %v721 = vunpack.c.l.b16 %v657
    %v722 = vunpack.c.l.b16 %v658
    %v723 = vunpack.c.l.b16 %v659
    %v724 = vunpack.c.l.b16 %v660
    %v725 = vunpack.c.l.b16 %v661
    %v726 = vunpack.c.l.b16 %v662
    %v727 = vunpack.c.l.b16 %v663
    %v728 = vunpack.c.l.b16 %v664
    %v729 = vunpack.c.l.b16 %v665
    %v730 = vunpack.c.l.b16 %v666
    %v731 = vunpack.c.l.b16 %v667
    %v732 = vunpack.c.l.b16 %v668
    %v733 = vunpack.c.l.b16 %v669
    %v734 = vunpack.c.l.b16 %v670
    %v735 = vunpack.c.l.b16 %v671
    %v736 = vunpack.c.l.b16 %v672
    %v737 = vunpack.c.l.b16 %v673
    %v738 = vunpack.c.l.b16 %v674
    %v739 = vunpack.c.l.b16 %v675
    %v740 = vunpack.c.l.b16 %v676
    %v741 = vunpack.c.l.b16 %v677
    %v742 = vunpack.c.l.b16 %v678
    %v743 = vunpack.c.l.b16 %v679
    %v744 = vunpack.c.l.b16 %v680
    %v745 = vunpack.c.l.b16 %v681
    %v746 = vpack.c.b16 %v715, %v714
    %v747 = vpack.c.b16 %v717, %v716
    %v748 = vpack.c.b16 %v719, %v718
    %v749 = vpack.c.b16 %v721, %v720
    %v750 = vpack.c.b16 %v723, %v722
    %v751 = vpack.c.b16 %v725, %v724
    %v752 = vpack.c.b16 %v727, %v726
    %v753 = vpack.c.b16 %v729, %v728
    %v754 = vpack.c.b16 %v731, %v730
    %v755 = vpack.c.b16 %v733, %v732
    %v756 = vpack.c.b16 %v735, %v734
    %v757 = vpack.c.b16 %v737, %v736
    %v758 = vpack.c.b16 %v739, %v738
    %v759 = vpack.c.b16 %v741, %v740
    %v760 = vpack.c.b16 %v743, %v742
    %v761 = vpack.c.b16 %v745, %v744
    %778 = vmatpush.bf16.msra.mxu0 %v221
    %779 = vmatpush.bf16.msra.mxu0 %v220
    %780 = vmatpush.bf16.msra.mxu0 %v219
    %781 = vmatpush.bf16.msra.mxu0 %v218
    %782 = vmatpush.bf16.msra.mxu0 %v217
    %783 = vmatpush.bf16.msra.mxu0 %v216
    %784 = vmatpush.bf16.msra.mxu0 %v215
    %785 = vmatpush.bf16.msra.mxu0 %v214
    %786 = vmatmul.bf16.gmra.mxu0 %v746
    %v787 = vpop.f32.mrf.mxu0
    %v788 = vadd.f32 %v84, %v787
    %v789 = vpop.f32.mrf.mxu0
    %v790 = vadd.f32 %v84, %v789
    %791 = vmatmul.bf16.gmra.mxu0 %v747
    %v792 = vpop.f32.mrf.mxu0
    %v793 = vadd.f32 %v84, %v792
    %v794 = vpop.f32.mrf.mxu0
    %v795 = vadd.f32 %v84, %v794
    %796 = vmatmul.bf16.gmra.mxu0 %v748
    %v797 = vpop.f32.mrf.mxu0
    %v798 = vadd.f32 %v84, %v797
    %v799 = vpop.f32.mrf.mxu0
    %v800 = vadd.f32 %v84, %v799
    %801 = vmatmul.bf16.gmra.mxu0 %v749
    %v802 = vpop.f32.mrf.mxu0
    %v803 = vadd.f32 %v84, %v802
    %v804 = vpop.f32.mrf.mxu0
    %v805 = vadd.f32 %v84, %v804
    %806 = vmatmul.bf16.gmra.mxu0 %v750
    %v807 = vpop.f32.mrf.mxu0
    %v808 = vadd.f32 %v84, %v807
    %v809 = vpop.f32.mrf.mxu0
    %v810 = vadd.f32 %v84, %v809
    %811 = vmatmul.bf16.gmra.mxu0 %v751
    %v812 = vpop.f32.mrf.mxu0
    %v813 = vadd.f32 %v84, %v812
    %v814 = vpop.f32.mrf.mxu0
    %v815 = vadd.f32 %v84, %v814
    %816 = vmatmul.bf16.gmra.mxu0 %v752
    %v817 = vpop.f32.mrf.mxu0
    %v818 = vadd.f32 %v84, %v817
    %v819 = vpop.f32.mrf.mxu0
    %v820 = vadd.f32 %v84, %v819
    %821 = vmatmul.bf16.gmra.mxu0 %v753
    %v822 = vpop.f32.mrf.mxu0
    %v823 = vadd.f32 %v84, %v822
    %v824 = vpop.f32.mrf.mxu0
    %v825 = vadd.f32 %v84, %v824
    %826 = vmatmul.bf16.gmra.mxu0 %v754
    %v827 = vpop.f32.mrf.mxu0
    %v828 = vadd.f32 %v84, %v827
    %v829 = vpop.f32.mrf.mxu0
    %v830 = vadd.f32 %v84, %v829
    %831 = vmatmul.bf16.gmra.mxu0 %v755
    %v832 = vpop.f32.mrf.mxu0
    %v833 = vadd.f32 %v84, %v832
    %v834 = vpop.f32.mrf.mxu0
    %v835 = vadd.f32 %v84, %v834
    %836 = vmatmul.bf16.gmra.mxu0 %v756
    %v837 = vpop.f32.mrf.mxu0
    %v838 = vadd.f32 %v84, %v837
    %v839 = vpop.f32.mrf.mxu0
    %v840 = vadd.f32 %v84, %v839
    %841 = vmatmul.bf16.gmra.mxu0 %v757
    %v842 = vpop.f32.mrf.mxu0
    %v843 = vadd.f32 %v84, %v842
    %v844 = vpop.f32.mrf.mxu0
    %v845 = vadd.f32 %v84, %v844
    %846 = vmatmul.bf16.gmra.mxu0 %v758
    %v847 = vpop.f32.mrf.mxu0
    %v848 = vadd.f32 %v84, %v847
    %v849 = vpop.f32.mrf.mxu0
    %v850 = vadd.f32 %v84, %v849
    %851 = vmatmul.bf16.gmra.mxu0 %v759
    %v852 = vpop.f32.mrf.mxu0
    %v853 = vadd.f32 %v84, %v852
    %v854 = vpop.f32.mrf.mxu0
    %v855 = vadd.f32 %v84, %v854
    %856 = vmatmul.bf16.gmra.mxu0 %v760
    %v857 = vpop.f32.mrf.mxu0
    %v858 = vadd.f32 %v84, %v857
    %v859 = vpop.f32.mrf.mxu0
    %v860 = vadd.f32 %v84, %v859
    %861 = vmatmul.bf16.gmra.mxu0 %v761
    %v862 = vpop.f32.mrf.mxu0
    %v863 = vadd.f32 %v84, %v862
    %v864 = vpop.f32.mrf.mxu0
    %v865 = vadd.f32 %v84, %v864
    %866 = vdwg.mxu0
    %v867 = vmax.f32 %v788, 0.0
    %v868 = vmax.f32 %v790, 0.0
    %v869 = vmax.f32 %v793, 0.0
    %v870 = vmax.f32 %v795, 0.0
    %v871 = vmax.f32 %v798, 0.0
    %v872 = vmax.f32 %v800, 0.0
    %v873 = vmax.f32 %v803, 0.0
    %v874 = vmax.f32 %v805, 0.0
    %v875 = vmax.f32 %v808, 0.0
    %v876 = vmax.f32 %v810, 0.0
    %v877 = vmax.f32 %v813, 0.0
    %v878 = vmax.f32 %v815, 0.0
    %v879 = vmax.f32 %v818, 0.0
    %v880 = vmax.f32 %v820, 0.0
    %v881 = vmax.f32 %v823, 0.0
    %v882 = vmax.f32 %v825, 0.0
    %v883 = vmax.f32 %v828, 0.0
    %v884 = vmax.f32 %v830, 0.0
    %v885 = vmax.f32 %v833, 0.0
    %v886 = vmax.f32 %v835, 0.0
    %v887 = vmax.f32 %v838, 0.0
    %v888 = vmax.f32 %v840, 0.0
    %v889 = vmax.f32 %v843, 0.0
    %v890 = vmax.f32 %v845, 0.0
    %v891 = vmax.f32 %v848, 0.0
    %v892 = vmax.f32 %v850, 0.0
    %v893 = vmax.f32 %v853, 0.0
    %v894 = vmax.f32 %v855, 0.0
    %v895 = vmax.f32 %v858, 0.0
    %v896 = vmax.f32 %v860, 0.0
    %v897 = vmax.f32 %v863, 0.0
    %v898 = vmax.f32 %v865, 0.0
    %v899 = vadd.f32 %v867, %v868
    %v900 = vadd.f32 %v899, %v869
    %v901 = vadd.f32 %v900, %v870
    %v902 = vadd.f32 %v901, %v871
    %v903 = vadd.f32 %v902, %v872
    %v904 = vadd.f32 %v903, %v873
    %v905 = vadd.f32 %v904, %v874
    %v906 = vadd.f32 %v905, %v875
    %v907 = vadd.f32 %v906, %v876
    %v908 = vadd.f32 %v907, %v877
    %v909 = vadd.f32 %v908, %v878
    %v910 = vadd.f32 %v909, %v879
    %v911 = vadd.f32 %v910, %v880
    %v912 = vadd.f32 %v911, %v881
    %v913 = vadd.f32 %v912, %v882
    %v914 = vadd.f32 %v913, %v883
    %v915 = vadd.f32 %v914, %v884
    %v916 = vadd.f32 %v915, %v885
    %v917 = vadd.f32 %v916, %v886
    %v918 = vadd.f32 %v917, %v887
    %v919 = vadd.f32 %v918, %v888
    %v920 = vadd.f32 %v919, %v889
    %v921 = vadd.f32 %v920, %v890
    %v922 = vadd.f32 %v921, %v891
    %v923 = vadd.f32 %v922, %v892
    %v924 = vadd.f32 %v923, %v893
    %v925 = vadd.f32 %v924, %v894
    %v926 = vadd.f32 %v925, %v895
    %v927 = vadd.f32 %v926, %v896
    %v928 = vadd.f32 %v927, %v897
    %v929 = vadd.f32 %v928, %v898
    %v930 = vrot.slane %v929, 4
    %v931 = vadd.f32 %v929, %v930
    %v932 = vrot.slane %v931, 2
    %v933 = vadd.f32 %v931, %v932
    %v934 = vrot.slane %v933, 1
    %v935 = vadd.f32 %v933, %v934
    %v936 = vmul.f32 %v935, %v394
    %v937 = vpack.c.bf16 %v936, %v936
    %938 = vmatpush.bf16.msra.mxu0 %v553
    %939 = vmatpush.bf16.msra.mxu0 %v549
    %940 = vmatpush.bf16.msra.mxu0 %v545
    %941 = vmatpush.bf16.msra.mxu0 %v541
    %942 = vmatpush.bf16.msra.mxu0 %v537
    %943 = vmatpush.bf16.msra.mxu0 %v533
    %944 = vmatpush.bf16.msra.mxu0 %v529
    %945 = vmatpush.bf16.msra.mxu0 %v525
    %946 = vmatmul.bf16.gmra.mxu0 %v937
    %v947 = vpop.f32.mrf.mxu0
    %v948 = vadd.f32 %v590, %v947
    %v949 = vpop.f32.mrf.mxu0
    %950 = vdwg.mxu0
    %951 = vmatpush.bf16.msra.mxu0 %v554
    %952 = vmatpush.bf16.msra.mxu0 %v550
    %953 = vmatpush.bf16.msra.mxu0 %v546
    %954 = vmatpush.bf16.msra.mxu0 %v542
    %955 = vmatpush.bf16.msra.mxu0 %v538
    %956 = vmatpush.bf16.msra.mxu0 %v534
    %957 = vmatpush.bf16.msra.mxu0 %v530
    %958 = vmatpush.bf16.msra.mxu0 %v526
    %959 = vmatmul.bf16.gmra.mxu0 %v937
    %v960 = vpop.f32.mrf.mxu0
    %v961 = vadd.f32 %v591, %v960
    %v962 = vpop.f32.mrf.mxu0
    %963 = vdwg.mxu0
    %964 = vmatpush.bf16.msra.mxu0 %v555
    %965 = vmatpush.bf16.msra.mxu0 %v551
    %966 = vmatpush.bf16.msra.mxu0 %v547
    %967 = vmatpush.bf16.msra.mxu0 %v543
    %968 = vmatpush.bf16.msra.mxu0 %v539
    %969 = vmatpush.bf16.msra.mxu0 %v535
    %970 = vmatpush.bf16.msra.mxu0 %v531
    %971 = vmatpush.bf16.msra.mxu0 %v527
    %972 = vmatmul.bf16.gmra.mxu0 %v937
    %v973 = vpop.f32.mrf.mxu0
    %v974 = vadd.f32 %v592, %v973
    %v975 = vpop.f32.mrf.mxu0
    %976 = vdwg.mxu0
    %977 = vmatpush.bf16.msra.mxu0 %v556
    %978 = vmatpush.bf16.msra.mxu0 %v552
    %979 = vmatpush.bf16.msra.mxu0 %v548
    %980 = vmatpush.bf16.msra.mxu0 %v544
    %981 = vmatpush.bf16.msra.mxu0 %v540
    %982 = vmatpush.bf16.msra.mxu0 %v536
    %983 = vmatpush.bf16.msra.mxu0 %v532
    %984 = vmatpush.bf16.msra.mxu0 %v528
    %985 = vmatmul.bf16.gmra.mxu0 %v937
    %v986 = vpop.f32.mrf.mxu0
    %v987 = vadd.f32 %v593, %v986
    %v988 = vpop.f32.mrf.mxu0
    %989 = vdwg.mxu0
    %v990 = vld [vmem:[%s0 + $0x100] sm:$0xf]
    %v991 = vld [vmem:[%s0 + $0x104] sm:$0xf]
    %v992 = vld [vmem:[%s0 + $0x108] sm:$0xf]
    %v993 = vld [vmem:[%s0 + $0x10c] sm:$0xf]
    %v994 = vld [vmem:[%s0 + $0x110] sm:$0xf]
    %v995 = vld [vmem:[%s0 + $0x114] sm:$0xf]
    %v996 = vld [vmem:[%s0 + $0x118] sm:$0xf]
    %v997 = vld [vmem:[%s0 + $0x11c] sm:$0xf]
    %v998 = vld [vmem:[%s0 + $0x120] sm:$0xf]
    %v999 = vld [vmem:[%s0 + $0x124] sm:$0xf]
    %v1000 = vld [vmem:[%s0 + $0x128] sm:$0xf]
    %v1001 = vld [vmem:[%s0 + $0x12c] sm:$0xf]
    %v1002 = vld [vmem:[%s0 + $0x130] sm:$0xf]
    %v1003 = vld [vmem:[%s0 + $0x134] sm:$0xf]
    %v1004 = vld [vmem:[%s0 + $0x138] sm:$0xf]
    %v1005 = vld [vmem:[%s0 + $0x13c] sm:$0xf]
    %v1006 = vld [vmem:[%s0 + $0x140] sm:$0xf]
    %v1007 = vld [vmem:[%s0 + $0x144] sm:$0xf]
    %v1008 = vld [vmem:[%s0 + $0x148] sm:$0xf]
    %v1009 = vld [vmem:[%s0 + $0x14c] sm:$0xf]
    %v1010 = vld [vmem:[%s0 + $0x150] sm:$0xf]
    %v1011 = vld [vmem:[%s0 + $0x154] sm:$0xf]
    %v1012 = vld [vmem:[%s0 + $0x158] sm:$0xf]
    %v1013 = vld [vmem:[%s0 + $0x15c] sm:$0xf]
    %v1014 = vld [vmem:[%s0 + $0x160] sm:$0xf]
    %v1015 = vld [vmem:[%s0 + $0x164] sm:$0xf]
    %v1016 = vld [vmem:[%s0 + $0x168] sm:$0xf]
    %v1017 = vld [vmem:[%s0 + $0x16c] sm:$0xf]
    %v1018 = vld [vmem:[%s0 + $0x170] sm:$0xf]
    %v1019 = vld [vmem:[%s0 + $0x174] sm:$0xf]
    %v1020 = vld [vmem:[%s0 + $0x178] sm:$0xf]
    %v1021 = vld [vmem:[%s0 + $0x17c] sm:$0xf]
    %v1054 = vunpack.c.l.b16 %v990
    %v1055 = vunpack.c.l.b16 %v991
    %v1056 = vunpack.c.l.b16 %v992
    %v1057 = vunpack.c.l.b16 %v993
    %v1058 = vunpack.c.l.b16 %v994
    %v1059 = vunpack.c.l.b16 %v995
    %v1060 = vunpack.c.l.b16 %v996
    %v1061 = vunpack.c.l.b16 %v997
    %v1062 = vunpack.c.l.b16 %v998
    %v1063 = vunpack.c.l.b16 %v999
    %v1064 = vunpack.c.l.b16 %v1000
    %v1065 = vunpack.c.l.b16 %v1001
    %v1066 = vunpack.c.l.b16 %v1002
    %v1067 = vunpack.c.l.b16 %v1003
    %v1068 = vunpack.c.l.b16 %v1004
    %v1069 = vunpack.c.l.b16 %v1005
    %v1070 = vunpack.c.l.b16 %v1006
    %v1071 = vunpack.c.l.b16 %v1007
    %v1072 = vunpack.c.l.b16 %v1008
    %v1073 = vunpack.c.l.b16 %v1009
    %v1074 = vunpack.c.l.b16 %v1010
    %v1075 = vunpack.c.l.b16 %v1011
    %v1076 = vunpack.c.l.b16 %v1012
    %v1077 = vunpack.c.l.b16 %v1013
    %v1078 = vunpack.c.l.b16 %v1014
    %v1079 = vunpack.c.l.b16 %v1015
    %v1080 = vunpack.c.l.b16 %v1016
    %v1081 = vunpack.c.l.b16 %v1017
    %v1082 = vunpack.c.l.b16 %v1018
    %v1083 = vunpack.c.l.b16 %v1019
    %v1084 = vunpack.c.l.b16 %v1020
    %v1085 = vunpack.c.l.b16 %v1021
    %v1086 = vpack.c.b16 %v1055, %v1054
    %v1087 = vpack.c.b16 %v1057, %v1056
    %v1088 = vpack.c.b16 %v1059, %v1058
    %v1089 = vpack.c.b16 %v1061, %v1060
    %v1090 = vpack.c.b16 %v1063, %v1062
    %v1091 = vpack.c.b16 %v1065, %v1064
    %v1092 = vpack.c.b16 %v1067, %v1066
    %v1093 = vpack.c.b16 %v1069, %v1068
    %v1094 = vpack.c.b16 %v1071, %v1070
    %v1095 = vpack.c.b16 %v1073, %v1072
    %v1096 = vpack.c.b16 %v1075, %v1074
    %v1097 = vpack.c.b16 %v1077, %v1076
    %v1098 = vpack.c.b16 %v1079, %v1078
    %v1099 = vpack.c.b16 %v1081, %v1080
    %v1100 = vpack.c.b16 %v1083, %v1082
    %v1101 = vpack.c.b16 %v1085, %v1084
    %1118 = vmatpush.bf16.msra.mxu0 %v221
    %1119 = vmatpush.bf16.msra.mxu0 %v220
    %1120 = vmatpush.bf16.msra.mxu0 %v219
    %1121 = vmatpush.bf16.msra.mxu0 %v218
    %1122 = vmatpush.bf16.msra.mxu0 %v217
    %1123 = vmatpush.bf16.msra.mxu0 %v216
    %1124 = vmatpush.bf16.msra.mxu0 %v215
    %1125 = vmatpush.bf16.msra.mxu0 %v214
    %1126 = vmatmul.bf16.gmra.mxu0 %v1086
    %v1127 = vpop.f32.mrf.mxu0
    %v1128 = vadd.f32 %v84, %v1127
    %v1129 = vpop.f32.mrf.mxu0
    %v1130 = vadd.f32 %v84, %v1129
    %1131 = vmatmul.bf16.gmra.mxu0 %v1087
    %v1132 = vpop.f32.mrf.mxu0
    %v1133 = vadd.f32 %v84, %v1132
    %v1134 = vpop.f32.mrf.mxu0
    %v1135 = vadd.f32 %v84, %v1134
    %1136 = vmatmul.bf16.gmra.mxu0 %v1088
    %v1137 = vpop.f32.mrf.mxu0
    %v1138 = vadd.f32 %v84, %v1137
    %v1139 = vpop.f32.mrf.mxu0
    %v1140 = vadd.f32 %v84, %v1139
    %1141 = vmatmul.bf16.gmra.mxu0 %v1089
    %v1142 = vpop.f32.mrf.mxu0
    %v1143 = vadd.f32 %v84, %v1142
    %v1144 = vpop.f32.mrf.mxu0
    %v1145 = vadd.f32 %v84, %v1144
    %1146 = vmatmul.bf16.gmra.mxu0 %v1090
    %v1147 = vpop.f32.mrf.mxu0
    %v1148 = vadd.f32 %v84, %v1147
    %v1149 = vpop.f32.mrf.mxu0
    %v1150 = vadd.f32 %v84, %v1149
    %1151 = vmatmul.bf16.gmra.mxu0 %v1091
    %v1152 = vpop.f32.mrf.mxu0
    %v1153 = vadd.f32 %v84, %v1152
    %v1154 = vpop.f32.mrf.mxu0
    %v1155 = vadd.f32 %v84, %v1154
    %1156 = vmatmul.bf16.gmra.mxu0 %v1092
    %v1157 = vpop.f32.mrf.mxu0
    %v1158 = vadd.f32 %v84, %v1157
    %v1159 = vpop.f32.mrf.mxu0
    %v1160 = vadd.f32 %v84, %v1159
    %1161 = vmatmul.bf16.gmra.mxu0 %v1093
    %v1162 = vpop.f32.mrf.mxu0
    %v1163 = vadd.f32 %v84, %v1162
    %v1164 = vpop.f32.mrf.mxu0
    %v1165 = vadd.f32 %v84, %v1164
    %1166 = vmatmul.bf16.gmra.mxu0 %v1094
    %v1167 = vpop.f32.mrf.mxu0
    %v1168 = vadd.f32 %v84, %v1167
    %v1169 = vpop.f32.mrf.mxu0
    %v1170 = vadd.f32 %v84, %v1169
    %1171 = vmatmul.bf16.gmra.mxu0 %v1095
    %v1172 = vpop.f32.mrf.mxu0
    %v1173 = vadd.f32 %v84, %v1172
    %v1174 = vpop.f32.mrf.mxu0
    %v1175 = vadd.f32 %v84, %v1174
    %1176 = vmatmul.bf16.gmra.mxu0 %v1096
    %v1177 = vpop.f32.mrf.mxu0
    %v1178 = vadd.f32 %v84, %v1177
    %v1179 = vpop.f32.mrf.mxu0
    %v1180 = vadd.f32 %v84, %v1179
    %1181 = vmatmul.bf16.gmra.mxu0 %v1097
    %v1182 = vpop.f32.mrf.mxu0
    %v1183 = vadd.f32 %v84, %v1182
    %v1184 = vpop.f32.mrf.mxu0
    %v1185 = vadd.f32 %v84, %v1184
    %1186 = vmatmul.bf16.gmra.mxu0 %v1098
    %v1187 = vpop.f32.mrf.mxu0
    %v1188 = vadd.f32 %v84, %v1187
    %v1189 = vpop.f32.mrf.mxu0
    %v1190 = vadd.f32 %v84, %v1189
    %1191 = vmatmul.bf16.gmra.mxu0 %v1099
    %v1192 = vpop.f32.mrf.mxu0
    %v1193 = vadd.f32 %v84, %v1192
    %v1194 = vpop.f32.mrf.mxu0
    %v1195 = vadd.f32 %v84, %v1194
    %1196 = vmatmul.bf16.gmra.mxu0 %v1100
    %v1197 = vpop.f32.mrf.mxu0
    %v1198 = vadd.f32 %v84, %v1197
    %v1199 = vpop.f32.mrf.mxu0
    %v1200 = vadd.f32 %v84, %v1199
    %1201 = vmatmul.bf16.gmra.mxu0 %v1101
    %v1202 = vpop.f32.mrf.mxu0
    %v1203 = vadd.f32 %v84, %v1202
    %v1204 = vpop.f32.mrf.mxu0
    %v1205 = vadd.f32 %v84, %v1204
    %1206 = vdwg.mxu0
    %v1207 = vmax.f32 %v1128, 0.0
    %v1208 = vmax.f32 %v1130, 0.0
    %v1209 = vmax.f32 %v1133, 0.0
    %v1210 = vmax.f32 %v1135, 0.0
    %v1211 = vmax.f32 %v1138, 0.0
    %v1212 = vmax.f32 %v1140, 0.0
    %v1213 = vmax.f32 %v1143, 0.0
    %v1214 = vmax.f32 %v1145, 0.0
    %v1215 = vmax.f32 %v1148, 0.0
    %v1216 = vmax.f32 %v1150, 0.0
    %v1217 = vmax.f32 %v1153, 0.0
    %v1218 = vmax.f32 %v1155, 0.0
    %v1219 = vmax.f32 %v1158, 0.0
    %v1220 = vmax.f32 %v1160, 0.0
    %v1221 = vmax.f32 %v1163, 0.0
    %v1222 = vmax.f32 %v1165, 0.0
    %v1223 = vmax.f32 %v1168, 0.0
    %v1224 = vmax.f32 %v1170, 0.0
    %v1225 = vmax.f32 %v1173, 0.0
    %v1226 = vmax.f32 %v1175, 0.0
    %v1227 = vmax.f32 %v1178, 0.0
    %v1228 = vmax.f32 %v1180, 0.0
    %v1229 = vmax.f32 %v1183, 0.0
    %v1230 = vmax.f32 %v1185, 0.0
    %v1231 = vmax.f32 %v1188, 0.0
    %v1232 = vmax.f32 %v1190, 0.0
    %v1233 = vmax.f32 %v1193, 0.0
    %v1234 = vmax.f32 %v1195, 0.0
    %v1235 = vmax.f32 %v1198, 0.0
    %v1236 = vmax.f32 %v1200, 0.0
    %v1237 = vmax.f32 %v1203, 0.0
    %v1238 = vmax.f32 %v1205, 0.0
    %v1239 = vadd.f32 %v1207, %v1208
    %v1240 = vadd.f32 %v1239, %v1209
    %v1241 = vadd.f32 %v1240, %v1210
    %v1242 = vadd.f32 %v1241, %v1211
    %v1243 = vadd.f32 %v1242, %v1212
    %v1244 = vadd.f32 %v1243, %v1213
    %v1245 = vadd.f32 %v1244, %v1214
    %v1246 = vadd.f32 %v1245, %v1215
    %v1247 = vadd.f32 %v1246, %v1216
    %v1248 = vadd.f32 %v1247, %v1217
    %v1249 = vadd.f32 %v1248, %v1218
    %v1250 = vadd.f32 %v1249, %v1219
    %v1251 = vadd.f32 %v1250, %v1220
    %v1252 = vadd.f32 %v1251, %v1221
    %v1253 = vadd.f32 %v1252, %v1222
    %v1254 = vadd.f32 %v1253, %v1223
    %v1255 = vadd.f32 %v1254, %v1224
    %v1256 = vadd.f32 %v1255, %v1225
    %v1257 = vadd.f32 %v1256, %v1226
    %v1258 = vadd.f32 %v1257, %v1227
    %v1259 = vadd.f32 %v1258, %v1228
    %v1260 = vadd.f32 %v1259, %v1229
    %v1261 = vadd.f32 %v1260, %v1230
    %v1262 = vadd.f32 %v1261, %v1231
    %v1263 = vadd.f32 %v1262, %v1232
    %v1264 = vadd.f32 %v1263, %v1233
    %v1265 = vadd.f32 %v1264, %v1234
    %v1266 = vadd.f32 %v1265, %v1235
    %v1267 = vadd.f32 %v1266, %v1236
    %v1268 = vadd.f32 %v1267, %v1237
    %v1269 = vadd.f32 %v1268, %v1238
    %v1270 = vrot.slane %v1269, 4
    %v1271 = vadd.f32 %v1269, %v1270
    %v1272 = vrot.slane %v1271, 2
    %v1273 = vadd.f32 %v1271, %v1272
    %v1274 = vrot.slane %v1273, 1
    %v1275 = vadd.f32 %v1273, %v1274
    %v1276 = vmul.f32 %v1275, %v394
    %v1277 = vpack.c.bf16 %v1276, %v1276
    %1278 = vmatpush.bf16.msra.mxu0 %v553
    %1279 = vmatpush.bf16.msra.mxu0 %v549
    %1280 = vmatpush.bf16.msra.mxu0 %v545
    %1281 = vmatpush.bf16.msra.mxu0 %v541
    %1282 = vmatpush.bf16.msra.mxu0 %v537
    %1283 = vmatpush.bf16.msra.mxu0 %v533
    %1284 = vmatpush.bf16.msra.mxu0 %v529
    %1285 = vmatpush.bf16.msra.mxu0 %v525
    %1286 = vmatmul.bf16.gmra.mxu0 %v1277
    %v1287 = vpop.f32.mrf.mxu0
    %v1288 = vadd.f32 %v590, %v1287
    %v1289 = vpop.f32.mrf.mxu0
    %1290 = vdwg.mxu0
    %1291 = vmatpush.bf16.msra.mxu0 %v554
    %1292 = vmatpush.bf16.msra.mxu0 %v550
    %1293 = vmatpush.bf16.msra.mxu0 %v546
    %1294 = vmatpush.bf16.msra.mxu0 %v542
    %1295 = vmatpush.bf16.msra.mxu0 %v538
    %1296 = vmatpush.bf16.msra.mxu0 %v534
    %1297 = vmatpush.bf16.msra.mxu0 %v530
    %1298 = vmatpush.bf16.msra.mxu0 %v526
    %1299 = vmatmul.bf16.gmra.mxu0 %v1277
    %v1300 = vpop.f32.mrf.mxu0
    %v1301 = vadd.f32 %v591, %v1300
    %v1302 = vpop.f32.mrf.mxu0
    %1303 = vdwg.mxu0
    %1304 = vmatpush.bf16.msra.mxu0 %v555
    %1305 = vmatpush.bf16.msra.mxu0 %v551
    %1306 = vmatpush.bf16.msra.mxu0 %v547
    %1307 = vmatpush.bf16.msra.mxu0 %v543
    %1308 = vmatpush.bf16.msra.mxu0 %v539
    %1309 = vmatpush.bf16.msra.mxu0 %v535
    %1310 = vmatpush.bf16.msra.mxu0 %v531
    %1311 = vmatpush.bf16.msra.mxu0 %v527
    %1312 = vmatmul.bf16.gmra.mxu0 %v1277
    %v1313 = vpop.f32.mrf.mxu0
    %v1314 = vadd.f32 %v592, %v1313
    %v1315 = vpop.f32.mrf.mxu0
    %1316 = vdwg.mxu0
    %1317 = vmatpush.bf16.msra.mxu0 %v556
    %1318 = vmatpush.bf16.msra.mxu0 %v552
    %1319 = vmatpush.bf16.msra.mxu0 %v548
    %1320 = vmatpush.bf16.msra.mxu0 %v544
    %1321 = vmatpush.bf16.msra.mxu0 %v540
    %1322 = vmatpush.bf16.msra.mxu0 %v536
    %1323 = vmatpush.bf16.msra.mxu0 %v532
    %1324 = vmatpush.bf16.msra.mxu0 %v528
    %1325 = vmatmul.bf16.gmra.mxu0 %v1277
    %v1326 = vpop.f32.mrf.mxu0
    %v1327 = vadd.f32 %v593, %v1326
    %v1328 = vpop.f32.mrf.mxu0
    %1329 = vdwg.mxu0
    %v1330 = vld [vmem:[%s0 + $0x180] sm:$0xf]
    %v1331 = vld [vmem:[%s0 + $0x184] sm:$0xf]
    %v1332 = vld [vmem:[%s0 + $0x188] sm:$0xf]
    %v1333 = vld [vmem:[%s0 + $0x18c] sm:$0xf]
    %v1334 = vld [vmem:[%s0 + $0x190] sm:$0xf]
    %v1335 = vld [vmem:[%s0 + $0x194] sm:$0xf]
    %v1336 = vld [vmem:[%s0 + $0x198] sm:$0xf]
    %v1337 = vld [vmem:[%s0 + $0x19c] sm:$0xf]
    %v1338 = vld [vmem:[%s0 + $0x1a0] sm:$0xf]
    %v1339 = vld [vmem:[%s0 + $0x1a4] sm:$0xf]
    %v1340 = vld [vmem:[%s0 + $0x1a8] sm:$0xf]
    %v1341 = vld [vmem:[%s0 + $0x1ac] sm:$0xf]
    %v1342 = vld [vmem:[%s0 + $0x1b0] sm:$0xf]
    %v1343 = vld [vmem:[%s0 + $0x1b4] sm:$0xf]
    %v1344 = vld [vmem:[%s0 + $0x1b8] sm:$0xf]
    %v1345 = vld [vmem:[%s0 + $0x1bc] sm:$0xf]
    %v1346 = vld [vmem:[%s0 + $0x1c0] sm:$0xf]
    %v1347 = vld [vmem:[%s0 + $0x1c4] sm:$0xf]
    %v1348 = vld [vmem:[%s0 + $0x1c8] sm:$0xf]
    %v1349 = vld [vmem:[%s0 + $0x1cc] sm:$0xf]
    %v1350 = vld [vmem:[%s0 + $0x1d0] sm:$0xf]
    %v1351 = vld [vmem:[%s0 + $0x1d4] sm:$0xf]
    %v1352 = vld [vmem:[%s0 + $0x1d8] sm:$0xf]
    %v1353 = vld [vmem:[%s0 + $0x1dc] sm:$0xf]
    %v1354 = vld [vmem:[%s0 + $0x1e0] sm:$0xf]
    %v1355 = vld [vmem:[%s0 + $0x1e4] sm:$0xf]
    %v1356 = vld [vmem:[%s0 + $0x1e8] sm:$0xf]
    %v1357 = vld [vmem:[%s0 + $0x1ec] sm:$0xf]
    %v1358 = vld [vmem:[%s0 + $0x1f0] sm:$0xf]
    %v1359 = vld [vmem:[%s0 + $0x1f4] sm:$0xf]
    %v1360 = vld [vmem:[%s0 + $0x1f8] sm:$0xf]
    %v1361 = vld [vmem:[%s0 + $0x1fc] sm:$0xf]
    %v1394 = vunpack.c.l.b16 %v1330
    %v1395 = vunpack.c.l.b16 %v1331
    %v1396 = vunpack.c.l.b16 %v1332
    %v1397 = vunpack.c.l.b16 %v1333
    %v1398 = vunpack.c.l.b16 %v1334
    %v1399 = vunpack.c.l.b16 %v1335
    %v1400 = vunpack.c.l.b16 %v1336
    %v1401 = vunpack.c.l.b16 %v1337
    %v1402 = vunpack.c.l.b16 %v1338
    %v1403 = vunpack.c.l.b16 %v1339
    %v1404 = vunpack.c.l.b16 %v1340
    %v1405 = vunpack.c.l.b16 %v1341
    %v1406 = vunpack.c.l.b16 %v1342
    %v1407 = vunpack.c.l.b16 %v1343
    %v1408 = vunpack.c.l.b16 %v1344
    %v1409 = vunpack.c.l.b16 %v1345
    %v1410 = vunpack.c.l.b16 %v1346
    %v1411 = vunpack.c.l.b16 %v1347
    %v1412 = vunpack.c.l.b16 %v1348
    %v1413 = vunpack.c.l.b16 %v1349
    %v1414 = vunpack.c.l.b16 %v1350
    %v1415 = vunpack.c.l.b16 %v1351
    %v1416 = vunpack.c.l.b16 %v1352
    %v1417 = vunpack.c.l.b16 %v1353
    %v1418 = vunpack.c.l.b16 %v1354
    %v1419 = vunpack.c.l.b16 %v1355
    %v1420 = vunpack.c.l.b16 %v1356
    %v1421 = vunpack.c.l.b16 %v1357
    %v1422 = vunpack.c.l.b16 %v1358
    %v1423 = vunpack.c.l.b16 %v1359
    %v1424 = vunpack.c.l.b16 %v1360
    %v1425 = vunpack.c.l.b16 %v1361
    %v1426 = vpack.c.b16 %v1395, %v1394
    %v1427 = vpack.c.b16 %v1397, %v1396
    %v1428 = vpack.c.b16 %v1399, %v1398
    %v1429 = vpack.c.b16 %v1401, %v1400
    %v1430 = vpack.c.b16 %v1403, %v1402
    %v1431 = vpack.c.b16 %v1405, %v1404
    %v1432 = vpack.c.b16 %v1407, %v1406
    %v1433 = vpack.c.b16 %v1409, %v1408
    %v1434 = vpack.c.b16 %v1411, %v1410
    %v1435 = vpack.c.b16 %v1413, %v1412
    %v1436 = vpack.c.b16 %v1415, %v1414
    %v1437 = vpack.c.b16 %v1417, %v1416
    %v1438 = vpack.c.b16 %v1419, %v1418
    %v1439 = vpack.c.b16 %v1421, %v1420
    %v1440 = vpack.c.b16 %v1423, %v1422
    %v1441 = vpack.c.b16 %v1425, %v1424
    %1458 = vmatpush.bf16.msra.mxu0 %v221
    %1459 = vmatpush.bf16.msra.mxu0 %v220
    %1460 = vmatpush.bf16.msra.mxu0 %v219
    %1461 = vmatpush.bf16.msra.mxu0 %v218
    %1462 = vmatpush.bf16.msra.mxu0 %v217
    %1463 = vmatpush.bf16.msra.mxu0 %v216
    %1464 = vmatpush.bf16.msra.mxu0 %v215
    %1465 = vmatpush.bf16.msra.mxu0 %v214
    %1466 = vmatmul.bf16.gmra.mxu0 %v1426
    %v1467 = vpop.f32.mrf.mxu0
    %v1468 = vadd.f32 %v84, %v1467
    %v1469 = vpop.f32.mrf.mxu0
    %v1470 = vadd.f32 %v84, %v1469
    %1471 = vmatmul.bf16.gmra.mxu0 %v1427
    %v1472 = vpop.f32.mrf.mxu0
    %v1473 = vadd.f32 %v84, %v1472
    %v1474 = vpop.f32.mrf.mxu0
    %v1475 = vadd.f32 %v84, %v1474
    %1476 = vmatmul.bf16.gmra.mxu0 %v1428
    %v1477 = vpop.f32.mrf.mxu0
    %v1478 = vadd.f32 %v84, %v1477
    %v1479 = vpop.f32.mrf.mxu0
    %v1480 = vadd.f32 %v84, %v1479
    %1481 = vmatmul.bf16.gmra.mxu0 %v1429
    %v1482 = vpop.f32.mrf.mxu0
    %v1483 = vadd.f32 %v84, %v1482
    %v1484 = vpop.f32.mrf.mxu0
    %v1485 = vadd.f32 %v84, %v1484
    %1486 = vmatmul.bf16.gmra.mxu0 %v1430
    %v1487 = vpop.f32.mrf.mxu0
    %v1488 = vadd.f32 %v84, %v1487
    %v1489 = vpop.f32.mrf.mxu0
    %v1490 = vadd.f32 %v84, %v1489
    %1491 = vmatmul.bf16.gmra.mxu0 %v1431
    %v1492 = vpop.f32.mrf.mxu0
    %v1493 = vadd.f32 %v84, %v1492
    %v1494 = vpop.f32.mrf.mxu0
    %v1495 = vadd.f32 %v84, %v1494
    %1496 = vmatmul.bf16.gmra.mxu0 %v1432
    %v1497 = vpop.f32.mrf.mxu0
    %v1498 = vadd.f32 %v84, %v1497
    %v1499 = vpop.f32.mrf.mxu0
    %v1500 = vadd.f32 %v84, %v1499
    %1501 = vmatmul.bf16.gmra.mxu0 %v1433
    %v1502 = vpop.f32.mrf.mxu0
    %v1503 = vadd.f32 %v84, %v1502
    %v1504 = vpop.f32.mrf.mxu0
    %v1505 = vadd.f32 %v84, %v1504
    %1506 = vmatmul.bf16.gmra.mxu0 %v1434
    %v1507 = vpop.f32.mrf.mxu0
    %v1508 = vadd.f32 %v84, %v1507
    %v1509 = vpop.f32.mrf.mxu0
    %v1510 = vadd.f32 %v84, %v1509
    %1511 = vmatmul.bf16.gmra.mxu0 %v1435
    %v1512 = vpop.f32.mrf.mxu0
    %v1513 = vadd.f32 %v84, %v1512
    %v1514 = vpop.f32.mrf.mxu0
    %v1515 = vadd.f32 %v84, %v1514
    %1516 = vmatmul.bf16.gmra.mxu0 %v1436
    %v1517 = vpop.f32.mrf.mxu0
    %v1518 = vadd.f32 %v84, %v1517
    %v1519 = vpop.f32.mrf.mxu0
    %v1520 = vadd.f32 %v84, %v1519
    %1521 = vmatmul.bf16.gmra.mxu0 %v1437
    %v1522 = vpop.f32.mrf.mxu0
    %v1523 = vadd.f32 %v84, %v1522
    %v1524 = vpop.f32.mrf.mxu0
    %v1525 = vadd.f32 %v84, %v1524
    %1526 = vmatmul.bf16.gmra.mxu0 %v1438
    %v1527 = vpop.f32.mrf.mxu0
    %v1528 = vadd.f32 %v84, %v1527
    %v1529 = vpop.f32.mrf.mxu0
    %v1530 = vadd.f32 %v84, %v1529
    %1531 = vmatmul.bf16.gmra.mxu0 %v1439
    %v1532 = vpop.f32.mrf.mxu0
    %v1533 = vadd.f32 %v84, %v1532
    %v1534 = vpop.f32.mrf.mxu0
    %v1535 = vadd.f32 %v84, %v1534
    %1536 = vmatmul.bf16.gmra.mxu0 %v1440
    %v1537 = vpop.f32.mrf.mxu0
    %v1538 = vadd.f32 %v84, %v1537
    %v1539 = vpop.f32.mrf.mxu0
    %v1540 = vadd.f32 %v84, %v1539
    %1541 = vmatmul.bf16.gmra.mxu0 %v1441
    %v1542 = vpop.f32.mrf.mxu0
    %v1543 = vadd.f32 %v84, %v1542
    %v1544 = vpop.f32.mrf.mxu0
    %v1545 = vadd.f32 %v84, %v1544
    %1546 = vdwg.mxu0
    %v1547 = vmax.f32 %v1468, 0.0
    %v1548 = vmax.f32 %v1470, 0.0
    %v1549 = vmax.f32 %v1473, 0.0
    %v1550 = vmax.f32 %v1475, 0.0
    %v1551 = vmax.f32 %v1478, 0.0
    %v1552 = vmax.f32 %v1480, 0.0
    %v1553 = vmax.f32 %v1483, 0.0
    %v1554 = vmax.f32 %v1485, 0.0
    %v1555 = vmax.f32 %v1488, 0.0
    %v1556 = vmax.f32 %v1490, 0.0
    %v1557 = vmax.f32 %v1493, 0.0
    %v1558 = vmax.f32 %v1495, 0.0
    %v1559 = vmax.f32 %v1498, 0.0
    %v1560 = vmax.f32 %v1500, 0.0
    %v1561 = vmax.f32 %v1503, 0.0
    %v1562 = vmax.f32 %v1505, 0.0
    %v1563 = vmax.f32 %v1508, 0.0
    %v1564 = vmax.f32 %v1510, 0.0
    %v1565 = vmax.f32 %v1513, 0.0
    %v1566 = vmax.f32 %v1515, 0.0
    %v1567 = vmax.f32 %v1518, 0.0
    %v1568 = vmax.f32 %v1520, 0.0
    %v1569 = vmax.f32 %v1523, 0.0
    %v1570 = vmax.f32 %v1525, 0.0
    %v1571 = vmax.f32 %v1528, 0.0
    %v1572 = vmax.f32 %v1530, 0.0
    %v1573 = vmax.f32 %v1533, 0.0
    %v1574 = vmax.f32 %v1535, 0.0
    %v1575 = vmax.f32 %v1538, 0.0
    %v1576 = vmax.f32 %v1540, 0.0
    %v1577 = vmax.f32 %v1543, 0.0
    %v1578 = vmax.f32 %v1545, 0.0
    %v1579 = vadd.f32 %v1547, %v1548
    %v1580 = vadd.f32 %v1579, %v1549
    %v1581 = vadd.f32 %v1580, %v1550
    %v1582 = vadd.f32 %v1581, %v1551
    %v1583 = vadd.f32 %v1582, %v1552
    %v1584 = vadd.f32 %v1583, %v1553
    %v1585 = vadd.f32 %v1584, %v1554
    %v1586 = vadd.f32 %v1585, %v1555
    %v1587 = vadd.f32 %v1586, %v1556
    %v1588 = vadd.f32 %v1587, %v1557
    %v1589 = vadd.f32 %v1588, %v1558
    %v1590 = vadd.f32 %v1589, %v1559
    %v1591 = vadd.f32 %v1590, %v1560
    %v1592 = vadd.f32 %v1591, %v1561
    %v1593 = vadd.f32 %v1592, %v1562
    %v1594 = vadd.f32 %v1593, %v1563
    %v1595 = vadd.f32 %v1594, %v1564
    %v1596 = vadd.f32 %v1595, %v1565
    %v1597 = vadd.f32 %v1596, %v1566
    %v1598 = vadd.f32 %v1597, %v1567
    %v1599 = vadd.f32 %v1598, %v1568
    %v1600 = vadd.f32 %v1599, %v1569
    %v1601 = vadd.f32 %v1600, %v1570
    %v1602 = vadd.f32 %v1601, %v1571
    %v1603 = vadd.f32 %v1602, %v1572
    %v1604 = vadd.f32 %v1603, %v1573
    %v1605 = vadd.f32 %v1604, %v1574
    %v1606 = vadd.f32 %v1605, %v1575
    %v1607 = vadd.f32 %v1606, %v1576
    %v1608 = vadd.f32 %v1607, %v1577
    %v1609 = vadd.f32 %v1608, %v1578
    %v1610 = vrot.slane %v1609, 4
    %v1611 = vadd.f32 %v1609, %v1610
    %v1612 = vrot.slane %v1611, 2
    %v1613 = vadd.f32 %v1611, %v1612
    %v1614 = vrot.slane %v1613, 1
    %v1615 = vadd.f32 %v1613, %v1614
    %v1616 = vmul.f32 %v1615, %v394
    %v1617 = vpack.c.bf16 %v1616, %v1616
    %1618 = vmatpush.bf16.msra.mxu0 %v553
    %1619 = vmatpush.bf16.msra.mxu0 %v549
    %1620 = vmatpush.bf16.msra.mxu0 %v545
    %1621 = vmatpush.bf16.msra.mxu0 %v541
    %1622 = vmatpush.bf16.msra.mxu0 %v537
    %1623 = vmatpush.bf16.msra.mxu0 %v533
    %1624 = vmatpush.bf16.msra.mxu0 %v529
    %1625 = vmatpush.bf16.msra.mxu0 %v525
    %1626 = vmatmul.bf16.gmra.mxu0 %v1617
    %v1627 = vpop.f32.mrf.mxu0
    %v1628 = vadd.f32 %v590, %v1627
    %v1629 = vpop.f32.mrf.mxu0
    %1630 = vdwg.mxu0
    %1631 = vmatpush.bf16.msra.mxu0 %v554
    %1632 = vmatpush.bf16.msra.mxu0 %v550
    %1633 = vmatpush.bf16.msra.mxu0 %v546
    %1634 = vmatpush.bf16.msra.mxu0 %v542
    %1635 = vmatpush.bf16.msra.mxu0 %v538
    %1636 = vmatpush.bf16.msra.mxu0 %v534
    %1637 = vmatpush.bf16.msra.mxu0 %v530
    %1638 = vmatpush.bf16.msra.mxu0 %v526
    %1639 = vmatmul.bf16.gmra.mxu0 %v1617
    %v1640 = vpop.f32.mrf.mxu0
    %v1641 = vadd.f32 %v591, %v1640
    %v1642 = vpop.f32.mrf.mxu0
    %1643 = vdwg.mxu0
    %1644 = vmatpush.bf16.msra.mxu0 %v555
    %1645 = vmatpush.bf16.msra.mxu0 %v551
    %1646 = vmatpush.bf16.msra.mxu0 %v547
    %1647 = vmatpush.bf16.msra.mxu0 %v543
    %1648 = vmatpush.bf16.msra.mxu0 %v539
    %1649 = vmatpush.bf16.msra.mxu0 %v535
    %1650 = vmatpush.bf16.msra.mxu0 %v531
    %1651 = vmatpush.bf16.msra.mxu0 %v527
    %1652 = vmatmul.bf16.gmra.mxu0 %v1617
    %v1653 = vpop.f32.mrf.mxu0
    %v1654 = vadd.f32 %v592, %v1653
    %v1655 = vpop.f32.mrf.mxu0
    %1656 = vdwg.mxu0
    %1657 = vmatpush.bf16.msra.mxu0 %v556
    %1658 = vmatpush.bf16.msra.mxu0 %v552
    %1659 = vmatpush.bf16.msra.mxu0 %v548
    %1660 = vmatpush.bf16.msra.mxu0 %v544
    %1661 = vmatpush.bf16.msra.mxu0 %v540
    %1662 = vmatpush.bf16.msra.mxu0 %v536
    %1663 = vmatpush.bf16.msra.mxu0 %v532
    %1664 = vmatpush.bf16.msra.mxu0 %v528
    %1665 = vmatmul.bf16.gmra.mxu0 %v1617
    %v1666 = vpop.f32.mrf.mxu0
    %v1667 = vadd.f32 %v593, %v1666
    %v1668 = vpop.f32.mrf.mxu0
    %1669 = vdwg.mxu0
    %v1670 = vld [vmem:[%s0 + $0x200] sm:$0xf]
    %v1671 = vld [vmem:[%s0 + $0x204] sm:$0xf]
    %v1672 = vld [vmem:[%s0 + $0x208] sm:$0xf]
    %v1673 = vld [vmem:[%s0 + $0x20c] sm:$0xf]
    %v1674 = vld [vmem:[%s0 + $0x210] sm:$0xf]
    %v1675 = vld [vmem:[%s0 + $0x214] sm:$0xf]
    %v1676 = vld [vmem:[%s0 + $0x218] sm:$0xf]
    %v1677 = vld [vmem:[%s0 + $0x21c] sm:$0xf]
    %v1678 = vld [vmem:[%s0 + $0x220] sm:$0xf]
    %v1679 = vld [vmem:[%s0 + $0x224] sm:$0xf]
    %v1680 = vld [vmem:[%s0 + $0x228] sm:$0xf]
    %v1681 = vld [vmem:[%s0 + $0x22c] sm:$0xf]
    %v1682 = vld [vmem:[%s0 + $0x230] sm:$0xf]
    %v1683 = vld [vmem:[%s0 + $0x234] sm:$0xf]
    %v1684 = vld [vmem:[%s0 + $0x238] sm:$0xf]
    %v1685 = vld [vmem:[%s0 + $0x23c] sm:$0xf]
    %v1686 = vld [vmem:[%s0 + $0x240] sm:$0xf]
    %v1687 = vld [vmem:[%s0 + $0x244] sm:$0xf]
    %v1688 = vld [vmem:[%s0 + $0x248] sm:$0xf]
    %v1689 = vld [vmem:[%s0 + $0x24c] sm:$0xf]
    %v1690 = vld [vmem:[%s0 + $0x250] sm:$0xf]
    %v1691 = vld [vmem:[%s0 + $0x254] sm:$0xf]
    %v1692 = vld [vmem:[%s0 + $0x258] sm:$0xf]
    %v1693 = vld [vmem:[%s0 + $0x25c] sm:$0xf]
    %v1694 = vld [vmem:[%s0 + $0x260] sm:$0xf]
    %v1695 = vld [vmem:[%s0 + $0x264] sm:$0xf]
    %v1696 = vld [vmem:[%s0 + $0x268] sm:$0xf]
    %v1697 = vld [vmem:[%s0 + $0x26c] sm:$0xf]
    %v1698 = vld [vmem:[%s0 + $0x270] sm:$0xf]
    %v1699 = vld [vmem:[%s0 + $0x274] sm:$0xf]
    %v1700 = vld [vmem:[%s0 + $0x278] sm:$0xf]
    %v1701 = vld [vmem:[%s0 + $0x27c] sm:$0xf]
    %v1734 = vunpack.c.l.b16 %v1670
    %v1735 = vunpack.c.l.b16 %v1671
    %v1736 = vunpack.c.l.b16 %v1672
    %v1737 = vunpack.c.l.b16 %v1673
    %v1738 = vunpack.c.l.b16 %v1674
    %v1739 = vunpack.c.l.b16 %v1675
    %v1740 = vunpack.c.l.b16 %v1676
    %v1741 = vunpack.c.l.b16 %v1677
    %v1742 = vunpack.c.l.b16 %v1678
    %v1743 = vunpack.c.l.b16 %v1679
    %v1744 = vunpack.c.l.b16 %v1680
    %v1745 = vunpack.c.l.b16 %v1681
    %v1746 = vunpack.c.l.b16 %v1682
    %v1747 = vunpack.c.l.b16 %v1683
    %v1748 = vunpack.c.l.b16 %v1684
    %v1749 = vunpack.c.l.b16 %v1685
    %v1750 = vunpack.c.l.b16 %v1686
    %v1751 = vunpack.c.l.b16 %v1687
    %v1752 = vunpack.c.l.b16 %v1688
    %v1753 = vunpack.c.l.b16 %v1689
    %v1754 = vunpack.c.l.b16 %v1690
    %v1755 = vunpack.c.l.b16 %v1691
    %v1756 = vunpack.c.l.b16 %v1692
    %v1757 = vunpack.c.l.b16 %v1693
    %v1758 = vunpack.c.l.b16 %v1694
    %v1759 = vunpack.c.l.b16 %v1695
    %v1760 = vunpack.c.l.b16 %v1696
    %v1761 = vunpack.c.l.b16 %v1697
    %v1762 = vunpack.c.l.b16 %v1698
    %v1763 = vunpack.c.l.b16 %v1699
    %v1764 = vunpack.c.l.b16 %v1700
    %v1765 = vunpack.c.l.b16 %v1701
    %v1766 = vpack.c.b16 %v1735, %v1734
    %v1767 = vpack.c.b16 %v1737, %v1736
    %v1768 = vpack.c.b16 %v1739, %v1738
    %v1769 = vpack.c.b16 %v1741, %v1740
    %v1770 = vpack.c.b16 %v1743, %v1742
    %v1771 = vpack.c.b16 %v1745, %v1744
    %v1772 = vpack.c.b16 %v1747, %v1746
    %v1773 = vpack.c.b16 %v1749, %v1748
    %v1774 = vpack.c.b16 %v1751, %v1750
    %v1775 = vpack.c.b16 %v1753, %v1752
    %v1776 = vpack.c.b16 %v1755, %v1754
    %v1777 = vpack.c.b16 %v1757, %v1756
    %v1778 = vpack.c.b16 %v1759, %v1758
    %v1779 = vpack.c.b16 %v1761, %v1760
    %v1780 = vpack.c.b16 %v1763, %v1762
    %v1781 = vpack.c.b16 %v1765, %v1764
    %1798 = vmatpush.bf16.msra.mxu0 %v221
    %1799 = vmatpush.bf16.msra.mxu0 %v220
    %1800 = vmatpush.bf16.msra.mxu0 %v219
    %1801 = vmatpush.bf16.msra.mxu0 %v218
    %1802 = vmatpush.bf16.msra.mxu0 %v217
    %1803 = vmatpush.bf16.msra.mxu0 %v216
    %1804 = vmatpush.bf16.msra.mxu0 %v215
    %1805 = vmatpush.bf16.msra.mxu0 %v214
    %1806 = vmatmul.bf16.gmra.mxu0 %v1766
    %v1807 = vpop.f32.mrf.mxu0
    %v1808 = vadd.f32 %v84, %v1807
    %v1809 = vpop.f32.mrf.mxu0
    %v1810 = vadd.f32 %v84, %v1809
    %1811 = vmatmul.bf16.gmra.mxu0 %v1767
    %v1812 = vpop.f32.mrf.mxu0
    %v1813 = vadd.f32 %v84, %v1812
    %v1814 = vpop.f32.mrf.mxu0
    %v1815 = vadd.f32 %v84, %v1814
    %1816 = vmatmul.bf16.gmra.mxu0 %v1768
    %v1817 = vpop.f32.mrf.mxu0
    %v1818 = vadd.f32 %v84, %v1817
    %v1819 = vpop.f32.mrf.mxu0
    %v1820 = vadd.f32 %v84, %v1819
    %1821 = vmatmul.bf16.gmra.mxu0 %v1769
    %v1822 = vpop.f32.mrf.mxu0
    %v1823 = vadd.f32 %v84, %v1822
    %v1824 = vpop.f32.mrf.mxu0
    %v1825 = vadd.f32 %v84, %v1824
    %1826 = vmatmul.bf16.gmra.mxu0 %v1770
    %v1827 = vpop.f32.mrf.mxu0
    %v1828 = vadd.f32 %v84, %v1827
    %v1829 = vpop.f32.mrf.mxu0
    %v1830 = vadd.f32 %v84, %v1829
    %1831 = vmatmul.bf16.gmra.mxu0 %v1771
    %v1832 = vpop.f32.mrf.mxu0
    %v1833 = vadd.f32 %v84, %v1832
    %v1834 = vpop.f32.mrf.mxu0
    %v1835 = vadd.f32 %v84, %v1834
    %1836 = vmatmul.bf16.gmra.mxu0 %v1772
    %v1837 = vpop.f32.mrf.mxu0
    %v1838 = vadd.f32 %v84, %v1837
    %v1839 = vpop.f32.mrf.mxu0
    %v1840 = vadd.f32 %v84, %v1839
    %1841 = vmatmul.bf16.gmra.mxu0 %v1773
    %v1842 = vpop.f32.mrf.mxu0
    %v1843 = vadd.f32 %v84, %v1842
    %v1844 = vpop.f32.mrf.mxu0
    %v1845 = vadd.f32 %v84, %v1844
    %1846 = vmatmul.bf16.gmra.mxu0 %v1774
    %v1847 = vpop.f32.mrf.mxu0
    %v1848 = vadd.f32 %v84, %v1847
    %v1849 = vpop.f32.mrf.mxu0
    %v1850 = vadd.f32 %v84, %v1849
    %1851 = vmatmul.bf16.gmra.mxu0 %v1775
    %v1852 = vpop.f32.mrf.mxu0
    %v1853 = vadd.f32 %v84, %v1852
    %v1854 = vpop.f32.mrf.mxu0
    %v1855 = vadd.f32 %v84, %v1854
    %1856 = vmatmul.bf16.gmra.mxu0 %v1776
    %v1857 = vpop.f32.mrf.mxu0
    %v1858 = vadd.f32 %v84, %v1857
    %v1859 = vpop.f32.mrf.mxu0
    %v1860 = vadd.f32 %v84, %v1859
    %1861 = vmatmul.bf16.gmra.mxu0 %v1777
    %v1862 = vpop.f32.mrf.mxu0
    %v1863 = vadd.f32 %v84, %v1862
    %v1864 = vpop.f32.mrf.mxu0
    %v1865 = vadd.f32 %v84, %v1864
    %1866 = vmatmul.bf16.gmra.mxu0 %v1778
    %v1867 = vpop.f32.mrf.mxu0
    %v1868 = vadd.f32 %v84, %v1867
    %v1869 = vpop.f32.mrf.mxu0
    %v1870 = vadd.f32 %v84, %v1869
    %1871 = vmatmul.bf16.gmra.mxu0 %v1779
    %v1872 = vpop.f32.mrf.mxu0
    %v1873 = vadd.f32 %v84, %v1872
    %v1874 = vpop.f32.mrf.mxu0
    %v1875 = vadd.f32 %v84, %v1874
    %1876 = vmatmul.bf16.gmra.mxu0 %v1780
    %v1877 = vpop.f32.mrf.mxu0
    %v1878 = vadd.f32 %v84, %v1877
    %v1879 = vpop.f32.mrf.mxu0
    %v1880 = vadd.f32 %v84, %v1879
    %1881 = vmatmul.bf16.gmra.mxu0 %v1781
    %v1882 = vpop.f32.mrf.mxu0
    %v1883 = vadd.f32 %v84, %v1882
    %v1884 = vpop.f32.mrf.mxu0
    %v1885 = vadd.f32 %v84, %v1884
    %1886 = vdwg.mxu0
    %v1887 = vmax.f32 %v1808, 0.0
    %v1888 = vmax.f32 %v1810, 0.0
    %v1889 = vmax.f32 %v1813, 0.0
    %v1890 = vmax.f32 %v1815, 0.0
    %v1891 = vmax.f32 %v1818, 0.0
    %v1892 = vmax.f32 %v1820, 0.0
    %v1893 = vmax.f32 %v1823, 0.0
    %v1894 = vmax.f32 %v1825, 0.0
    %v1895 = vmax.f32 %v1828, 0.0
    %v1896 = vmax.f32 %v1830, 0.0
    %v1897 = vmax.f32 %v1833, 0.0
    %v1898 = vmax.f32 %v1835, 0.0
    %v1899 = vmax.f32 %v1838, 0.0
    %v1900 = vmax.f32 %v1840, 0.0
    %v1901 = vmax.f32 %v1843, 0.0
    %v1902 = vmax.f32 %v1845, 0.0
    %v1903 = vmax.f32 %v1848, 0.0
    %v1904 = vmax.f32 %v1850, 0.0
    %v1905 = vmax.f32 %v1853, 0.0
    %v1906 = vmax.f32 %v1855, 0.0
    %v1907 = vmax.f32 %v1858, 0.0
    %v1908 = vmax.f32 %v1860, 0.0
    %v1909 = vmax.f32 %v1863, 0.0
    %v1910 = vmax.f32 %v1865, 0.0
    %v1911 = vmax.f32 %v1868, 0.0
    %v1912 = vmax.f32 %v1870, 0.0
    %v1913 = vmax.f32 %v1873, 0.0
    %v1914 = vmax.f32 %v1875, 0.0
    %v1915 = vmax.f32 %v1878, 0.0
    %v1916 = vmax.f32 %v1880, 0.0
    %v1917 = vmax.f32 %v1883, 0.0
    %v1918 = vmax.f32 %v1885, 0.0
    %v1919 = vadd.f32 %v1887, %v1888
    %v1920 = vadd.f32 %v1919, %v1889
    %v1921 = vadd.f32 %v1920, %v1890
    %v1922 = vadd.f32 %v1921, %v1891
    %v1923 = vadd.f32 %v1922, %v1892
    %v1924 = vadd.f32 %v1923, %v1893
    %v1925 = vadd.f32 %v1924, %v1894
    %v1926 = vadd.f32 %v1925, %v1895
    %v1927 = vadd.f32 %v1926, %v1896
    %v1928 = vadd.f32 %v1927, %v1897
    %v1929 = vadd.f32 %v1928, %v1898
    %v1930 = vadd.f32 %v1929, %v1899
    %v1931 = vadd.f32 %v1930, %v1900
    %v1932 = vadd.f32 %v1931, %v1901
    %v1933 = vadd.f32 %v1932, %v1902
    %v1934 = vadd.f32 %v1933, %v1903
    %v1935 = vadd.f32 %v1934, %v1904
    %v1936 = vadd.f32 %v1935, %v1905
    %v1937 = vadd.f32 %v1936, %v1906
    %v1938 = vadd.f32 %v1937, %v1907
    %v1939 = vadd.f32 %v1938, %v1908
    %v1940 = vadd.f32 %v1939, %v1909
    %v1941 = vadd.f32 %v1940, %v1910
    %v1942 = vadd.f32 %v1941, %v1911
    %v1943 = vadd.f32 %v1942, %v1912
    %v1944 = vadd.f32 %v1943, %v1913
    %v1945 = vadd.f32 %v1944, %v1914
    %v1946 = vadd.f32 %v1945, %v1915
    %v1947 = vadd.f32 %v1946, %v1916
    %v1948 = vadd.f32 %v1947, %v1917
    %v1949 = vadd.f32 %v1948, %v1918
    %v1950 = vrot.slane %v1949, 4
    %v1951 = vadd.f32 %v1949, %v1950
    %v1952 = vrot.slane %v1951, 2
    %v1953 = vadd.f32 %v1951, %v1952
    %v1954 = vrot.slane %v1953, 1
    %v1955 = vadd.f32 %v1953, %v1954
    %v1956 = vmul.f32 %v1955, %v394
    %v1957 = vpack.c.bf16 %v1956, %v1956
    %1958 = vmatpush.bf16.msra.mxu0 %v553
    %1959 = vmatpush.bf16.msra.mxu0 %v549
    %1960 = vmatpush.bf16.msra.mxu0 %v545
    %1961 = vmatpush.bf16.msra.mxu0 %v541
    %1962 = vmatpush.bf16.msra.mxu0 %v537
    %1963 = vmatpush.bf16.msra.mxu0 %v533
    %1964 = vmatpush.bf16.msra.mxu0 %v529
    %1965 = vmatpush.bf16.msra.mxu0 %v525
    %1966 = vmatmul.bf16.gmra.mxu0 %v1957
    %v1967 = vpop.f32.mrf.mxu0
    %v1968 = vadd.f32 %v590, %v1967
    %v1969 = vpop.f32.mrf.mxu0
    %1970 = vdwg.mxu0
    %1971 = vmatpush.bf16.msra.mxu0 %v554
    %1972 = vmatpush.bf16.msra.mxu0 %v550
    %1973 = vmatpush.bf16.msra.mxu0 %v546
    %1974 = vmatpush.bf16.msra.mxu0 %v542
    %1975 = vmatpush.bf16.msra.mxu0 %v538
    %1976 = vmatpush.bf16.msra.mxu0 %v534
    %1977 = vmatpush.bf16.msra.mxu0 %v530
    %1978 = vmatpush.bf16.msra.mxu0 %v526
    %1979 = vmatmul.bf16.gmra.mxu0 %v1957
    %v1980 = vpop.f32.mrf.mxu0
    %v1981 = vadd.f32 %v591, %v1980
    %v1982 = vpop.f32.mrf.mxu0
    %1983 = vdwg.mxu0
    %1984 = vmatpush.bf16.msra.mxu0 %v555
    %1985 = vmatpush.bf16.msra.mxu0 %v551
    %1986 = vmatpush.bf16.msra.mxu0 %v547
    %1987 = vmatpush.bf16.msra.mxu0 %v543
    %1988 = vmatpush.bf16.msra.mxu0 %v539
    %1989 = vmatpush.bf16.msra.mxu0 %v535
    %1990 = vmatpush.bf16.msra.mxu0 %v531
    %1991 = vmatpush.bf16.msra.mxu0 %v527
    %1992 = vmatmul.bf16.gmra.mxu0 %v1957
    %v1993 = vpop.f32.mrf.mxu0
    %v1994 = vadd.f32 %v592, %v1993
    %v1995 = vpop.f32.mrf.mxu0
    %1996 = vdwg.mxu0
    %1997 = vmatpush.bf16.msra.mxu0 %v556
    %1998 = vmatpush.bf16.msra.mxu0 %v552
    %1999 = vmatpush.bf16.msra.mxu0 %v548
    %2000 = vmatpush.bf16.msra.mxu0 %v544
    %2001 = vmatpush.bf16.msra.mxu0 %v540
    %2002 = vmatpush.bf16.msra.mxu0 %v536
    %2003 = vmatpush.bf16.msra.mxu0 %v532
    %2004 = vmatpush.bf16.msra.mxu0 %v528
    %2005 = vmatmul.bf16.gmra.mxu0 %v1957
    %v2006 = vpop.f32.mrf.mxu0
    %v2007 = vadd.f32 %v593, %v2006
    %v2008 = vpop.f32.mrf.mxu0
    %2009 = vdwg.mxu0
    %v2010 = vld [vmem:[%s0 + $0x280] sm:$0xf]
    %v2011 = vld [vmem:[%s0 + $0x284] sm:$0xf]
    %v2012 = vld [vmem:[%s0 + $0x288] sm:$0xf]
    %v2013 = vld [vmem:[%s0 + $0x28c] sm:$0xf]
    %v2014 = vld [vmem:[%s0 + $0x290] sm:$0xf]
    %v2015 = vld [vmem:[%s0 + $0x294] sm:$0xf]
    %v2016 = vld [vmem:[%s0 + $0x298] sm:$0xf]
    %v2017 = vld [vmem:[%s0 + $0x29c] sm:$0xf]
    %v2018 = vld [vmem:[%s0 + $0x2a0] sm:$0xf]
    %v2019 = vld [vmem:[%s0 + $0x2a4] sm:$0xf]
    %v2020 = vld [vmem:[%s0 + $0x2a8] sm:$0xf]
    %v2021 = vld [vmem:[%s0 + $0x2ac] sm:$0xf]
    %v2022 = vld [vmem:[%s0 + $0x2b0] sm:$0xf]
    %v2023 = vld [vmem:[%s0 + $0x2b4] sm:$0xf]
    %v2024 = vld [vmem:[%s0 + $0x2b8] sm:$0xf]
    %v2025 = vld [vmem:[%s0 + $0x2bc] sm:$0xf]
    %v2026 = vld [vmem:[%s0 + $0x2c0] sm:$0xf]
    %v2027 = vld [vmem:[%s0 + $0x2c4] sm:$0xf]
    %v2028 = vld [vmem:[%s0 + $0x2c8] sm:$0xf]
    %v2029 = vld [vmem:[%s0 + $0x2cc] sm:$0xf]
    %v2030 = vld [vmem:[%s0 + $0x2d0] sm:$0xf]
    %v2031 = vld [vmem:[%s0 + $0x2d4] sm:$0xf]
    %v2032 = vld [vmem:[%s0 + $0x2d8] sm:$0xf]
    %v2033 = vld [vmem:[%s0 + $0x2dc] sm:$0xf]
    %v2034 = vld [vmem:[%s0 + $0x2e0] sm:$0xf]
    %v2035 = vld [vmem:[%s0 + $0x2e4] sm:$0xf]
    %v2036 = vld [vmem:[%s0 + $0x2e8] sm:$0xf]
    %v2037 = vld [vmem:[%s0 + $0x2ec] sm:$0xf]
    %v2038 = vld [vmem:[%s0 + $0x2f0] sm:$0xf]
    %v2039 = vld [vmem:[%s0 + $0x2f4] sm:$0xf]
    %v2040 = vld [vmem:[%s0 + $0x2f8] sm:$0xf]
    %v2041 = vld [vmem:[%s0 + $0x2fc] sm:$0xf]
    %v2074 = vunpack.c.l.b16 %v2010
    %v2075 = vunpack.c.l.b16 %v2011
    %v2076 = vunpack.c.l.b16 %v2012
    %v2077 = vunpack.c.l.b16 %v2013
    %v2078 = vunpack.c.l.b16 %v2014
    %v2079 = vunpack.c.l.b16 %v2015
    %v2080 = vunpack.c.l.b16 %v2016
    %v2081 = vunpack.c.l.b16 %v2017
    %v2082 = vunpack.c.l.b16 %v2018
    %v2083 = vunpack.c.l.b16 %v2019
    %v2084 = vunpack.c.l.b16 %v2020
    %v2085 = vunpack.c.l.b16 %v2021
    %v2086 = vunpack.c.l.b16 %v2022
    %v2087 = vunpack.c.l.b16 %v2023
    %v2088 = vunpack.c.l.b16 %v2024
    %v2089 = vunpack.c.l.b16 %v2025
    %v2090 = vunpack.c.l.b16 %v2026
    %v2091 = vunpack.c.l.b16 %v2027
    %v2092 = vunpack.c.l.b16 %v2028
    %v2093 = vunpack.c.l.b16 %v2029
    %v2094 = vunpack.c.l.b16 %v2030
    %v2095 = vunpack.c.l.b16 %v2031
    %v2096 = vunpack.c.l.b16 %v2032
    %v2097 = vunpack.c.l.b16 %v2033
    %v2098 = vunpack.c.l.b16 %v2034
    %v2099 = vunpack.c.l.b16 %v2035
    %v2100 = vunpack.c.l.b16 %v2036
    %v2101 = vunpack.c.l.b16 %v2037
    %v2102 = vunpack.c.l.b16 %v2038
    %v2103 = vunpack.c.l.b16 %v2039
    %v2104 = vunpack.c.l.b16 %v2040
    %v2105 = vunpack.c.l.b16 %v2041
    %v2106 = vpack.c.b16 %v2075, %v2074
    %v2107 = vpack.c.b16 %v2077, %v2076
    %v2108 = vpack.c.b16 %v2079, %v2078
    %v2109 = vpack.c.b16 %v2081, %v2080
    %v2110 = vpack.c.b16 %v2083, %v2082
    %v2111 = vpack.c.b16 %v2085, %v2084
    %v2112 = vpack.c.b16 %v2087, %v2086
    %v2113 = vpack.c.b16 %v2089, %v2088
    %v2114 = vpack.c.b16 %v2091, %v2090
    %v2115 = vpack.c.b16 %v2093, %v2092
    %v2116 = vpack.c.b16 %v2095, %v2094
    %v2117 = vpack.c.b16 %v2097, %v2096
    %v2118 = vpack.c.b16 %v2099, %v2098
    %v2119 = vpack.c.b16 %v2101, %v2100
    %v2120 = vpack.c.b16 %v2103, %v2102
    %v2121 = vpack.c.b16 %v2105, %v2104
    %2138 = vmatpush.bf16.msra.mxu0 %v221
    %2139 = vmatpush.bf16.msra.mxu0 %v220
    %2140 = vmatpush.bf16.msra.mxu0 %v219
    %2141 = vmatpush.bf16.msra.mxu0 %v218
    %2142 = vmatpush.bf16.msra.mxu0 %v217
    %2143 = vmatpush.bf16.msra.mxu0 %v216
    %2144 = vmatpush.bf16.msra.mxu0 %v215
    %2145 = vmatpush.bf16.msra.mxu0 %v214
    %2146 = vmatmul.bf16.gmra.mxu0 %v2106
    %v2147 = vpop.f32.mrf.mxu0
    %v2148 = vadd.f32 %v84, %v2147
    %v2149 = vpop.f32.mrf.mxu0
    %v2150 = vadd.f32 %v84, %v2149
    %2151 = vmatmul.bf16.gmra.mxu0 %v2107
    %v2152 = vpop.f32.mrf.mxu0
    %v2153 = vadd.f32 %v84, %v2152
    %v2154 = vpop.f32.mrf.mxu0
    %v2155 = vadd.f32 %v84, %v2154
    %2156 = vmatmul.bf16.gmra.mxu0 %v2108
    %v2157 = vpop.f32.mrf.mxu0
    %v2158 = vadd.f32 %v84, %v2157
    %v2159 = vpop.f32.mrf.mxu0
    %v2160 = vadd.f32 %v84, %v2159
    %2161 = vmatmul.bf16.gmra.mxu0 %v2109
    %v2162 = vpop.f32.mrf.mxu0
    %v2163 = vadd.f32 %v84, %v2162
    %v2164 = vpop.f32.mrf.mxu0
    %v2165 = vadd.f32 %v84, %v2164
    %2166 = vmatmul.bf16.gmra.mxu0 %v2110
    %v2167 = vpop.f32.mrf.mxu0
    %v2168 = vadd.f32 %v84, %v2167
    %v2169 = vpop.f32.mrf.mxu0
    %v2170 = vadd.f32 %v84, %v2169
    %2171 = vmatmul.bf16.gmra.mxu0 %v2111
    %v2172 = vpop.f32.mrf.mxu0
    %v2173 = vadd.f32 %v84, %v2172
    %v2174 = vpop.f32.mrf.mxu0
    %v2175 = vadd.f32 %v84, %v2174
    %2176 = vmatmul.bf16.gmra.mxu0 %v2112
    %v2177 = vpop.f32.mrf.mxu0
    %v2178 = vadd.f32 %v84, %v2177
    %v2179 = vpop.f32.mrf.mxu0
    %v2180 = vadd.f32 %v84, %v2179
    %2181 = vmatmul.bf16.gmra.mxu0 %v2113
    %v2182 = vpop.f32.mrf.mxu0
    %v2183 = vadd.f32 %v84, %v2182
    %v2184 = vpop.f32.mrf.mxu0
    %v2185 = vadd.f32 %v84, %v2184
    %2186 = vmatmul.bf16.gmra.mxu0 %v2114
    %v2187 = vpop.f32.mrf.mxu0
    %v2188 = vadd.f32 %v84, %v2187
    %v2189 = vpop.f32.mrf.mxu0
    %v2190 = vadd.f32 %v84, %v2189
    %2191 = vmatmul.bf16.gmra.mxu0 %v2115
    %v2192 = vpop.f32.mrf.mxu0
    %v2193 = vadd.f32 %v84, %v2192
    %v2194 = vpop.f32.mrf.mxu0
    %v2195 = vadd.f32 %v84, %v2194
    %2196 = vmatmul.bf16.gmra.mxu0 %v2116
    %v2197 = vpop.f32.mrf.mxu0
    %v2198 = vadd.f32 %v84, %v2197
    %v2199 = vpop.f32.mrf.mxu0
    %v2200 = vadd.f32 %v84, %v2199
    %2201 = vmatmul.bf16.gmra.mxu0 %v2117
    %v2202 = vpop.f32.mrf.mxu0
    %v2203 = vadd.f32 %v84, %v2202
    %v2204 = vpop.f32.mrf.mxu0
    %v2205 = vadd.f32 %v84, %v2204
    %2206 = vmatmul.bf16.gmra.mxu0 %v2118
    %v2207 = vpop.f32.mrf.mxu0
    %v2208 = vadd.f32 %v84, %v2207
    %v2209 = vpop.f32.mrf.mxu0
    %v2210 = vadd.f32 %v84, %v2209
    %2211 = vmatmul.bf16.gmra.mxu0 %v2119
    %v2212 = vpop.f32.mrf.mxu0
    %v2213 = vadd.f32 %v84, %v2212
    %v2214 = vpop.f32.mrf.mxu0
    %v2215 = vadd.f32 %v84, %v2214
    %2216 = vmatmul.bf16.gmra.mxu0 %v2120
    %v2217 = vpop.f32.mrf.mxu0
    %v2218 = vadd.f32 %v84, %v2217
    %v2219 = vpop.f32.mrf.mxu0
    %v2220 = vadd.f32 %v84, %v2219
    %2221 = vmatmul.bf16.gmra.mxu0 %v2121
    %v2222 = vpop.f32.mrf.mxu0
    %v2223 = vadd.f32 %v84, %v2222
    %v2224 = vpop.f32.mrf.mxu0
    %v2225 = vadd.f32 %v84, %v2224
    %2226 = vdwg.mxu0
    %v2227 = vmax.f32 %v2148, 0.0
    %v2228 = vmax.f32 %v2150, 0.0
    %v2229 = vmax.f32 %v2153, 0.0
    %v2230 = vmax.f32 %v2155, 0.0
    %v2231 = vmax.f32 %v2158, 0.0
    %v2232 = vmax.f32 %v2160, 0.0
    %v2233 = vmax.f32 %v2163, 0.0
    %v2234 = vmax.f32 %v2165, 0.0
    %v2235 = vmax.f32 %v2168, 0.0
    %v2236 = vmax.f32 %v2170, 0.0
    %v2237 = vmax.f32 %v2173, 0.0
    %v2238 = vmax.f32 %v2175, 0.0
    %v2239 = vmax.f32 %v2178, 0.0
    %v2240 = vmax.f32 %v2180, 0.0
    %v2241 = vmax.f32 %v2183, 0.0
    %v2242 = vmax.f32 %v2185, 0.0
    %v2243 = vmax.f32 %v2188, 0.0
    %v2244 = vmax.f32 %v2190, 0.0
    %v2245 = vmax.f32 %v2193, 0.0
    %v2246 = vmax.f32 %v2195, 0.0
    %v2247 = vmax.f32 %v2198, 0.0
    %v2248 = vmax.f32 %v2200, 0.0
    %v2249 = vmax.f32 %v2203, 0.0
    %v2250 = vmax.f32 %v2205, 0.0
    %v2251 = vmax.f32 %v2208, 0.0
    %v2252 = vmax.f32 %v2210, 0.0
    %v2253 = vmax.f32 %v2213, 0.0
    %v2254 = vmax.f32 %v2215, 0.0
    %v2255 = vmax.f32 %v2218, 0.0
    %v2256 = vmax.f32 %v2220, 0.0
    %v2257 = vmax.f32 %v2223, 0.0
    %v2258 = vmax.f32 %v2225, 0.0
    %v2259 = vadd.f32 %v2227, %v2228
    %v2260 = vadd.f32 %v2259, %v2229
    %v2261 = vadd.f32 %v2260, %v2230
    %v2262 = vadd.f32 %v2261, %v2231
    %v2263 = vadd.f32 %v2262, %v2232
    %v2264 = vadd.f32 %v2263, %v2233
    %v2265 = vadd.f32 %v2264, %v2234
    %v2266 = vadd.f32 %v2265, %v2235
    %v2267 = vadd.f32 %v2266, %v2236
    %v2268 = vadd.f32 %v2267, %v2237
    %v2269 = vadd.f32 %v2268, %v2238
    %v2270 = vadd.f32 %v2269, %v2239
    %v2271 = vadd.f32 %v2270, %v2240
    %v2272 = vadd.f32 %v2271, %v2241
    %v2273 = vadd.f32 %v2272, %v2242
    %v2274 = vadd.f32 %v2273, %v2243
    %v2275 = vadd.f32 %v2274, %v2244
    %v2276 = vadd.f32 %v2275, %v2245
    %v2277 = vadd.f32 %v2276, %v2246
    %v2278 = vadd.f32 %v2277, %v2247
    %v2279 = vadd.f32 %v2278, %v2248
    %v2280 = vadd.f32 %v2279, %v2249
    %v2281 = vadd.f32 %v2280, %v2250
    %v2282 = vadd.f32 %v2281, %v2251
    %v2283 = vadd.f32 %v2282, %v2252
    %v2284 = vadd.f32 %v2283, %v2253
    %v2285 = vadd.f32 %v2284, %v2254
    %v2286 = vadd.f32 %v2285, %v2255
    %v2287 = vadd.f32 %v2286, %v2256
    %v2288 = vadd.f32 %v2287, %v2257
    %v2289 = vadd.f32 %v2288, %v2258
    %v2290 = vrot.slane %v2289, 4
    %v2291 = vadd.f32 %v2289, %v2290
    %v2292 = vrot.slane %v2291, 2
    %v2293 = vadd.f32 %v2291, %v2292
    %v2294 = vrot.slane %v2293, 1
    %v2295 = vadd.f32 %v2293, %v2294
    %v2296 = vmul.f32 %v2295, %v394
    %v2297 = vpack.c.bf16 %v2296, %v2296
    %2298 = vmatpush.bf16.msra.mxu0 %v553
    %2299 = vmatpush.bf16.msra.mxu0 %v549
    %2300 = vmatpush.bf16.msra.mxu0 %v545
    %2301 = vmatpush.bf16.msra.mxu0 %v541
    %2302 = vmatpush.bf16.msra.mxu0 %v537
    %2303 = vmatpush.bf16.msra.mxu0 %v533
    %2304 = vmatpush.bf16.msra.mxu0 %v529
    %2305 = vmatpush.bf16.msra.mxu0 %v525
    %2306 = vmatmul.bf16.gmra.mxu0 %v2297
    %v2307 = vpop.f32.mrf.mxu0
    %v2308 = vadd.f32 %v590, %v2307
    %v2309 = vpop.f32.mrf.mxu0
    %2310 = vdwg.mxu0
    %2311 = vmatpush.bf16.msra.mxu0 %v554
    %2312 = vmatpush.bf16.msra.mxu0 %v550
    %2313 = vmatpush.bf16.msra.mxu0 %v546
    %2314 = vmatpush.bf16.msra.mxu0 %v542
    %2315 = vmatpush.bf16.msra.mxu0 %v538
    %2316 = vmatpush.bf16.msra.mxu0 %v534
    %2317 = vmatpush.bf16.msra.mxu0 %v530
    %2318 = vmatpush.bf16.msra.mxu0 %v526
    %2319 = vmatmul.bf16.gmra.mxu0 %v2297
    %v2320 = vpop.f32.mrf.mxu0
    %v2321 = vadd.f32 %v591, %v2320
    %v2322 = vpop.f32.mrf.mxu0
    %2323 = vdwg.mxu0
    %2324 = vmatpush.bf16.msra.mxu0 %v555
    %2325 = vmatpush.bf16.msra.mxu0 %v551
    %2326 = vmatpush.bf16.msra.mxu0 %v547
    %2327 = vmatpush.bf16.msra.mxu0 %v543
    %2328 = vmatpush.bf16.msra.mxu0 %v539
    %2329 = vmatpush.bf16.msra.mxu0 %v535
    %2330 = vmatpush.bf16.msra.mxu0 %v531
    %2331 = vmatpush.bf16.msra.mxu0 %v527
    %2332 = vmatmul.bf16.gmra.mxu0 %v2297
    %v2333 = vpop.f32.mrf.mxu0
    %v2334 = vadd.f32 %v592, %v2333
    %v2335 = vpop.f32.mrf.mxu0
    %2336 = vdwg.mxu0
    %2337 = vmatpush.bf16.msra.mxu0 %v556
    %2338 = vmatpush.bf16.msra.mxu0 %v552
    %2339 = vmatpush.bf16.msra.mxu0 %v548
    %2340 = vmatpush.bf16.msra.mxu0 %v544
    %2341 = vmatpush.bf16.msra.mxu0 %v540
    %2342 = vmatpush.bf16.msra.mxu0 %v536
    %2343 = vmatpush.bf16.msra.mxu0 %v532
    %2344 = vmatpush.bf16.msra.mxu0 %v528
    %2345 = vmatmul.bf16.gmra.mxu0 %v2297
    %v2346 = vpop.f32.mrf.mxu0
    %v2347 = vadd.f32 %v593, %v2346
    %v2348 = vpop.f32.mrf.mxu0
    %2349 = vdwg.mxu0
    %v2350 = vld [vmem:[%s0 + $0x300] sm:$0xf]
    %v2351 = vld [vmem:[%s0 + $0x304] sm:$0xf]
    %v2352 = vld [vmem:[%s0 + $0x308] sm:$0xf]
    %v2353 = vld [vmem:[%s0 + $0x30c] sm:$0xf]
    %v2354 = vld [vmem:[%s0 + $0x310] sm:$0xf]
    %v2355 = vld [vmem:[%s0 + $0x314] sm:$0xf]
    %v2356 = vld [vmem:[%s0 + $0x318] sm:$0xf]
    %v2357 = vld [vmem:[%s0 + $0x31c] sm:$0xf]
    %v2358 = vld [vmem:[%s0 + $0x320] sm:$0xf]
    %v2359 = vld [vmem:[%s0 + $0x324] sm:$0xf]
    %v2360 = vld [vmem:[%s0 + $0x328] sm:$0xf]
    %v2361 = vld [vmem:[%s0 + $0x32c] sm:$0xf]
    %v2362 = vld [vmem:[%s0 + $0x330] sm:$0xf]
    %v2363 = vld [vmem:[%s0 + $0x334] sm:$0xf]
    %v2364 = vld [vmem:[%s0 + $0x338] sm:$0xf]
    %v2365 = vld [vmem:[%s0 + $0x33c] sm:$0xf]
    %v2366 = vld [vmem:[%s0 + $0x340] sm:$0xf]
    %v2367 = vld [vmem:[%s0 + $0x344] sm:$0xf]
    %v2368 = vld [vmem:[%s0 + $0x348] sm:$0xf]
    %v2369 = vld [vmem:[%s0 + $0x34c] sm:$0xf]
    %v2370 = vld [vmem:[%s0 + $0x350] sm:$0xf]
    %v2371 = vld [vmem:[%s0 + $0x354] sm:$0xf]
    %v2372 = vld [vmem:[%s0 + $0x358] sm:$0xf]
    %v2373 = vld [vmem:[%s0 + $0x35c] sm:$0xf]
    %v2374 = vld [vmem:[%s0 + $0x360] sm:$0xf]
    %v2375 = vld [vmem:[%s0 + $0x364] sm:$0xf]
    %v2376 = vld [vmem:[%s0 + $0x368] sm:$0xf]
    %v2377 = vld [vmem:[%s0 + $0x36c] sm:$0xf]
    %v2378 = vld [vmem:[%s0 + $0x370] sm:$0xf]
    %v2379 = vld [vmem:[%s0 + $0x374] sm:$0xf]
    %v2380 = vld [vmem:[%s0 + $0x378] sm:$0xf]
    %v2381 = vld [vmem:[%s0 + $0x37c] sm:$0xf]
    %v2414 = vunpack.c.l.b16 %v2350
    %v2415 = vunpack.c.l.b16 %v2351
    %v2416 = vunpack.c.l.b16 %v2352
    %v2417 = vunpack.c.l.b16 %v2353
    %v2418 = vunpack.c.l.b16 %v2354
    %v2419 = vunpack.c.l.b16 %v2355
    %v2420 = vunpack.c.l.b16 %v2356
    %v2421 = vunpack.c.l.b16 %v2357
    %v2422 = vunpack.c.l.b16 %v2358
    %v2423 = vunpack.c.l.b16 %v2359
    %v2424 = vunpack.c.l.b16 %v2360
    %v2425 = vunpack.c.l.b16 %v2361
    %v2426 = vunpack.c.l.b16 %v2362
    %v2427 = vunpack.c.l.b16 %v2363
    %v2428 = vunpack.c.l.b16 %v2364
    %v2429 = vunpack.c.l.b16 %v2365
    %v2430 = vunpack.c.l.b16 %v2366
    %v2431 = vunpack.c.l.b16 %v2367
    %v2432 = vunpack.c.l.b16 %v2368
    %v2433 = vunpack.c.l.b16 %v2369
    %v2434 = vunpack.c.l.b16 %v2370
    %v2435 = vunpack.c.l.b16 %v2371
    %v2436 = vunpack.c.l.b16 %v2372
    %v2437 = vunpack.c.l.b16 %v2373
    %v2438 = vunpack.c.l.b16 %v2374
    %v2439 = vunpack.c.l.b16 %v2375
    %v2440 = vunpack.c.l.b16 %v2376
    %v2441 = vunpack.c.l.b16 %v2377
    %v2442 = vunpack.c.l.b16 %v2378
    %v2443 = vunpack.c.l.b16 %v2379
    %v2444 = vunpack.c.l.b16 %v2380
    %v2445 = vunpack.c.l.b16 %v2381
    %v2446 = vpack.c.b16 %v2415, %v2414
    %v2447 = vpack.c.b16 %v2417, %v2416
    %v2448 = vpack.c.b16 %v2419, %v2418
    %v2449 = vpack.c.b16 %v2421, %v2420
    %v2450 = vpack.c.b16 %v2423, %v2422
    %v2451 = vpack.c.b16 %v2425, %v2424
    %v2452 = vpack.c.b16 %v2427, %v2426
    %v2453 = vpack.c.b16 %v2429, %v2428
    %v2454 = vpack.c.b16 %v2431, %v2430
    %v2455 = vpack.c.b16 %v2433, %v2432
    %v2456 = vpack.c.b16 %v2435, %v2434
    %v2457 = vpack.c.b16 %v2437, %v2436
    %v2458 = vpack.c.b16 %v2439, %v2438
    %v2459 = vpack.c.b16 %v2441, %v2440
    %v2460 = vpack.c.b16 %v2443, %v2442
    %v2461 = vpack.c.b16 %v2445, %v2444
    %2478 = vmatpush.bf16.msra.mxu0 %v221
    %2479 = vmatpush.bf16.msra.mxu0 %v220
    %2480 = vmatpush.bf16.msra.mxu0 %v219
    %2481 = vmatpush.bf16.msra.mxu0 %v218
    %2482 = vmatpush.bf16.msra.mxu0 %v217
    %2483 = vmatpush.bf16.msra.mxu0 %v216
    %2484 = vmatpush.bf16.msra.mxu0 %v215
    %2485 = vmatpush.bf16.msra.mxu0 %v214
    %2486 = vmatmul.bf16.gmra.mxu0 %v2446
    %v2487 = vpop.f32.mrf.mxu0
    %v2488 = vadd.f32 %v84, %v2487
    %v2489 = vpop.f32.mrf.mxu0
    %v2490 = vadd.f32 %v84, %v2489
    %2491 = vmatmul.bf16.gmra.mxu0 %v2447
    %v2492 = vpop.f32.mrf.mxu0
    %v2493 = vadd.f32 %v84, %v2492
    %v2494 = vpop.f32.mrf.mxu0
    %v2495 = vadd.f32 %v84, %v2494
    %2496 = vmatmul.bf16.gmra.mxu0 %v2448
    %v2497 = vpop.f32.mrf.mxu0
    %v2498 = vadd.f32 %v84, %v2497
    %v2499 = vpop.f32.mrf.mxu0
    %v2500 = vadd.f32 %v84, %v2499
    %2501 = vmatmul.bf16.gmra.mxu0 %v2449
    %v2502 = vpop.f32.mrf.mxu0
    %v2503 = vadd.f32 %v84, %v2502
    %v2504 = vpop.f32.mrf.mxu0
    %v2505 = vadd.f32 %v84, %v2504
    %2506 = vmatmul.bf16.gmra.mxu0 %v2450
    %v2507 = vpop.f32.mrf.mxu0
    %v2508 = vadd.f32 %v84, %v2507
    %v2509 = vpop.f32.mrf.mxu0
    %v2510 = vadd.f32 %v84, %v2509
    %2511 = vmatmul.bf16.gmra.mxu0 %v2451
    %v2512 = vpop.f32.mrf.mxu0
    %v2513 = vadd.f32 %v84, %v2512
    %v2514 = vpop.f32.mrf.mxu0
    %v2515 = vadd.f32 %v84, %v2514
    %2516 = vmatmul.bf16.gmra.mxu0 %v2452
    %v2517 = vpop.f32.mrf.mxu0
    %v2518 = vadd.f32 %v84, %v2517
    %v2519 = vpop.f32.mrf.mxu0
    %v2520 = vadd.f32 %v84, %v2519
    %2521 = vmatmul.bf16.gmra.mxu0 %v2453
    %v2522 = vpop.f32.mrf.mxu0
    %v2523 = vadd.f32 %v84, %v2522
    %v2524 = vpop.f32.mrf.mxu0
    %v2525 = vadd.f32 %v84, %v2524
    %2526 = vmatmul.bf16.gmra.mxu0 %v2454
    %v2527 = vpop.f32.mrf.mxu0
    %v2528 = vadd.f32 %v84, %v2527
    %v2529 = vpop.f32.mrf.mxu0
    %v2530 = vadd.f32 %v84, %v2529
    %2531 = vmatmul.bf16.gmra.mxu0 %v2455
    %v2532 = vpop.f32.mrf.mxu0
    %v2533 = vadd.f32 %v84, %v2532
    %v2534 = vpop.f32.mrf.mxu0
    %v2535 = vadd.f32 %v84, %v2534
    %2536 = vmatmul.bf16.gmra.mxu0 %v2456
    %v2537 = vpop.f32.mrf.mxu0
    %v2538 = vadd.f32 %v84, %v2537
    %v2539 = vpop.f32.mrf.mxu0
    %v2540 = vadd.f32 %v84, %v2539
    %2541 = vmatmul.bf16.gmra.mxu0 %v2457
    %v2542 = vpop.f32.mrf.mxu0
    %v2543 = vadd.f32 %v84, %v2542
    %v2544 = vpop.f32.mrf.mxu0
    %v2545 = vadd.f32 %v84, %v2544
    %2546 = vmatmul.bf16.gmra.mxu0 %v2458
    %v2547 = vpop.f32.mrf.mxu0
    %v2548 = vadd.f32 %v84, %v2547
    %v2549 = vpop.f32.mrf.mxu0
    %v2550 = vadd.f32 %v84, %v2549
    %2551 = vmatmul.bf16.gmra.mxu0 %v2459
    %v2552 = vpop.f32.mrf.mxu0
    %v2553 = vadd.f32 %v84, %v2552
    %v2554 = vpop.f32.mrf.mxu0
    %v2555 = vadd.f32 %v84, %v2554
    %2556 = vmatmul.bf16.gmra.mxu0 %v2460
    %v2557 = vpop.f32.mrf.mxu0
    %v2558 = vadd.f32 %v84, %v2557
    %v2559 = vpop.f32.mrf.mxu0
    %v2560 = vadd.f32 %v84, %v2559
    %2561 = vmatmul.bf16.gmra.mxu0 %v2461
    %v2562 = vpop.f32.mrf.mxu0
    %v2563 = vadd.f32 %v84, %v2562
    %v2564 = vpop.f32.mrf.mxu0
    %v2565 = vadd.f32 %v84, %v2564
    %2566 = vdwg.mxu0
    %v2567 = vmax.f32 %v2488, 0.0
    %v2568 = vmax.f32 %v2490, 0.0
    %v2569 = vmax.f32 %v2493, 0.0
    %v2570 = vmax.f32 %v2495, 0.0
    %v2571 = vmax.f32 %v2498, 0.0
    %v2572 = vmax.f32 %v2500, 0.0
    %v2573 = vmax.f32 %v2503, 0.0
    %v2574 = vmax.f32 %v2505, 0.0
    %v2575 = vmax.f32 %v2508, 0.0
    %v2576 = vmax.f32 %v2510, 0.0
    %v2577 = vmax.f32 %v2513, 0.0
    %v2578 = vmax.f32 %v2515, 0.0
    %v2579 = vmax.f32 %v2518, 0.0
    %v2580 = vmax.f32 %v2520, 0.0
    %v2581 = vmax.f32 %v2523, 0.0
    %v2582 = vmax.f32 %v2525, 0.0
    %v2583 = vmax.f32 %v2528, 0.0
    %v2584 = vmax.f32 %v2530, 0.0
    %v2585 = vmax.f32 %v2533, 0.0
    %v2586 = vmax.f32 %v2535, 0.0
    %v2587 = vmax.f32 %v2538, 0.0
    %v2588 = vmax.f32 %v2540, 0.0
    %v2589 = vmax.f32 %v2543, 0.0
    %v2590 = vmax.f32 %v2545, 0.0
    %v2591 = vmax.f32 %v2548, 0.0
    %v2592 = vmax.f32 %v2550, 0.0
    %v2593 = vmax.f32 %v2553, 0.0
    %v2594 = vmax.f32 %v2555, 0.0
    %v2595 = vmax.f32 %v2558, 0.0
    %v2596 = vmax.f32 %v2560, 0.0
    %v2597 = vmax.f32 %v2563, 0.0
    %v2598 = vmax.f32 %v2565, 0.0
    %v2599 = vadd.f32 %v2567, %v2568
    %v2600 = vadd.f32 %v2599, %v2569
    %v2601 = vadd.f32 %v2600, %v2570
    %v2602 = vadd.f32 %v2601, %v2571
    %v2603 = vadd.f32 %v2602, %v2572
    %v2604 = vadd.f32 %v2603, %v2573
    %v2605 = vadd.f32 %v2604, %v2574
    %v2606 = vadd.f32 %v2605, %v2575
    %v2607 = vadd.f32 %v2606, %v2576
    %v2608 = vadd.f32 %v2607, %v2577
    %v2609 = vadd.f32 %v2608, %v2578
    %v2610 = vadd.f32 %v2609, %v2579
    %v2611 = vadd.f32 %v2610, %v2580
    %v2612 = vadd.f32 %v2611, %v2581
    %v2613 = vadd.f32 %v2612, %v2582
    %v2614 = vadd.f32 %v2613, %v2583
    %v2615 = vadd.f32 %v2614, %v2584
    %v2616 = vadd.f32 %v2615, %v2585
    %v2617 = vadd.f32 %v2616, %v2586
    %v2618 = vadd.f32 %v2617, %v2587
    %v2619 = vadd.f32 %v2618, %v2588
    %v2620 = vadd.f32 %v2619, %v2589
    %v2621 = vadd.f32 %v2620, %v2590
    %v2622 = vadd.f32 %v2621, %v2591
    %v2623 = vadd.f32 %v2622, %v2592
    %v2624 = vadd.f32 %v2623, %v2593
    %v2625 = vadd.f32 %v2624, %v2594
    %v2626 = vadd.f32 %v2625, %v2595
    %v2627 = vadd.f32 %v2626, %v2596
    %v2628 = vadd.f32 %v2627, %v2597
    %v2629 = vadd.f32 %v2628, %v2598
    %v2630 = vrot.slane %v2629, 4
    %v2631 = vadd.f32 %v2629, %v2630
    %v2632 = vrot.slane %v2631, 2
    %v2633 = vadd.f32 %v2631, %v2632
    %v2634 = vrot.slane %v2633, 1
    %v2635 = vadd.f32 %v2633, %v2634
    %v2636 = vmul.f32 %v2635, %v394
    %v2637 = vpack.c.bf16 %v2636, %v2636
    %2638 = vmatpush.bf16.msra.mxu0 %v553
    %2639 = vmatpush.bf16.msra.mxu0 %v549
    %2640 = vmatpush.bf16.msra.mxu0 %v545
    %2641 = vmatpush.bf16.msra.mxu0 %v541
    %2642 = vmatpush.bf16.msra.mxu0 %v537
    %2643 = vmatpush.bf16.msra.mxu0 %v533
    %2644 = vmatpush.bf16.msra.mxu0 %v529
    %2645 = vmatpush.bf16.msra.mxu0 %v525
    %2646 = vmatmul.bf16.gmra.mxu0 %v2637
    %v2647 = vpop.f32.mrf.mxu0
    %v2648 = vadd.f32 %v590, %v2647
    %v2649 = vpop.f32.mrf.mxu0
    %2650 = vdwg.mxu0
    %2651 = vmatpush.bf16.msra.mxu0 %v554
    %2652 = vmatpush.bf16.msra.mxu0 %v550
    %2653 = vmatpush.bf16.msra.mxu0 %v546
    %2654 = vmatpush.bf16.msra.mxu0 %v542
    %2655 = vmatpush.bf16.msra.mxu0 %v538
    %2656 = vmatpush.bf16.msra.mxu0 %v534
    %2657 = vmatpush.bf16.msra.mxu0 %v530
    %2658 = vmatpush.bf16.msra.mxu0 %v526
    %2659 = vmatmul.bf16.gmra.mxu0 %v2637
    %v2660 = vpop.f32.mrf.mxu0
    %v2661 = vadd.f32 %v591, %v2660
    %v2662 = vpop.f32.mrf.mxu0
    %2663 = vdwg.mxu0
    %2664 = vmatpush.bf16.msra.mxu0 %v555
    %2665 = vmatpush.bf16.msra.mxu0 %v551
    %2666 = vmatpush.bf16.msra.mxu0 %v547
    %2667 = vmatpush.bf16.msra.mxu0 %v543
    %2668 = vmatpush.bf16.msra.mxu0 %v539
    %2669 = vmatpush.bf16.msra.mxu0 %v535
    %2670 = vmatpush.bf16.msra.mxu0 %v531
    %2671 = vmatpush.bf16.msra.mxu0 %v527
    %2672 = vmatmul.bf16.gmra.mxu0 %v2637
    %v2673 = vpop.f32.mrf.mxu0
    %v2674 = vadd.f32 %v592, %v2673
    %v2675 = vpop.f32.mrf.mxu0
    %2676 = vdwg.mxu0
    %2677 = vmatpush.bf16.msra.mxu0 %v556
    %2678 = vmatpush.bf16.msra.mxu0 %v552
    %2679 = vmatpush.bf16.msra.mxu0 %v548
    %2680 = vmatpush.bf16.msra.mxu0 %v544
    %2681 = vmatpush.bf16.msra.mxu0 %v540
    %2682 = vmatpush.bf16.msra.mxu0 %v536
    %2683 = vmatpush.bf16.msra.mxu0 %v532
    %2684 = vmatpush.bf16.msra.mxu0 %v528
    %2685 = vmatmul.bf16.gmra.mxu0 %v2637
    %v2686 = vpop.f32.mrf.mxu0
    %v2687 = vadd.f32 %v593, %v2686
    %v2688 = vpop.f32.mrf.mxu0
    %2689 = vdwg.mxu0
    %v2690 = vld [vmem:[%s0 + $0x380] sm:$0xf]
    %v2691 = vld [vmem:[%s0 + $0x384] sm:$0xf]
    %v2692 = vld [vmem:[%s0 + $0x388] sm:$0xf]
    %v2693 = vld [vmem:[%s0 + $0x38c] sm:$0xf]
    %v2694 = vld [vmem:[%s0 + $0x390] sm:$0xf]
    %v2695 = vld [vmem:[%s0 + $0x394] sm:$0xf]
    %v2696 = vld [vmem:[%s0 + $0x398] sm:$0xf]
    %v2697 = vld [vmem:[%s0 + $0x39c] sm:$0xf]
    %v2698 = vld [vmem:[%s0 + $0x3a0] sm:$0xf]
    %v2699 = vld [vmem:[%s0 + $0x3a4] sm:$0xf]
    %v2700 = vld [vmem:[%s0 + $0x3a8] sm:$0xf]
    %v2701 = vld [vmem:[%s0 + $0x3ac] sm:$0xf]
    %v2702 = vld [vmem:[%s0 + $0x3b0] sm:$0xf]
    %v2703 = vld [vmem:[%s0 + $0x3b4] sm:$0xf]
    %v2704 = vld [vmem:[%s0 + $0x3b8] sm:$0xf]
    %v2705 = vld [vmem:[%s0 + $0x3bc] sm:$0xf]
    %v2706 = vld [vmem:[%s0 + $0x3c0] sm:$0xf]
    %v2707 = vld [vmem:[%s0 + $0x3c4] sm:$0xf]
    %v2708 = vld [vmem:[%s0 + $0x3c8] sm:$0xf]
    %v2709 = vld [vmem:[%s0 + $0x3cc] sm:$0xf]
    %v2710 = vld [vmem:[%s0 + $0x3d0] sm:$0xf]
    %v2711 = vld [vmem:[%s0 + $0x3d4] sm:$0xf]
    %v2712 = vld [vmem:[%s0 + $0x3d8] sm:$0xf]
    %v2713 = vld [vmem:[%s0 + $0x3dc] sm:$0xf]
    %v2714 = vld [vmem:[%s0 + $0x3e0] sm:$0xf]
    %v2715 = vld [vmem:[%s0 + $0x3e4] sm:$0xf]
    %v2716 = vld [vmem:[%s0 + $0x3e8] sm:$0xf]
    %v2717 = vld [vmem:[%s0 + $0x3ec] sm:$0xf]
    %v2718 = vld [vmem:[%s0 + $0x3f0] sm:$0xf]
    %v2719 = vld [vmem:[%s0 + $0x3f4] sm:$0xf]
    %v2720 = vld [vmem:[%s0 + $0x3f8] sm:$0xf]
    %v2721 = vld [vmem:[%s0 + $0x3fc] sm:$0xf]
    %v2754 = vunpack.c.l.b16 %v2690
    %v2755 = vunpack.c.l.b16 %v2691
    %v2756 = vunpack.c.l.b16 %v2692
    %v2757 = vunpack.c.l.b16 %v2693
    %v2758 = vunpack.c.l.b16 %v2694
    %v2759 = vunpack.c.l.b16 %v2695
    %v2760 = vunpack.c.l.b16 %v2696
    %v2761 = vunpack.c.l.b16 %v2697
    %v2762 = vunpack.c.l.b16 %v2698
    %v2763 = vunpack.c.l.b16 %v2699
    %v2764 = vunpack.c.l.b16 %v2700
    %v2765 = vunpack.c.l.b16 %v2701
    %v2766 = vunpack.c.l.b16 %v2702
    %v2767 = vunpack.c.l.b16 %v2703
    %v2768 = vunpack.c.l.b16 %v2704
    %v2769 = vunpack.c.l.b16 %v2705
    %v2770 = vunpack.c.l.b16 %v2706
    %v2771 = vunpack.c.l.b16 %v2707
    %v2772 = vunpack.c.l.b16 %v2708
    %v2773 = vunpack.c.l.b16 %v2709
    %v2774 = vunpack.c.l.b16 %v2710
    %v2775 = vunpack.c.l.b16 %v2711
    %v2776 = vunpack.c.l.b16 %v2712
    %v2777 = vunpack.c.l.b16 %v2713
    %v2778 = vunpack.c.l.b16 %v2714
    %v2779 = vunpack.c.l.b16 %v2715
    %v2780 = vunpack.c.l.b16 %v2716
    %v2781 = vunpack.c.l.b16 %v2717
    %v2782 = vunpack.c.l.b16 %v2718
    %v2783 = vunpack.c.l.b16 %v2719
    %v2784 = vunpack.c.l.b16 %v2720
    %v2785 = vunpack.c.l.b16 %v2721
    %v2786 = vpack.c.b16 %v2755, %v2754
    %v2787 = vpack.c.b16 %v2757, %v2756
    %v2788 = vpack.c.b16 %v2759, %v2758
    %v2789 = vpack.c.b16 %v2761, %v2760
    %v2790 = vpack.c.b16 %v2763, %v2762
    %v2791 = vpack.c.b16 %v2765, %v2764
    %v2792 = vpack.c.b16 %v2767, %v2766
    %v2793 = vpack.c.b16 %v2769, %v2768
    %v2794 = vpack.c.b16 %v2771, %v2770
    %v2795 = vpack.c.b16 %v2773, %v2772
    %v2796 = vpack.c.b16 %v2775, %v2774
    %v2797 = vpack.c.b16 %v2777, %v2776
    %v2798 = vpack.c.b16 %v2779, %v2778
    %v2799 = vpack.c.b16 %v2781, %v2780
    %v2800 = vpack.c.b16 %v2783, %v2782
    %v2801 = vpack.c.b16 %v2785, %v2784
    %2818 = vmatpush.bf16.msra.mxu0 %v221
    %2819 = vmatpush.bf16.msra.mxu0 %v220
    %2820 = vmatpush.bf16.msra.mxu0 %v219
    %2821 = vmatpush.bf16.msra.mxu0 %v218
    %2822 = vmatpush.bf16.msra.mxu0 %v217
    %2823 = vmatpush.bf16.msra.mxu0 %v216
    %2824 = vmatpush.bf16.msra.mxu0 %v215
    %2825 = vmatpush.bf16.msra.mxu0 %v214
    %2826 = vmatmul.bf16.gmra.mxu0 %v2786
    %v2827 = vpop.f32.mrf.mxu0
    %v2828 = vadd.f32 %v84, %v2827
    %v2829 = vpop.f32.mrf.mxu0
    %v2830 = vadd.f32 %v84, %v2829
    %2831 = vmatmul.bf16.gmra.mxu0 %v2787
    %v2832 = vpop.f32.mrf.mxu0
    %v2833 = vadd.f32 %v84, %v2832
    %v2834 = vpop.f32.mrf.mxu0
    %v2835 = vadd.f32 %v84, %v2834
    %2836 = vmatmul.bf16.gmra.mxu0 %v2788
    %v2837 = vpop.f32.mrf.mxu0
    %v2838 = vadd.f32 %v84, %v2837
    %v2839 = vpop.f32.mrf.mxu0
    %v2840 = vadd.f32 %v84, %v2839
    %2841 = vmatmul.bf16.gmra.mxu0 %v2789
    %v2842 = vpop.f32.mrf.mxu0
    %v2843 = vadd.f32 %v84, %v2842
    %v2844 = vpop.f32.mrf.mxu0
    %v2845 = vadd.f32 %v84, %v2844
    %2846 = vmatmul.bf16.gmra.mxu0 %v2790
    %v2847 = vpop.f32.mrf.mxu0
    %v2848 = vadd.f32 %v84, %v2847
    %v2849 = vpop.f32.mrf.mxu0
    %v2850 = vadd.f32 %v84, %v2849
    %2851 = vmatmul.bf16.gmra.mxu0 %v2791
    %v2852 = vpop.f32.mrf.mxu0
    %v2853 = vadd.f32 %v84, %v2852
    %v2854 = vpop.f32.mrf.mxu0
    %v2855 = vadd.f32 %v84, %v2854
    %2856 = vmatmul.bf16.gmra.mxu0 %v2792
    %v2857 = vpop.f32.mrf.mxu0
    %v2858 = vadd.f32 %v84, %v2857
    %v2859 = vpop.f32.mrf.mxu0
    %v2860 = vadd.f32 %v84, %v2859
    %2861 = vmatmul.bf16.gmra.mxu0 %v2793
    %v2862 = vpop.f32.mrf.mxu0
    %v2863 = vadd.f32 %v84, %v2862
    %v2864 = vpop.f32.mrf.mxu0
    %v2865 = vadd.f32 %v84, %v2864
    %2866 = vmatmul.bf16.gmra.mxu0 %v2794
    %v2867 = vpop.f32.mrf.mxu0
    %v2868 = vadd.f32 %v84, %v2867
    %v2869 = vpop.f32.mrf.mxu0
    %v2870 = vadd.f32 %v84, %v2869
    %2871 = vmatmul.bf16.gmra.mxu0 %v2795
    %v2872 = vpop.f32.mrf.mxu0
    %v2873 = vadd.f32 %v84, %v2872
    %v2874 = vpop.f32.mrf.mxu0
    %v2875 = vadd.f32 %v84, %v2874
    %2876 = vmatmul.bf16.gmra.mxu0 %v2796
    %v2877 = vpop.f32.mrf.mxu0
    %v2878 = vadd.f32 %v84, %v2877
    %v2879 = vpop.f32.mrf.mxu0
    %v2880 = vadd.f32 %v84, %v2879
    %2881 = vmatmul.bf16.gmra.mxu0 %v2797
    %v2882 = vpop.f32.mrf.mxu0
    %v2883 = vadd.f32 %v84, %v2882
    %v2884 = vpop.f32.mrf.mxu0
    %v2885 = vadd.f32 %v84, %v2884
    %2886 = vmatmul.bf16.gmra.mxu0 %v2798
    %v2887 = vpop.f32.mrf.mxu0
    %v2888 = vadd.f32 %v84, %v2887
    %v2889 = vpop.f32.mrf.mxu0
    %v2890 = vadd.f32 %v84, %v2889
    %2891 = vmatmul.bf16.gmra.mxu0 %v2799
    %v2892 = vpop.f32.mrf.mxu0
    %v2893 = vadd.f32 %v84, %v2892
    %v2894 = vpop.f32.mrf.mxu0
    %v2895 = vadd.f32 %v84, %v2894
    %2896 = vmatmul.bf16.gmra.mxu0 %v2800
    %v2897 = vpop.f32.mrf.mxu0
    %v2898 = vadd.f32 %v84, %v2897
    %v2899 = vpop.f32.mrf.mxu0
    %v2900 = vadd.f32 %v84, %v2899
    %2901 = vmatmul.bf16.gmra.mxu0 %v2801
    %v2902 = vpop.f32.mrf.mxu0
    %v2903 = vadd.f32 %v84, %v2902
    %v2904 = vpop.f32.mrf.mxu0
    %v2905 = vadd.f32 %v84, %v2904
    %2906 = vdwg.mxu0
    %v2907 = vmax.f32 %v2828, 0.0
    %v2908 = vmax.f32 %v2830, 0.0
    %v2909 = vmax.f32 %v2833, 0.0
    %v2910 = vmax.f32 %v2835, 0.0
    %v2911 = vmax.f32 %v2838, 0.0
    %v2912 = vmax.f32 %v2840, 0.0
    %v2913 = vmax.f32 %v2843, 0.0
    %v2914 = vmax.f32 %v2845, 0.0
    %v2915 = vmax.f32 %v2848, 0.0
    %v2916 = vmax.f32 %v2850, 0.0
    %v2917 = vmax.f32 %v2853, 0.0
    %v2918 = vmax.f32 %v2855, 0.0
    %v2919 = vmax.f32 %v2858, 0.0
    %v2920 = vmax.f32 %v2860, 0.0
    %v2921 = vmax.f32 %v2863, 0.0
    %v2922 = vmax.f32 %v2865, 0.0
    %v2923 = vmax.f32 %v2868, 0.0
    %v2924 = vmax.f32 %v2870, 0.0
    %v2925 = vmax.f32 %v2873, 0.0
    %v2926 = vmax.f32 %v2875, 0.0
    %v2927 = vmax.f32 %v2878, 0.0
    %v2928 = vmax.f32 %v2880, 0.0
    %v2929 = vmax.f32 %v2883, 0.0
    %v2930 = vmax.f32 %v2885, 0.0
    %v2931 = vmax.f32 %v2888, 0.0
    %v2932 = vmax.f32 %v2890, 0.0
    %v2933 = vmax.f32 %v2893, 0.0
    %v2934 = vmax.f32 %v2895, 0.0
    %v2935 = vmax.f32 %v2898, 0.0
    %v2936 = vmax.f32 %v2900, 0.0
    %v2937 = vmax.f32 %v2903, 0.0
    %v2938 = vmax.f32 %v2905, 0.0
    %v2939 = vadd.f32 %v2907, %v2908
    %v2940 = vadd.f32 %v2939, %v2909
    %v2941 = vadd.f32 %v2940, %v2910
    %v2942 = vadd.f32 %v2941, %v2911
    %v2943 = vadd.f32 %v2942, %v2912
    %v2944 = vadd.f32 %v2943, %v2913
    %v2945 = vadd.f32 %v2944, %v2914
    %v2946 = vadd.f32 %v2945, %v2915
    %v2947 = vadd.f32 %v2946, %v2916
    %v2948 = vadd.f32 %v2947, %v2917
    %v2949 = vadd.f32 %v2948, %v2918
    %v2950 = vadd.f32 %v2949, %v2919
    %v2951 = vadd.f32 %v2950, %v2920
    %v2952 = vadd.f32 %v2951, %v2921
    %v2953 = vadd.f32 %v2952, %v2922
    %v2954 = vadd.f32 %v2953, %v2923
    %v2955 = vadd.f32 %v2954, %v2924
    %v2956 = vadd.f32 %v2955, %v2925
    %v2957 = vadd.f32 %v2956, %v2926
    %v2958 = vadd.f32 %v2957, %v2927
    %v2959 = vadd.f32 %v2958, %v2928
    %v2960 = vadd.f32 %v2959, %v2929
    %v2961 = vadd.f32 %v2960, %v2930
    %v2962 = vadd.f32 %v2961, %v2931
    %v2963 = vadd.f32 %v2962, %v2932
    %v2964 = vadd.f32 %v2963, %v2933
    %v2965 = vadd.f32 %v2964, %v2934
    %v2966 = vadd.f32 %v2965, %v2935
    %v2967 = vadd.f32 %v2966, %v2936
    %v2968 = vadd.f32 %v2967, %v2937
    %v2969 = vadd.f32 %v2968, %v2938
    %v2970 = vrot.slane %v2969, 4
    %v2971 = vadd.f32 %v2969, %v2970
    %v2972 = vrot.slane %v2971, 2
    %v2973 = vadd.f32 %v2971, %v2972
    %v2974 = vrot.slane %v2973, 1
    %v2975 = vadd.f32 %v2973, %v2974
    %v2976 = vmul.f32 %v2975, %v394
    %v2977 = vpack.c.bf16 %v2976, %v2976
    %2978 = vmatpush.bf16.msra.mxu0 %v553
    %2979 = vmatpush.bf16.msra.mxu0 %v549
    %2980 = vmatpush.bf16.msra.mxu0 %v545
    %2981 = vmatpush.bf16.msra.mxu0 %v541
    %2982 = vmatpush.bf16.msra.mxu0 %v537
    %2983 = vmatpush.bf16.msra.mxu0 %v533
    %2984 = vmatpush.bf16.msra.mxu0 %v529
    %2985 = vmatpush.bf16.msra.mxu0 %v525
    %2986 = vmatmul.bf16.gmra.mxu0 %v2977
    %v2987 = vpop.f32.mrf.mxu0
    %v2988 = vadd.f32 %v590, %v2987
    %v2989 = vpop.f32.mrf.mxu0
    %2990 = vdwg.mxu0
    %2991 = vmatpush.bf16.msra.mxu0 %v554
    %2992 = vmatpush.bf16.msra.mxu0 %v550
    %2993 = vmatpush.bf16.msra.mxu0 %v546
    %2994 = vmatpush.bf16.msra.mxu0 %v542
    %2995 = vmatpush.bf16.msra.mxu0 %v538
    %2996 = vmatpush.bf16.msra.mxu0 %v534
    %2997 = vmatpush.bf16.msra.mxu0 %v530
    %2998 = vmatpush.bf16.msra.mxu0 %v526
    %2999 = vmatmul.bf16.gmra.mxu0 %v2977
    %v3000 = vpop.f32.mrf.mxu0
    %v3001 = vadd.f32 %v591, %v3000
    %v3002 = vpop.f32.mrf.mxu0
    %3003 = vdwg.mxu0
    %3004 = vmatpush.bf16.msra.mxu0 %v555
    %3005 = vmatpush.bf16.msra.mxu0 %v551
    %3006 = vmatpush.bf16.msra.mxu0 %v547
    %3007 = vmatpush.bf16.msra.mxu0 %v543
    %3008 = vmatpush.bf16.msra.mxu0 %v539
    %3009 = vmatpush.bf16.msra.mxu0 %v535
    %3010 = vmatpush.bf16.msra.mxu0 %v531
    %3011 = vmatpush.bf16.msra.mxu0 %v527
    %3012 = vmatmul.bf16.gmra.mxu0 %v2977
    %v3013 = vpop.f32.mrf.mxu0
    %v3014 = vadd.f32 %v592, %v3013
    %v3015 = vpop.f32.mrf.mxu0
    %3016 = vdwg.mxu0
    %3017 = vmatpush.bf16.msra.mxu0 %v556
    %3018 = vmatpush.bf16.msra.mxu0 %v552
    %3019 = vmatpush.bf16.msra.mxu0 %v548
    %3020 = vmatpush.bf16.msra.mxu0 %v544
    %3021 = vmatpush.bf16.msra.mxu0 %v540
    %3022 = vmatpush.bf16.msra.mxu0 %v536
    %3023 = vmatpush.bf16.msra.mxu0 %v532
    %3024 = vmatpush.bf16.msra.mxu0 %v528
    %3025 = vmatmul.bf16.gmra.mxu0 %v2977
    %v3026 = vpop.f32.mrf.mxu0
    %v3027 = vadd.f32 %v593, %v3026
    %v3028 = vpop.f32.mrf.mxu0
    %3029 = vdwg.mxu0
    %v3030 = vxor.u32 %v608, 2147483648
    %v3031 = vmul.f32 %v3030, 1.442695
    %v3032 = vpow.pop %v3031
    %v3033 = vadd.f32 %v3032, 1.0
    %v3034 = vrcp.pop %v3033
    %v3035 = vmul.f32 %v3033, %v3034
    %v3036 = vsub.f32 1.0, %v3035
    %v3037 = vmul.f32 %v3034, %v3036
    %v3038 = vadd.f32 %v3034, %v3037
    %vm3039 = vweird.f32 %v3033
    %vm3040 = vweird.f32 %v3034
    %vm3041 = vmor %vm3039, %vm3040
    %v3042 = vsel %vm3041, %v3034, %v3038
    %v3043 = vand.u32 2147483647, %v3033
    %vm3044 = vcmp.eq.f32.partialorder %v3043, 8.507059e+37
    %v3045 = vand.u32 %v3033, 2147483648
    %v3046 = vor.u32 1.1754944e-38, %v3045
    %v3047 = vsel %vm3044, %v3046, %v3042
    %v3048 = vmul.f32 1.0, %v3047
    %v3049 = vxor.u32 %v621, 2147483648
    %v3050 = vmul.f32 %v3049, 1.442695
    %v3051 = vpow.pop %v3050
    %v3052 = vadd.f32 %v3051, 1.0
    %v3053 = vrcp.pop %v3052
    %v3054 = vmul.f32 %v3052, %v3053
    %v3055 = vsub.f32 1.0, %v3054
    %v3056 = vmul.f32 %v3053, %v3055
    %v3057 = vadd.f32 %v3053, %v3056
    %vm3058 = vweird.f32 %v3052
    %vm3059 = vweird.f32 %v3053
    %vm3060 = vmor %vm3058, %vm3059
    %v3061 = vsel %vm3060, %v3053, %v3057
    %v3062 = vand.u32 2147483647, %v3052
    %vm3063 = vcmp.eq.f32.partialorder %v3062, 8.507059e+37
    %v3064 = vand.u32 %v3052, 2147483648
    %v3065 = vor.u32 1.1754944e-38, %v3064
    %v3066 = vsel %vm3063, %v3065, %v3061
    %v3067 = vmul.f32 1.0, %v3066
    %v3068 = vtanh.pop %v634
    %v3069 = vxor.u32 %v647, 2147483648
    %v3070 = vmul.f32 %v3069, 1.442695
    %v3071 = vpow.pop %v3070
    %v3072 = vadd.f32 %v3071, 1.0
    %v3073 = vrcp.pop %v3072
    %v3074 = vmul.f32 %v3072, %v3073
    %v3075 = vsub.f32 1.0, %v3074
    %v3076 = vmul.f32 %v3073, %v3075
    %v3077 = vadd.f32 %v3073, %v3076
    %vm3078 = vweird.f32 %v3072
    %vm3079 = vweird.f32 %v3073
    %vm3080 = vmor %vm3078, %vm3079
    %v3081 = vsel %vm3080, %v3073, %v3077
    %v3082 = vand.u32 2147483647, %v3072
    %vm3083 = vcmp.eq.f32.partialorder %v3082, 8.507059e+37
    %v3084 = vand.u32 %v3072, 2147483648
    %v3085 = vor.u32 1.1754944e-38, %v3084
    %v3086 = vsel %vm3083, %v3085, %v3081
    %v3087 = vmul.f32 1.0, %v3086
    %v3088 = vmul.f32 %v3067, 0.0
    %v3089 = vmul.f32 %v3048, %v3068
    %v3090 = vadd.f32 %v3088, %v3089
    %v3091 = vtanh.pop %v3090
    %v3092 = vmul.f32 %v3087, %v3091
    %vm3093 = vcmask 1040384
    %v3094 = vsel %vm3093, %v3090, 0.0
    %v3095 = vpack.c.bf16 %v3092, %v3092
    %v3096 = vpack.c.bf16 0.0, 0.0
    %v3097 = vld [vmem:[%s5] sm:$0xff]
    %v3098 = vld [vmem:[%s5 + $0x8] sm:$0xff]
    %v3099 = vld [vmem:[%s5 + $0x10] sm:$0xff]
    %v3100 = vld [vmem:[%s5 + $0x18] sm:$0xff]
    %v3101 = vld [vmem:[%s5 + $0x20] sm:$0xff]
    %v3102 = vld [vmem:[%s5 + $0x28] sm:$0xff]
    %v3103 = vld [vmem:[%s5 + $0x30] sm:$0xff]
    %v3104 = vld [vmem:[%s5 + $0x38] sm:$0xff]
    %v3105 = vld [vmem:[%s5 + $0x40] sm:$0xff]
    %v3106 = vld [vmem:[%s5 + $0x48] sm:$0xff]
    %v3107 = vld [vmem:[%s5 + $0x50] sm:$0xff]
    %v3108 = vld [vmem:[%s5 + $0x58] sm:$0xff]
    %v3109 = vld [vmem:[%s5 + $0x60] sm:$0xff]
    %v3110 = vld [vmem:[%s5 + $0x68] sm:$0xff]
    %v3111 = vld [vmem:[%s5 + $0x70] sm:$0xff]
    %v3112 = vld [vmem:[%s5 + $0x78] sm:$0xff]
    %v3113 = vld [vmem:[%s5 + $0x80] sm:$0xff]
    %v3114 = vld [vmem:[%s5 + $0x88] sm:$0xff]
    %v3115 = vld [vmem:[%s5 + $0x90] sm:$0xff]
    %v3116 = vld [vmem:[%s5 + $0x98] sm:$0xff]
    %v3117 = vld [vmem:[%s5 + $0xa0] sm:$0xff]
    %v3118 = vld [vmem:[%s5 + $0xa8] sm:$0xff]
    %v3119 = vld [vmem:[%s5 + $0xb0] sm:$0xff]
    %v3120 = vld [vmem:[%s5 + $0xb8] sm:$0xff]
    %v3121 = vld [vmem:[%s5 + $0xc0] sm:$0xff]
    %v3122 = vld [vmem:[%s5 + $0xc8] sm:$0xff]
    %v3123 = vld [vmem:[%s5 + $0xd0] sm:$0xff]
    %v3124 = vld [vmem:[%s5 + $0xd8] sm:$0xff]
    %v3125 = vld [vmem:[%s5 + $0xe0] sm:$0xff]
    %v3126 = vld [vmem:[%s5 + $0xe8] sm:$0xff]
    %v3127 = vld [vmem:[%s5 + $0xf0] sm:$0xff]
    %v3128 = vld [vmem:[%s5 + $0xf8] sm:$0xff]
    %v3129 = vld [vmem:[%s5 + $0x100] sm:$0xff]
    %v3130 = vld [vmem:[%s5 + $0x108] sm:$0xff]
    %v3131 = vld [vmem:[%s5 + $0x110] sm:$0xff]
    %v3132 = vld [vmem:[%s5 + $0x118] sm:$0xff]
    %v3133 = vld [vmem:[%s5 + $0x120] sm:$0xff]
    %v3134 = vld [vmem:[%s5 + $0x128] sm:$0xff]
    %v3135 = vld [vmem:[%s5 + $0x130] sm:$0xff]
    %v3136 = vld [vmem:[%s5 + $0x138] sm:$0xff]
    %v3137 = vld [vmem:[%s5 + $0x140] sm:$0xff]
    %v3138 = vld [vmem:[%s5 + $0x148] sm:$0xff]
    %v3139 = vld [vmem:[%s5 + $0x150] sm:$0xff]
    %v3140 = vld [vmem:[%s5 + $0x158] sm:$0xff]
    %v3141 = vld [vmem:[%s5 + $0x160] sm:$0xff]
    %v3142 = vld [vmem:[%s5 + $0x168] sm:$0xff]
    %v3143 = vld [vmem:[%s5 + $0x170] sm:$0xff]
    %v3144 = vld [vmem:[%s5 + $0x178] sm:$0xff]
    %v3145 = vld [vmem:[%s5 + $0x180] sm:$0xff]
    %v3146 = vld [vmem:[%s5 + $0x188] sm:$0xff]
    %v3147 = vld [vmem:[%s5 + $0x190] sm:$0xff]
    %v3148 = vld [vmem:[%s5 + $0x198] sm:$0xff]
    %v3149 = vld [vmem:[%s5 + $0x1a0] sm:$0xff]
    %v3150 = vld [vmem:[%s5 + $0x1a8] sm:$0xff]
    %v3151 = vld [vmem:[%s5 + $0x1b0] sm:$0xff]
    %v3152 = vld [vmem:[%s5 + $0x1b8] sm:$0xff]
    %v3153 = vld [vmem:[%s5 + $0x1c0] sm:$0xff]
    %v3154 = vld [vmem:[%s5 + $0x1c8] sm:$0xff]
    %v3155 = vld [vmem:[%s5 + $0x1d0] sm:$0xff]
    %v3156 = vld [vmem:[%s5 + $0x1d8] sm:$0xff]
    %v3157 = vld [vmem:[%s5 + $0x1e0] sm:$0xff]
    %v3158 = vld [vmem:[%s5 + $0x1e8] sm:$0xff]
    %v3159 = vld [vmem:[%s5 + $0x1f0] sm:$0xff]
    %v3160 = vld [vmem:[%s5 + $0x1f8] sm:$0xff]
    %v3161 = vld [vmem:[%s5 + $0x200] sm:$0xff]
    %v3162 = vld [vmem:[%s5 + $0x208] sm:$0xff]
    %v3163 = vld [vmem:[%s5 + $0x210] sm:$0xff]
    %v3164 = vld [vmem:[%s5 + $0x218] sm:$0xff]
    %v3165 = vld [vmem:[%s5 + $0x220] sm:$0xff]
    %v3166 = vld [vmem:[%s5 + $0x228] sm:$0xff]
    %v3167 = vld [vmem:[%s5 + $0x230] sm:$0xff]
    %v3168 = vld [vmem:[%s5 + $0x238] sm:$0xff]
    %v3169 = vld [vmem:[%s5 + $0x240] sm:$0xff]
    %v3170 = vld [vmem:[%s5 + $0x248] sm:$0xff]
    %v3171 = vld [vmem:[%s5 + $0x250] sm:$0xff]
    %v3172 = vld [vmem:[%s5 + $0x258] sm:$0xff]
    %v3173 = vld [vmem:[%s5 + $0x260] sm:$0xff]
    %v3174 = vld [vmem:[%s5 + $0x268] sm:$0xff]
    %v3175 = vld [vmem:[%s5 + $0x270] sm:$0xff]
    %v3176 = vld [vmem:[%s5 + $0x278] sm:$0xff]
    %v3177 = vld [vmem:[%s5 + $0x280] sm:$0xff]
    %v3178 = vld [vmem:[%s5 + $0x288] sm:$0xff]
    %v3179 = vld [vmem:[%s5 + $0x290] sm:$0xff]
    %v3180 = vld [vmem:[%s5 + $0x298] sm:$0xff]
    %v3181 = vld [vmem:[%s5 + $0x2a0] sm:$0xff]
    %v3182 = vld [vmem:[%s5 + $0x2a8] sm:$0xff]
    %v3183 = vld [vmem:[%s5 + $0x2b0] sm:$0xff]
    %v3184 = vld [vmem:[%s5 + $0x2b8] sm:$0xff]
    %v3185 = vld [vmem:[%s5 + $0x2c0] sm:$0xff]
    %v3186 = vld [vmem:[%s5 + $0x2c8] sm:$0xff]
    %v3187 = vld [vmem:[%s5 + $0x2d0] sm:$0xff]
    %v3188 = vld [vmem:[%s5 + $0x2d8] sm:$0xff]
    %v3189 = vld [vmem:[%s5 + $0x2e0] sm:$0xff]
    %v3190 = vld [vmem:[%s5 + $0x2e8] sm:$0xff]
    %v3191 = vld [vmem:[%s5 + $0x2f0] sm:$0xff]
    %v3192 = vld [vmem:[%s5 + $0x2f8] sm:$0xff]
    %v3193 = vld [vmem:[%s5 + $0x300] sm:$0xff]
    %v3194 = vld [vmem:[%s5 + $0x308] sm:$0xff]
    %v3195 = vld [vmem:[%s5 + $0x310] sm:$0xff]
    %v3196 = vld [vmem:[%s5 + $0x318] sm:$0xff]
    %v3197 = vld [vmem:[%s5 + $0x320] sm:$0xff]
    %v3198 = vld [vmem:[%s5 + $0x328] sm:$0xff]
    %v3199 = vld [vmem:[%s5 + $0x330] sm:$0xff]
    %v3200 = vld [vmem:[%s5 + $0x338] sm:$0xff]
    %v3201 = vld [vmem:[%s5 + $0x340] sm:$0xff]
    %v3202 = vld [vmem:[%s5 + $0x348] sm:$0xff]
    %v3203 = vld [vmem:[%s5 + $0x350] sm:$0xff]
    %v3204 = vld [vmem:[%s5 + $0x358] sm:$0xff]
    %v3205 = vld [vmem:[%s5 + $0x360] sm:$0xff]
    %v3206 = vld [vmem:[%s5 + $0x368] sm:$0xff]
    %v3207 = vld [vmem:[%s5 + $0x370] sm:$0xff]
    %v3208 = vld [vmem:[%s5 + $0x378] sm:$0xff]
    %v3209 = vld [vmem:[%s5 + $0x380] sm:$0xff]
    %v3210 = vld [vmem:[%s5 + $0x388] sm:$0xff]
    %v3211 = vld [vmem:[%s5 + $0x390] sm:$0xff]
    %v3212 = vld [vmem:[%s5 + $0x398] sm:$0xff]
    %v3213 = vld [vmem:[%s5 + $0x3a0] sm:$0xff]
    %v3214 = vld [vmem:[%s5 + $0x3a8] sm:$0xff]
    %v3215 = vld [vmem:[%s5 + $0x3b0] sm:$0xff]
    %v3216 = vld [vmem:[%s5 + $0x3b8] sm:$0xff]
    %v3217 = vld [vmem:[%s5 + $0x3c0] sm:$0xff]
    %v3218 = vld [vmem:[%s5 + $0x3c8] sm:$0xff]
    %v3219 = vld [vmem:[%s5 + $0x3d0] sm:$0xff]
    %v3220 = vld [vmem:[%s5 + $0x3d8] sm:$0xff]
    %v3221 = vld [vmem:[%s5 + $0x3e0] sm:$0xff]
    %v3222 = vld [vmem:[%s5 + $0x3e8] sm:$0xff]
    %v3223 = vld [vmem:[%s5 + $0x3f0] sm:$0xff]
    %v3224 = vld [vmem:[%s5 + $0x3f8] sm:$0xff]
    %v3353 = vunpack.c.l.b16 %v3097
    %v3354 = vunpack.c.h.b16 %v3097
    %v3355 = vunpack.c.l.b16 %v3098
    %v3356 = vunpack.c.h.b16 %v3098
    %v3357 = vunpack.c.l.b16 %v3099
    %v3358 = vunpack.c.h.b16 %v3099
    %v3359 = vunpack.c.l.b16 %v3100
    %v3360 = vunpack.c.h.b16 %v3100
    %v3361 = vunpack.c.l.b16 %v3101
    %v3362 = vunpack.c.h.b16 %v3101
    %v3363 = vunpack.c.l.b16 %v3102
    %v3364 = vunpack.c.h.b16 %v3102
    %v3365 = vunpack.c.l.b16 %v3103
    %v3366 = vunpack.c.h.b16 %v3103
    %v3367 = vunpack.c.l.b16 %v3104
    %v3368 = vunpack.c.h.b16 %v3104
    %v3369 = vunpack.c.l.b16 %v3105
    %v3370 = vunpack.c.h.b16 %v3105
    %v3371 = vunpack.c.l.b16 %v3106
    %v3372 = vunpack.c.h.b16 %v3106
    %v3373 = vunpack.c.l.b16 %v3107
    %v3374 = vunpack.c.h.b16 %v3107
    %v3375 = vunpack.c.l.b16 %v3108
    %v3376 = vunpack.c.h.b16 %v3108
    %v3377 = vunpack.c.l.b16 %v3109
    %v3378 = vunpack.c.h.b16 %v3109
    %v3379 = vunpack.c.l.b16 %v3110
    %v3380 = vunpack.c.h.b16 %v3110
    %v3381 = vunpack.c.l.b16 %v3111
    %v3382 = vunpack.c.h.b16 %v3111
    %v3383 = vunpack.c.l.b16 %v3112
    %v3384 = vunpack.c.h.b16 %v3112
    %v3385 = vunpack.c.l.b16 %v3113
    %v3386 = vunpack.c.h.b16 %v3113
    %v3387 = vunpack.c.l.b16 %v3114
    %v3388 = vunpack.c.h.b16 %v3114
    %v3389 = vunpack.c.l.b16 %v3115
    %v3390 = vunpack.c.h.b16 %v3115
    %v3391 = vunpack.c.l.b16 %v3116
    %v3392 = vunpack.c.h.b16 %v3116
    %v3393 = vunpack.c.l.b16 %v3117
    %v3394 = vunpack.c.h.b16 %v3117
    %v3395 = vunpack.c.l.b16 %v3118
    %v3396 = vunpack.c.h.b16 %v3118
    %v3397 = vunpack.c.l.b16 %v3119
    %v3398 = vunpack.c.h.b16 %v3119
    %v3399 = vunpack.c.l.b16 %v3120
    %v3400 = vunpack.c.h.b16 %v3120
    %v3401 = vunpack.c.l.b16 %v3121
    %v3402 = vunpack.c.h.b16 %v3121
    %v3403 = vunpack.c.l.b16 %v3122
    %v3404 = vunpack.c.h.b16 %v3122
    %v3405 = vunpack.c.l.b16 %v3123
    %v3406 = vunpack.c.h.b16 %v3123
    %v3407 = vunpack.c.l.b16 %v3124
    %v3408 = vunpack.c.h.b16 %v3124
    %v3409 = vunpack.c.l.b16 %v3125
    %v3410 = vunpack.c.h.b16 %v3125
    %v3411 = vunpack.c.l.b16 %v3126
    %v3412 = vunpack.c.h.b16 %v3126
    %v3413 = vunpack.c.l.b16 %v3127
    %v3414 = vunpack.c.h.b16 %v3127
    %v3415 = vunpack.c.l.b16 %v3128
    %v3416 = vunpack.c.h.b16 %v3128
    %v3417 = vunpack.c.l.b16 %v3129
    %v3418 = vunpack.c.h.b16 %v3129
    %v3419 = vunpack.c.l.b16 %v3130
    %v3420 = vunpack.c.h.b16 %v3130
    %v3421 = vunpack.c.l.b16 %v3131
    %v3422 = vunpack.c.h.b16 %v3131
    %v3423 = vunpack.c.l.b16 %v3132
    %v3424 = vunpack.c.h.b16 %v3132
    %v3425 = vunpack.c.l.b16 %v3133
    %v3426 = vunpack.c.h.b16 %v3133
    %v3427 = vunpack.c.l.b16 %v3134
    %v3428 = vunpack.c.h.b16 %v3134
    %v3429 = vunpack.c.l.b16 %v3135
    %v3430 = vunpack.c.h.b16 %v3135
    %v3431 = vunpack.c.l.b16 %v3136
    %v3432 = vunpack.c.h.b16 %v3136
    %v3433 = vunpack.c.l.b16 %v3137
    %v3434 = vunpack.c.h.b16 %v3137
    %v3435 = vunpack.c.l.b16 %v3138
    %v3436 = vunpack.c.h.b16 %v3138
    %v3437 = vunpack.c.l.b16 %v3139
    %v3438 = vunpack.c.h.b16 %v3139
    %v3439 = vunpack.c.l.b16 %v3140
    %v3440 = vunpack.c.h.b16 %v3140
    %v3441 = vunpack.c.l.b16 %v3141
    %v3442 = vunpack.c.h.b16 %v3141
    %v3443 = vunpack.c.l.b16 %v3142
    %v3444 = vunpack.c.h.b16 %v3142
    %v3445 = vunpack.c.l.b16 %v3143
    %v3446 = vunpack.c.h.b16 %v3143
    %v3447 = vunpack.c.l.b16 %v3144
    %v3448 = vunpack.c.h.b16 %v3144
    %v3449 = vunpack.c.l.b16 %v3145
    %v3450 = vunpack.c.h.b16 %v3145
    %v3451 = vunpack.c.l.b16 %v3146
    %v3452 = vunpack.c.h.b16 %v3146
    %v3453 = vunpack.c.l.b16 %v3147
    %v3454 = vunpack.c.h.b16 %v3147
    %v3455 = vunpack.c.l.b16 %v3148
    %v3456 = vunpack.c.h.b16 %v3148
    %v3457 = vunpack.c.l.b16 %v3149
    %v3458 = vunpack.c.h.b16 %v3149
    %v3459 = vunpack.c.l.b16 %v3150
    %v3460 = vunpack.c.h.b16 %v3150
    %v3461 = vunpack.c.l.b16 %v3151
    %v3462 = vunpack.c.h.b16 %v3151
    %v3463 = vunpack.c.l.b16 %v3152
    %v3464 = vunpack.c.h.b16 %v3152
    %v3465 = vunpack.c.l.b16 %v3153
    %v3466 = vunpack.c.h.b16 %v3153
    %v3467 = vunpack.c.l.b16 %v3154
    %v3468 = vunpack.c.h.b16 %v3154
    %v3469 = vunpack.c.l.b16 %v3155
    %v3470 = vunpack.c.h.b16 %v3155
    %v3471 = vunpack.c.l.b16 %v3156
    %v3472 = vunpack.c.h.b16 %v3156
    %v3473 = vunpack.c.l.b16 %v3157
    %v3474 = vunpack.c.h.b16 %v3157
    %v3475 = vunpack.c.l.b16 %v3158
    %v3476 = vunpack.c.h.b16 %v3158
    %v3477 = vunpack.c.l.b16 %v3159
    %v3478 = vunpack.c.h.b16 %v3159
    %v3479 = vunpack.c.l.b16 %v3160
    %v3480 = vunpack.c.h.b16 %v3160
    %v3481 = vunpack.c.l.b16 %v3161
    %v3482 = vunpack.c.h.b16 %v3161
    %v3483 = vunpack.c.l.b16 %v3162
    %v3484 = vunpack.c.h.b16 %v3162
    %v3485 = vunpack.c.l.b16 %v3163
    %v3486 = vunpack.c.h.b16 %v3163
    %v3487 = vunpack.c.l.b16 %v3164
    %v3488 = vunpack.c.h.b16 %v3164
    %v3489 = vunpack.c.l.b16 %v3165
    %v3490 = vunpack.c.h.b16 %v3165
    %v3491 = vunpack.c.l.b16 %v3166
    %v3492 = vunpack.c.h.b16 %v3166
    %v3493 = vunpack.c.l.b16 %v3167
    %v3494 = vunpack.c.h.b16 %v3167
    %v3495 = vunpack.c.l.b16 %v3168
    %v3496 = vunpack.c.h.b16 %v3168
    %v3497 = vunpack.c.l.b16 %v3169
    %v3498 = vunpack.c.h.b16 %v3169
    %v3499 = vunpack.c.l.b16 %v3170
    %v3500 = vunpack.c.h.b16 %v3170
    %v3501 = vunpack.c.l.b16 %v3171
    %v3502 = vunpack.c.h.b16 %v3171
    %v3503 = vunpack.c.l.b16 %v3172
    %v3504 = vunpack.c.h.b16 %v3172
    %v3505 = vunpack.c.l.b16 %v3173
    %v3506 = vunpack.c.h.b16 %v3173
    %v3507 = vunpack.c.l.b16 %v3174
    %v3508 = vunpack.c.h.b16 %v3174
    %v3509 = vunpack.c.l.b16 %v3175
    %v3510 = vunpack.c.h.b16 %v3175
    %v3511 = vunpack.c.l.b16 %v3176
    %v3512 = vunpack.c.h.b16 %v3176
    %v3513 = vunpack.c.l.b16 %v3177
    %v3514 = vunpack.c.h.b16 %v3177
    %v3515 = vunpack.c.l.b16 %v3178
    %v3516 = vunpack.c.h.b16 %v3178
    %v3517 = vunpack.c.l.b16 %v3179
    %v3518 = vunpack.c.h.b16 %v3179
    %v3519 = vunpack.c.l.b16 %v3180
    %v3520 = vunpack.c.h.b16 %v3180
    %v3521 = vunpack.c.l.b16 %v3181
    %v3522 = vunpack.c.h.b16 %v3181
    %v3523 = vunpack.c.l.b16 %v3182
    %v3524 = vunpack.c.h.b16 %v3182
    %v3525 = vunpack.c.l.b16 %v3183
    %v3526 = vunpack.c.h.b16 %v3183
    %v3527 = vunpack.c.l.b16 %v3184
    %v3528 = vunpack.c.h.b16 %v3184
    %v3529 = vunpack.c.l.b16 %v3185
    %v3530 = vunpack.c.h.b16 %v3185
    %v3531 = vunpack.c.l.b16 %v3186
    %v3532 = vunpack.c.h.b16 %v3186
    %v3533 = vunpack.c.l.b16 %v3187
    %v3534 = vunpack.c.h.b16 %v3187
    %v3535 = vunpack.c.l.b16 %v3188
    %v3536 = vunpack.c.h.b16 %v3188
    %v3537 = vunpack.c.l.b16 %v3189
    %v3538 = vunpack.c.h.b16 %v3189
    %v3539 = vunpack.c.l.b16 %v3190
    %v3540 = vunpack.c.h.b16 %v3190
    %v3541 = vunpack.c.l.b16 %v3191
    %v3542 = vunpack.c.h.b16 %v3191
    %v3543 = vunpack.c.l.b16 %v3192
    %v3544 = vunpack.c.h.b16 %v3192
    %v3545 = vunpack.c.l.b16 %v3193
    %v3546 = vunpack.c.h.b16 %v3193
    %v3547 = vunpack.c.l.b16 %v3194
    %v3548 = vunpack.c.h.b16 %v3194
    %v3549 = vunpack.c.l.b16 %v3195
    %v3550 = vunpack.c.h.b16 %v3195
    %v3551 = vunpack.c.l.b16 %v3196
    %v3552 = vunpack.c.h.b16 %v3196
    %v3553 = vunpack.c.l.b16 %v3197
    %v3554 = vunpack.c.h.b16 %v3197
    %v3555 = vunpack.c.l.b16 %v3198
    %v3556 = vunpack.c.h.b16 %v3198
    %v3557 = vunpack.c.l.b16 %v3199
    %v3558 = vunpack.c.h.b16 %v3199
    %v3559 = vunpack.c.l.b16 %v3200
    %v3560 = vunpack.c.h.b16 %v3200
    %v3561 = vunpack.c.l.b16 %v3201
    %v3562 = vunpack.c.h.b16 %v3201
    %v3563 = vunpack.c.l.b16 %v3202
    %v3564 = vunpack.c.h.b16 %v3202
    %v3565 = vunpack.c.l.b16 %v3203
    %v3566 = vunpack.c.h.b16 %v3203
    %v3567 = vunpack.c.l.b16 %v3204
    %v3568 = vunpack.c.h.b16 %v3204
    %v3569 = vunpack.c.l.b16 %v3205
    %v3570 = vunpack.c.h.b16 %v3205
    %v3571 = vunpack.c.l.b16 %v3206
    %v3572 = vunpack.c.h.b16 %v3206
    %v3573 = vunpack.c.l.b16 %v3207
    %v3574 = vunpack.c.h.b16 %v3207
    %v3575 = vunpack.c.l.b16 %v3208
    %v3576 = vunpack.c.h.b16 %v3208
    %v3577 = vunpack.c.l.b16 %v3209
    %v3578 = vunpack.c.h.b16 %v3209
    %v3579 = vunpack.c.l.b16 %v3210
    %v3580 = vunpack.c.h.b16 %v3210
    %v3581 = vunpack.c.l.b16 %v3211
    %v3582 = vunpack.c.h.b16 %v3211
    %v3583 = vunpack.c.l.b16 %v3212
    %v3584 = vunpack.c.h.b16 %v3212
    %v3585 = vunpack.c.l.b16 %v3213
    %v3586 = vunpack.c.h.b16 %v3213
    %v3587 = vunpack.c.l.b16 %v3214
    %v3588 = vunpack.c.h.b16 %v3214
    %v3589 = vunpack.c.l.b16 %v3215
    %v3590 = vunpack.c.h.b16 %v3215
    %v3591 = vunpack.c.l.b16 %v3216
    %v3592 = vunpack.c.h.b16 %v3216
    %v3593 = vunpack.c.l.b16 %v3217
    %v3594 = vunpack.c.h.b16 %v3217
    %v3595 = vunpack.c.l.b16 %v3218
    %v3596 = vunpack.c.h.b16 %v3218
    %v3597 = vunpack.c.l.b16 %v3219
    %v3598 = vunpack.c.h.b16 %v3219
    %v3599 = vunpack.c.l.b16 %v3220
    %v3600 = vunpack.c.h.b16 %v3220
    %v3601 = vunpack.c.l.b16 %v3221
    %v3602 = vunpack.c.h.b16 %v3221
    %v3603 = vunpack.c.l.b16 %v3222
    %v3604 = vunpack.c.h.b16 %v3222
    %v3605 = vunpack.c.l.b16 %v3223
    %v3606 = vunpack.c.h.b16 %v3223
    %v3607 = vunpack.c.l.b16 %v3224
    %v3608 = vunpack.c.h.b16 %v3224
    %v3609 = vpack.c.b16 %v3361, %v3353
    %v3610 = vpack.c.b16 %v3362, %v3354
    %v3611 = vpack.c.b16 %v3363, %v3355
    %v3612 = vpack.c.b16 %v3364, %v3356
    %v3613 = vpack.c.b16 %v3365, %v3357
    %v3614 = vpack.c.b16 %v3366, %v3358
    %v3615 = vpack.c.b16 %v3367, %v3359
    %v3616 = vpack.c.b16 %v3368, %v3360
    %v3617 = vpack.c.b16 %v3377, %v3369
    %v3618 = vpack.c.b16 %v3378, %v3370
    %v3619 = vpack.c.b16 %v3379, %v3371
    %v3620 = vpack.c.b16 %v3380, %v3372
    %v3621 = vpack.c.b16 %v3381, %v3373
    %v3622 = vpack.c.b16 %v3382, %v3374
    %v3623 = vpack.c.b16 %v3383, %v3375
    %v3624 = vpack.c.b16 %v3384, %v3376
    %v3625 = vpack.c.b16 %v3393, %v3385
    %v3626 = vpack.c.b16 %v3394, %v3386
    %v3627 = vpack.c.b16 %v3395, %v3387
    %v3628 = vpack.c.b16 %v3396, %v3388
    %v3629 = vpack.c.b16 %v3397, %v3389
    %v3630 = vpack.c.b16 %v3398, %v3390
    %v3631 = vpack.c.b16 %v3399, %v3391
    %v3632 = vpack.c.b16 %v3400, %v3392
    %v3633 = vpack.c.b16 %v3409, %v3401
    %v3634 = vpack.c.b16 %v3410, %v3402
    %v3635 = vpack.c.b16 %v3411, %v3403
    %v3636 = vpack.c.b16 %v3412, %v3404
    %v3637 = vpack.c.b16 %v3413, %v3405
    %v3638 = vpack.c.b16 %v3414, %v3406
    %v3639 = vpack.c.b16 %v3415, %v3407
    %v3640 = vpack.c.b16 %v3416, %v3408
    %v3641 = vpack.c.b16 %v3425, %v3417
    %v3642 = vpack.c.b16 %v3426, %v3418
    %v3643 = vpack.c.b16 %v3427, %v3419
    %v3644 = vpack.c.b16 %v3428, %v3420
    %v3645 = vpack.c.b16 %v3429, %v3421
    %v3646 = vpack.c.b16 %v3430, %v3422
    %v3647 = vpack.c.b16 %v3431, %v3423
    %v3648 = vpack.c.b16 %v3432, %v3424
    %v3649 = vpack.c.b16 %v3441, %v3433
    %v3650 = vpack.c.b16 %v3442, %v3434
    %v3651 = vpack.c.b16 %v3443, %v3435
    %v3652 = vpack.c.b16 %v3444, %v3436
    %v3653 = vpack.c.b16 %v3445, %v3437
    %v3654 = vpack.c.b16 %v3446, %v3438
    %v3655 = vpack.c.b16 %v3447, %v3439
    %v3656 = vpack.c.b16 %v3448, %v3440
    %v3657 = vpack.c.b16 %v3457, %v3449
    %v3658 = vpack.c.b16 %v3458, %v3450
    %v3659 = vpack.c.b16 %v3459, %v3451
    %v3660 = vpack.c.b16 %v3460, %v3452
    %v3661 = vpack.c.b16 %v3461, %v3453
    %v3662 = vpack.c.b16 %v3462, %v3454
    %v3663 = vpack.c.b16 %v3463, %v3455
    %v3664 = vpack.c.b16 %v3464, %v3456
    %v3665 = vpack.c.b16 %v3473, %v3465
    %v3666 = vpack.c.b16 %v3474, %v3466
    %v3667 = vpack.c.b16 %v3475, %v3467
    %v3668 = vpack.c.b16 %v3476, %v3468
    %v3669 = vpack.c.b16 %v3477, %v3469
    %v3670 = vpack.c.b16 %v3478, %v3470
    %v3671 = vpack.c.b16 %v3479, %v3471
    %v3672 = vpack.c.b16 %v3480, %v3472
    %v3673 = vpack.c.b16 %v3489, %v3481
    %v3674 = vpack.c.b16 %v3490, %v3482
    %v3675 = vpack.c.b16 %v3491, %v3483
    %v3676 = vpack.c.b16 %v3492, %v3484
    %v3677 = vpack.c.b16 %v3493, %v3485
    %v3678 = vpack.c.b16 %v3494, %v3486
    %v3679 = vpack.c.b16 %v3495, %v3487
    %v3680 = vpack.c.b16 %v3496, %v3488
    %v3681 = vpack.c.b16 %v3505, %v3497
    %v3682 = vpack.c.b16 %v3506, %v3498
    %v3683 = vpack.c.b16 %v3507, %v3499
    %v3684 = vpack.c.b16 %v3508, %v3500
    %v3685 = vpack.c.b16 %v3509, %v3501
    %v3686 = vpack.c.b16 %v3510, %v3502
    %v3687 = vpack.c.b16 %v3511, %v3503
    %v3688 = vpack.c.b16 %v3512, %v3504
    %v3689 = vpack.c.b16 %v3521, %v3513
    %v3690 = vpack.c.b16 %v3522, %v3514
    %v3691 = vpack.c.b16 %v3523, %v3515
    %v3692 = vpack.c.b16 %v3524, %v3516
    %v3693 = vpack.c.b16 %v3525, %v3517
    %v3694 = vpack.c.b16 %v3526, %v3518
    %v3695 = vpack.c.b16 %v3527, %v3519
    %v3696 = vpack.c.b16 %v3528, %v3520
    %v3697 = vpack.c.b16 %v3537, %v3529
    %v3698 = vpack.c.b16 %v3538, %v3530
    %v3699 = vpack.c.b16 %v3539, %v3531
    %v3700 = vpack.c.b16 %v3540, %v3532
    %v3701 = vpack.c.b16 %v3541, %v3533
    %v3702 = vpack.c.b16 %v3542, %v3534
    %v3703 = vpack.c.b16 %v3543, %v3535
    %v3704 = vpack.c.b16 %v3544, %v3536
    %v3705 = vpack.c.b16 %v3553, %v3545
    %v3706 = vpack.c.b16 %v3554, %v3546
    %v3707 = vpack.c.b16 %v3555, %v3547
    %v3708 = vpack.c.b16 %v3556, %v3548
    %v3709 = vpack.c.b16 %v3557, %v3549
    %v3710 = vpack.c.b16 %v3558, %v3550
    %v3711 = vpack.c.b16 %v3559, %v3551
    %v3712 = vpack.c.b16 %v3560, %v3552
    %v3713 = vpack.c.b16 %v3569, %v3561
    %v3714 = vpack.c.b16 %v3570, %v3562
    %v3715 = vpack.c.b16 %v3571, %v3563
    %v3716 = vpack.c.b16 %v3572, %v3564
    %v3717 = vpack.c.b16 %v3573, %v3565
    %v3718 = vpack.c.b16 %v3574, %v3566
    %v3719 = vpack.c.b16 %v3575, %v3567
    %v3720 = vpack.c.b16 %v3576, %v3568
    %v3721 = vpack.c.b16 %v3585, %v3577
    %v3722 = vpack.c.b16 %v3586, %v3578
    %v3723 = vpack.c.b16 %v3587, %v3579
    %v3724 = vpack.c.b16 %v3588, %v3580
    %v3725 = vpack.c.b16 %v3589, %v3581
    %v3726 = vpack.c.b16 %v3590, %v3582
    %v3727 = vpack.c.b16 %v3591, %v3583
    %v3728 = vpack.c.b16 %v3592, %v3584
    %v3729 = vpack.c.b16 %v3601, %v3593
    %v3730 = vpack.c.b16 %v3602, %v3594
    %v3731 = vpack.c.b16 %v3603, %v3595
    %v3732 = vpack.c.b16 %v3604, %v3596
    %v3733 = vpack.c.b16 %v3605, %v3597
    %v3734 = vpack.c.b16 %v3606, %v3598
    %v3735 = vpack.c.b16 %v3607, %v3599
    %v3736 = vpack.c.b16 %v3608, %v3600
    %3865 = vmatpush.bf16.msra.mxu0 %v3665
    %3866 = vmatpush.bf16.msra.mxu0 %v3657
    %3867 = vmatpush.bf16.msra.mxu0 %v3649
    %3868 = vmatpush.bf16.msra.mxu0 %v3641
    %3869 = vmatpush.bf16.msra.mxu0 %v3633
    %3870 = vmatpush.bf16.msra.mxu0 %v3625
    %3871 = vmatpush.bf16.msra.mxu0 %v3617
    %3872 = vmatpush.bf16.msra.mxu0 %v3609
    %3873 = vmatmul.bf16.gmra.mxu0 %v3095
    %v3874 = vpop.f32.mrf.mxu0
    %v3875 = vadd.f32 0.0, %v3874
    %v3876 = vpop.f32.mrf.mxu0
    %3877 = vdwg.mxu0
    %3878 = vmatpush.bf16.msra.mxu0 %v3729
    %3879 = vmatpush.bf16.msra.mxu0 %v3721
    %3880 = vmatpush.bf16.msra.mxu0 %v3713
    %3881 = vmatpush.bf16.msra.mxu0 %v3705
    %3882 = vmatpush.bf16.msra.mxu0 %v3697
    %3883 = vmatpush.bf16.msra.mxu0 %v3689
    %3884 = vmatpush.bf16.msra.mxu0 %v3681
    %3885 = vmatpush.bf16.msra.mxu0 %v3673
    %3886 = vmatmul.bf16.gmra.mxu0 %v3096
    %v3887 = vpop.f32.mrf.mxu0
    %v3888 = vadd.f32 %v3875, %v3887
    %v3889 = vpop.f32.mrf.mxu0
    %3890 = vdwg.mxu0
    %3891 = vmatpush.bf16.msra.mxu0 %v3666
    %3892 = vmatpush.bf16.msra.mxu0 %v3658
    %3893 = vmatpush.bf16.msra.mxu0 %v3650
    %3894 = vmatpush.bf16.msra.mxu0 %v3642
    %3895 = vmatpush.bf16.msra.mxu0 %v3634
    %3896 = vmatpush.bf16.msra.mxu0 %v3626
    %3897 = vmatpush.bf16.msra.mxu0 %v3618
    %3898 = vmatpush.bf16.msra.mxu0 %v3610
    %3899 = vmatmul.bf16.gmra.mxu0 %v3095
    %v3900 = vpop.f32.mrf.mxu0
    %v3901 = vadd.f32 0.0, %v3900
    %v3902 = vpop.f32.mrf.mxu0
    %3903 = vdwg.mxu0
    %3904 = vmatpush.bf16.msra.mxu0 %v3730
    %3905 = vmatpush.bf16.msra.mxu0 %v3722
    %3906 = vmatpush.bf16.msra.mxu0 %v3714
    %3907 = vmatpush.bf16.msra.mxu0 %v3706
    %3908 = vmatpush.bf16.msra.mxu0 %v3698
    %3909 = vmatpush.bf16.msra.mxu0 %v3690
    %3910 = vmatpush.bf16.msra.mxu0 %v3682
    %3911 = vmatpush.bf16.msra.mxu0 %v3674
    %3912 = vmatmul.bf16.gmra.mxu0 %v3096
    %v3913 = vpop.f32.mrf.mxu0
    %v3914 = vadd.f32 %v3901, %v3913
    %v3915 = vpop.f32.mrf.mxu0
    %3916 = vdwg.mxu0
    %3917 = vmatpush.bf16.msra.mxu0 %v3667
    %3918 = vmatpush.bf16.msra.mxu0 %v3659
    %3919 = vmatpush.bf16.msra.mxu0 %v3651
    %3920 = vmatpush.bf16.msra.mxu0 %v3643
    %3921 = vmatpush.bf16.msra.mxu0 %v3635
    %3922 = vmatpush.bf16.msra.mxu0 %v3627
    %3923 = vmatpush.bf16.msra.mxu0 %v3619
    %3924 = vmatpush.bf16.msra.mxu0 %v3611
    %3925 = vmatmul.bf16.gmra.mxu0 %v3095
    %v3926 = vpop.f32.mrf.mxu0
    %v3927 = vadd.f32 0.0, %v3926
    %v3928 = vpop.f32.mrf.mxu0
    %3929 = vdwg.mxu0
    %3930 = vmatpush.bf16.msra.mxu0 %v3731
    %3931 = vmatpush.bf16.msra.mxu0 %v3723
    %3932 = vmatpush.bf16.msra.mxu0 %v3715
    %3933 = vmatpush.bf16.msra.mxu0 %v3707
    %3934 = vmatpush.bf16.msra.mxu0 %v3699
    %3935 = vmatpush.bf16.msra.mxu0 %v3691
    %3936 = vmatpush.bf16.msra.mxu0 %v3683
    %3937 = vmatpush.bf16.msra.mxu0 %v3675
    %3938 = vmatmul.bf16.gmra.mxu0 %v3096
    %v3939 = vpop.f32.mrf.mxu0
    %v3940 = vadd.f32 %v3927, %v3939
    %v3941 = vpop.f32.mrf.mxu0
    %3942 = vdwg.mxu0
    %3943 = vmatpush.bf16.msra.mxu0 %v3668
    %3944 = vmatpush.bf16.msra.mxu0 %v3660
    %3945 = vmatpush.bf16.msra.mxu0 %v3652
    %3946 = vmatpush.bf16.msra.mxu0 %v3644
    %3947 = vmatpush.bf16.msra.mxu0 %v3636
    %3948 = vmatpush.bf16.msra.mxu0 %v3628
    %3949 = vmatpush.bf16.msra.mxu0 %v3620
    %3950 = vmatpush.bf16.msra.mxu0 %v3612
    %3951 = vmatmul.bf16.gmra.mxu0 %v3095
    %v3952 = vpop.f32.mrf.mxu0
    %v3953 = vadd.f32 0.0, %v3952
    %v3954 = vpop.f32.mrf.mxu0
    %3955 = vdwg.mxu0
    %3956 = vmatpush.bf16.msra.mxu0 %v3732
    %3957 = vmatpush.bf16.msra.mxu0 %v3724
    %3958 = vmatpush.bf16.msra.mxu0 %v3716
    %3959 = vmatpush.bf16.msra.mxu0 %v3708
    %3960 = vmatpush.bf16.msra.mxu0 %v3700
    %3961 = vmatpush.bf16.msra.mxu0 %v3692
    %3962 = vmatpush.bf16.msra.mxu0 %v3684
    %3963 = vmatpush.bf16.msra.mxu0 %v3676
    %3964 = vmatmul.bf16.gmra.mxu0 %v3096
    %v3965 = vpop.f32.mrf.mxu0
    %v3966 = vadd.f32 %v3953, %v3965
    %v3967 = vpop.f32.mrf.mxu0
    %3968 = vdwg.mxu0
    %3969 = vmatpush.bf16.msra.mxu0 %v3669
    %3970 = vmatpush.bf16.msra.mxu0 %v3661
    %3971 = vmatpush.bf16.msra.mxu0 %v3653
    %3972 = vmatpush.bf16.msra.mxu0 %v3645
    %3973 = vmatpush.bf16.msra.mxu0 %v3637
    %3974 = vmatpush.bf16.msra.mxu0 %v3629
    %3975 = vmatpush.bf16.msra.mxu0 %v3621
    %3976 = vmatpush.bf16.msra.mxu0 %v3613
    %3977 = vmatmul.bf16.gmra.mxu0 %v3095
    %v3978 = vpop.f32.mrf.mxu0
    %v3979 = vadd.f32 0.0, %v3978
    %v3980 = vpop.f32.mrf.mxu0
    %3981 = vdwg.mxu0
    %3982 = vmatpush.bf16.msra.mxu0 %v3733
    %3983 = vmatpush.bf16.msra.mxu0 %v3725
    %3984 = vmatpush.bf16.msra.mxu0 %v3717
    %3985 = vmatpush.bf16.msra.mxu0 %v3709
    %3986 = vmatpush.bf16.msra.mxu0 %v3701
    %3987 = vmatpush.bf16.msra.mxu0 %v3693
    %3988 = vmatpush.bf16.msra.mxu0 %v3685
    %3989 = vmatpush.bf16.msra.mxu0 %v3677
    %3990 = vmatmul.bf16.gmra.mxu0 %v3096
    %v3991 = vpop.f32.mrf.mxu0
    %v3992 = vadd.f32 %v3979, %v3991
    %v3993 = vpop.f32.mrf.mxu0
    %3994 = vdwg.mxu0
    %3995 = vmatpush.bf16.msra.mxu0 %v3670
    %3996 = vmatpush.bf16.msra.mxu0 %v3662
    %3997 = vmatpush.bf16.msra.mxu0 %v3654
    %3998 = vmatpush.bf16.msra.mxu0 %v3646
    %3999 = vmatpush.bf16.msra.mxu0 %v3638
    %4000 = vmatpush.bf16.msra.mxu0 %v3630
    %4001 = vmatpush.bf16.msra.mxu0 %v3622
    %4002 = vmatpush.bf16.msra.mxu0 %v3614
    %4003 = vmatmul.bf16.gmra.mxu0 %v3095
    %v4004 = vpop.f32.mrf.mxu0
    %v4005 = vadd.f32 0.0, %v4004
    %v4006 = vpop.f32.mrf.mxu0
    %4007 = vdwg.mxu0
    %4008 = vmatpush.bf16.msra.mxu0 %v3734
    %4009 = vmatpush.bf16.msra.mxu0 %v3726
    %4010 = vmatpush.bf16.msra.mxu0 %v3718
    %4011 = vmatpush.bf16.msra.mxu0 %v3710
    %4012 = vmatpush.bf16.msra.mxu0 %v3702
    %4013 = vmatpush.bf16.msra.mxu0 %v3694
    %4014 = vmatpush.bf16.msra.mxu0 %v3686
    %4015 = vmatpush.bf16.msra.mxu0 %v3678
    %4016 = vmatmul.bf16.gmra.mxu0 %v3096
    %v4017 = vpop.f32.mrf.mxu0
    %v4018 = vadd.f32 %v4005, %v4017
    %v4019 = vpop.f32.mrf.mxu0
    %4020 = vdwg.mxu0
    %4021 = vmatpush.bf16.msra.mxu0 %v3671
    %4022 = vmatpush.bf16.msra.mxu0 %v3663
    %4023 = vmatpush.bf16.msra.mxu0 %v3655
    %4024 = vmatpush.bf16.msra.mxu0 %v3647
    %4025 = vmatpush.bf16.msra.mxu0 %v3639
    %4026 = vmatpush.bf16.msra.mxu0 %v3631
    %4027 = vmatpush.bf16.msra.mxu0 %v3623
    %4028 = vmatpush.bf16.msra.mxu0 %v3615
    %4029 = vmatmul.bf16.gmra.mxu0 %v3095
    %v4030 = vpop.f32.mrf.mxu0
    %v4031 = vadd.f32 0.0, %v4030
    %v4032 = vpop.f32.mrf.mxu0
    %4033 = vdwg.mxu0
    %4034 = vmatpush.bf16.msra.mxu0 %v3735
    %4035 = vmatpush.bf16.msra.mxu0 %v3727
    %4036 = vmatpush.bf16.msra.mxu0 %v3719
    %4037 = vmatpush.bf16.msra.mxu0 %v3711
    %4038 = vmatpush.bf16.msra.mxu0 %v3703
    %4039 = vmatpush.bf16.msra.mxu0 %v3695
    %4040 = vmatpush.bf16.msra.mxu0 %v3687
    %4041 = vmatpush.bf16.msra.mxu0 %v3679
    %4042 = vmatmul.bf16.gmra.mxu0 %v3096
    %v4043 = vpop.f32.mrf.mxu0
    %v4044 = vadd.f32 %v4031, %v4043
    %v4045 = vpop.f32.mrf.mxu0
    %4046 = vdwg.mxu0
    %4047 = vmatpush.bf16.msra.mxu0 %v3672
    %4048 = vmatpush.bf16.msra.mxu0 %v3664
    %4049 = vmatpush.bf16.msra.mxu0 %v3656
    %4050 = vmatpush.bf16.msra.mxu0 %v3648
    %4051 = vmatpush.bf16.msra.mxu0 %v3640
    %4052 = vmatpush.bf16.msra.mxu0 %v3632
    %4053 = vmatpush.bf16.msra.mxu0 %v3624
    %4054 = vmatpush.bf16.msra.mxu0 %v3616
    %4055 = vmatmul.bf16.gmra.mxu0 %v3095
    %v4056 = vpop.f32.mrf.mxu0
    %v4057 = vadd.f32 0.0, %v4056
    %v4058 = vpop.f32.mrf.mxu0
    %4059 = vdwg.mxu0
    %4060 = vmatpush.bf16.msra.mxu0 %v3736
    %4061 = vmatpush.bf16.msra.mxu0 %v3728
    %4062 = vmatpush.bf16.msra.mxu0 %v3720
    %4063 = vmatpush.bf16.msra.mxu0 %v3712
    %4064 = vmatpush.bf16.msra.mxu0 %v3704
    %4065 = vmatpush.bf16.msra.mxu0 %v3696
    %4066 = vmatpush.bf16.msra.mxu0 %v3688
    %4067 = vmatpush.bf16.msra.mxu0 %v3680
    %4068 = vmatmul.bf16.gmra.mxu0 %v3096
    %v4069 = vpop.f32.mrf.mxu0
    %v4070 = vadd.f32 %v4057, %v4069
    %v4071 = vpop.f32.mrf.mxu0
    %4072 = vdwg.mxu0
    %v4073 = vld [vmem:[%s6] sm:$0xf]
    %v4074 = vadd.f32 %v3888, %v948
    %v4075 = vadd.f32 %v3914, %v961
    %v4076 = vadd.f32 %v3940, %v974
    %v4077 = vadd.f32 %v3966, %v987
    %v4079 = vperm.slane %v4073, 0
    %v4080 = vperm.slane %v4073, 1
    %v4081 = vperm.slane %v4073, 2
    %v4082 = vperm.slane %v4073, 3
    %v4087 = vadd.f32 %v3992, %v4079
    %v4088 = vadd.f32 %v4018, %v4080
    %v4089 = vadd.f32 %v4044, %v4081
    %v4090 = vadd.f32 %v4070, %v4082
    %v4095 = vrot.slane %v4087, 7
    %v4096 = vrot.slane %v4088, 7
    %v4097 = vrot.slane %v4089, 7
    %v4098 = vrot.slane %v4090, 7
    %v4103 = vsel %vm3093, %v4074, %v4095
    %v4104 = vsel %vm3093, %v4075, %v4096
    %v4105 = vsel %vm3093, %v4076, %v4097
    %v4106 = vsel %vm3093, %v4077, %v4098
    %v4107 = vxor.u32 %v4103, 2147483648
    %v4108 = vmul.f32 %v4107, 1.442695
    %v4109 = vpow.pop %v4108
    %v4110 = vadd.f32 %v4109, 1.0
    %v4111 = vrcp.pop %v4110
    %v4112 = vmul.f32 %v4110, %v4111
    %v4113 = vsub.f32 1.0, %v4112
    %v4114 = vmul.f32 %v4111, %v4113
    %v4115 = vadd.f32 %v4111, %v4114
    %vm4116 = vweird.f32 %v4110
    %vm4117 = vweird.f32 %v4111
    %vm4118 = vmor %vm4116, %vm4117
    %v4119 = vsel %vm4118, %v4111, %v4115
    %v4120 = vand.u32 2147483647, %v4110
    %vm4121 = vcmp.eq.f32.partialorder %v4120, 8.507059e+37
    %v4122 = vand.u32 %v4110, 2147483648
    %v4123 = vor.u32 1.1754944e-38, %v4122
    %v4124 = vsel %vm4121, %v4123, %v4119
    %v4125 = vmul.f32 1.0, %v4124
    %v4126 = vxor.u32 %v4104, 2147483648
    %v4127 = vmul.f32 %v4126, 1.442695
    %v4128 = vpow.pop %v4127
    %v4129 = vadd.f32 %v4128, 1.0
    %v4130 = vrcp.pop %v4129
    %v4131 = vmul.f32 %v4129, %v4130
    %v4132 = vsub.f32 1.0, %v4131
    %v4133 = vmul.f32 %v4130, %v4132
    %v4134 = vadd.f32 %v4130, %v4133
    %vm4135 = vweird.f32 %v4129
    %vm4136 = vweird.f32 %v4130
    %vm4137 = vmor %vm4135, %vm4136
    %v4138 = vsel %vm4137, %v4130, %v4134
    %v4139 = vand.u32 2147483647, %v4129
    %vm4140 = vcmp.eq.f32.partialorder %v4139, 8.507059e+37
    %v4141 = vand.u32 %v4129, 2147483648
    %v4142 = vor.u32 1.1754944e-38, %v4141
    %v4143 = vsel %vm4140, %v4142, %v4138
    %v4144 = vmul.f32 1.0, %v4143
    %v4145 = vtanh.pop %v4105
    %v4146 = vxor.u32 %v4106, 2147483648
    %v4147 = vmul.f32 %v4146, 1.442695
    %v4148 = vpow.pop %v4147
    %v4149 = vadd.f32 %v4148, 1.0
    %v4150 = vrcp.pop %v4149
    %v4151 = vmul.f32 %v4149, %v4150
    %v4152 = vsub.f32 1.0, %v4151
    %v4153 = vmul.f32 %v4150, %v4152
    %v4154 = vadd.f32 %v4150, %v4153
    %vm4155 = vweird.f32 %v4149
    %vm4156 = vweird.f32 %v4150
    %vm4157 = vmor %vm4155, %vm4156
    %v4158 = vsel %vm4157, %v4150, %v4154
    %v4159 = vand.u32 2147483647, %v4149
    %vm4160 = vcmp.eq.f32.partialorder %v4159, 8.507059e+37
    %v4161 = vand.u32 %v4149, 2147483648
    %v4162 = vor.u32 1.1754944e-38, %v4161
    %v4163 = vsel %vm4160, %v4162, %v4158
    %v4164 = vmul.f32 1.0, %v4163
    %v4165 = vmul.f32 %v4144, %v3094
    %v4166 = vmul.f32 %v4125, %v4145
    %v4167 = vadd.f32 %v4165, %v4166
    %v4168 = vtanh.pop %v4167
    %v4169 = vmul.f32 %v4164, %v4168
    %v4171 = vrot.slane %v4169, 1
    %v4173 = vpack.c.bf16 %v4169, %v4169
    %v4174 = vpack.c.bf16 %v4171, %v4171
    %4175 = vmatpush.bf16.msra.mxu0 %v3665
    %4176 = vmatpush.bf16.msra.mxu0 %v3657
    %4177 = vmatpush.bf16.msra.mxu0 %v3649
    %4178 = vmatpush.bf16.msra.mxu0 %v3641
    %4179 = vmatpush.bf16.msra.mxu0 %v3633
    %4180 = vmatpush.bf16.msra.mxu0 %v3625
    %4181 = vmatpush.bf16.msra.mxu0 %v3617
    %4182 = vmatpush.bf16.msra.mxu0 %v3609
    %4183 = vmatmul.bf16.gmra.mxu0 %v4173
    %v4184 = vpop.f32.mrf.mxu0
    %v4185 = vadd.f32 0.0, %v4184
    %v4186 = vpop.f32.mrf.mxu0
    %4187 = vdwg.mxu0
    %4188 = vmatpush.bf16.msra.mxu0 %v3729
    %4189 = vmatpush.bf16.msra.mxu0 %v3721
    %4190 = vmatpush.bf16.msra.mxu0 %v3713
    %4191 = vmatpush.bf16.msra.mxu0 %v3705
    %4192 = vmatpush.bf16.msra.mxu0 %v3697
    %4193 = vmatpush.bf16.msra.mxu0 %v3689
    %4194 = vmatpush.bf16.msra.mxu0 %v3681
    %4195 = vmatpush.bf16.msra.mxu0 %v3673
    %4196 = vmatmul.bf16.gmra.mxu0 %v4174
    %v4197 = vpop.f32.mrf.mxu0
    %v4198 = vadd.f32 %v4185, %v4197
    %v4199 = vpop.f32.mrf.mxu0
    %4200 = vdwg.mxu0
    %4201 = vmatpush.bf16.msra.mxu0 %v3666
    %4202 = vmatpush.bf16.msra.mxu0 %v3658
    %4203 = vmatpush.bf16.msra.mxu0 %v3650
    %4204 = vmatpush.bf16.msra.mxu0 %v3642
    %4205 = vmatpush.bf16.msra.mxu0 %v3634
    %4206 = vmatpush.bf16.msra.mxu0 %v3626
    %4207 = vmatpush.bf16.msra.mxu0 %v3618
    %4208 = vmatpush.bf16.msra.mxu0 %v3610
    %4209 = vmatmul.bf16.gmra.mxu0 %v4173
    %v4210 = vpop.f32.mrf.mxu0
    %v4211 = vadd.f32 0.0, %v4210
    %v4212 = vpop.f32.mrf.mxu0
    %4213 = vdwg.mxu0
    %4214 = vmatpush.bf16.msra.mxu0 %v3730
    %4215 = vmatpush.bf16.msra.mxu0 %v3722
    %4216 = vmatpush.bf16.msra.mxu0 %v3714
    %4217 = vmatpush.bf16.msra.mxu0 %v3706
    %4218 = vmatpush.bf16.msra.mxu0 %v3698
    %4219 = vmatpush.bf16.msra.mxu0 %v3690
    %4220 = vmatpush.bf16.msra.mxu0 %v3682
    %4221 = vmatpush.bf16.msra.mxu0 %v3674
    %4222 = vmatmul.bf16.gmra.mxu0 %v4174
    %v4223 = vpop.f32.mrf.mxu0
    %v4224 = vadd.f32 %v4211, %v4223
    %v4225 = vpop.f32.mrf.mxu0
    %4226 = vdwg.mxu0
    %4227 = vmatpush.bf16.msra.mxu0 %v3667
    %4228 = vmatpush.bf16.msra.mxu0 %v3659
    %4229 = vmatpush.bf16.msra.mxu0 %v3651
    %4230 = vmatpush.bf16.msra.mxu0 %v3643
    %4231 = vmatpush.bf16.msra.mxu0 %v3635
    %4232 = vmatpush.bf16.msra.mxu0 %v3627
    %4233 = vmatpush.bf16.msra.mxu0 %v3619
    %4234 = vmatpush.bf16.msra.mxu0 %v3611
    %4235 = vmatmul.bf16.gmra.mxu0 %v4173
    %v4236 = vpop.f32.mrf.mxu0
    %v4237 = vadd.f32 0.0, %v4236
    %v4238 = vpop.f32.mrf.mxu0
    %4239 = vdwg.mxu0
    %4240 = vmatpush.bf16.msra.mxu0 %v3731
    %4241 = vmatpush.bf16.msra.mxu0 %v3723
    %4242 = vmatpush.bf16.msra.mxu0 %v3715
    %4243 = vmatpush.bf16.msra.mxu0 %v3707
    %4244 = vmatpush.bf16.msra.mxu0 %v3699
    %4245 = vmatpush.bf16.msra.mxu0 %v3691
    %4246 = vmatpush.bf16.msra.mxu0 %v3683
    %4247 = vmatpush.bf16.msra.mxu0 %v3675
    %4248 = vmatmul.bf16.gmra.mxu0 %v4174
    %v4249 = vpop.f32.mrf.mxu0
    %v4250 = vadd.f32 %v4237, %v4249
    %v4251 = vpop.f32.mrf.mxu0
    %4252 = vdwg.mxu0
    %4253 = vmatpush.bf16.msra.mxu0 %v3668
    %4254 = vmatpush.bf16.msra.mxu0 %v3660
    %4255 = vmatpush.bf16.msra.mxu0 %v3652
    %4256 = vmatpush.bf16.msra.mxu0 %v3644
    %4257 = vmatpush.bf16.msra.mxu0 %v3636
    %4258 = vmatpush.bf16.msra.mxu0 %v3628
    %4259 = vmatpush.bf16.msra.mxu0 %v3620
    %4260 = vmatpush.bf16.msra.mxu0 %v3612
    %4261 = vmatmul.bf16.gmra.mxu0 %v4173
    %v4262 = vpop.f32.mrf.mxu0
    %v4263 = vadd.f32 0.0, %v4262
    %v4264 = vpop.f32.mrf.mxu0
    %4265 = vdwg.mxu0
    %4266 = vmatpush.bf16.msra.mxu0 %v3732
    %4267 = vmatpush.bf16.msra.mxu0 %v3724
    %4268 = vmatpush.bf16.msra.mxu0 %v3716
    %4269 = vmatpush.bf16.msra.mxu0 %v3708
    %4270 = vmatpush.bf16.msra.mxu0 %v3700
    %4271 = vmatpush.bf16.msra.mxu0 %v3692
    %4272 = vmatpush.bf16.msra.mxu0 %v3684
    %4273 = vmatpush.bf16.msra.mxu0 %v3676
    %4274 = vmatmul.bf16.gmra.mxu0 %v4174
    %v4275 = vpop.f32.mrf.mxu0
    %v4276 = vadd.f32 %v4263, %v4275
    %v4277 = vpop.f32.mrf.mxu0
    %4278 = vdwg.mxu0
    %4279 = vmatpush.bf16.msra.mxu0 %v3669
    %4280 = vmatpush.bf16.msra.mxu0 %v3661
    %4281 = vmatpush.bf16.msra.mxu0 %v3653
    %4282 = vmatpush.bf16.msra.mxu0 %v3645
    %4283 = vmatpush.bf16.msra.mxu0 %v3637
    %4284 = vmatpush.bf16.msra.mxu0 %v3629
    %4285 = vmatpush.bf16.msra.mxu0 %v3621
    %4286 = vmatpush.bf16.msra.mxu0 %v3613
    %4287 = vmatmul.bf16.gmra.mxu0 %v4173
    %v4288 = vpop.f32.mrf.mxu0
    %v4289 = vadd.f32 0.0, %v4288
    %v4290 = vpop.f32.mrf.mxu0
    %4291 = vdwg.mxu0
    %4292 = vmatpush.bf16.msra.mxu0 %v3733
    %4293 = vmatpush.bf16.msra.mxu0 %v3725
    %4294 = vmatpush.bf16.msra.mxu0 %v3717
    %4295 = vmatpush.bf16.msra.mxu0 %v3709
    %4296 = vmatpush.bf16.msra.mxu0 %v3701
    %4297 = vmatpush.bf16.msra.mxu0 %v3693
    %4298 = vmatpush.bf16.msra.mxu0 %v3685
    %4299 = vmatpush.bf16.msra.mxu0 %v3677
    %4300 = vmatmul.bf16.gmra.mxu0 %v4174
    %v4301 = vpop.f32.mrf.mxu0
    %v4302 = vadd.f32 %v4289, %v4301
    %v4303 = vpop.f32.mrf.mxu0
    %4304 = vdwg.mxu0
    %4305 = vmatpush.bf16.msra.mxu0 %v3670
    %4306 = vmatpush.bf16.msra.mxu0 %v3662
    %4307 = vmatpush.bf16.msra.mxu0 %v3654
    %4308 = vmatpush.bf16.msra.mxu0 %v3646
    %4309 = vmatpush.bf16.msra.mxu0 %v3638
    %4310 = vmatpush.bf16.msra.mxu0 %v3630
    %4311 = vmatpush.bf16.msra.mxu0 %v3622
    %4312 = vmatpush.bf16.msra.mxu0 %v3614
    %4313 = vmatmul.bf16.gmra.mxu0 %v4173
    %v4314 = vpop.f32.mrf.mxu0
    %v4315 = vadd.f32 0.0, %v4314
    %v4316 = vpop.f32.mrf.mxu0
    %4317 = vdwg.mxu0
    %4318 = vmatpush.bf16.msra.mxu0 %v3734
    %4319 = vmatpush.bf16.msra.mxu0 %v3726
    %4320 = vmatpush.bf16.msra.mxu0 %v3718
    %4321 = vmatpush.bf16.msra.mxu0 %v3710
    %4322 = vmatpush.bf16.msra.mxu0 %v3702
    %4323 = vmatpush.bf16.msra.mxu0 %v3694
    %4324 = vmatpush.bf16.msra.mxu0 %v3686
    %4325 = vmatpush.bf16.msra.mxu0 %v3678
    %4326 = vmatmul.bf16.gmra.mxu0 %v4174
    %v4327 = vpop.f32.mrf.mxu0
    %v4328 = vadd.f32 %v4315, %v4327
    %v4329 = vpop.f32.mrf.mxu0
    %4330 = vdwg.mxu0
    %4331 = vmatpush.bf16.msra.mxu0 %v3671
    %4332 = vmatpush.bf16.msra.mxu0 %v3663
    %4333 = vmatpush.bf16.msra.mxu0 %v3655
    %4334 = vmatpush.bf16.msra.mxu0 %v3647
    %4335 = vmatpush.bf16.msra.mxu0 %v3639
    %4336 = vmatpush.bf16.msra.mxu0 %v3631
    %4337 = vmatpush.bf16.msra.mxu0 %v3623
    %4338 = vmatpush.bf16.msra.mxu0 %v3615
    %4339 = vmatmul.bf16.gmra.mxu0 %v4173
    %v4340 = vpop.f32.mrf.mxu0
    %v4341 = vadd.f32 0.0, %v4340
    %v4342 = vpop.f32.mrf.mxu0
    %4343 = vdwg.mxu0
    %4344 = vmatpush.bf16.msra.mxu0 %v3735
    %4345 = vmatpush.bf16.msra.mxu0 %v3727
    %4346 = vmatpush.bf16.msra.mxu0 %v3719
    %4347 = vmatpush.bf16.msra.mxu0 %v3711
    %4348 = vmatpush.bf16.msra.mxu0 %v3703
    %4349 = vmatpush.bf16.msra.mxu0 %v3695
    %4350 = vmatpush.bf16.msra.mxu0 %v3687
    %4351 = vmatpush.bf16.msra.mxu0 %v3679
    %4352 = vmatmul.bf16.gmra.mxu0 %v4174
    %v4353 = vpop.f32.mrf.mxu0
    %v4354 = vadd.f32 %v4341, %v4353
    %v4355 = vpop.f32.mrf.mxu0
    %4356 = vdwg.mxu0
    %4357 = vmatpush.bf16.msra.mxu0 %v3672
    %4358 = vmatpush.bf16.msra.mxu0 %v3664
    %4359 = vmatpush.bf16.msra.mxu0 %v3656
    %4360 = vmatpush.bf16.msra.mxu0 %v3648
    %4361 = vmatpush.bf16.msra.mxu0 %v3640
    %4362 = vmatpush.bf16.msra.mxu0 %v3632
    %4363 = vmatpush.bf16.msra.mxu0 %v3624
    %4364 = vmatpush.bf16.msra.mxu0 %v3616
    %4365 = vmatmul.bf16.gmra.mxu0 %v4173
    %v4366 = vpop.f32.mrf.mxu0
    %v4367 = vadd.f32 0.0, %v4366
    %v4368 = vpop.f32.mrf.mxu0
    %4369 = vdwg.mxu0
    %4370 = vmatpush.bf16.msra.mxu0 %v3736
    %4371 = vmatpush.bf16.msra.mxu0 %v3728
    %4372 = vmatpush.bf16.msra.mxu0 %v3720
    %4373 = vmatpush.bf16.msra.mxu0 %v3712
    %4374 = vmatpush.bf16.msra.mxu0 %v3704
    %4375 = vmatpush.bf16.msra.mxu0 %v3696
    %4376 = vmatpush.bf16.msra.mxu0 %v3688
    %4377 = vmatpush.bf16.msra.mxu0 %v3680
    %4378 = vmatmul.bf16.gmra.mxu0 %v4174
    %v4379 = vpop.f32.mrf.mxu0
    %v4380 = vadd.f32 %v4367, %v4379
    %v4381 = vpop.f32.mrf.mxu0
    %4382 = vdwg.mxu0
    %v4383 = vadd.f32 %v4198, %v1288
    %v4384 = vadd.f32 %v4224, %v1301
    %v4385 = vadd.f32 %v4250, %v1314
    %v4386 = vadd.f32 %v4276, %v1327
    %v4387 = vadd.f32 %v4302, %v4079
    %v4388 = vadd.f32 %v4328, %v4080
    %v4389 = vadd.f32 %v4354, %v4081
    %v4390 = vadd.f32 %v4380, %v4082
    %v4395 = vrot.slane %v4387, 7
    %v4396 = vrot.slane %v4388, 7
    %v4397 = vrot.slane %v4389, 7
    %v4398 = vrot.slane %v4390, 7
    %v4403 = vsel %vm3093, %v4383, %v4395
    %v4404 = vsel %vm3093, %v4384, %v4396
    %v4405 = vsel %vm3093, %v4385, %v4397
    %v4406 = vsel %vm3093, %v4386, %v4398
    %v4407 = vxor.u32 %v4403, 2147483648
    %v4408 = vmul.f32 %v4407, 1.442695
    %v4409 = vpow.pop %v4408
    %v4410 = vadd.f32 %v4409, 1.0
    %v4411 = vrcp.pop %v4410
    %v4412 = vmul.f32 %v4410, %v4411
    %v4413 = vsub.f32 1.0, %v4412
    %v4414 = vmul.f32 %v4411, %v4413
    %v4415 = vadd.f32 %v4411, %v4414
    %vm4416 = vweird.f32 %v4410
    %vm4417 = vweird.f32 %v4411
    %vm4418 = vmor %vm4416, %vm4417
    %v4419 = vsel %vm4418, %v4411, %v4415
    %v4420 = vand.u32 2147483647, %v4410
    %vm4421 = vcmp.eq.f32.partialorder %v4420, 8.507059e+37
    %v4422 = vand.u32 %v4410, 2147483648
    %v4423 = vor.u32 1.1754944e-38, %v4422
    %v4424 = vsel %vm4421, %v4423, %v4419
    %v4425 = vmul.f32 1.0, %v4424
    %v4426 = vxor.u32 %v4404, 2147483648
    %v4427 = vmul.f32 %v4426, 1.442695
    %v4428 = vpow.pop %v4427
    %v4429 = vadd.f32 %v4428, 1.0
    %v4430 = vrcp.pop %v4429
    %v4431 = vmul.f32 %v4429, %v4430
    %v4432 = vsub.f32 1.0, %v4431
    %v4433 = vmul.f32 %v4430, %v4432
    %v4434 = vadd.f32 %v4430, %v4433
    %vm4435 = vweird.f32 %v4429
    %vm4436 = vweird.f32 %v4430
    %vm4437 = vmor %vm4435, %vm4436
    %v4438 = vsel %vm4437, %v4430, %v4434
    %v4439 = vand.u32 2147483647, %v4429
    %vm4440 = vcmp.eq.f32.partialorder %v4439, 8.507059e+37
    %v4441 = vand.u32 %v4429, 2147483648
    %v4442 = vor.u32 1.1754944e-38, %v4441
    %v4443 = vsel %vm4440, %v4442, %v4438
    %v4444 = vmul.f32 1.0, %v4443
    %v4445 = vtanh.pop %v4405
    %v4446 = vxor.u32 %v4406, 2147483648
    %v4447 = vmul.f32 %v4446, 1.442695
    %v4448 = vpow.pop %v4447
    %v4449 = vadd.f32 %v4448, 1.0
    %v4450 = vrcp.pop %v4449
    %v4451 = vmul.f32 %v4449, %v4450
    %v4452 = vsub.f32 1.0, %v4451
    %v4453 = vmul.f32 %v4450, %v4452
    %v4454 = vadd.f32 %v4450, %v4453
    %vm4455 = vweird.f32 %v4449
    %vm4456 = vweird.f32 %v4450
    %vm4457 = vmor %vm4455, %vm4456
    %v4458 = vsel %vm4457, %v4450, %v4454
    %v4459 = vand.u32 2147483647, %v4449
    %vm4460 = vcmp.eq.f32.partialorder %v4459, 8.507059e+37
    %v4461 = vand.u32 %v4449, 2147483648
    %v4462 = vor.u32 1.1754944e-38, %v4461
    %v4463 = vsel %vm4460, %v4462, %v4458
    %v4464 = vmul.f32 1.0, %v4463
    %v4465 = vmul.f32 %v4444, %v4167
    %v4466 = vmul.f32 %v4425, %v4445
    %v4467 = vadd.f32 %v4465, %v4466
    %v4468 = vtanh.pop %v4467
    %v4469 = vmul.f32 %v4464, %v4468
    %v4471 = vrot.slane %v4469, 1
    %v4473 = vpack.c.bf16 %v4469, %v4469
    %v4474 = vpack.c.bf16 %v4471, %v4471
    %4475 = vmatpush.bf16.msra.mxu0 %v3665
    %4476 = vmatpush.bf16.msra.mxu0 %v3657
    %4477 = vmatpush.bf16.msra.mxu0 %v3649
    %4478 = vmatpush.bf16.msra.mxu0 %v3641
    %4479 = vmatpush.bf16.msra.mxu0 %v3633
    %4480 = vmatpush.bf16.msra.mxu0 %v3625
    %4481 = vmatpush.bf16.msra.mxu0 %v3617
    %4482 = vmatpush.bf16.msra.mxu0 %v3609
    %4483 = vmatmul.bf16.gmra.mxu0 %v4473
    %v4484 = vpop.f32.mrf.mxu0
    %v4485 = vadd.f32 0.0, %v4484
    %v4486 = vpop.f32.mrf.mxu0
    %4487 = vdwg.mxu0
    %4488 = vmatpush.bf16.msra.mxu0 %v3729
    %4489 = vmatpush.bf16.msra.mxu0 %v3721
    %4490 = vmatpush.bf16.msra.mxu0 %v3713
    %4491 = vmatpush.bf16.msra.mxu0 %v3705
    %4492 = vmatpush.bf16.msra.mxu0 %v3697
    %4493 = vmatpush.bf16.msra.mxu0 %v3689
    %4494 = vmatpush.bf16.msra.mxu0 %v3681
    %4495 = vmatpush.bf16.msra.mxu0 %v3673
    %4496 = vmatmul.bf16.gmra.mxu0 %v4474
    %v4497 = vpop.f32.mrf.mxu0
    %v4498 = vadd.f32 %v4485, %v4497
    %v4499 = vpop.f32.mrf.mxu0
    %4500 = vdwg.mxu0
    %4501 = vmatpush.bf16.msra.mxu0 %v3666
    %4502 = vmatpush.bf16.msra.mxu0 %v3658
    %4503 = vmatpush.bf16.msra.mxu0 %v3650
    %4504 = vmatpush.bf16.msra.mxu0 %v3642
    %4505 = vmatpush.bf16.msra.mxu0 %v3634
    %4506 = vmatpush.bf16.msra.mxu0 %v3626
    %4507 = vmatpush.bf16.msra.mxu0 %v3618
    %4508 = vmatpush.bf16.msra.mxu0 %v3610
    %4509 = vmatmul.bf16.gmra.mxu0 %v4473
    %v4510 = vpop.f32.mrf.mxu0
    %v4511 = vadd.f32 0.0, %v4510
    %v4512 = vpop.f32.mrf.mxu0
    %4513 = vdwg.mxu0
    %4514 = vmatpush.bf16.msra.mxu0 %v3730
    %4515 = vmatpush.bf16.msra.mxu0 %v3722
    %4516 = vmatpush.bf16.msra.mxu0 %v3714
    %4517 = vmatpush.bf16.msra.mxu0 %v3706
    %4518 = vmatpush.bf16.msra.mxu0 %v3698
    %4519 = vmatpush.bf16.msra.mxu0 %v3690
    %4520 = vmatpush.bf16.msra.mxu0 %v3682
    %4521 = vmatpush.bf16.msra.mxu0 %v3674
    %4522 = vmatmul.bf16.gmra.mxu0 %v4474
    %v4523 = vpop.f32.mrf.mxu0
    %v4524 = vadd.f32 %v4511, %v4523
    %v4525 = vpop.f32.mrf.mxu0
    %4526 = vdwg.mxu0
    %4527 = vmatpush.bf16.msra.mxu0 %v3667
    %4528 = vmatpush.bf16.msra.mxu0 %v3659
    %4529 = vmatpush.bf16.msra.mxu0 %v3651
    %4530 = vmatpush.bf16.msra.mxu0 %v3643
    %4531 = vmatpush.bf16.msra.mxu0 %v3635
    %4532 = vmatpush.bf16.msra.mxu0 %v3627
    %4533 = vmatpush.bf16.msra.mxu0 %v3619
    %4534 = vmatpush.bf16.msra.mxu0 %v3611
    %4535 = vmatmul.bf16.gmra.mxu0 %v4473
    %v4536 = vpop.f32.mrf.mxu0
    %v4537 = vadd.f32 0.0, %v4536
    %v4538 = vpop.f32.mrf.mxu0
    %4539 = vdwg.mxu0
    %4540 = vmatpush.bf16.msra.mxu0 %v3731
    %4541 = vmatpush.bf16.msra.mxu0 %v3723
    %4542 = vmatpush.bf16.msra.mxu0 %v3715
    %4543 = vmatpush.bf16.msra.mxu0 %v3707
    %4544 = vmatpush.bf16.msra.mxu0 %v3699
    %4545 = vmatpush.bf16.msra.mxu0 %v3691
    %4546 = vmatpush.bf16.msra.mxu0 %v3683
    %4547 = vmatpush.bf16.msra.mxu0 %v3675
    %4548 = vmatmul.bf16.gmra.mxu0 %v4474
    %v4549 = vpop.f32.mrf.mxu0
    %v4550 = vadd.f32 %v4537, %v4549
    %v4551 = vpop.f32.mrf.mxu0
    %4552 = vdwg.mxu0
    %4553 = vmatpush.bf16.msra.mxu0 %v3668
    %4554 = vmatpush.bf16.msra.mxu0 %v3660
    %4555 = vmatpush.bf16.msra.mxu0 %v3652
    %4556 = vmatpush.bf16.msra.mxu0 %v3644
    %4557 = vmatpush.bf16.msra.mxu0 %v3636
    %4558 = vmatpush.bf16.msra.mxu0 %v3628
    %4559 = vmatpush.bf16.msra.mxu0 %v3620
    %4560 = vmatpush.bf16.msra.mxu0 %v3612
    %4561 = vmatmul.bf16.gmra.mxu0 %v4473
    %v4562 = vpop.f32.mrf.mxu0
    %v4563 = vadd.f32 0.0, %v4562
    %v4564 = vpop.f32.mrf.mxu0
    %4565 = vdwg.mxu0
    %4566 = vmatpush.bf16.msra.mxu0 %v3732
    %4567 = vmatpush.bf16.msra.mxu0 %v3724
    %4568 = vmatpush.bf16.msra.mxu0 %v3716
    %4569 = vmatpush.bf16.msra.mxu0 %v3708
    %4570 = vmatpush.bf16.msra.mxu0 %v3700
    %4571 = vmatpush.bf16.msra.mxu0 %v3692
    %4572 = vmatpush.bf16.msra.mxu0 %v3684
    %4573 = vmatpush.bf16.msra.mxu0 %v3676
    %4574 = vmatmul.bf16.gmra.mxu0 %v4474
    %v4575 = vpop.f32.mrf.mxu0
    %v4576 = vadd.f32 %v4563, %v4575
    %v4577 = vpop.f32.mrf.mxu0
    %4578 = vdwg.mxu0
    %4579 = vmatpush.bf16.msra.mxu0 %v3669
    %4580 = vmatpush.bf16.msra.mxu0 %v3661
    %4581 = vmatpush.bf16.msra.mxu0 %v3653
    %4582 = vmatpush.bf16.msra.mxu0 %v3645
    %4583 = vmatpush.bf16.msra.mxu0 %v3637
    %4584 = vmatpush.bf16.msra.mxu0 %v3629
    %4585 = vmatpush.bf16.msra.mxu0 %v3621
    %4586 = vmatpush.bf16.msra.mxu0 %v3613
    %4587 = vmatmul.bf16.gmra.mxu0 %v4473
    %v4588 = vpop.f32.mrf.mxu0
    %v4589 = vadd.f32 0.0, %v4588
    %v4590 = vpop.f32.mrf.mxu0
    %4591 = vdwg.mxu0
    %4592 = vmatpush.bf16.msra.mxu0 %v3733
    %4593 = vmatpush.bf16.msra.mxu0 %v3725
    %4594 = vmatpush.bf16.msra.mxu0 %v3717
    %4595 = vmatpush.bf16.msra.mxu0 %v3709
    %4596 = vmatpush.bf16.msra.mxu0 %v3701
    %4597 = vmatpush.bf16.msra.mxu0 %v3693
    %4598 = vmatpush.bf16.msra.mxu0 %v3685
    %4599 = vmatpush.bf16.msra.mxu0 %v3677
    %4600 = vmatmul.bf16.gmra.mxu0 %v4474
    %v4601 = vpop.f32.mrf.mxu0
    %v4602 = vadd.f32 %v4589, %v4601
    %v4603 = vpop.f32.mrf.mxu0
    %4604 = vdwg.mxu0
    %4605 = vmatpush.bf16.msra.mxu0 %v3670
    %4606 = vmatpush.bf16.msra.mxu0 %v3662
    %4607 = vmatpush.bf16.msra.mxu0 %v3654
    %4608 = vmatpush.bf16.msra.mxu0 %v3646
    %4609 = vmatpush.bf16.msra.mxu0 %v3638
    %4610 = vmatpush.bf16.msra.mxu0 %v3630
    %4611 = vmatpush.bf16.msra.mxu0 %v3622
    %4612 = vmatpush.bf16.msra.mxu0 %v3614
    %4613 = vmatmul.bf16.gmra.mxu0 %v4473
    %v4614 = vpop.f32.mrf.mxu0
    %v4615 = vadd.f32 0.0, %v4614
    %v4616 = vpop.f32.mrf.mxu0
    %4617 = vdwg.mxu0
    %4618 = vmatpush.bf16.msra.mxu0 %v3734
    %4619 = vmatpush.bf16.msra.mxu0 %v3726
    %4620 = vmatpush.bf16.msra.mxu0 %v3718
    %4621 = vmatpush.bf16.msra.mxu0 %v3710
    %4622 = vmatpush.bf16.msra.mxu0 %v3702
    %4623 = vmatpush.bf16.msra.mxu0 %v3694
    %4624 = vmatpush.bf16.msra.mxu0 %v3686
    %4625 = vmatpush.bf16.msra.mxu0 %v3678
    %4626 = vmatmul.bf16.gmra.mxu0 %v4474
    %v4627 = vpop.f32.mrf.mxu0
    %v4628 = vadd.f32 %v4615, %v4627
    %v4629 = vpop.f32.mrf.mxu0
    %4630 = vdwg.mxu0
    %4631 = vmatpush.bf16.msra.mxu0 %v3671
    %4632 = vmatpush.bf16.msra.mxu0 %v3663
    %4633 = vmatpush.bf16.msra.mxu0 %v3655
    %4634 = vmatpush.bf16.msra.mxu0 %v3647
    %4635 = vmatpush.bf16.msra.mxu0 %v3639
    %4636 = vmatpush.bf16.msra.mxu0 %v3631
    %4637 = vmatpush.bf16.msra.mxu0 %v3623
    %4638 = vmatpush.bf16.msra.mxu0 %v3615
    %4639 = vmatmul.bf16.gmra.mxu0 %v4473
    %v4640 = vpop.f32.mrf.mxu0
    %v4641 = vadd.f32 0.0, %v4640
    %v4642 = vpop.f32.mrf.mxu0
    %4643 = vdwg.mxu0
    %4644 = vmatpush.bf16.msra.mxu0 %v3735
    %4645 = vmatpush.bf16.msra.mxu0 %v3727
    %4646 = vmatpush.bf16.msra.mxu0 %v3719
    %4647 = vmatpush.bf16.msra.mxu0 %v3711
    %4648 = vmatpush.bf16.msra.mxu0 %v3703
    %4649 = vmatpush.bf16.msra.mxu0 %v3695
    %4650 = vmatpush.bf16.msra.mxu0 %v3687
    %4651 = vmatpush.bf16.msra.mxu0 %v3679
    %4652 = vmatmul.bf16.gmra.mxu0 %v4474
    %v4653 = vpop.f32.mrf.mxu0
    %v4654 = vadd.f32 %v4641, %v4653
    %v4655 = vpop.f32.mrf.mxu0
    %4656 = vdwg.mxu0
    %4657 = vmatpush.bf16.msra.mxu0 %v3672
    %4658 = vmatpush.bf16.msra.mxu0 %v3664
    %4659 = vmatpush.bf16.msra.mxu0 %v3656
    %4660 = vmatpush.bf16.msra.mxu0 %v3648
    %4661 = vmatpush.bf16.msra.mxu0 %v3640
    %4662 = vmatpush.bf16.msra.mxu0 %v3632
    %4663 = vmatpush.bf16.msra.mxu0 %v3624
    %4664 = vmatpush.bf16.msra.mxu0 %v3616
    %4665 = vmatmul.bf16.gmra.mxu0 %v4473
    %v4666 = vpop.f32.mrf.mxu0
    %v4667 = vadd.f32 0.0, %v4666
    %v4668 = vpop.f32.mrf.mxu0
    %4669 = vdwg.mxu0
    %4670 = vmatpush.bf16.msra.mxu0 %v3736
    %4671 = vmatpush.bf16.msra.mxu0 %v3728
    %4672 = vmatpush.bf16.msra.mxu0 %v3720
    %4673 = vmatpush.bf16.msra.mxu0 %v3712
    %4674 = vmatpush.bf16.msra.mxu0 %v3704
    %4675 = vmatpush.bf16.msra.mxu0 %v3696
    %4676 = vmatpush.bf16.msra.mxu0 %v3688
    %4677 = vmatpush.bf16.msra.mxu0 %v3680
    %4678 = vmatmul.bf16.gmra.mxu0 %v4474
    %v4679 = vpop.f32.mrf.mxu0
    %v4680 = vadd.f32 %v4667, %v4679
    %v4681 = vpop.f32.mrf.mxu0
    %4682 = vdwg.mxu0
    %v4683 = vadd.f32 %v4498, %v1628
    %v4684 = vadd.f32 %v4524, %v1641
    %v4685 = vadd.f32 %v4550, %v1654
    %v4686 = vadd.f32 %v4576, %v1667
    %v4687 = vadd.f32 %v4602, %v4079
    %v4688 = vadd.f32 %v4628, %v4080
    %v4689 = vadd.f32 %v4654, %v4081
    %v4690 = vadd.f32 %v4680, %v4082
    %v4695 = vrot.slane %v4687, 7
    %v4696 = vrot.slane %v4688, 7
    %v4697 = vrot.slane %v4689, 7
    %v4698 = vrot.slane %v4690, 7
    %v4703 = vsel %vm3093, %v4683, %v4695
    %v4704 = vsel %vm3093, %v4684, %v4696
    %v4705 = vsel %vm3093, %v4685, %v4697
    %v4706 = vsel %vm3093, %v4686, %v4698
    %v4707 = vxor.u32 %v4703, 2147483648
    %v4708 = vmul.f32 %v4707, 1.442695
    %v4709 = vpow.pop %v4708
    %v4710 = vadd.f32 %v4709, 1.0
    %v4711 = vrcp.pop %v4710
    %v4712 = vmul.f32 %v4710, %v4711
    %v4713 = vsub.f32 1.0, %v4712
    %v4714 = vmul.f32 %v4711, %v4713
    %v4715 = vadd.f32 %v4711, %v4714
    %vm4716 = vweird.f32 %v4710
    %vm4717 = vweird.f32 %v4711
    %vm4718 = vmor %vm4716, %vm4717
    %v4719 = vsel %vm4718, %v4711, %v4715
    %v4720 = vand.u32 2147483647, %v4710
    %vm4721 = vcmp.eq.f32.partialorder %v4720, 8.507059e+37
    %v4722 = vand.u32 %v4710, 2147483648
    %v4723 = vor.u32 1.1754944e-38, %v4722
    %v4724 = vsel %vm4721, %v4723, %v4719
    %v4725 = vmul.f32 1.0, %v4724
    %v4726 = vxor.u32 %v4704, 2147483648
    %v4727 = vmul.f32 %v4726, 1.442695
    %v4728 = vpow.pop %v4727
    %v4729 = vadd.f32 %v4728, 1.0
    %v4730 = vrcp.pop %v4729
    %v4731 = vmul.f32 %v4729, %v4730
    %v4732 = vsub.f32 1.0, %v4731
    %v4733 = vmul.f32 %v4730, %v4732
    %v4734 = vadd.f32 %v4730, %v4733
    %vm4735 = vweird.f32 %v4729
    %vm4736 = vweird.f32 %v4730
    %vm4737 = vmor %vm4735, %vm4736
    %v4738 = vsel %vm4737, %v4730, %v4734
    %v4739 = vand.u32 2147483647, %v4729
    %vm4740 = vcmp.eq.f32.partialorder %v4739, 8.507059e+37
    %v4741 = vand.u32 %v4729, 2147483648
    %v4742 = vor.u32 1.1754944e-38, %v4741
    %v4743 = vsel %vm4740, %v4742, %v4738
    %v4744 = vmul.f32 1.0, %v4743
    %v4745 = vtanh.pop %v4705
    %v4746 = vxor.u32 %v4706, 2147483648
    %v4747 = vmul.f32 %v4746, 1.442695
    %v4748 = vpow.pop %v4747
    %v4749 = vadd.f32 %v4748, 1.0
    %v4750 = vrcp.pop %v4749
    %v4751 = vmul.f32 %v4749, %v4750
    %v4752 = vsub.f32 1.0, %v4751
    %v4753 = vmul.f32 %v4750, %v4752
    %v4754 = vadd.f32 %v4750, %v4753
    %vm4755 = vweird.f32 %v4749
    %vm4756 = vweird.f32 %v4750
    %vm4757 = vmor %vm4755, %vm4756
    %v4758 = vsel %vm4757, %v4750, %v4754
    %v4759 = vand.u32 2147483647, %v4749
    %vm4760 = vcmp.eq.f32.partialorder %v4759, 8.507059e+37
    %v4761 = vand.u32 %v4749, 2147483648
    %v4762 = vor.u32 1.1754944e-38, %v4761
    %v4763 = vsel %vm4760, %v4762, %v4758
    %v4764 = vmul.f32 1.0, %v4763
    %v4765 = vmul.f32 %v4744, %v4467
    %v4766 = vmul.f32 %v4725, %v4745
    %v4767 = vadd.f32 %v4765, %v4766
    %v4768 = vtanh.pop %v4767
    %v4769 = vmul.f32 %v4764, %v4768
    %v4771 = vrot.slane %v4769, 1
    %v4773 = vpack.c.bf16 %v4769, %v4769
    %v4774 = vpack.c.bf16 %v4771, %v4771
    %4775 = vmatpush.bf16.msra.mxu0 %v3665
    %4776 = vmatpush.bf16.msra.mxu0 %v3657
    %4777 = vmatpush.bf16.msra.mxu0 %v3649
    %4778 = vmatpush.bf16.msra.mxu0 %v3641
    %4779 = vmatpush.bf16.msra.mxu0 %v3633
    %4780 = vmatpush.bf16.msra.mxu0 %v3625
    %4781 = vmatpush.bf16.msra.mxu0 %v3617
    %4782 = vmatpush.bf16.msra.mxu0 %v3609
    %4783 = vmatmul.bf16.gmra.mxu0 %v4773
    %v4784 = vpop.f32.mrf.mxu0
    %v4785 = vadd.f32 0.0, %v4784
    %v4786 = vpop.f32.mrf.mxu0
    %4787 = vdwg.mxu0
    %4788 = vmatpush.bf16.msra.mxu0 %v3729
    %4789 = vmatpush.bf16.msra.mxu0 %v3721
    %4790 = vmatpush.bf16.msra.mxu0 %v3713
    %4791 = vmatpush.bf16.msra.mxu0 %v3705
    %4792 = vmatpush.bf16.msra.mxu0 %v3697
    %4793 = vmatpush.bf16.msra.mxu0 %v3689
    %4794 = vmatpush.bf16.msra.mxu0 %v3681
    %4795 = vmatpush.bf16.msra.mxu0 %v3673
    %4796 = vmatmul.bf16.gmra.mxu0 %v4774
    %v4797 = vpop.f32.mrf.mxu0
    %v4798 = vadd.f32 %v4785, %v4797
    %v4799 = vpop.f32.mrf.mxu0
    %4800 = vdwg.mxu0
    %4801 = vmatpush.bf16.msra.mxu0 %v3666
    %4802 = vmatpush.bf16.msra.mxu0 %v3658
    %4803 = vmatpush.bf16.msra.mxu0 %v3650
    %4804 = vmatpush.bf16.msra.mxu0 %v3642
    %4805 = vmatpush.bf16.msra.mxu0 %v3634
    %4806 = vmatpush.bf16.msra.mxu0 %v3626
    %4807 = vmatpush.bf16.msra.mxu0 %v3618
    %4808 = vmatpush.bf16.msra.mxu0 %v3610
    %4809 = vmatmul.bf16.gmra.mxu0 %v4773
    %v4810 = vpop.f32.mrf.mxu0
    %v4811 = vadd.f32 0.0, %v4810
    %v4812 = vpop.f32.mrf.mxu0
    %4813 = vdwg.mxu0
    %4814 = vmatpush.bf16.msra.mxu0 %v3730
    %4815 = vmatpush.bf16.msra.mxu0 %v3722
    %4816 = vmatpush.bf16.msra.mxu0 %v3714
    %4817 = vmatpush.bf16.msra.mxu0 %v3706
    %4818 = vmatpush.bf16.msra.mxu0 %v3698
    %4819 = vmatpush.bf16.msra.mxu0 %v3690
    %4820 = vmatpush.bf16.msra.mxu0 %v3682
    %4821 = vmatpush.bf16.msra.mxu0 %v3674
    %4822 = vmatmul.bf16.gmra.mxu0 %v4774
    %v4823 = vpop.f32.mrf.mxu0
    %v4824 = vadd.f32 %v4811, %v4823
    %v4825 = vpop.f32.mrf.mxu0
    %4826 = vdwg.mxu0
    %4827 = vmatpush.bf16.msra.mxu0 %v3667
    %4828 = vmatpush.bf16.msra.mxu0 %v3659
    %4829 = vmatpush.bf16.msra.mxu0 %v3651
    %4830 = vmatpush.bf16.msra.mxu0 %v3643
    %4831 = vmatpush.bf16.msra.mxu0 %v3635
    %4832 = vmatpush.bf16.msra.mxu0 %v3627
    %4833 = vmatpush.bf16.msra.mxu0 %v3619
    %4834 = vmatpush.bf16.msra.mxu0 %v3611
    %4835 = vmatmul.bf16.gmra.mxu0 %v4773
    %v4836 = vpop.f32.mrf.mxu0
    %v4837 = vadd.f32 0.0, %v4836
    %v4838 = vpop.f32.mrf.mxu0
    %4839 = vdwg.mxu0
    %4840 = vmatpush.bf16.msra.mxu0 %v3731
    %4841 = vmatpush.bf16.msra.mxu0 %v3723
    %4842 = vmatpush.bf16.msra.mxu0 %v3715
    %4843 = vmatpush.bf16.msra.mxu0 %v3707
    %4844 = vmatpush.bf16.msra.mxu0 %v3699
    %4845 = vmatpush.bf16.msra.mxu0 %v3691
    %4846 = vmatpush.bf16.msra.mxu0 %v3683
    %4847 = vmatpush.bf16.msra.mxu0 %v3675
    %4848 = vmatmul.bf16.gmra.mxu0 %v4774
    %v4849 = vpop.f32.mrf.mxu0
    %v4850 = vadd.f32 %v4837, %v4849
    %v4851 = vpop.f32.mrf.mxu0
    %4852 = vdwg.mxu0
    %4853 = vmatpush.bf16.msra.mxu0 %v3668
    %4854 = vmatpush.bf16.msra.mxu0 %v3660
    %4855 = vmatpush.bf16.msra.mxu0 %v3652
    %4856 = vmatpush.bf16.msra.mxu0 %v3644
    %4857 = vmatpush.bf16.msra.mxu0 %v3636
    %4858 = vmatpush.bf16.msra.mxu0 %v3628
    %4859 = vmatpush.bf16.msra.mxu0 %v3620
    %4860 = vmatpush.bf16.msra.mxu0 %v3612
    %4861 = vmatmul.bf16.gmra.mxu0 %v4773
    %v4862 = vpop.f32.mrf.mxu0
    %v4863 = vadd.f32 0.0, %v4862
    %v4864 = vpop.f32.mrf.mxu0
    %4865 = vdwg.mxu0
    %4866 = vmatpush.bf16.msra.mxu0 %v3732
    %4867 = vmatpush.bf16.msra.mxu0 %v3724
    %4868 = vmatpush.bf16.msra.mxu0 %v3716
    %4869 = vmatpush.bf16.msra.mxu0 %v3708
    %4870 = vmatpush.bf16.msra.mxu0 %v3700
    %4871 = vmatpush.bf16.msra.mxu0 %v3692
    %4872 = vmatpush.bf16.msra.mxu0 %v3684
    %4873 = vmatpush.bf16.msra.mxu0 %v3676
    %4874 = vmatmul.bf16.gmra.mxu0 %v4774
    %v4875 = vpop.f32.mrf.mxu0
    %v4876 = vadd.f32 %v4863, %v4875
    %v4877 = vpop.f32.mrf.mxu0
    %4878 = vdwg.mxu0
    %4879 = vmatpush.bf16.msra.mxu0 %v3669
    %4880 = vmatpush.bf16.msra.mxu0 %v3661
    %4881 = vmatpush.bf16.msra.mxu0 %v3653
    %4882 = vmatpush.bf16.msra.mxu0 %v3645
    %4883 = vmatpush.bf16.msra.mxu0 %v3637
    %4884 = vmatpush.bf16.msra.mxu0 %v3629
    %4885 = vmatpush.bf16.msra.mxu0 %v3621
    %4886 = vmatpush.bf16.msra.mxu0 %v3613
    %4887 = vmatmul.bf16.gmra.mxu0 %v4773
    %v4888 = vpop.f32.mrf.mxu0
    %v4889 = vadd.f32 0.0, %v4888
    %v4890 = vpop.f32.mrf.mxu0
    %4891 = vdwg.mxu0
    %4892 = vmatpush.bf16.msra.mxu0 %v3733
    %4893 = vmatpush.bf16.msra.mxu0 %v3725
    %4894 = vmatpush.bf16.msra.mxu0 %v3717
    %4895 = vmatpush.bf16.msra.mxu0 %v3709
    %4896 = vmatpush.bf16.msra.mxu0 %v3701
    %4897 = vmatpush.bf16.msra.mxu0 %v3693
    %4898 = vmatpush.bf16.msra.mxu0 %v3685
    %4899 = vmatpush.bf16.msra.mxu0 %v3677
    %4900 = vmatmul.bf16.gmra.mxu0 %v4774
    %v4901 = vpop.f32.mrf.mxu0
    %v4902 = vadd.f32 %v4889, %v4901
    %v4903 = vpop.f32.mrf.mxu0
    %4904 = vdwg.mxu0
    %4905 = vmatpush.bf16.msra.mxu0 %v3670
    %4906 = vmatpush.bf16.msra.mxu0 %v3662
    %4907 = vmatpush.bf16.msra.mxu0 %v3654
    %4908 = vmatpush.bf16.msra.mxu0 %v3646
    %4909 = vmatpush.bf16.msra.mxu0 %v3638
    %4910 = vmatpush.bf16.msra.mxu0 %v3630
    %4911 = vmatpush.bf16.msra.mxu0 %v3622
    %4912 = vmatpush.bf16.msra.mxu0 %v3614
    %4913 = vmatmul.bf16.gmra.mxu0 %v4773
    %v4914 = vpop.f32.mrf.mxu0
    %v4915 = vadd.f32 0.0, %v4914
    %v4916 = vpop.f32.mrf.mxu0
    %4917 = vdwg.mxu0
    %4918 = vmatpush.bf16.msra.mxu0 %v3734
    %4919 = vmatpush.bf16.msra.mxu0 %v3726
    %4920 = vmatpush.bf16.msra.mxu0 %v3718
    %4921 = vmatpush.bf16.msra.mxu0 %v3710
    %4922 = vmatpush.bf16.msra.mxu0 %v3702
    %4923 = vmatpush.bf16.msra.mxu0 %v3694
    %4924 = vmatpush.bf16.msra.mxu0 %v3686
    %4925 = vmatpush.bf16.msra.mxu0 %v3678
    %4926 = vmatmul.bf16.gmra.mxu0 %v4774
    %v4927 = vpop.f32.mrf.mxu0
    %v4928 = vadd.f32 %v4915, %v4927
    %v4929 = vpop.f32.mrf.mxu0
    %4930 = vdwg.mxu0
    %4931 = vmatpush.bf16.msra.mxu0 %v3671
    %4932 = vmatpush.bf16.msra.mxu0 %v3663
    %4933 = vmatpush.bf16.msra.mxu0 %v3655
    %4934 = vmatpush.bf16.msra.mxu0 %v3647
    %4935 = vmatpush.bf16.msra.mxu0 %v3639
    %4936 = vmatpush.bf16.msra.mxu0 %v3631
    %4937 = vmatpush.bf16.msra.mxu0 %v3623
    %4938 = vmatpush.bf16.msra.mxu0 %v3615
    %4939 = vmatmul.bf16.gmra.mxu0 %v4773
    %v4940 = vpop.f32.mrf.mxu0
    %v4941 = vadd.f32 0.0, %v4940
    %v4942 = vpop.f32.mrf.mxu0
    %4943 = vdwg.mxu0
    %4944 = vmatpush.bf16.msra.mxu0 %v3735
    %4945 = vmatpush.bf16.msra.mxu0 %v3727
    %4946 = vmatpush.bf16.msra.mxu0 %v3719
    %4947 = vmatpush.bf16.msra.mxu0 %v3711
    %4948 = vmatpush.bf16.msra.mxu0 %v3703
    %4949 = vmatpush.bf16.msra.mxu0 %v3695
    %4950 = vmatpush.bf16.msra.mxu0 %v3687
    %4951 = vmatpush.bf16.msra.mxu0 %v3679
    %4952 = vmatmul.bf16.gmra.mxu0 %v4774
    %v4953 = vpop.f32.mrf.mxu0
    %v4954 = vadd.f32 %v4941, %v4953
    %v4955 = vpop.f32.mrf.mxu0
    %4956 = vdwg.mxu0
    %4957 = vmatpush.bf16.msra.mxu0 %v3672
    %4958 = vmatpush.bf16.msra.mxu0 %v3664
    %4959 = vmatpush.bf16.msra.mxu0 %v3656
    %4960 = vmatpush.bf16.msra.mxu0 %v3648
    %4961 = vmatpush.bf16.msra.mxu0 %v3640
    %4962 = vmatpush.bf16.msra.mxu0 %v3632
    %4963 = vmatpush.bf16.msra.mxu0 %v3624
    %4964 = vmatpush.bf16.msra.mxu0 %v3616
    %4965 = vmatmul.bf16.gmra.mxu0 %v4773
    %v4966 = vpop.f32.mrf.mxu0
    %v4967 = vadd.f32 0.0, %v4966
    %v4968 = vpop.f32.mrf.mxu0
    %4969 = vdwg.mxu0
    %4970 = vmatpush.bf16.msra.mxu0 %v3736
    %4971 = vmatpush.bf16.msra.mxu0 %v3728
    %4972 = vmatpush.bf16.msra.mxu0 %v3720
    %4973 = vmatpush.bf16.msra.mxu0 %v3712
    %4974 = vmatpush.bf16.msra.mxu0 %v3704
    %4975 = vmatpush.bf16.msra.mxu0 %v3696
    %4976 = vmatpush.bf16.msra.mxu0 %v3688
    %4977 = vmatpush.bf16.msra.mxu0 %v3680
    %4978 = vmatmul.bf16.gmra.mxu0 %v4774
    %v4979 = vpop.f32.mrf.mxu0
    %v4980 = vadd.f32 %v4967, %v4979
    %v4981 = vpop.f32.mrf.mxu0
    %4982 = vdwg.mxu0
    %v4983 = vadd.f32 %v4798, %v1968
    %v4984 = vadd.f32 %v4824, %v1981
    %v4985 = vadd.f32 %v4850, %v1994
    %v4986 = vadd.f32 %v4876, %v2007
    %v4987 = vadd.f32 %v4902, %v4079
    %v4988 = vadd.f32 %v4928, %v4080
    %v4989 = vadd.f32 %v4954, %v4081
    %v4990 = vadd.f32 %v4980, %v4082
    %v4995 = vrot.slane %v4987, 7
    %v4996 = vrot.slane %v4988, 7
    %v4997 = vrot.slane %v4989, 7
    %v4998 = vrot.slane %v4990, 7
    %v5003 = vsel %vm3093, %v4983, %v4995
    %v5004 = vsel %vm3093, %v4984, %v4996
    %v5005 = vsel %vm3093, %v4985, %v4997
    %v5006 = vsel %vm3093, %v4986, %v4998
    %v5007 = vxor.u32 %v5003, 2147483648
    %v5008 = vmul.f32 %v5007, 1.442695
    %v5009 = vpow.pop %v5008
    %v5010 = vadd.f32 %v5009, 1.0
    %v5011 = vrcp.pop %v5010
    %v5012 = vmul.f32 %v5010, %v5011
    %v5013 = vsub.f32 1.0, %v5012
    %v5014 = vmul.f32 %v5011, %v5013
    %v5015 = vadd.f32 %v5011, %v5014
    %vm5016 = vweird.f32 %v5010
    %vm5017 = vweird.f32 %v5011
    %vm5018 = vmor %vm5016, %vm5017
    %v5019 = vsel %vm5018, %v5011, %v5015
    %v5020 = vand.u32 2147483647, %v5010
    %vm5021 = vcmp.eq.f32.partialorder %v5020, 8.507059e+37
    %v5022 = vand.u32 %v5010, 2147483648
    %v5023 = vor.u32 1.1754944e-38, %v5022
    %v5024 = vsel %vm5021, %v5023, %v5019
    %v5025 = vmul.f32 1.0, %v5024
    %v5026 = vxor.u32 %v5004, 2147483648
    %v5027 = vmul.f32 %v5026, 1.442695
    %v5028 = vpow.pop %v5027
    %v5029 = vadd.f32 %v5028, 1.0
    %v5030 = vrcp.pop %v5029
    %v5031 = vmul.f32 %v5029, %v5030
    %v5032 = vsub.f32 1.0, %v5031
    %v5033 = vmul.f32 %v5030, %v5032
    %v5034 = vadd.f32 %v5030, %v5033
    %vm5035 = vweird.f32 %v5029
    %vm5036 = vweird.f32 %v5030
    %vm5037 = vmor %vm5035, %vm5036
    %v5038 = vsel %vm5037, %v5030, %v5034
    %v5039 = vand.u32 2147483647, %v5029
    %vm5040 = vcmp.eq.f32.partialorder %v5039, 8.507059e+37
    %v5041 = vand.u32 %v5029, 2147483648
    %v5042 = vor.u32 1.1754944e-38, %v5041
    %v5043 = vsel %vm5040, %v5042, %v5038
    %v5044 = vmul.f32 1.0, %v5043
    %v5045 = vtanh.pop %v5005
    %v5046 = vxor.u32 %v5006, 2147483648
    %v5047 = vmul.f32 %v5046, 1.442695
    %v5048 = vpow.pop %v5047
    %v5049 = vadd.f32 %v5048, 1.0
    %v5050 = vrcp.pop %v5049
    %v5051 = vmul.f32 %v5049, %v5050
    %v5052 = vsub.f32 1.0, %v5051
    %v5053 = vmul.f32 %v5050, %v5052
    %v5054 = vadd.f32 %v5050, %v5053
    %vm5055 = vweird.f32 %v5049
    %vm5056 = vweird.f32 %v5050
    %vm5057 = vmor %vm5055, %vm5056
    %v5058 = vsel %vm5057, %v5050, %v5054
    %v5059 = vand.u32 2147483647, %v5049
    %vm5060 = vcmp.eq.f32.partialorder %v5059, 8.507059e+37
    %v5061 = vand.u32 %v5049, 2147483648
    %v5062 = vor.u32 1.1754944e-38, %v5061
    %v5063 = vsel %vm5060, %v5062, %v5058
    %v5064 = vmul.f32 1.0, %v5063
    %v5065 = vmul.f32 %v5044, %v4767
    %v5066 = vmul.f32 %v5025, %v5045
    %v5067 = vadd.f32 %v5065, %v5066
    %v5068 = vtanh.pop %v5067
    %v5069 = vmul.f32 %v5064, %v5068
    %v5071 = vrot.slane %v5069, 1
    %v5073 = vpack.c.bf16 %v5069, %v5069
    %v5074 = vpack.c.bf16 %v5071, %v5071
    %5075 = vmatpush.bf16.msra.mxu0 %v3665
    %5076 = vmatpush.bf16.msra.mxu0 %v3657
    %5077 = vmatpush.bf16.msra.mxu0 %v3649
    %5078 = vmatpush.bf16.msra.mxu0 %v3641
    %5079 = vmatpush.bf16.msra.mxu0 %v3633
    %5080 = vmatpush.bf16.msra.mxu0 %v3625
    %5081 = vmatpush.bf16.msra.mxu0 %v3617
    %5082 = vmatpush.bf16.msra.mxu0 %v3609
    %5083 = vmatmul.bf16.gmra.mxu0 %v5073
    %v5084 = vpop.f32.mrf.mxu0
    %v5085 = vadd.f32 0.0, %v5084
    %v5086 = vpop.f32.mrf.mxu0
    %5087 = vdwg.mxu0
    %5088 = vmatpush.bf16.msra.mxu0 %v3729
    %5089 = vmatpush.bf16.msra.mxu0 %v3721
    %5090 = vmatpush.bf16.msra.mxu0 %v3713
    %5091 = vmatpush.bf16.msra.mxu0 %v3705
    %5092 = vmatpush.bf16.msra.mxu0 %v3697
    %5093 = vmatpush.bf16.msra.mxu0 %v3689
    %5094 = vmatpush.bf16.msra.mxu0 %v3681
    %5095 = vmatpush.bf16.msra.mxu0 %v3673
    %5096 = vmatmul.bf16.gmra.mxu0 %v5074
    %v5097 = vpop.f32.mrf.mxu0
    %v5098 = vadd.f32 %v5085, %v5097
    %v5099 = vpop.f32.mrf.mxu0
    %5100 = vdwg.mxu0
    %5101 = vmatpush.bf16.msra.mxu0 %v3666
    %5102 = vmatpush.bf16.msra.mxu0 %v3658
    %5103 = vmatpush.bf16.msra.mxu0 %v3650
    %5104 = vmatpush.bf16.msra.mxu0 %v3642
    %5105 = vmatpush.bf16.msra.mxu0 %v3634
    %5106 = vmatpush.bf16.msra.mxu0 %v3626
    %5107 = vmatpush.bf16.msra.mxu0 %v3618
    %5108 = vmatpush.bf16.msra.mxu0 %v3610
    %5109 = vmatmul.bf16.gmra.mxu0 %v5073
    %v5110 = vpop.f32.mrf.mxu0
    %v5111 = vadd.f32 0.0, %v5110
    %v5112 = vpop.f32.mrf.mxu0
    %5113 = vdwg.mxu0
    %5114 = vmatpush.bf16.msra.mxu0 %v3730
    %5115 = vmatpush.bf16.msra.mxu0 %v3722
    %5116 = vmatpush.bf16.msra.mxu0 %v3714
    %5117 = vmatpush.bf16.msra.mxu0 %v3706
    %5118 = vmatpush.bf16.msra.mxu0 %v3698
    %5119 = vmatpush.bf16.msra.mxu0 %v3690
    %5120 = vmatpush.bf16.msra.mxu0 %v3682
    %5121 = vmatpush.bf16.msra.mxu0 %v3674
    %5122 = vmatmul.bf16.gmra.mxu0 %v5074
    %v5123 = vpop.f32.mrf.mxu0
    %v5124 = vadd.f32 %v5111, %v5123
    %v5125 = vpop.f32.mrf.mxu0
    %5126 = vdwg.mxu0
    %5127 = vmatpush.bf16.msra.mxu0 %v3667
    %5128 = vmatpush.bf16.msra.mxu0 %v3659
    %5129 = vmatpush.bf16.msra.mxu0 %v3651
    %5130 = vmatpush.bf16.msra.mxu0 %v3643
    %5131 = vmatpush.bf16.msra.mxu0 %v3635
    %5132 = vmatpush.bf16.msra.mxu0 %v3627
    %5133 = vmatpush.bf16.msra.mxu0 %v3619
    %5134 = vmatpush.bf16.msra.mxu0 %v3611
    %5135 = vmatmul.bf16.gmra.mxu0 %v5073
    %v5136 = vpop.f32.mrf.mxu0
    %v5137 = vadd.f32 0.0, %v5136
    %v5138 = vpop.f32.mrf.mxu0
    %5139 = vdwg.mxu0
    %5140 = vmatpush.bf16.msra.mxu0 %v3731
    %5141 = vmatpush.bf16.msra.mxu0 %v3723
    %5142 = vmatpush.bf16.msra.mxu0 %v3715
    %5143 = vmatpush.bf16.msra.mxu0 %v3707
    %5144 = vmatpush.bf16.msra.mxu0 %v3699
    %5145 = vmatpush.bf16.msra.mxu0 %v3691
    %5146 = vmatpush.bf16.msra.mxu0 %v3683
    %5147 = vmatpush.bf16.msra.mxu0 %v3675
    %5148 = vmatmul.bf16.gmra.mxu0 %v5074
    %v5149 = vpop.f32.mrf.mxu0
    %v5150 = vadd.f32 %v5137, %v5149
    %v5151 = vpop.f32.mrf.mxu0
    %5152 = vdwg.mxu0
    %5153 = vmatpush.bf16.msra.mxu0 %v3668
    %5154 = vmatpush.bf16.msra.mxu0 %v3660
    %5155 = vmatpush.bf16.msra.mxu0 %v3652
    %5156 = vmatpush.bf16.msra.mxu0 %v3644
    %5157 = vmatpush.bf16.msra.mxu0 %v3636
    %5158 = vmatpush.bf16.msra.mxu0 %v3628
    %5159 = vmatpush.bf16.msra.mxu0 %v3620
    %5160 = vmatpush.bf16.msra.mxu0 %v3612
    %5161 = vmatmul.bf16.gmra.mxu0 %v5073
    %v5162 = vpop.f32.mrf.mxu0
    %v5163 = vadd.f32 0.0, %v5162
    %v5164 = vpop.f32.mrf.mxu0
    %5165 = vdwg.mxu0
    %5166 = vmatpush.bf16.msra.mxu0 %v3732
    %5167 = vmatpush.bf16.msra.mxu0 %v3724
    %5168 = vmatpush.bf16.msra.mxu0 %v3716
    %5169 = vmatpush.bf16.msra.mxu0 %v3708
    %5170 = vmatpush.bf16.msra.mxu0 %v3700
    %5171 = vmatpush.bf16.msra.mxu0 %v3692
    %5172 = vmatpush.bf16.msra.mxu0 %v3684
    %5173 = vmatpush.bf16.msra.mxu0 %v3676
    %5174 = vmatmul.bf16.gmra.mxu0 %v5074
    %v5175 = vpop.f32.mrf.mxu0
    %v5176 = vadd.f32 %v5163, %v5175
    %v5177 = vpop.f32.mrf.mxu0
    %5178 = vdwg.mxu0
    %5179 = vmatpush.bf16.msra.mxu0 %v3669
    %5180 = vmatpush.bf16.msra.mxu0 %v3661
    %5181 = vmatpush.bf16.msra.mxu0 %v3653
    %5182 = vmatpush.bf16.msra.mxu0 %v3645
    %5183 = vmatpush.bf16.msra.mxu0 %v3637
    %5184 = vmatpush.bf16.msra.mxu0 %v3629
    %5185 = vmatpush.bf16.msra.mxu0 %v3621
    %5186 = vmatpush.bf16.msra.mxu0 %v3613
    %5187 = vmatmul.bf16.gmra.mxu0 %v5073
    %v5188 = vpop.f32.mrf.mxu0
    %v5189 = vadd.f32 0.0, %v5188
    %v5190 = vpop.f32.mrf.mxu0
    %5191 = vdwg.mxu0
    %5192 = vmatpush.bf16.msra.mxu0 %v3733
    %5193 = vmatpush.bf16.msra.mxu0 %v3725
    %5194 = vmatpush.bf16.msra.mxu0 %v3717
    %5195 = vmatpush.bf16.msra.mxu0 %v3709
    %5196 = vmatpush.bf16.msra.mxu0 %v3701
    %5197 = vmatpush.bf16.msra.mxu0 %v3693
    %5198 = vmatpush.bf16.msra.mxu0 %v3685
    %5199 = vmatpush.bf16.msra.mxu0 %v3677
    %5200 = vmatmul.bf16.gmra.mxu0 %v5074
    %v5201 = vpop.f32.mrf.mxu0
    %v5202 = vadd.f32 %v5189, %v5201
    %v5203 = vpop.f32.mrf.mxu0
    %5204 = vdwg.mxu0
    %5205 = vmatpush.bf16.msra.mxu0 %v3670
    %5206 = vmatpush.bf16.msra.mxu0 %v3662
    %5207 = vmatpush.bf16.msra.mxu0 %v3654
    %5208 = vmatpush.bf16.msra.mxu0 %v3646
    %5209 = vmatpush.bf16.msra.mxu0 %v3638
    %5210 = vmatpush.bf16.msra.mxu0 %v3630
    %5211 = vmatpush.bf16.msra.mxu0 %v3622
    %5212 = vmatpush.bf16.msra.mxu0 %v3614
    %5213 = vmatmul.bf16.gmra.mxu0 %v5073
    %v5214 = vpop.f32.mrf.mxu0
    %v5215 = vadd.f32 0.0, %v5214
    %v5216 = vpop.f32.mrf.mxu0
    %5217 = vdwg.mxu0
    %5218 = vmatpush.bf16.msra.mxu0 %v3734
    %5219 = vmatpush.bf16.msra.mxu0 %v3726
    %5220 = vmatpush.bf16.msra.mxu0 %v3718
    %5221 = vmatpush.bf16.msra.mxu0 %v3710
    %5222 = vmatpush.bf16.msra.mxu0 %v3702
    %5223 = vmatpush.bf16.msra.mxu0 %v3694
    %5224 = vmatpush.bf16.msra.mxu0 %v3686
    %5225 = vmatpush.bf16.msra.mxu0 %v3678
    %5226 = vmatmul.bf16.gmra.mxu0 %v5074
    %v5227 = vpop.f32.mrf.mxu0
    %v5228 = vadd.f32 %v5215, %v5227
    %v5229 = vpop.f32.mrf.mxu0
    %5230 = vdwg.mxu0
    %5231 = vmatpush.bf16.msra.mxu0 %v3671
    %5232 = vmatpush.bf16.msra.mxu0 %v3663
    %5233 = vmatpush.bf16.msra.mxu0 %v3655
    %5234 = vmatpush.bf16.msra.mxu0 %v3647
    %5235 = vmatpush.bf16.msra.mxu0 %v3639
    %5236 = vmatpush.bf16.msra.mxu0 %v3631
    %5237 = vmatpush.bf16.msra.mxu0 %v3623
    %5238 = vmatpush.bf16.msra.mxu0 %v3615
    %5239 = vmatmul.bf16.gmra.mxu0 %v5073
    %v5240 = vpop.f32.mrf.mxu0
    %v5241 = vadd.f32 0.0, %v5240
    %v5242 = vpop.f32.mrf.mxu0
    %5243 = vdwg.mxu0
    %5244 = vmatpush.bf16.msra.mxu0 %v3735
    %5245 = vmatpush.bf16.msra.mxu0 %v3727
    %5246 = vmatpush.bf16.msra.mxu0 %v3719
    %5247 = vmatpush.bf16.msra.mxu0 %v3711
    %5248 = vmatpush.bf16.msra.mxu0 %v3703
    %5249 = vmatpush.bf16.msra.mxu0 %v3695
    %5250 = vmatpush.bf16.msra.mxu0 %v3687
    %5251 = vmatpush.bf16.msra.mxu0 %v3679
    %5252 = vmatmul.bf16.gmra.mxu0 %v5074
    %v5253 = vpop.f32.mrf.mxu0
    %v5254 = vadd.f32 %v5241, %v5253
    %v5255 = vpop.f32.mrf.mxu0
    %5256 = vdwg.mxu0
    %5257 = vmatpush.bf16.msra.mxu0 %v3672
    %5258 = vmatpush.bf16.msra.mxu0 %v3664
    %5259 = vmatpush.bf16.msra.mxu0 %v3656
    %5260 = vmatpush.bf16.msra.mxu0 %v3648
    %5261 = vmatpush.bf16.msra.mxu0 %v3640
    %5262 = vmatpush.bf16.msra.mxu0 %v3632
    %5263 = vmatpush.bf16.msra.mxu0 %v3624
    %5264 = vmatpush.bf16.msra.mxu0 %v3616
    %5265 = vmatmul.bf16.gmra.mxu0 %v5073
    %v5266 = vpop.f32.mrf.mxu0
    %v5267 = vadd.f32 0.0, %v5266
    %v5268 = vpop.f32.mrf.mxu0
    %5269 = vdwg.mxu0
    %5270 = vmatpush.bf16.msra.mxu0 %v3736
    %5271 = vmatpush.bf16.msra.mxu0 %v3728
    %5272 = vmatpush.bf16.msra.mxu0 %v3720
    %5273 = vmatpush.bf16.msra.mxu0 %v3712
    %5274 = vmatpush.bf16.msra.mxu0 %v3704
    %5275 = vmatpush.bf16.msra.mxu0 %v3696
    %5276 = vmatpush.bf16.msra.mxu0 %v3688
    %5277 = vmatpush.bf16.msra.mxu0 %v3680
    %5278 = vmatmul.bf16.gmra.mxu0 %v5074
    %v5279 = vpop.f32.mrf.mxu0
    %v5280 = vadd.f32 %v5267, %v5279
    %v5281 = vpop.f32.mrf.mxu0
    %5282 = vdwg.mxu0
    %v5283 = vadd.f32 %v5098, %v2308
    %v5284 = vadd.f32 %v5124, %v2321
    %v5285 = vadd.f32 %v5150, %v2334
    %v5286 = vadd.f32 %v5176, %v2347
    %v5287 = vadd.f32 %v5202, %v4079
    %v5288 = vadd.f32 %v5228, %v4080
    %v5289 = vadd.f32 %v5254, %v4081
    %v5290 = vadd.f32 %v5280, %v4082
    %v5295 = vrot.slane %v5287, 7
    %v5296 = vrot.slane %v5288, 7
    %v5297 = vrot.slane %v5289, 7
    %v5298 = vrot.slane %v5290, 7
    %v5303 = vsel %vm3093, %v5283, %v5295
    %v5304 = vsel %vm3093, %v5284, %v5296
    %v5305 = vsel %vm3093, %v5285, %v5297
    %v5306 = vsel %vm3093, %v5286, %v5298
    %v5307 = vxor.u32 %v5303, 2147483648
    %v5308 = vmul.f32 %v5307, 1.442695
    %v5309 = vpow.pop %v5308
    %v5310 = vadd.f32 %v5309, 1.0
    %v5311 = vrcp.pop %v5310
    %v5312 = vmul.f32 %v5310, %v5311
    %v5313 = vsub.f32 1.0, %v5312
    %v5314 = vmul.f32 %v5311, %v5313
    %v5315 = vadd.f32 %v5311, %v5314
    %vm5316 = vweird.f32 %v5310
    %vm5317 = vweird.f32 %v5311
    %vm5318 = vmor %vm5316, %vm5317
    %v5319 = vsel %vm5318, %v5311, %v5315
    %v5320 = vand.u32 2147483647, %v5310
    %vm5321 = vcmp.eq.f32.partialorder %v5320, 8.507059e+37
    %v5322 = vand.u32 %v5310, 2147483648
    %v5323 = vor.u32 1.1754944e-38, %v5322
    %v5324 = vsel %vm5321, %v5323, %v5319
    %v5325 = vmul.f32 1.0, %v5324
    %v5326 = vxor.u32 %v5304, 2147483648
    %v5327 = vmul.f32 %v5326, 1.442695
    %v5328 = vpow.pop %v5327
    %v5329 = vadd.f32 %v5328, 1.0
    %v5330 = vrcp.pop %v5329
    %v5331 = vmul.f32 %v5329, %v5330
    %v5332 = vsub.f32 1.0, %v5331
    %v5333 = vmul.f32 %v5330, %v5332
    %v5334 = vadd.f32 %v5330, %v5333
    %vm5335 = vweird.f32 %v5329
    %vm5336 = vweird.f32 %v5330
    %vm5337 = vmor %vm5335, %vm5336
    %v5338 = vsel %vm5337, %v5330, %v5334
    %v5339 = vand.u32 2147483647, %v5329
    %vm5340 = vcmp.eq.f32.partialorder %v5339, 8.507059e+37
    %v5341 = vand.u32 %v5329, 2147483648
    %v5342 = vor.u32 1.1754944e-38, %v5341
    %v5343 = vsel %vm5340, %v5342, %v5338
    %v5344 = vmul.f32 1.0, %v5343
    %v5345 = vtanh.pop %v5305
    %v5346 = vxor.u32 %v5306, 2147483648
    %v5347 = vmul.f32 %v5346, 1.442695
    %v5348 = vpow.pop %v5347
    %v5349 = vadd.f32 %v5348, 1.0
    %v5350 = vrcp.pop %v5349
    %v5351 = vmul.f32 %v5349, %v5350
    %v5352 = vsub.f32 1.0, %v5351
    %v5353 = vmul.f32 %v5350, %v5352
    %v5354 = vadd.f32 %v5350, %v5353
    %vm5355 = vweird.f32 %v5349
    %vm5356 = vweird.f32 %v5350
    %vm5357 = vmor %vm5355, %vm5356
    %v5358 = vsel %vm5357, %v5350, %v5354
    %v5359 = vand.u32 2147483647, %v5349
    %vm5360 = vcmp.eq.f32.partialorder %v5359, 8.507059e+37
    %v5361 = vand.u32 %v5349, 2147483648
    %v5362 = vor.u32 1.1754944e-38, %v5361
    %v5363 = vsel %vm5360, %v5362, %v5358
    %v5364 = vmul.f32 1.0, %v5363
    %v5365 = vmul.f32 %v5344, %v5067
    %v5366 = vmul.f32 %v5325, %v5345
    %v5367 = vadd.f32 %v5365, %v5366
    %v5368 = vtanh.pop %v5367
    %v5369 = vmul.f32 %v5364, %v5368
    %v5371 = vrot.slane %v5369, 1
    %v5373 = vpack.c.bf16 %v5369, %v5369
    %v5374 = vpack.c.bf16 %v5371, %v5371
    %5375 = vmatpush.bf16.msra.mxu0 %v3665
    %5376 = vmatpush.bf16.msra.mxu0 %v3657
    %5377 = vmatpush.bf16.msra.mxu0 %v3649
    %5378 = vmatpush.bf16.msra.mxu0 %v3641
    %5379 = vmatpush.bf16.msra.mxu0 %v3633
    %5380 = vmatpush.bf16.msra.mxu0 %v3625
    %5381 = vmatpush.bf16.msra.mxu0 %v3617
    %5382 = vmatpush.bf16.msra.mxu0 %v3609
    %5383 = vmatmul.bf16.gmra.mxu0 %v5373
    %v5384 = vpop.f32.mrf.mxu0
    %v5385 = vadd.f32 0.0, %v5384
    %v5386 = vpop.f32.mrf.mxu0
    %5387 = vdwg.mxu0
    %5388 = vmatpush.bf16.msra.mxu0 %v3729
    %5389 = vmatpush.bf16.msra.mxu0 %v3721
    %5390 = vmatpush.bf16.msra.mxu0 %v3713
    %5391 = vmatpush.bf16.msra.mxu0 %v3705
    %5392 = vmatpush.bf16.msra.mxu0 %v3697
    %5393 = vmatpush.bf16.msra.mxu0 %v3689
    %5394 = vmatpush.bf16.msra.mxu0 %v3681
    %5395 = vmatpush.bf16.msra.mxu0 %v3673
    %5396 = vmatmul.bf16.gmra.mxu0 %v5374
    %v5397 = vpop.f32.mrf.mxu0
    %v5398 = vadd.f32 %v5385, %v5397
    %v5399 = vpop.f32.mrf.mxu0
    %5400 = vdwg.mxu0
    %5401 = vmatpush.bf16.msra.mxu0 %v3666
    %5402 = vmatpush.bf16.msra.mxu0 %v3658
    %5403 = vmatpush.bf16.msra.mxu0 %v3650
    %5404 = vmatpush.bf16.msra.mxu0 %v3642
    %5405 = vmatpush.bf16.msra.mxu0 %v3634
    %5406 = vmatpush.bf16.msra.mxu0 %v3626
    %5407 = vmatpush.bf16.msra.mxu0 %v3618
    %5408 = vmatpush.bf16.msra.mxu0 %v3610
    %5409 = vmatmul.bf16.gmra.mxu0 %v5373
    %v5410 = vpop.f32.mrf.mxu0
    %v5411 = vadd.f32 0.0, %v5410
    %v5412 = vpop.f32.mrf.mxu0
    %5413 = vdwg.mxu0
    %5414 = vmatpush.bf16.msra.mxu0 %v3730
    %5415 = vmatpush.bf16.msra.mxu0 %v3722
    %5416 = vmatpush.bf16.msra.mxu0 %v3714
    %5417 = vmatpush.bf16.msra.mxu0 %v3706
    %5418 = vmatpush.bf16.msra.mxu0 %v3698
    %5419 = vmatpush.bf16.msra.mxu0 %v3690
    %5420 = vmatpush.bf16.msra.mxu0 %v3682
    %5421 = vmatpush.bf16.msra.mxu0 %v3674
    %5422 = vmatmul.bf16.gmra.mxu0 %v5374
    %v5423 = vpop.f32.mrf.mxu0
    %v5424 = vadd.f32 %v5411, %v5423
    %v5425 = vpop.f32.mrf.mxu0
    %5426 = vdwg.mxu0
    %5427 = vmatpush.bf16.msra.mxu0 %v3667
    %5428 = vmatpush.bf16.msra.mxu0 %v3659
    %5429 = vmatpush.bf16.msra.mxu0 %v3651
    %5430 = vmatpush.bf16.msra.mxu0 %v3643
    %5431 = vmatpush.bf16.msra.mxu0 %v3635
    %5432 = vmatpush.bf16.msra.mxu0 %v3627
    %5433 = vmatpush.bf16.msra.mxu0 %v3619
    %5434 = vmatpush.bf16.msra.mxu0 %v3611
    %5435 = vmatmul.bf16.gmra.mxu0 %v5373
    %v5436 = vpop.f32.mrf.mxu0
    %v5437 = vadd.f32 0.0, %v5436
    %v5438 = vpop.f32.mrf.mxu0
    %5439 = vdwg.mxu0
    %5440 = vmatpush.bf16.msra.mxu0 %v3731
    %5441 = vmatpush.bf16.msra.mxu0 %v3723
    %5442 = vmatpush.bf16.msra.mxu0 %v3715
    %5443 = vmatpush.bf16.msra.mxu0 %v3707
    %5444 = vmatpush.bf16.msra.mxu0 %v3699
    %5445 = vmatpush.bf16.msra.mxu0 %v3691
    %5446 = vmatpush.bf16.msra.mxu0 %v3683
    %5447 = vmatpush.bf16.msra.mxu0 %v3675
    %5448 = vmatmul.bf16.gmra.mxu0 %v5374
    %v5449 = vpop.f32.mrf.mxu0
    %v5450 = vadd.f32 %v5437, %v5449
    %v5451 = vpop.f32.mrf.mxu0
    %5452 = vdwg.mxu0
    %5453 = vmatpush.bf16.msra.mxu0 %v3668
    %5454 = vmatpush.bf16.msra.mxu0 %v3660
    %5455 = vmatpush.bf16.msra.mxu0 %v3652
    %5456 = vmatpush.bf16.msra.mxu0 %v3644
    %5457 = vmatpush.bf16.msra.mxu0 %v3636
    %5458 = vmatpush.bf16.msra.mxu0 %v3628
    %5459 = vmatpush.bf16.msra.mxu0 %v3620
    %5460 = vmatpush.bf16.msra.mxu0 %v3612
    %5461 = vmatmul.bf16.gmra.mxu0 %v5373
    %v5462 = vpop.f32.mrf.mxu0
    %v5463 = vadd.f32 0.0, %v5462
    %v5464 = vpop.f32.mrf.mxu0
    %5465 = vdwg.mxu0
    %5466 = vmatpush.bf16.msra.mxu0 %v3732
    %5467 = vmatpush.bf16.msra.mxu0 %v3724
    %5468 = vmatpush.bf16.msra.mxu0 %v3716
    %5469 = vmatpush.bf16.msra.mxu0 %v3708
    %5470 = vmatpush.bf16.msra.mxu0 %v3700
    %5471 = vmatpush.bf16.msra.mxu0 %v3692
    %5472 = vmatpush.bf16.msra.mxu0 %v3684
    %5473 = vmatpush.bf16.msra.mxu0 %v3676
    %5474 = vmatmul.bf16.gmra.mxu0 %v5374
    %v5475 = vpop.f32.mrf.mxu0
    %v5476 = vadd.f32 %v5463, %v5475
    %v5477 = vpop.f32.mrf.mxu0
    %5478 = vdwg.mxu0
    %5479 = vmatpush.bf16.msra.mxu0 %v3669
    %5480 = vmatpush.bf16.msra.mxu0 %v3661
    %5481 = vmatpush.bf16.msra.mxu0 %v3653
    %5482 = vmatpush.bf16.msra.mxu0 %v3645
    %5483 = vmatpush.bf16.msra.mxu0 %v3637
    %5484 = vmatpush.bf16.msra.mxu0 %v3629
    %5485 = vmatpush.bf16.msra.mxu0 %v3621
    %5486 = vmatpush.bf16.msra.mxu0 %v3613
    %5487 = vmatmul.bf16.gmra.mxu0 %v5373
    %v5488 = vpop.f32.mrf.mxu0
    %v5489 = vadd.f32 0.0, %v5488
    %v5490 = vpop.f32.mrf.mxu0
    %5491 = vdwg.mxu0
    %5492 = vmatpush.bf16.msra.mxu0 %v3733
    %5493 = vmatpush.bf16.msra.mxu0 %v3725
    %5494 = vmatpush.bf16.msra.mxu0 %v3717
    %5495 = vmatpush.bf16.msra.mxu0 %v3709
    %5496 = vmatpush.bf16.msra.mxu0 %v3701
    %5497 = vmatpush.bf16.msra.mxu0 %v3693
    %5498 = vmatpush.bf16.msra.mxu0 %v3685
    %5499 = vmatpush.bf16.msra.mxu0 %v3677
    %5500 = vmatmul.bf16.gmra.mxu0 %v5374
    %v5501 = vpop.f32.mrf.mxu0
    %v5502 = vadd.f32 %v5489, %v5501
    %v5503 = vpop.f32.mrf.mxu0
    %5504 = vdwg.mxu0
    %5505 = vmatpush.bf16.msra.mxu0 %v3670
    %5506 = vmatpush.bf16.msra.mxu0 %v3662
    %5507 = vmatpush.bf16.msra.mxu0 %v3654
    %5508 = vmatpush.bf16.msra.mxu0 %v3646
    %5509 = vmatpush.bf16.msra.mxu0 %v3638
    %5510 = vmatpush.bf16.msra.mxu0 %v3630
    %5511 = vmatpush.bf16.msra.mxu0 %v3622
    %5512 = vmatpush.bf16.msra.mxu0 %v3614
    %5513 = vmatmul.bf16.gmra.mxu0 %v5373
    %v5514 = vpop.f32.mrf.mxu0
    %v5515 = vadd.f32 0.0, %v5514
    %v5516 = vpop.f32.mrf.mxu0
    %5517 = vdwg.mxu0
    %5518 = vmatpush.bf16.msra.mxu0 %v3734
    %5519 = vmatpush.bf16.msra.mxu0 %v3726
    %5520 = vmatpush.bf16.msra.mxu0 %v3718
    %5521 = vmatpush.bf16.msra.mxu0 %v3710
    %5522 = vmatpush.bf16.msra.mxu0 %v3702
    %5523 = vmatpush.bf16.msra.mxu0 %v3694
    %5524 = vmatpush.bf16.msra.mxu0 %v3686
    %5525 = vmatpush.bf16.msra.mxu0 %v3678
    %5526 = vmatmul.bf16.gmra.mxu0 %v5374
    %v5527 = vpop.f32.mrf.mxu0
    %v5528 = vadd.f32 %v5515, %v5527
    %v5529 = vpop.f32.mrf.mxu0
    %5530 = vdwg.mxu0
    %5531 = vmatpush.bf16.msra.mxu0 %v3671
    %5532 = vmatpush.bf16.msra.mxu0 %v3663
    %5533 = vmatpush.bf16.msra.mxu0 %v3655
    %5534 = vmatpush.bf16.msra.mxu0 %v3647
    %5535 = vmatpush.bf16.msra.mxu0 %v3639
    %5536 = vmatpush.bf16.msra.mxu0 %v3631
    %5537 = vmatpush.bf16.msra.mxu0 %v3623
    %5538 = vmatpush.bf16.msra.mxu0 %v3615
    %5539 = vmatmul.bf16.gmra.mxu0 %v5373
    %v5540 = vpop.f32.mrf.mxu0
    %v5541 = vadd.f32 0.0, %v5540
    %v5542 = vpop.f32.mrf.mxu0
    %5543 = vdwg.mxu0
    %5544 = vmatpush.bf16.msra.mxu0 %v3735
    %5545 = vmatpush.bf16.msra.mxu0 %v3727
    %5546 = vmatpush.bf16.msra.mxu0 %v3719
    %5547 = vmatpush.bf16.msra.mxu0 %v3711
    %5548 = vmatpush.bf16.msra.mxu0 %v3703
    %5549 = vmatpush.bf16.msra.mxu0 %v3695
    %5550 = vmatpush.bf16.msra.mxu0 %v3687
    %5551 = vmatpush.bf16.msra.mxu0 %v3679
    %5552 = vmatmul.bf16.gmra.mxu0 %v5374
    %v5553 = vpop.f32.mrf.mxu0
    %v5554 = vadd.f32 %v5541, %v5553
    %v5555 = vpop.f32.mrf.mxu0
    %5556 = vdwg.mxu0
    %5557 = vmatpush.bf16.msra.mxu0 %v3672
    %5558 = vmatpush.bf16.msra.mxu0 %v3664
    %5559 = vmatpush.bf16.msra.mxu0 %v3656
    %5560 = vmatpush.bf16.msra.mxu0 %v3648
    %5561 = vmatpush.bf16.msra.mxu0 %v3640
    %5562 = vmatpush.bf16.msra.mxu0 %v3632
    %5563 = vmatpush.bf16.msra.mxu0 %v3624
    %5564 = vmatpush.bf16.msra.mxu0 %v3616
    %5565 = vmatmul.bf16.gmra.mxu0 %v5373
    %v5566 = vpop.f32.mrf.mxu0
    %v5567 = vadd.f32 0.0, %v5566
    %v5568 = vpop.f32.mrf.mxu0
    %5569 = vdwg.mxu0
    %5570 = vmatpush.bf16.msra.mxu0 %v3736
    %5571 = vmatpush.bf16.msra.mxu0 %v3728
    %5572 = vmatpush.bf16.msra.mxu0 %v3720
    %5573 = vmatpush.bf16.msra.mxu0 %v3712
    %5574 = vmatpush.bf16.msra.mxu0 %v3704
    %5575 = vmatpush.bf16.msra.mxu0 %v3696
    %5576 = vmatpush.bf16.msra.mxu0 %v3688
    %5577 = vmatpush.bf16.msra.mxu0 %v3680
    %5578 = vmatmul.bf16.gmra.mxu0 %v5374
    %v5579 = vpop.f32.mrf.mxu0
    %v5580 = vadd.f32 %v5567, %v5579
    %v5581 = vpop.f32.mrf.mxu0
    %5582 = vdwg.mxu0
    %v5583 = vadd.f32 %v5398, %v2648
    %v5584 = vadd.f32 %v5424, %v2661
    %v5585 = vadd.f32 %v5450, %v2674
    %v5586 = vadd.f32 %v5476, %v2687
    %v5587 = vadd.f32 %v5502, %v4079
    %v5588 = vadd.f32 %v5528, %v4080
    %v5589 = vadd.f32 %v5554, %v4081
    %v5590 = vadd.f32 %v5580, %v4082
    %v5595 = vrot.slane %v5587, 7
    %v5596 = vrot.slane %v5588, 7
    %v5597 = vrot.slane %v5589, 7
    %v5598 = vrot.slane %v5590, 7
    %v5603 = vsel %vm3093, %v5583, %v5595
    %v5604 = vsel %vm3093, %v5584, %v5596
    %v5605 = vsel %vm3093, %v5585, %v5597
    %v5606 = vsel %vm3093, %v5586, %v5598
    %v5607 = vxor.u32 %v5603, 2147483648
    %v5608 = vmul.f32 %v5607, 1.442695
    %v5609 = vpow.pop %v5608
    %v5610 = vadd.f32 %v5609, 1.0
    %v5611 = vrcp.pop %v5610
    %v5612 = vmul.f32 %v5610, %v5611
    %v5613 = vsub.f32 1.0, %v5612
    %v5614 = vmul.f32 %v5611, %v5613
    %v5615 = vadd.f32 %v5611, %v5614
    %vm5616 = vweird.f32 %v5610
    %vm5617 = vweird.f32 %v5611
    %vm5618 = vmor %vm5616, %vm5617
    %v5619 = vsel %vm5618, %v5611, %v5615
    %v5620 = vand.u32 2147483647, %v5610
    %vm5621 = vcmp.eq.f32.partialorder %v5620, 8.507059e+37
    %v5622 = vand.u32 %v5610, 2147483648
    %v5623 = vor.u32 1.1754944e-38, %v5622
    %v5624 = vsel %vm5621, %v5623, %v5619
    %v5625 = vmul.f32 1.0, %v5624
    %v5626 = vxor.u32 %v5604, 2147483648
    %v5627 = vmul.f32 %v5626, 1.442695
    %v5628 = vpow.pop %v5627
    %v5629 = vadd.f32 %v5628, 1.0
    %v5630 = vrcp.pop %v5629
    %v5631 = vmul.f32 %v5629, %v5630
    %v5632 = vsub.f32 1.0, %v5631
    %v5633 = vmul.f32 %v5630, %v5632
    %v5634 = vadd.f32 %v5630, %v5633
    %vm5635 = vweird.f32 %v5629
    %vm5636 = vweird.f32 %v5630
    %vm5637 = vmor %vm5635, %vm5636
    %v5638 = vsel %vm5637, %v5630, %v5634
    %v5639 = vand.u32 2147483647, %v5629
    %vm5640 = vcmp.eq.f32.partialorder %v5639, 8.507059e+37
    %v5641 = vand.u32 %v5629, 2147483648
    %v5642 = vor.u32 1.1754944e-38, %v5641
    %v5643 = vsel %vm5640, %v5642, %v5638
    %v5644 = vmul.f32 1.0, %v5643
    %v5645 = vtanh.pop %v5605
    %v5646 = vxor.u32 %v5606, 2147483648
    %v5647 = vmul.f32 %v5646, 1.442695
    %v5648 = vpow.pop %v5647
    %v5649 = vadd.f32 %v5648, 1.0
    %v5650 = vrcp.pop %v5649
    %v5651 = vmul.f32 %v5649, %v5650
    %v5652 = vsub.f32 1.0, %v5651
    %v5653 = vmul.f32 %v5650, %v5652
    %v5654 = vadd.f32 %v5650, %v5653
    %vm5655 = vweird.f32 %v5649
    %vm5656 = vweird.f32 %v5650
    %vm5657 = vmor %vm5655, %vm5656
    %v5658 = vsel %vm5657, %v5650, %v5654
    %v5659 = vand.u32 2147483647, %v5649
    %vm5660 = vcmp.eq.f32.partialorder %v5659, 8.507059e+37
    %v5661 = vand.u32 %v5649, 2147483648
    %v5662 = vor.u32 1.1754944e-38, %v5661
    %v5663 = vsel %vm5660, %v5662, %v5658
    %v5664 = vmul.f32 1.0, %v5663
    %v5665 = vmul.f32 %v5644, %v5367
    %v5666 = vmul.f32 %v5625, %v5645
    %v5667 = vadd.f32 %v5665, %v5666
    %v5668 = vtanh.pop %v5667
    %v5669 = vmul.f32 %v5664, %v5668
    %v5671 = vrot.slane %v5669, 1
    %v5673 = vpack.c.bf16 %v5669, %v5669
    %v5674 = vpack.c.bf16 %v5671, %v5671
    %5675 = vmatpush.bf16.msra.mxu0 %v3665
    %5676 = vmatpush.bf16.msra.mxu0 %v3657
    %5677 = vmatpush.bf16.msra.mxu0 %v3649
    %5678 = vmatpush.bf16.msra.mxu0 %v3641
    %5679 = vmatpush.bf16.msra.mxu0 %v3633
    %5680 = vmatpush.bf16.msra.mxu0 %v3625
    %5681 = vmatpush.bf16.msra.mxu0 %v3617
    %5682 = vmatpush.bf16.msra.mxu0 %v3609
    %5683 = vmatmul.bf16.gmra.mxu0 %v5673
    %v5684 = vpop.f32.mrf.mxu0
    %v5685 = vadd.f32 0.0, %v5684
    %v5686 = vpop.f32.mrf.mxu0
    %5687 = vdwg.mxu0
    %5688 = vmatpush.bf16.msra.mxu0 %v3729
    %5689 = vmatpush.bf16.msra.mxu0 %v3721
    %5690 = vmatpush.bf16.msra.mxu0 %v3713
    %5691 = vmatpush.bf16.msra.mxu0 %v3705
    %5692 = vmatpush.bf16.msra.mxu0 %v3697
    %5693 = vmatpush.bf16.msra.mxu0 %v3689
    %5694 = vmatpush.bf16.msra.mxu0 %v3681
    %5695 = vmatpush.bf16.msra.mxu0 %v3673
    %5696 = vmatmul.bf16.gmra.mxu0 %v5674
    %v5697 = vpop.f32.mrf.mxu0
    %v5698 = vadd.f32 %v5685, %v5697
    %v5699 = vpop.f32.mrf.mxu0
    %5700 = vdwg.mxu0
    %5701 = vmatpush.bf16.msra.mxu0 %v3666
    %5702 = vmatpush.bf16.msra.mxu0 %v3658
    %5703 = vmatpush.bf16.msra.mxu0 %v3650
    %5704 = vmatpush.bf16.msra.mxu0 %v3642
    %5705 = vmatpush.bf16.msra.mxu0 %v3634
    %5706 = vmatpush.bf16.msra.mxu0 %v3626
    %5707 = vmatpush.bf16.msra.mxu0 %v3618
    %5708 = vmatpush.bf16.msra.mxu0 %v3610
    %5709 = vmatmul.bf16.gmra.mxu0 %v5673
    %v5710 = vpop.f32.mrf.mxu0
    %v5711 = vadd.f32 0.0, %v5710
    %v5712 = vpop.f32.mrf.mxu0
    %5713 = vdwg.mxu0
    %5714 = vmatpush.bf16.msra.mxu0 %v3730
    %5715 = vmatpush.bf16.msra.mxu0 %v3722
    %5716 = vmatpush.bf16.msra.mxu0 %v3714
    %5717 = vmatpush.bf16.msra.mxu0 %v3706
    %5718 = vmatpush.bf16.msra.mxu0 %v3698
    %5719 = vmatpush.bf16.msra.mxu0 %v3690
    %5720 = vmatpush.bf16.msra.mxu0 %v3682
    %5721 = vmatpush.bf16.msra.mxu0 %v3674
    %5722 = vmatmul.bf16.gmra.mxu0 %v5674
    %v5723 = vpop.f32.mrf.mxu0
    %v5724 = vadd.f32 %v5711, %v5723
    %v5725 = vpop.f32.mrf.mxu0
    %5726 = vdwg.mxu0
    %5727 = vmatpush.bf16.msra.mxu0 %v3667
    %5728 = vmatpush.bf16.msra.mxu0 %v3659
    %5729 = vmatpush.bf16.msra.mxu0 %v3651
    %5730 = vmatpush.bf16.msra.mxu0 %v3643
    %5731 = vmatpush.bf16.msra.mxu0 %v3635
    %5732 = vmatpush.bf16.msra.mxu0 %v3627
    %5733 = vmatpush.bf16.msra.mxu0 %v3619
    %5734 = vmatpush.bf16.msra.mxu0 %v3611
    %5735 = vmatmul.bf16.gmra.mxu0 %v5673
    %v5736 = vpop.f32.mrf.mxu0
    %v5737 = vadd.f32 0.0, %v5736
    %v5738 = vpop.f32.mrf.mxu0
    %5739 = vdwg.mxu0
    %5740 = vmatpush.bf16.msra.mxu0 %v3731
    %5741 = vmatpush.bf16.msra.mxu0 %v3723
    %5742 = vmatpush.bf16.msra.mxu0 %v3715
    %5743 = vmatpush.bf16.msra.mxu0 %v3707
    %5744 = vmatpush.bf16.msra.mxu0 %v3699
    %5745 = vmatpush.bf16.msra.mxu0 %v3691
    %5746 = vmatpush.bf16.msra.mxu0 %v3683
    %5747 = vmatpush.bf16.msra.mxu0 %v3675
    %5748 = vmatmul.bf16.gmra.mxu0 %v5674
    %v5749 = vpop.f32.mrf.mxu0
    %v5750 = vadd.f32 %v5737, %v5749
    %v5751 = vpop.f32.mrf.mxu0
    %5752 = vdwg.mxu0
    %5753 = vmatpush.bf16.msra.mxu0 %v3668
    %5754 = vmatpush.bf16.msra.mxu0 %v3660
    %5755 = vmatpush.bf16.msra.mxu0 %v3652
    %5756 = vmatpush.bf16.msra.mxu0 %v3644
    %5757 = vmatpush.bf16.msra.mxu0 %v3636
    %5758 = vmatpush.bf16.msra.mxu0 %v3628
    %5759 = vmatpush.bf16.msra.mxu0 %v3620
    %5760 = vmatpush.bf16.msra.mxu0 %v3612
    %5761 = vmatmul.bf16.gmra.mxu0 %v5673
    %v5762 = vpop.f32.mrf.mxu0
    %v5763 = vadd.f32 0.0, %v5762
    %v5764 = vpop.f32.mrf.mxu0
    %5765 = vdwg.mxu0
    %5766 = vmatpush.bf16.msra.mxu0 %v3732
    %5767 = vmatpush.bf16.msra.mxu0 %v3724
    %5768 = vmatpush.bf16.msra.mxu0 %v3716
    %5769 = vmatpush.bf16.msra.mxu0 %v3708
    %5770 = vmatpush.bf16.msra.mxu0 %v3700
    %5771 = vmatpush.bf16.msra.mxu0 %v3692
    %5772 = vmatpush.bf16.msra.mxu0 %v3684
    %5773 = vmatpush.bf16.msra.mxu0 %v3676
    %5774 = vmatmul.bf16.gmra.mxu0 %v5674
    %v5775 = vpop.f32.mrf.mxu0
    %v5776 = vadd.f32 %v5763, %v5775
    %v5777 = vpop.f32.mrf.mxu0
    %5778 = vdwg.mxu0
    %5779 = vmatpush.bf16.msra.mxu0 %v3669
    %5780 = vmatpush.bf16.msra.mxu0 %v3661
    %5781 = vmatpush.bf16.msra.mxu0 %v3653
    %5782 = vmatpush.bf16.msra.mxu0 %v3645
    %5783 = vmatpush.bf16.msra.mxu0 %v3637
    %5784 = vmatpush.bf16.msra.mxu0 %v3629
    %5785 = vmatpush.bf16.msra.mxu0 %v3621
    %5786 = vmatpush.bf16.msra.mxu0 %v3613
    %5787 = vmatmul.bf16.gmra.mxu0 %v5673
    %v5788 = vpop.f32.mrf.mxu0
    %v5789 = vadd.f32 0.0, %v5788
    %v5790 = vpop.f32.mrf.mxu0
    %5791 = vdwg.mxu0
    %5792 = vmatpush.bf16.msra.mxu0 %v3733
    %5793 = vmatpush.bf16.msra.mxu0 %v3725
    %5794 = vmatpush.bf16.msra.mxu0 %v3717
    %5795 = vmatpush.bf16.msra.mxu0 %v3709
    %5796 = vmatpush.bf16.msra.mxu0 %v3701
    %5797 = vmatpush.bf16.msra.mxu0 %v3693
    %5798 = vmatpush.bf16.msra.mxu0 %v3685
    %5799 = vmatpush.bf16.msra.mxu0 %v3677
    %5800 = vmatmul.bf16.gmra.mxu0 %v5674
    %v5801 = vpop.f32.mrf.mxu0
    %v5802 = vadd.f32 %v5789, %v5801
    %v5803 = vpop.f32.mrf.mxu0
    %5804 = vdwg.mxu0
    %5805 = vmatpush.bf16.msra.mxu0 %v3670
    %5806 = vmatpush.bf16.msra.mxu0 %v3662
    %5807 = vmatpush.bf16.msra.mxu0 %v3654
    %5808 = vmatpush.bf16.msra.mxu0 %v3646
    %5809 = vmatpush.bf16.msra.mxu0 %v3638
    %5810 = vmatpush.bf16.msra.mxu0 %v3630
    %5811 = vmatpush.bf16.msra.mxu0 %v3622
    %5812 = vmatpush.bf16.msra.mxu0 %v3614
    %5813 = vmatmul.bf16.gmra.mxu0 %v5673
    %v5814 = vpop.f32.mrf.mxu0
    %v5815 = vadd.f32 0.0, %v5814
    %v5816 = vpop.f32.mrf.mxu0
    %5817 = vdwg.mxu0
    %5818 = vmatpush.bf16.msra.mxu0 %v3734
    %5819 = vmatpush.bf16.msra.mxu0 %v3726
    %5820 = vmatpush.bf16.msra.mxu0 %v3718
    %5821 = vmatpush.bf16.msra.mxu0 %v3710
    %5822 = vmatpush.bf16.msra.mxu0 %v3702
    %5823 = vmatpush.bf16.msra.mxu0 %v3694
    %5824 = vmatpush.bf16.msra.mxu0 %v3686
    %5825 = vmatpush.bf16.msra.mxu0 %v3678
    %5826 = vmatmul.bf16.gmra.mxu0 %v5674
    %v5827 = vpop.f32.mrf.mxu0
    %v5828 = vadd.f32 %v5815, %v5827
    %v5829 = vpop.f32.mrf.mxu0
    %5830 = vdwg.mxu0
    %5831 = vmatpush.bf16.msra.mxu0 %v3671
    %5832 = vmatpush.bf16.msra.mxu0 %v3663
    %5833 = vmatpush.bf16.msra.mxu0 %v3655
    %5834 = vmatpush.bf16.msra.mxu0 %v3647
    %5835 = vmatpush.bf16.msra.mxu0 %v3639
    %5836 = vmatpush.bf16.msra.mxu0 %v3631
    %5837 = vmatpush.bf16.msra.mxu0 %v3623
    %5838 = vmatpush.bf16.msra.mxu0 %v3615
    %5839 = vmatmul.bf16.gmra.mxu0 %v5673
    %v5840 = vpop.f32.mrf.mxu0
    %v5841 = vadd.f32 0.0, %v5840
    %v5842 = vpop.f32.mrf.mxu0
    %5843 = vdwg.mxu0
    %5844 = vmatpush.bf16.msra.mxu0 %v3735
    %5845 = vmatpush.bf16.msra.mxu0 %v3727
    %5846 = vmatpush.bf16.msra.mxu0 %v3719
    %5847 = vmatpush.bf16.msra.mxu0 %v3711
    %5848 = vmatpush.bf16.msra.mxu0 %v3703
    %5849 = vmatpush.bf16.msra.mxu0 %v3695
    %5850 = vmatpush.bf16.msra.mxu0 %v3687
    %5851 = vmatpush.bf16.msra.mxu0 %v3679
    %5852 = vmatmul.bf16.gmra.mxu0 %v5674
    %v5853 = vpop.f32.mrf.mxu0
    %v5854 = vadd.f32 %v5841, %v5853
    %v5855 = vpop.f32.mrf.mxu0
    %5856 = vdwg.mxu0
    %5857 = vmatpush.bf16.msra.mxu0 %v3672
    %5858 = vmatpush.bf16.msra.mxu0 %v3664
    %5859 = vmatpush.bf16.msra.mxu0 %v3656
    %5860 = vmatpush.bf16.msra.mxu0 %v3648
    %5861 = vmatpush.bf16.msra.mxu0 %v3640
    %5862 = vmatpush.bf16.msra.mxu0 %v3632
    %5863 = vmatpush.bf16.msra.mxu0 %v3624
    %5864 = vmatpush.bf16.msra.mxu0 %v3616
    %5865 = vmatmul.bf16.gmra.mxu0 %v5673
    %v5866 = vpop.f32.mrf.mxu0
    %v5867 = vadd.f32 0.0, %v5866
    %v5868 = vpop.f32.mrf.mxu0
    %5869 = vdwg.mxu0
    %5870 = vmatpush.bf16.msra.mxu0 %v3736
    %5871 = vmatpush.bf16.msra.mxu0 %v3728
    %5872 = vmatpush.bf16.msra.mxu0 %v3720
    %5873 = vmatpush.bf16.msra.mxu0 %v3712
    %5874 = vmatpush.bf16.msra.mxu0 %v3704
    %5875 = vmatpush.bf16.msra.mxu0 %v3696
    %5876 = vmatpush.bf16.msra.mxu0 %v3688
    %5877 = vmatpush.bf16.msra.mxu0 %v3680
    %5878 = vmatmul.bf16.gmra.mxu0 %v5674
    %v5879 = vpop.f32.mrf.mxu0
    %v5880 = vadd.f32 %v5867, %v5879
    %v5881 = vpop.f32.mrf.mxu0
    %5882 = vdwg.mxu0
    %v5883 = vadd.f32 %v5698, %v2988
    %v5884 = vadd.f32 %v5724, %v3001
    %v5885 = vadd.f32 %v5750, %v3014
    %v5886 = vadd.f32 %v5776, %v3027
    %v5887 = vadd.f32 %v5802, %v4079
    %v5888 = vadd.f32 %v5828, %v4080
    %v5889 = vadd.f32 %v5854, %v4081
    %v5890 = vadd.f32 %v5880, %v4082
    %v5895 = vrot.slane %v5887, 7
    %v5896 = vrot.slane %v5888, 7
    %v5897 = vrot.slane %v5889, 7
    %v5898 = vrot.slane %v5890, 7
    %v5903 = vsel %vm3093, %v5883, %v5895
    %v5904 = vsel %vm3093, %v5884, %v5896
    %v5905 = vsel %vm3093, %v5885, %v5897
    %v5906 = vsel %vm3093, %v5886, %v5898
    %v5907 = vxor.u32 %v5903, 2147483648
    %v5908 = vmul.f32 %v5907, 1.442695
    %v5909 = vpow.pop %v5908
    %v5910 = vadd.f32 %v5909, 1.0
    %v5911 = vrcp.pop %v5910
    %v5912 = vmul.f32 %v5910, %v5911
    %v5913 = vsub.f32 1.0, %v5912
    %v5914 = vmul.f32 %v5911, %v5913
    %v5915 = vadd.f32 %v5911, %v5914
    %vm5916 = vweird.f32 %v5910
    %vm5917 = vweird.f32 %v5911
    %vm5918 = vmor %vm5916, %vm5917
    %v5919 = vsel %vm5918, %v5911, %v5915
    %v5920 = vand.u32 2147483647, %v5910
    %vm5921 = vcmp.eq.f32.partialorder %v5920, 8.507059e+37
    %v5922 = vand.u32 %v5910, 2147483648
    %v5923 = vor.u32 1.1754944e-38, %v5922
    %v5924 = vsel %vm5921, %v5923, %v5919
    %v5925 = vmul.f32 1.0, %v5924
    %v5926 = vxor.u32 %v5904, 2147483648
    %v5927 = vmul.f32 %v5926, 1.442695
    %v5928 = vpow.pop %v5927
    %v5929 = vadd.f32 %v5928, 1.0
    %v5930 = vrcp.pop %v5929
    %v5931 = vmul.f32 %v5929, %v5930
    %v5932 = vsub.f32 1.0, %v5931
    %v5933 = vmul.f32 %v5930, %v5932
    %v5934 = vadd.f32 %v5930, %v5933
    %vm5935 = vweird.f32 %v5929
    %vm5936 = vweird.f32 %v5930
    %vm5937 = vmor %vm5935, %vm5936
    %v5938 = vsel %vm5937, %v5930, %v5934
    %v5939 = vand.u32 2147483647, %v5929
    %vm5940 = vcmp.eq.f32.partialorder %v5939, 8.507059e+37
    %v5941 = vand.u32 %v5929, 2147483648
    %v5942 = vor.u32 1.1754944e-38, %v5941
    %v5943 = vsel %vm5940, %v5942, %v5938
    %v5944 = vmul.f32 1.0, %v5943
    %v5945 = vtanh.pop %v5905
    %v5946 = vxor.u32 %v5906, 2147483648
    %v5947 = vmul.f32 %v5946, 1.442695
    %v5948 = vpow.pop %v5947
    %v5949 = vadd.f32 %v5948, 1.0
    %v5950 = vrcp.pop %v5949
    %v5951 = vmul.f32 %v5949, %v5950
    %v5952 = vsub.f32 1.0, %v5951
    %v5953 = vmul.f32 %v5950, %v5952
    %v5954 = vadd.f32 %v5950, %v5953
    %vm5955 = vweird.f32 %v5949
    %vm5956 = vweird.f32 %v5950
    %vm5957 = vmor %vm5955, %vm5956
    %v5958 = vsel %vm5957, %v5950, %v5954
    %v5959 = vand.u32 2147483647, %v5949
    %vm5960 = vcmp.eq.f32.partialorder %v5959, 8.507059e+37
    %v5961 = vand.u32 %v5949, 2147483648
    %v5962 = vor.u32 1.1754944e-38, %v5961
    %v5963 = vsel %vm5960, %v5962, %v5958
    %v5964 = vmul.f32 1.0, %v5963
    %v5965 = vmul.f32 %v5944, %v5667
    %v5966 = vmul.f32 %v5925, %v5945
    %v5967 = vadd.f32 %v5965, %v5966
    %v5968 = vtanh.pop %v5967
    %v5969 = vmul.f32 %v5964, %v5968
    %v5971 = vrot.slane %v5969, 1
    %v5973 = vpack.c.bf16 %v5969, %v5969
    %v5974 = vpack.c.bf16 %v5971, %v5971
    %5975 = vmatpush.bf16.msra.mxu0 %v3669
    %5976 = vmatpush.bf16.msra.mxu0 %v3661
    %5977 = vmatpush.bf16.msra.mxu0 %v3653
    %5978 = vmatpush.bf16.msra.mxu0 %v3645
    %5979 = vmatpush.bf16.msra.mxu0 %v3637
    %5980 = vmatpush.bf16.msra.mxu0 %v3629
    %5981 = vmatpush.bf16.msra.mxu0 %v3621
    %5982 = vmatpush.bf16.msra.mxu0 %v3613
    %5983 = vmatmul.bf16.gmra.mxu0 %v5973
    %v5984 = vpop.f32.mrf.mxu0
    %v5985 = vadd.f32 0.0, %v5984
    %v5986 = vpop.f32.mrf.mxu0
    %5987 = vdwg.mxu0
    %5988 = vmatpush.bf16.msra.mxu0 %v3733
    %5989 = vmatpush.bf16.msra.mxu0 %v3725
    %5990 = vmatpush.bf16.msra.mxu0 %v3717
    %5991 = vmatpush.bf16.msra.mxu0 %v3709
    %5992 = vmatpush.bf16.msra.mxu0 %v3701
    %5993 = vmatpush.bf16.msra.mxu0 %v3693
    %5994 = vmatpush.bf16.msra.mxu0 %v3685
    %5995 = vmatpush.bf16.msra.mxu0 %v3677
    %5996 = vmatmul.bf16.gmra.mxu0 %v5974
    %v5997 = vpop.f32.mrf.mxu0
    %v5998 = vadd.f32 %v5985, %v5997
    %v5999 = vpop.f32.mrf.mxu0
    %6000 = vdwg.mxu0
    %6001 = vmatpush.bf16.msra.mxu0 %v3670
    %6002 = vmatpush.bf16.msra.mxu0 %v3662
    %6003 = vmatpush.bf16.msra.mxu0 %v3654
    %6004 = vmatpush.bf16.msra.mxu0 %v3646
    %6005 = vmatpush.bf16.msra.mxu0 %v3638
    %6006 = vmatpush.bf16.msra.mxu0 %v3630
    %6007 = vmatpush.bf16.msra.mxu0 %v3622
    %6008 = vmatpush.bf16.msra.mxu0 %v3614
    %6009 = vmatmul.bf16.gmra.mxu0 %v5973
    %v6010 = vpop.f32.mrf.mxu0
    %v6011 = vadd.f32 0.0, %v6010
    %v6012 = vpop.f32.mrf.mxu0
    %6013 = vdwg.mxu0
    %6014 = vmatpush.bf16.msra.mxu0 %v3734
    %6015 = vmatpush.bf16.msra.mxu0 %v3726
    %6016 = vmatpush.bf16.msra.mxu0 %v3718
    %6017 = vmatpush.bf16.msra.mxu0 %v3710
    %6018 = vmatpush.bf16.msra.mxu0 %v3702
    %6019 = vmatpush.bf16.msra.mxu0 %v3694
    %6020 = vmatpush.bf16.msra.mxu0 %v3686
    %6021 = vmatpush.bf16.msra.mxu0 %v3678
    %6022 = vmatmul.bf16.gmra.mxu0 %v5974
    %v6023 = vpop.f32.mrf.mxu0
    %v6024 = vadd.f32 %v6011, %v6023
    %v6025 = vpop.f32.mrf.mxu0
    %6026 = vdwg.mxu0
    %6027 = vmatpush.bf16.msra.mxu0 %v3671
    %6028 = vmatpush.bf16.msra.mxu0 %v3663
    %6029 = vmatpush.bf16.msra.mxu0 %v3655
    %6030 = vmatpush.bf16.msra.mxu0 %v3647
    %6031 = vmatpush.bf16.msra.mxu0 %v3639
    %6032 = vmatpush.bf16.msra.mxu0 %v3631
    %6033 = vmatpush.bf16.msra.mxu0 %v3623
    %6034 = vmatpush.bf16.msra.mxu0 %v3615
    %6035 = vmatmul.bf16.gmra.mxu0 %v5973
    %v6036 = vpop.f32.mrf.mxu0
    %v6037 = vadd.f32 0.0, %v6036
    %v6038 = vpop.f32.mrf.mxu0
    %6039 = vdwg.mxu0
    %6040 = vmatpush.bf16.msra.mxu0 %v3735
    %6041 = vmatpush.bf16.msra.mxu0 %v3727
    %6042 = vmatpush.bf16.msra.mxu0 %v3719
    %6043 = vmatpush.bf16.msra.mxu0 %v3711
    %6044 = vmatpush.bf16.msra.mxu0 %v3703
    %6045 = vmatpush.bf16.msra.mxu0 %v3695
    %6046 = vmatpush.bf16.msra.mxu0 %v3687
    %6047 = vmatpush.bf16.msra.mxu0 %v3679
    %6048 = vmatmul.bf16.gmra.mxu0 %v5974
    %v6049 = vpop.f32.mrf.mxu0
    %v6050 = vadd.f32 %v6037, %v6049
    %v6051 = vpop.f32.mrf.mxu0
    %6052 = vdwg.mxu0
    %6053 = vmatpush.bf16.msra.mxu0 %v3672
    %6054 = vmatpush.bf16.msra.mxu0 %v3664
    %6055 = vmatpush.bf16.msra.mxu0 %v3656
    %6056 = vmatpush.bf16.msra.mxu0 %v3648
    %6057 = vmatpush.bf16.msra.mxu0 %v3640
    %6058 = vmatpush.bf16.msra.mxu0 %v3632
    %6059 = vmatpush.bf16.msra.mxu0 %v3624
    %6060 = vmatpush.bf16.msra.mxu0 %v3616
    %6061 = vmatmul.bf16.gmra.mxu0 %v5973
    %v6062 = vpop.f32.mrf.mxu0
    %v6063 = vadd.f32 0.0, %v6062
    %v6064 = vpop.f32.mrf.mxu0
    %6065 = vdwg.mxu0
    %6066 = vmatpush.bf16.msra.mxu0 %v3736
    %6067 = vmatpush.bf16.msra.mxu0 %v3728
    %6068 = vmatpush.bf16.msra.mxu0 %v3720
    %6069 = vmatpush.bf16.msra.mxu0 %v3712
    %6070 = vmatpush.bf16.msra.mxu0 %v3704
    %6071 = vmatpush.bf16.msra.mxu0 %v3696
    %6072 = vmatpush.bf16.msra.mxu0 %v3688
    %6073 = vmatpush.bf16.msra.mxu0 %v3680
    %6074 = vmatmul.bf16.gmra.mxu0 %v5974
    %v6075 = vpop.f32.mrf.mxu0
    %v6076 = vadd.f32 %v6063, %v6075
    %v6077 = vpop.f32.mrf.mxu0
    %6078 = vdwg.mxu0
    %v6079 = vadd.f32 %v5998, %v4079
    %v6080 = vadd.f32 %v6024, %v4080
    %v6081 = vadd.f32 %v6050, %v4081
    %v6082 = vadd.f32 %v6076, %v4082
    %v6083 = vxor.u32 %v6079, 2147483648
    %v6084 = vmul.f32 %v6083, 1.442695
    %v6085 = vpow.pop %v6084
    %v6086 = vadd.f32 %v6085, 1.0
    %v6087 = vrcp.pop %v6086
    %v6088 = vmul.f32 %v6086, %v6087
    %v6089 = vsub.f32 1.0, %v6088
    %v6090 = vmul.f32 %v6087, %v6089
    %v6091 = vadd.f32 %v6087, %v6090
    %vm6092 = vweird.f32 %v6086
    %vm6093 = vweird.f32 %v6087
    %vm6094 = vmor %vm6092, %vm6093
    %v6095 = vsel %vm6094, %v6087, %v6091
    %v6096 = vand.u32 2147483647, %v6086
    %vm6097 = vcmp.eq.f32.partialorder %v6096, 8.507059e+37
    %v6098 = vand.u32 %v6086, 2147483648
    %v6099 = vor.u32 1.1754944e-38, %v6098
    %v6100 = vsel %vm6097, %v6099, %v6095
    %v6101 = vmul.f32 1.0, %v6100
    %v6102 = vxor.u32 %v6080, 2147483648
    %v6103 = vmul.f32 %v6102, 1.442695
    %v6104 = vpow.pop %v6103
    %v6105 = vadd.f32 %v6104, 1.0
    %v6106 = vrcp.pop %v6105
    %v6107 = vmul.f32 %v6105, %v6106
    %v6108 = vsub.f32 1.0, %v6107
    %v6109 = vmul.f32 %v6106, %v6108
    %v6110 = vadd.f32 %v6106, %v6109
    %vm6111 = vweird.f32 %v6105
    %vm6112 = vweird.f32 %v6106
    %vm6113 = vmor %vm6111, %vm6112
    %v6114 = vsel %vm6113, %v6106, %v6110
    %v6115 = vand.u32 2147483647, %v6105
    %vm6116 = vcmp.eq.f32.partialorder %v6115, 8.507059e+37
    %v6117 = vand.u32 %v6105, 2147483648
    %v6118 = vor.u32 1.1754944e-38, %v6117
    %v6119 = vsel %vm6116, %v6118, %v6114
    %v6120 = vmul.f32 1.0, %v6119
    %v6121 = vtanh.pop %v6081
    %v6122 = vxor.u32 %v6082, 2147483648
    %v6123 = vmul.f32 %v6122, 1.442695
    %v6124 = vpow.pop %v6123
    %v6125 = vadd.f32 %v6124, 1.0
    %v6126 = vrcp.pop %v6125
    %v6127 = vmul.f32 %v6125, %v6126
    %v6128 = vsub.f32 1.0, %v6127
    %v6129 = vmul.f32 %v6126, %v6128
    %v6130 = vadd.f32 %v6126, %v6129
    %vm6131 = vweird.f32 %v6125
    %vm6132 = vweird.f32 %v6126
    %vm6133 = vmor %vm6131, %vm6132
    %v6134 = vsel %vm6133, %v6126, %v6130
    %v6135 = vand.u32 2147483647, %v6125
    %vm6136 = vcmp.eq.f32.partialorder %v6135, 8.507059e+37
    %v6137 = vand.u32 %v6125, 2147483648
    %v6138 = vor.u32 1.1754944e-38, %v6137
    %v6139 = vsel %vm6136, %v6138, %v6134
    %v6140 = vmul.f32 1.0, %v6139
    %v6142 = vrot.slane %v5967, 1
    %v6144 = vmul.f32 %v6120, %v6142
    %v6145 = vmul.f32 %v6101, %v6121
    %v6146 = vadd.f32 %v6144, %v6145
    %v6147 = vtanh.pop %v6146
    %v6148 = vmul.f32 %v6140, %v6147
    %v6149 = vld [vmem:[%s7] sm:$0xff]
    %v6150 = vld [vmem:[%s7 + $0x8] sm:$0xff]
    %v6151 = vld [vmem:[%s7 + $0x10] sm:$0xff]
    %v6152 = vld [vmem:[%s7 + $0x18] sm:$0xff]
    %v6153 = vld [vmem:[%s7 + $0x20] sm:$0xff]
    %v6154 = vld [vmem:[%s7 + $0x28] sm:$0xff]
    %v6155 = vld [vmem:[%s7 + $0x30] sm:$0xff]
    %v6156 = vld [vmem:[%s7 + $0x38] sm:$0xff]
    %v6157 = vld [vmem:[%s7 + $0x40] sm:$0xff]
    %v6158 = vld [vmem:[%s7 + $0x48] sm:$0xff]
    %v6159 = vld [vmem:[%s7 + $0x50] sm:$0xff]
    %v6160 = vld [vmem:[%s7 + $0x58] sm:$0xff]
    %v6161 = vld [vmem:[%s7 + $0x60] sm:$0xff]
    %v6162 = vld [vmem:[%s7 + $0x68] sm:$0xff]
    %v6163 = vld [vmem:[%s7 + $0x70] sm:$0xff]
    %v6164 = vld [vmem:[%s7 + $0x78] sm:$0xff]
    %v6165 = vld [vmem:[%s8] sm:$0x1]
    %6166 = vmatpush.msra.mxu0 %v6164
    %6167 = vmatpush.msra.mxu0 %v6163
    %6168 = vmatpush.msra.mxu0 %v6162
    %6169 = vmatpush.msra.mxu0 %v6161
    %6170 = vmatpush.msra.mxu0 %v6160
    %6171 = vmatpush.msra.mxu0 %v6159
    %6172 = vmatpush.msra.mxu0 %v6158
    %6173 = vmatpush.msra.mxu0 %v6157
    %6174 = vmatpush.msra.mxu0 %v6156
    %6175 = vmatpush.msra.mxu0 %v6155
    %6176 = vmatpush.msra.mxu0 %v6154
    %6177 = vmatpush.msra.mxu0 %v6153
    %6178 = vmatpush.msra.mxu0 %v6152
    %6179 = vmatpush.msra.mxu0 %v6151
    %6180 = vmatpush.msra.mxu0 %v6150
    %6181 = vmatpush.msra.mxu0 %v6149
    %6182 = vmatmul.f32.gmra.mxu0 %v6148
    %v6183 = vpop.f32.mrf.mxu0
    %v6184 = vadd.f32 %v6165, %v6183
    %6185 = vdwg.mxu0
    %vm6186 = vcmask 8192
    %v6187 = vsel %vm6186, %v6184, -inf
    %6188 = vmax.xlane.f32.xlu0 %v6187
    %v6189 = vpop.xlane.xlu0 %6188
    %v6190 = vsub.f32 %v6184, %v6189
    %v6191 = vmul.f32 %v6190, 1.442695
    %v6192 = vpow.pop %v6191
    %v6193 = vsel %vm6186, %v6192, 0.0
    %6194 = vadd.xlane.f32.xlu0 %v6193
    %v6195 = vpop.xlane.xlu0 %6194
    %v6196 = vrcp.pop %v6195
    %v6197 = vmul.f32 %v6192, %v6196
    %6198 = vst.msk [vmem:[#allocation2] sm:$0x1] %vm6186, %v6197
    // Predicated region
    $region38: #{rcnn_forward.1} parent=1 // pred_check
      _
    $region39: #{rcnn_forward.1} parent=1 // pred_check_branch
      %6200 = sbr.rel (0) target = $region41
    $region40: #{rcnn_forward.1} parent=1 // pred_region
      %6202 = vsyncadd [#allocation3], 0
      %s6204 = sshll.u32 [#allocation2], 4
      %s6205 = int_to_ptr.vmem [resolvable:$true] %s6204
      %s6206 = sshll.u32 %s9, 4
      %s6207 = int_to_ptr.hbm [resolvable:$true] %s6206
      %6209 = dma.vmem_to_hbm [thread:$0]  %s6205, 16, %s6207, [#allocation3]
    $region41: #{rcnn_forward.1} parent=1 // pred_fallthru
      _
    // Predicated region
    $region42: #{rcnn_forward.1} parent=1 // pred_check
      _
    $region43: #{rcnn_forward.1} parent=1 // pred_check_branch
      %6211 = sbr.rel (0) target = $region45
    $region44: #{rcnn_forward.1} parent=1 // pred_region
      %6213 = dma.done [#allocation3], 16
    $region45: #{rcnn_forward.1} parent=1 // pred_fallthru
      _
    %6214 = vsyncpa [#allocation3], 1

</llo_original>
